<compile_context>
chip_gen: v5e
topology: v5e:2x2
jax: 0.10.0
libtpu: 0.0.40
codegen_flags: <defaults>
</compile_context>

<pallas_src>
import jax
import jax.numpy as jnp
from jax.experimental import pallas as pl
from jax.experimental.pallas import tpu as pltpu

# Small-but-consistent configuration.  Spatial 9x4 and the 38 extra private
# planes are fixed by the architecture (fc1 = channels*9*4, conv1 in-channels
# = channels+38); channels/blocks are scaled down for a small run.
B, H, W = 2, 9, 4
CH, BLOCKS = 16, 2
X2C = 38
CIN = CH + X2C
HW = H * W
R = B * HW
PAD = 8                                 # zero halo rows above/below the activation
BN_EPS = 1e-5

TAPS = [(dy, dx) for dy in (-1, 0, 1) for dx in (-1, 0, 1)]   # == (kh, kw) order

_VMEM = pl.BlockSpec(memory_space=pltpu.MemorySpace.VMEM)


# ---------------------------------------------------------------------------
# Kernel 1: fused trunk (conv1 + ReLU + all ResNet blocks)
# ---------------------------------------------------------------------------
def _trunk_kernel(x_ref, mask_ref, c1w_ref, c1b_ref,
                  bw1_ref, bs1_ref, bb1_ref, bw2_ref, bs2_ref, bb2_ref,
                  o_ref, act_scr):
    def conv3x3(src_ref, w_cat):
        # 3x3 / pad=1 conv as an in-kernel im2col: 9 statically-offset sublane
        # window loads from a zero-haloed buffer, per-tap edge masks (VPU),
        # lane-concatenated into one (R, 9*Cin) patch -> a single MXU matmul
        # with f32 accumulation.  Nothing round-trips through HBM.
        cols = []
        for t, (dy, dx) in enumerate(TAPS):
            win = src_ref[pl.ds(PAD + dy * W + dx, R), :]     # (R, Cin) f32
            if not (dy == 0 and dx == 0):                     # center tap always valid
                win = win * mask_ref[t]                       # zero H/W-edge rows
            cols.append(win.astype(jnp.bfloat16))
        patch = jnp.concatenate(cols, axis=1)                 # (R, 9*Cin) bf16
        return jnp.dot(patch, w_cat, preferred_element_type=jnp.float32)

    # Zero the activation halo once; stores below only touch rows [PAD, PAD+R).
    act_scr[...] = jnp.zeros_like(act_scr)

    # conv1 + bias + ReLU (f32 epilogue).  Input halo is zero-padded by the wrapper.
    h = jnp.maximum(conv3x3(x_ref, c1w_ref[...]) + c1b_ref[...], 0.0)

    # ResNet blocks: conv-BN-ReLU-conv-BN + residual, ReLU.  BN is eval-mode
    # scale/shift folded at prep time; all elementwise math in f32.
    for blk in range(BLOCKS):
        act_scr[pl.ds(PAD, R), :] = h
        y = conv3x3(act_scr, bw1_ref[blk])
        y = jnp.maximum(y * bs1_ref[blk] + bb1_ref[blk], 0.0)
        act_scr[pl.ds(PAD, R), :] = y
        y = conv3x3(act_scr, bw2_ref[blk])
        h = jnp.maximum(y * bs2_ref[blk] + bb2_ref[blk] + h, 0.0)

    o_ref[...] = h.astype(o_ref.dtype)                        # (B*HW, CH) bf16


# ---------------------------------------------------------------------------
# Kernel 2: fused heads (fc1/fc1_aux + ReLU + fc2/fc2_aux, lane-dense output)
# ---------------------------------------------------------------------------
def _heads_kernel(x_ref, w1_ref, b1_ref, w2_ref, b2_ref, o_ref):
    h = jnp.dot(x_ref[...], w1_ref[...],
                preferred_element_type=jnp.float32) + b1_ref[...]
    h = jnp.maximum(h, 0.0)
    o_ref[...] = jnp.dot(h.astype(jnp.bfloat16), w2_ref[...],
                         preferred_element_type=jnp.float32) + b2_ref[...]


# ---------------------------------------------------------------------------
# Wrapper: ValueHead.forward(x1, x2) -> (v, v_aux)
# ---------------------------------------------------------------------------
def forward_value_head(kp, x1_nchw, x2_nchw):
    # NCHW -> NHWC -> (B*H*W, CIN); channels land on the 128-lane axis.
    x1 = jnp.transpose(x1_nchw, (0, 2, 3, 1))
    x2 = jnp.transpose(x2_nchw, (0, 2, 3, 1))
    xin = jnp.concatenate([x1, x2], axis=-1).reshape(R, CIN).astype(jnp.float32)
    # Zero halo rows so the in-kernel windowed loads never index out of range.
    xpad = jnp.zeros((R + 2 * PAD, CIN), jnp.float32).at[PAD:PAD + R].set(xin)

    trunk = pl.pallas_call(
        _trunk_kernel,
        out_shape=jax.ShapeDtypeStruct((R, CH), jnp.bfloat16),
        in_specs=[_VMEM] * 10,
        out_specs=_VMEM,
        scratch_shapes=[pltpu.VMEM((R + 2 * PAD, CH), jnp.float32)],
    )(xpad, kp['mask'], kp['c1w'], kp['c1b'],
      kp['bw1'], kp['bs1'], kp['bb1'], kp['bw2'], kp['bs2'], kp['bb2'])

    # (B*HW, CH) -> (B, HW*CH) is a free row-major reshape; the NCHW flatten
    # permutation is already folded into the fc1/fc1_aux weight rows.
    flat = trunk.reshape(B, HW * CH)

    heads = pl.pallas_call(
        _heads_kernel,
        out_shape=jax.ShapeDtypeStruct((B, 128), jnp.float32),
        in_specs=[_VMEM] * 5,
        out_specs=_VMEM,
    )(flat, kp['w1'], kp['b1'], kp['w2'], kp['b2'])

    v = heads[:, 0:1]        # fc2     : 256 -> 1
    v_aux = heads[:, 1:5]    # fc2_aux : 256 -> 4
    return v, v_aux


# ---------------------------------------------------------------------------
# Prep: tap edge masks + kernel-layout parameters
# ---------------------------------------------------------------------------
def _build_tap_masks(batch, h, w):
    """(9, R, 1) f32; mask[t][r] == 1 iff conv tap t reads an in-bounds pixel."""
    r = batch * h * w
    idx = jnp.arange(r)
    hh = (idx % (h * w)) // w
    ww = idx % w
    masks = []
    for dy, dx in TAPS:
        valid = (hh + dy >= 0) & (hh + dy < h) & (ww + dx >= 0) & (ww + dx < w)
        masks.append(valid.astype(jnp.float32).reshape(r, 1))
    return jnp.stack(masks)


def prepare_kernel_params(params, batch):
    bf16, f32 = jnp.bfloat16, jnp.float32
    kp = {'mask': _build_tap_masks(batch, H, W)}

    # Conv weights folded for the single-matmul im2col: (3,3,Cin,Cout) -> (9*Cin, Cout),
    # row index t*Cin + ci with t = kh*3 + kw (matches TAPS / patch column order).
    kp['c1w'] = params['conv1']['w'].reshape(9 * CIN, CH).astype(bf16)
    kp['c1b'] = params['conv1']['b'].reshape(1, CH).astype(f32)

    kp['bw1'] = jnp.stack([bp['conv1_w'].reshape(9 * CH, CH)
                           for bp in params['blocks']]).astype(bf16)
    kp['bw2'] = jnp.stack([bp['conv2_w'].reshape(9 * CH, CH)
                           for bp in params['blocks']]).astype(bf16)
    kp['bs1'] = jnp.stack([bp['bn1_scale'].reshape(1, CH)
                           for bp in params['blocks']]).astype(f32)
    kp['bb1'] = jnp.stack([bp['bn1_shift'].reshape(1, CH)
                           for bp in params['blocks']]).astype(f32)
    kp['bs2'] = jnp.stack([bp['bn2_scale'].reshape(1, CH)
                           for bp in params['blocks']]).astype(f32)
    kp['bb2'] = jnp.stack([bp['bn2_shift'].reshape(1, CH)
                           for bp in params['blocks']]).astype(f32)

    # Fold the NCHW flatten order into the fc1/fc1_aux rows so the heads
    # kernel consumes the NHWC-flattened activation directly.
    s = jnp.arange(HW)
    c = jnp.arange(CH)
    perm = (c[None, :] * HW + s[:, None]).reshape(-1)   # nhwc row -> nchw row
    kp['w1'] = jnp.concatenate([params['fc1']['w'][perm],
                                params['fc1_aux']['w'][perm]],
                               axis=1).astype(bf16)                  # (576, 512)
    kp['b1'] = jnp.concatenate([params['fc1']['b'],
                                params['fc1_aux']['b']]).reshape(1, 512).astype(f32)

    # fc2 (256->1) and fc2_aux (256->4) folded into one lane-dense (512,128)
    # matmul: column 0 = v, columns 1..4 = v_aux, remaining lanes zero.
    w2 = jnp.zeros((512, 128), f32)
    w2 = w2.at[:256, 0:1].set(params['fc2']['w'])
    w2 = w2.at[256:, 1:5].set(params['fc2_aux']['w'])
    kp['w2'] = w2.astype(bf16)
    b2 = jnp.zeros((1, 128), f32)
    b2 = b2.at[0, 0].set(params['fc2']['b'][0])
    b2 = b2.at[0, 1:5].set(params['fc2_aux']['b'])
    kp['b2'] = b2
    return kp


# ---------------------------------------------------------------------------
# Deterministic synthetic parameters (no checkpoint load)
# ---------------------------------------------------------------------------
def init_params(key):
    keys = iter(jax.random.split(key, 128))

    def conv(cin, cout, bias=True):
        w_ = jax.random.normal(next(keys), (3, 3, cin, cout),
                               jnp.float32) / jnp.sqrt(9.0 * cin)
        d = {'w': w_}
        if bias:
            d['b'] = 0.1 * jax.random.normal(next(keys), (cout,), jnp.float32)
        return d

    def linear(fin, fout):
        w_ = jax.random.normal(next(keys), (fin, fout),
                               jnp.float32) / jnp.sqrt(float(fin))
        b_ = 0.1 * jax.random.normal(next(keys), (fout,), jnp.float32)
        return {'w': w_, 'b': b_}

    def bn(c):   # eval-mode BatchNorm folded to scale/shift
        gamma = 1.0 + 0.1 * jax.random.normal(next(keys), (c,), jnp.float32)
        beta = 0.1 * jax.random.normal(next(keys), (c,), jnp.float32)
        mean = 0.1 * jax.random.normal(next(keys), (c,), jnp.float32)
        var = 0.5 + 0.5 * jnp.abs(jax.random.normal(next(keys), (c,), jnp.float32))
        scale = gamma / jnp.sqrt(var + BN_EPS)
        shift = beta - mean * scale
        return scale, shift

    def resblock(c):
        s1, b1 = bn(c)
        s2, b2 = bn(c)
        return {'conv1_w': conv(c, c, bias=False)['w'],
                'bn1_scale': s1, 'bn1_shift': b1,
                'conv2_w': conv(c, c, bias=False)['w'],
                'bn2_scale': s2, 'bn2_shift': b2}

    return {
        'conv1': conv(CIN, CH),
        'blocks': [resblock(CH) for _ in range(BLOCKS)],
        'fc1': linear(CH * HW, 256),
        'fc2': linear(256, 1),
        'fc1_aux': linear(CH * HW, 256),
        'fc2_aux': linear(256, 4),
    }


# ---------------------------------------------------------------------------
# Pure-JAX NCHW reference (correctness check only)
# ---------------------------------------------------------------------------
def _ref_forward(params, x1, x2):
    def conv(x, w_hwio, bias=None, scale=None, shift=None):
        w_oihw = jnp.transpose(w_hwio, (3, 2, 0, 1))
        y = jax.lax.conv_general_dilated(
            x, w_oihw, (1, 1), ((1, 1), (1, 1)),
            dimension_numbers=('NCHW', 'OIHW', 'NCHW'))
        if bias is not None:
            y = y + bias.reshape(1, -1, 1, 1)
        if scale is not None:
            y = y * scale.reshape(1, -1, 1, 1) + shift.reshape(1, -1, 1, 1)
        return y

    x = jax.nn.relu(conv(jnp.concatenate([x1, x2], axis=1),
                         params['conv1']['w'], bias=params['conv1']['b']))
    for bp in params['blocks']:
        h = jax.nn.relu(conv(x, bp['conv1_w'],
                             scale=bp['bn1_scale'], shift=bp['bn1_shift']))
        o = conv(h, bp['conv2_w'], scale=bp['bn2_scale'], shift=bp['bn2_shift'])
        x = jax.nn.relu(o + x)
    flat = x.reshape(x.shape[0], -1)
    v = jax.nn.relu(flat @ params['fc1']['w'] + params['fc1']['b'])
    v = v @ params['fc2']['w'] + params['fc2']['b']
    va = jax.nn.relu(flat @ params['fc1_aux']['w'] + params['fc1_aux']['b'])
    va = va @ params['fc2_aux']['w'] + params['fc2_aux']['b']
    return v, va


if __name__ == "__main__":
    key = jax.random.PRNGKey(0)
    kp_key, k1, k2 = jax.random.split(key, 3)
    params = init_params(kp_key)
    x1 = jax.random.normal(k1, (B, CH, H, W), jnp.float32)
    x2 = jax.random.normal(k2, (B, X2C, H, W), jnp.float32)

    kparams = prepare_kernel_params(params, B)
    v, v_aux = jax.jit(forward_value_head)(kparams, x1, x2)
    jax.block_until_ready((v, v_aux))
    assert v.shape == (B, 1) and v_aux.shape == (B, 4)

    v_ref, va_ref = _ref_forward(params, x1, x2)
    # bf16 MXU operands (f32 accumulation) vs an f32 reference -> 5e-2 tol.
    assert jnp.allclose(v, v_ref, rtol=5e-2, atol=5e-2), "value mismatch"
    assert jnp.allclose(v_aux, va_ref, rtol=5e-2, atol=5e-2), "value_aux mismatch"

    print("KERNEL_OK")
</pallas_src>

<mosaic_0001>
module attributes {stable_mosaic.version = 11 : i64} {
  func.func @_trunk_kernel(%arg0: memref<88x54xf32, #tpu.memory_space<vmem>>, %arg1: memref<9x72x1xf32, #tpu.memory_space<vmem>>, %arg2: memref<486x16xbf16, #tpu.memory_space<vmem>>, %arg3: memref<1x16xf32, #tpu.memory_space<vmem>>, %arg4: memref<2x144x16xbf16, #tpu.memory_space<vmem>>, %arg5: memref<2x1x16xf32, #tpu.memory_space<vmem>>, %arg6: memref<2x1x16xf32, #tpu.memory_space<vmem>>, %arg7: memref<2x144x16xbf16, #tpu.memory_space<vmem>>, %arg8: memref<2x1x16xf32, #tpu.memory_space<vmem>>, %arg9: memref<2x1x16xf32, #tpu.memory_space<vmem>>, %arg10: memref<72x16xbf16, #tpu.memory_space<vmem>>, %arg11: memref<88x16xf32, #tpu.memory_space<vmem>>) attributes {dimension_semantics = [], scalar_prefetch = 0 : i64, scratch_operands = 1 : i64, tpu.core_type = #tpu.core_type<tc>} {
    %cst = arith.constant 0.000000e+00 : f32
    %0 = vector.broadcast %cst : f32 to vector<88x16xf32>
    %c0 = arith.constant 0 : index
    %c0_0 = arith.constant 0 : index
    %1 = vector.load %arg11[%c0, %c0_0] : memref<88x16xf32, #tpu.memory_space<vmem>>, vector<88x16xf32>
    tpu.vector_store %arg11[%c0, %c0_0], %0 {strides = array<i32>} : memref<88x16xf32, #tpu.memory_space<vmem>>, vector<88x16xf32>,
    %c0_1 = arith.constant 0 : index
    %c0_2 = arith.constant 0 : index
    %2 = vector.load %arg2[%c0_1, %c0_2] : memref<486x16xbf16, #tpu.memory_space<vmem>>, vector<486x16xbf16>
    %c3 = arith.constant 3 : index
    %c0_3 = arith.constant 0 : index
    %3 = vector.load %arg0[%c3, %c0_3] : memref<88x54xf32, #tpu.memory_space<vmem>>, vector<72x54xf32>
    %c0_4 = arith.constant 0 : index
    %c0_5 = arith.constant 0 : index
    %c0_6 = arith.constant 0 : index
    %4 = vector.load %arg1[%c0_4, %c0_5, %c0_6] : memref<9x72x1xf32, #tpu.memory_space<vmem>>, vector<1x72x1xf32>
    %5 = vector.shape_cast %4 : vector<1x72x1xf32> to vector<72x1xf32>
    %6 = vector.broadcast %5 : vector<72x1xf32> to vector<72x54xf32>
    %7 = arith.mulf %3, %6 : vector<72x54xf32>
    %8 = arith.truncf %7 : vector<72x54xf32> to vector<72x54xbf16>
    %c4 = arith.constant 4 : index
    %c0_7 = arith.constant 0 : index
    %9 = vector.load %arg0[%c4, %c0_7] : memref<88x54xf32, #tpu.memory_space<vmem>>, vector<72x54xf32>
    %c1 = arith.constant 1 : index
    %c0_8 = arith.constant 0 : index
    %c0_9 = arith.constant 0 : index
    %10 = vector.load %arg1[%c1, %c0_8, %c0_9] : memref<9x72x1xf32, #tpu.memory_space<vmem>>, vector<1x72x1xf32>
    %11 = vector.shape_cast %10 : vector<1x72x1xf32> to vector<72x1xf32>
    %12 = vector.broadcast %11 : vector<72x1xf32> to vector<72x54xf32>
    %13 = arith.mulf %9, %12 : vector<72x54xf32>
    %14 = arith.truncf %13 : vector<72x54xf32> to vector<72x54xbf16>
    %c5 = arith.constant 5 : index
    %c0_10 = arith.constant 0 : index
    %15 = vector.load %arg0[%c5, %c0_10] : memref<88x54xf32, #tpu.memory_space<vmem>>, vector<72x54xf32>
    %c2 = arith.constant 2 : index
    %c0_11 = arith.constant 0 : index
    %c0_12 = arith.constant 0 : index
    %16 = vector.load %arg1[%c2, %c0_11, %c0_12] : memref<9x72x1xf32, #tpu.memory_space<vmem>>, vector<1x72x1xf32>
    %17 = vector.shape_cast %16 : vector<1x72x1xf32> to vector<72x1xf32>
    %18 = vector.broadcast %17 : vector<72x1xf32> to vector<72x54xf32>
    %19 = arith.mulf %15, %18 : vector<72x54xf32>
    %20 = arith.truncf %19 : vector<72x54xf32> to vector<72x54xbf16>
    %c7 = arith.constant 7 : index
    %c0_13 = arith.constant 0 : index
    %21 = vector.load %arg0[%c7, %c0_13] : memref<88x54xf32, #tpu.memory_space<vmem>>, vector<72x54xf32>
    %c3_14 = arith.constant 3 : index
    %c0_15 = arith.constant 0 : index
    %c0_16 = arith.constant 0 : index
    %22 = vector.load %arg1[%c3_14, %c0_15, %c0_16] : memref<9x72x1xf32, #tpu.memory_space<vmem>>, vector<1x72x1xf32>
    %23 = vector.shape_cast %22 : vector<1x72x1xf32> to vector<72x1xf32>
    %24 = vector.broadcast %23 : vector<72x1xf32> to vector<72x54xf32>
    %25 = arith.mulf %21, %24 : vector<72x54xf32>
    %26 = arith.truncf %25 : vector<72x54xf32> to vector<72x54xbf16>
    %c8 = arith.constant 8 : index
    %c0_17 = arith.constant 0 : index
    %27 = vector.load %arg0[%c8, %c0_17] : memref<88x54xf32, #tpu.memory_space<vmem>>, vector<72x54xf32>
    %28 = arith.truncf %27 : vector<72x54xf32> to vector<72x54xbf16>
    %c9 = arith.constant 9 : index
    %c0_18 = arith.constant 0 : index
    %29 = vector.load %arg0[%c9, %c0_18] : memref<88x54xf32, #tpu.memory_space<vmem>>, vector<72x54xf32>
    %c5_19 = arith.constant 5 : index
    %c0_20 = arith.constant 0 : index
    %c0_21 = arith.constant 0 : index
    %30 = vector.load %arg1[%c5_19, %c0_20, %c0_21] : memref<9x72x1xf32, #tpu.memory_space<vmem>>, vector<1x72x1xf32>
    %31 = vector.shape_cast %30 : vector<1x72x1xf32> to vector<72x1xf32>
    %32 = vector.broadcast %31 : vector<72x1xf32> to vector<72x54xf32>
    %33 = arith.mulf %29, %32 : vector<72x54xf32>
    %34 = arith.truncf %33 : vector<72x54xf32> to vector<72x54xbf16>
    %c11 = arith.constant 11 : index
    %c0_22 = arith.constant 0 : index
    %35 = vector.load %arg0[%c11, %c0_22] : memref<88x54xf32, #tpu.memory_space<vmem>>, vector<72x54xf32>
    %c6 = arith.constant 6 : index
    %c0_23 = arith.constant 0 : index
    %c0_24 = arith.constant 0 : index
    %36 = vector.load %arg1[%c6, %c0_23, %c0_24] : memref<9x72x1xf32, #tpu.memory_space<vmem>>, vector<1x72x1xf32>
    %37 = vector.shape_cast %36 : vector<1x72x1xf32> to vector<72x1xf32>
    %38 = vector.broadcast %37 : vector<72x1xf32> to vector<72x54xf32>
    %39 = arith.mulf %35, %38 : vector<72x54xf32>
    %40 = arith.truncf %39 : vector<72x54xf32> to vector<72x54xbf16>
    %c12 = arith.constant 12 : index
    %c0_25 = arith.constant 0 : index
    %41 = vector.load %arg0[%c12, %c0_25] : memref<88x54xf32, #tpu.memory_space<vmem>>, vector<72x54xf32>
    %c7_26 = arith.constant 7 : index
    %c0_27 = arith.constant 0 : index
    %c0_28 = arith.constant 0 : index
    %42 = vector.load %arg1[%c7_26, %c0_27, %c0_28] : memref<9x72x1xf32, #tpu.memory_space<vmem>>, vector<1x72x1xf32>
    %43 = vector.shape_cast %42 : vector<1x72x1xf32> to vector<72x1xf32>
    %44 = vector.broadcast %43 : vector<72x1xf32> to vector<72x54xf32>
    %45 = arith.mulf %41, %44 : vector<72x54xf32>
    %46 = arith.truncf %45 : vector<72x54xf32> to vector<72x54xbf16>
    %c13 = arith.constant 13 : index
    %c0_29 = arith.constant 0 : index
    %47 = vector.load %arg0[%c13, %c0_29] : memref<88x54xf32, #tpu.memory_space<vmem>>, vector<72x54xf32>
    %c8_30 = arith.constant 8 : index
    %c0_31 = arith.constant 0 : index
    %c0_32 = arith.constant 0 : index
    %48 = vector.load %arg1[%c8_30, %c0_31, %c0_32] : memref<9x72x1xf32, #tpu.memory_space<vmem>>, vector<1x72x1xf32>
    %49 = vector.shape_cast %48 : vector<1x72x1xf32> to vector<72x1xf32>
    %50 = vector.broadcast %49 : vector<72x1xf32> to vector<72x54xf32>
    %51 = arith.mulf %47, %50 : vector<72x54xf32>
    %52 = arith.truncf %51 : vector<72x54xf32> to vector<72x54xbf16>
    %53 = tpu.concatenate %8, %14, %20, %26, %28, %34, %40, %46, %52 in 1 : vector<72x54xbf16>, vector<72x54xbf16>, vector<72x54xbf16>, vector<72x54xbf16>, vector<72x54xbf16>, vector<72x54xbf16>, vector<72x54xbf16>, vector<72x54xbf16>, vector<72x54xbf16> -> vector<72x486xbf16>
    %cst_33 = arith.constant dense<0.000000e+00> : vector<72x16xf32>
    %54 = tpu.matmul %53, %2, %cst_33 {dimension_numbers = #tpu.dot_dimension_numbers<[1], [0], [0], [1], [0, 0, 1, 1], [], []>} : vector<72x486xbf16>, vector<486x16xbf16>, vector<72x16xf32> -> vector<72x16xf32>
    %c0_34 = arith.constant 0 : index
    %c0_35 = arith.constant 0 : index
    %55 = vector.load %arg3[%c0_34, %c0_35] : memref<1x16xf32, #tpu.memory_space<vmem>>, vector<1x16xf32>
    %56 = vector.broadcast %55 : vector<1x16xf32> to vector<72x16xf32>
    %57 = arith.addf %54, %56 : vector<72x16xf32>
    %cst_36 = arith.constant 0.000000e+00 : f32
    %58 = vector.broadcast %cst_36 : f32 to vector<72x16xf32>
    %59 = arith.maximumf %57, %58 : vector<72x16xf32>
    %c8_37 = arith.constant 8 : index
    %c0_38 = arith.constant 0 : index
    %60 = vector.load %arg11[%c8_37, %c0_38] : memref<88x16xf32, #tpu.memory_space<vmem>>, vector<72x16xf32>
    tpu.vector_store %arg11[%c8_37, %c0_38], %59 {strides = array<i32>} : memref<88x16xf32, #tpu.memory_space<vmem>>, vector<72x16xf32>,
    %c0_39 = arith.constant 0 : index
    %c0_40 = arith.constant 0 : index
    %c0_41 = arith.constant 0 : index
    %61 = vector.load %arg4[%c0_39, %c0_40, %c0_41] : memref<2x144x16xbf16, #tpu.memory_space<vmem>>, vector<1x144x16xbf16>
    %62 = vector.shape_cast %61 : vector<1x144x16xbf16> to vector<144x16xbf16>
    %c3_42 = arith.constant 3 : index
    %c0_43 = arith.constant 0 : index
    %63 = vector.load %arg11[%c3_42, %c0_43] : memref<88x16xf32, #tpu.memory_space<vmem>>, vector<72x16xf32>
    %c0_44 = arith.constant 0 : index
    %c0_45 = arith.constant 0 : index
    %c0_46 = arith.constant 0 : index
    %64 = vector.load %arg1[%c0_44, %c0_45, %c0_46] : memref<9x72x1xf32, #tpu.memory_space<vmem>>, vector<1x72x1xf32>
    %65 = vector.shape_cast %64 : vector<1x72x1xf32> to vector<72x1xf32>
    %66 = vector.broadcast %65 : vector<72x1xf32> to vector<72x16xf32>
    %67 = arith.mulf %63, %66 : vector<72x16xf32>
    %68 = arith.truncf %67 : vector<72x16xf32> to vector<72x16xbf16>
    %c4_47 = arith.constant 4 : index
    %c0_48 = arith.constant 0 : index
    %69 = vector.load %arg11[%c4_47, %c0_48] : memref<88x16xf32, #tpu.memory_space<vmem>>, vector<72x16xf32>
    %c1_49 = arith.constant 1 : index
    %c0_50 = arith.constant 0 : index
    %c0_51 = arith.constant 0 : index
    %70 = vector.load %arg1[%c1_49, %c0_50, %c0_51] : memref<9x72x1xf32, #tpu.memory_space<vmem>>, vector<1x72x1xf32>
    %71 = vector.shape_cast %70 : vector<1x72x1xf32> to vector<72x1xf32>
    %72 = vector.broadcast %71 : vector<72x1xf32> to vector<72x16xf32>
    %73 = arith.mulf %69, %72 : vector<72x16xf32>
    %74 = arith.truncf %73 : vector<72x16xf32> to vector<72x16xbf16>
    %c5_52 = arith.constant 5 : index
    %c0_53 = arith.constant 0 : index
    %75 = vector.load %arg11[%c5_52, %c0_53] : memref<88x16xf32, #tpu.memory_space<vmem>>, vector<72x16xf32>
    %c2_54 = arith.constant 2 : index
    %c0_55 = arith.constant 0 : index
    %c0_56 = arith.constant 0 : index
    %76 = vector.load %arg1[%c2_54, %c0_55, %c0_56] : memref<9x72x1xf32, #tpu.memory_space<vmem>>, vector<1x72x1xf32>
    %77 = vector.shape_cast %76 : vector<1x72x1xf32> to vector<72x1xf32>
    %78 = vector.broadcast %77 : vector<72x1xf32> to vector<72x16xf32>
    %79 = arith.mulf %75, %78 : vector<72x16xf32>
    %80 = arith.truncf %79 : vector<72x16xf32> to vector<72x16xbf16>
    %c7_57 = arith.constant 7 : index
    %c0_58 = arith.constant 0 : index
    %81 = vector.load %arg11[%c7_57, %c0_58] : memref<88x16xf32, #tpu.memory_space<vmem>>, vector<72x16xf32>
    %c3_59 = arith.constant 3 : index
    %c0_60 = arith.constant 0 : index
    %c0_61 = arith.constant 0 : index
    %82 = vector.load %arg1[%c3_59, %c0_60, %c0_61] : memref<9x72x1xf32, #tpu.memory_space<vmem>>, vector<1x72x1xf32>
    %83 = vector.shape_cast %82 : vector<1x72x1xf32> to vector<72x1xf32>
    %84 = vector.broadcast %83 : vector<72x1xf32> to vector<72x16xf32>
    %85 = arith.mulf %81, %84 : vector<72x16xf32>
    %86 = arith.truncf %85 : vector<72x16xf32> to vector<72x16xbf16>
    %c8_62 = arith.constant 8 : index
    %c0_63 = arith.constant 0 : index
    %87 = vector.load %arg11[%c8_62, %c0_63] : memref<88x16xf32, #tpu.memory_space<vmem>>, vector<72x16xf32>
    %88 = arith.truncf %87 : vector<72x16xf32> to vector<72x16xbf16>
    %c9_64 = arith.constant 9 : index
    %c0_65 = arith.constant 0 : index
    %89 = vector.load %arg11[%c9_64, %c0_65] : memref<88x16xf32, #tpu.memory_space<vmem>>, vector<72x16xf32>
    %c5_66 = arith.constant 5 : index
    %c0_67 = arith.constant 0 : index
    %c0_68 = arith.constant 0 : index
    %90 = vector.load %arg1[%c5_66, %c0_67, %c0_68] : memref<9x72x1xf32, #tpu.memory_space<vmem>>, vector<1x72x1xf32>
    %91 = vector.shape_cast %90 : vector<1x72x1xf32> to vector<72x1xf32>
    %92 = vector.broadcast %91 : vector<72x1xf32> to vector<72x16xf32>
    %93 = arith.mulf %89, %92 : vector<72x16xf32>
    %94 = arith.truncf %93 : vector<72x16xf32> to vector<72x16xbf16>
    %c11_69 = arith.constant 11 : index
    %c0_70 = arith.constant 0 : index
    %95 = vector.load %arg11[%c11_69, %c0_70] : memref<88x16xf32, #tpu.memory_space<vmem>>, vector<72x16xf32>
    %c6_71 = arith.constant 6 : index
    %c0_72 = arith.constant 0 : index
    %c0_73 = arith.constant 0 : index
    %96 = vector.load %arg1[%c6_71, %c0_72, %c0_73] : memref<9x72x1xf32, #tpu.memory_space<vmem>>, vector<1x72x1xf32>
    %97 = vector.shape_cast %96 : vector<1x72x1xf32> to vector<72x1xf32>
    %98 = vector.broadcast %97 : vector<72x1xf32> to vector<72x16xf32>
    %99 = arith.mulf %95, %98 : vector<72x16xf32>
    %100 = arith.truncf %99 : vector<72x16xf32> to vector<72x16xbf16>
    %c12_74 = arith.constant 12 : index
    %c0_75 = arith.constant 0 : index
    %101 = vector.load %arg11[%c12_74, %c0_75] : memref<88x16xf32, #tpu.memory_space<vmem>>, vector<72x16xf32>
    %c7_76 = arith.constant 7 : index
    %c0_77 = arith.constant 0 : index
    %c0_78 = arith.constant 0 : index
    %102 = vector.load %arg1[%c7_76, %c0_77, %c0_78] : memref<9x72x1xf32, #tpu.memory_space<vmem>>, vector<1x72x1xf32>
    %103 = vector.shape_cast %102 : vector<1x72x1xf32> to vector<72x1xf32>
    %104 = vector.broadcast %103 : vector<72x1xf32> to vector<72x16xf32>
    %105 = arith.mulf %101, %104 : vector<72x16xf32>
    %106 = arith.truncf %105 : vector<72x16xf32> to vector<72x16xbf16>
    %c13_79 = arith.constant 13 : index
    %c0_80 = arith.constant 0 : index
    %107 = vector.load %arg11[%c13_79, %c0_80] : memref<88x16xf32, #tpu.memory_space<vmem>>, vector<72x16xf32>
    %c8_81 = arith.constant 8 : index
    %c0_82 = arith.constant 0 : index
    %c0_83 = arith.constant 0 : index
    %108 = vector.load %arg1[%c8_81, %c0_82, %c0_83] : memref<9x72x1xf32, #tpu.memory_space<vmem>>, vector<1x72x1xf32>
    %109 = vector.shape_cast %108 : vector<1x72x1xf32> to vector<72x1xf32>
    %110 = vector.broadcast %109 : vector<72x1xf32> to vector<72x16xf32>
    %111 = arith.mulf %107, %110 : vector<72x16xf32>
    %112 = arith.truncf %111 : vector<72x16xf32> to vector<72x16xbf16>
    %113 = tpu.concatenate %68, %74, %80, %86, %88, %94, %100, %106, %112 in 1 : vector<72x16xbf16>, vector<72x16xbf16>, vector<72x16xbf16>, vector<72x16xbf16>, vector<72x16xbf16>, vector<72x16xbf16>, vector<72x16xbf16>, vector<72x16xbf16>, vector<72x16xbf16> -> vector<72x144xbf16>
    %cst_84 = arith.constant dense<0.000000e+00> : vector<72x16xf32>
    %114 = tpu.matmul %113, %62, %cst_84 {dimension_numbers = #tpu.dot_dimension_numbers<[1], [0], [0], [1], [0, 0, 1, 1], [], []>} : vector<72x144xbf16>, vector<144x16xbf16>, vector<72x16xf32> -> vector<72x16xf32>
    %c0_85 = arith.constant 0 : index
    %c0_86 = arith.constant 0 : index
    %c0_87 = arith.constant 0 : index
    %115 = vector.load %arg5[%c0_85, %c0_86, %c0_87] : memref<2x1x16xf32, #tpu.memory_space<vmem>>, vector<1x1x16xf32>
    %116 = vector.shape_cast %115 : vector<1x1x16xf32> to vector<1x16xf32>
    %117 = vector.broadcast %116 : vector<1x16xf32> to vector<72x16xf32>
    %118 = arith.mulf %114, %117 : vector<72x16xf32>
    %c0_88 = arith.constant 0 : index
    %c0_89 = arith.constant 0 : index
    %c0_90 = arith.constant 0 : index
    %119 = vector.load %arg6[%c0_88, %c0_89, %c0_90] : memref<2x1x16xf32, #tpu.memory_space<vmem>>, vector<1x1x16xf32>
    %120 = vector.shape_cast %119 : vector<1x1x16xf32> to vector<1x16xf32>
    %121 = vector.broadcast %120 : vector<1x16xf32> to vector<72x16xf32>
    %122 = arith.addf %118, %121 : vector<72x16xf32>
    %cst_91 = arith.constant 0.000000e+00 : f32
    %123 = vector.broadcast %cst_91 : f32 to vector<72x16xf32>
    %124 = arith.maximumf %122, %123 : vector<72x16xf32>
    %c8_92 = arith.constant 8 : index
    %c0_93 = arith.constant 0 : index
    %125 = vector.load %arg11[%c8_92, %c0_93] : memref<88x16xf32, #tpu.memory_space<vmem>>, vector<72x16xf32>
    tpu.vector_store %arg11[%c8_92, %c0_93], %124 {strides = array<i32>} : memref<88x16xf32, #tpu.memory_space<vmem>>, vector<72x16xf32>,
    %c0_94 = arith.constant 0 : index
    %c0_95 = arith.constant 0 : index
    %c0_96 = arith.constant 0 : index
    %126 = vector.load %arg7[%c0_94, %c0_95, %c0_96] : memref<2x144x16xbf16, #tpu.memory_space<vmem>>, vector<1x144x16xbf16>
    %127 = vector.shape_cast %126 : vector<1x144x16xbf16> to vector<144x16xbf16>
    %c3_97 = arith.constant 3 : index
    %c0_98 = arith.constant 0 : index
    %128 = vector.load %arg11[%c3_97, %c0_98] : memref<88x16xf32, #tpu.memory_space<vmem>>, vector<72x16xf32>
    %c0_99 = arith.constant 0 : index
    %c0_100 = arith.constant 0 : index
    %c0_101 = arith.constant 0 : index
    %129 = vector.load %arg1[%c0_99, %c0_100, %c0_101] : memref<9x72x1xf32, #tpu.memory_space<vmem>>, vector<1x72x1xf32>
    %130 = vector.shape_cast %129 : vector<1x72x1xf32> to vector<72x1xf32>
    %131 = vector.broadcast %130 : vector<72x1xf32> to vector<72x16xf32>
    %132 = arith.mulf %128, %131 : vector<72x16xf32>
    %133 = arith.truncf %132 : vector<72x16xf32> to vector<72x16xbf16>
    %c4_102 = arith.constant 4 : index
    %c0_103 = arith.constant 0 : index
    %134 = vector.load %arg11[%c4_102, %c0_103] : memref<88x16xf32, #tpu.memory_space<vmem>>, vector<72x16xf32>
    %c1_104 = arith.constant 1 : index
    %c0_105 = arith.constant 0 : index
    %c0_106 = arith.constant 0 : index
    %135 = vector.load %arg1[%c1_104, %c0_105, %c0_106] : memref<9x72x1xf32, #tpu.memory_space<vmem>>, vector<1x72x1xf32>
    %136 = vector.shape_cast %135 : vector<1x72x1xf32> to vector<72x1xf32>
    %137 = vector.broadcast %136 : vector<72x1xf32> to vector<72x16xf32>
    %138 = arith.mulf %134, %137 : vector<72x16xf32>
    %139 = arith.truncf %138 : vector<72x16xf32> to vector<72x16xbf16>
    %c5_107 = arith.constant 5 : index
    %c0_108 = arith.constant 0 : index
    %140 = vector.load %arg11[%c5_107, %c0_108] : memref<88x16xf32, #tpu.memory_space<vmem>>, vector<72x16xf32>
    %c2_109 = arith.constant 2 : index
    %c0_110 = arith.constant 0 : index
    %c0_111 = arith.constant 0 : index
    %141 = vector.load %arg1[%c2_109, %c0_110, %c0_111] : memref<9x72x1xf32, #tpu.memory_space<vmem>>, vector<1x72x1xf32>
    %142 = vector.shape_cast %141 : vector<1x72x1xf32> to vector<72x1xf32>
    %143 = vector.broadcast %142 : vector<72x1xf32> to vector<72x16xf32>
    %144 = arith.mulf %140, %143 : vector<72x16xf32>
    %145 = arith.truncf %144 : vector<72x16xf32> to vector<72x16xbf16>
    %c7_112 = arith.constant 7 : index
    %c0_113 = arith.constant 0 : index
    %146 = vector.load %arg11[%c7_112, %c0_113] : memref<88x16xf32, #tpu.memory_space<vmem>>, vector<72x16xf32>
    %c3_114 = arith.constant 3 : index
    %c0_115 = arith.constant 0 : index
    %c0_116 = arith.constant 0 : index
    %147 = vector.load %arg1[%c3_114, %c0_115, %c0_116] : memref<9x72x1xf32, #tpu.memory_space<vmem>>, vector<1x72x1xf32>
    %148 = vector.shape_cast %147 : vector<1x72x1xf32> to vector<72x1xf32>
    %149 = vector.broadcast %148 : vector<72x1xf32> to vector<72x16xf32>
    %150 = arith.mulf %146, %149 : vector<72x16xf32>
    %151 = arith.truncf %150 : vector<72x16xf32> to vector<72x16xbf16>
    %c8_117 = arith.constant 8 : index
    %c0_118 = arith.constant 0 : index
    %152 = vector.load %arg11[%c8_117, %c0_118] : memref<88x16xf32, #tpu.memory_space<vmem>>, vector<72x16xf32>
    %153 = arith.truncf %152 : vector<72x16xf32> to vector<72x16xbf16>
    %c9_119 = arith.constant 9 : index
    %c0_120 = arith.constant 0 : index
    %154 = vector.load %arg11[%c9_119, %c0_120] : memref<88x16xf32, #tpu.memory_space<vmem>>, vector<72x16xf32>
    %c5_121 = arith.constant 5 : index
    %c0_122 = arith.constant 0 : index
    %c0_123 = arith.constant 0 : index
    %155 = vector.load %arg1[%c5_121, %c0_122, %c0_123] : memref<9x72x1xf32, #tpu.memory_space<vmem>>, vector<1x72x1xf32>
    %156 = vector.shape_cast %155 : vector<1x72x1xf32> to vector<72x1xf32>
    %157 = vector.broadcast %156 : vector<72x1xf32> to vector<72x16xf32>
    %158 = arith.mulf %154, %157 : vector<72x16xf32>
    %159 = arith.truncf %158 : vector<72x16xf32> to vector<72x16xbf16>
    %c11_124 = arith.constant 11 : index
    %c0_125 = arith.constant 0 : index
    %160 = vector.load %arg11[%c11_124, %c0_125] : memref<88x16xf32, #tpu.memory_space<vmem>>, vector<72x16xf32>
    %c6_126 = arith.constant 6 : index
    %c0_127 = arith.constant 0 : index
    %c0_128 = arith.constant 0 : index
    %161 = vector.load %arg1[%c6_126, %c0_127, %c0_128] : memref<9x72x1xf32, #tpu.memory_space<vmem>>, vector<1x72x1xf32>
    %162 = vector.shape_cast %161 : vector<1x72x1xf32> to vector<72x1xf32>
    %163 = vector.broadcast %162 : vector<72x1xf32> to vector<72x16xf32>
    %164 = arith.mulf %160, %163 : vector<72x16xf32>
    %165 = arith.truncf %164 : vector<72x16xf32> to vector<72x16xbf16>
    %c12_129 = arith.constant 12 : index
    %c0_130 = arith.constant 0 : index
    %166 = vector.load %arg11[%c12_129, %c0_130] : memref<88x16xf32, #tpu.memory_space<vmem>>, vector<72x16xf32>
    %c7_131 = arith.constant 7 : index
    %c0_132 = arith.constant 0 : index
    %c0_133 = arith.constant 0 : index
    %167 = vector.load %arg1[%c7_131, %c0_132, %c0_133] : memref<9x72x1xf32, #tpu.memory_space<vmem>>, vector<1x72x1xf32>
    %168 = vector.shape_cast %167 : vector<1x72x1xf32> to vector<72x1xf32>
    %169 = vector.broadcast %168 : vector<72x1xf32> to vector<72x16xf32>
    %170 = arith.mulf %166, %169 : vector<72x16xf32>
    %171 = arith.truncf %170 : vector<72x16xf32> to vector<72x16xbf16>
    %c13_134 = arith.constant 13 : index
    %c0_135 = arith.constant 0 : index
    %172 = vector.load %arg11[%c13_134, %c0_135] : memref<88x16xf32, #tpu.memory_space<vmem>>, vector<72x16xf32>
    %c8_136 = arith.constant 8 : index
    %c0_137 = arith.constant 0 : index
    %c0_138 = arith.constant 0 : index
    %173 = vector.load %arg1[%c8_136, %c0_137, %c0_138] : memref<9x72x1xf32, #tpu.memory_space<vmem>>, vector<1x72x1xf32>
    %174 = vector.shape_cast %173 : vector<1x72x1xf32> to vector<72x1xf32>
    %175 = vector.broadcast %174 : vector<72x1xf32> to vector<72x16xf32>
    %176 = arith.mulf %172, %175 : vector<72x16xf32>
    %177 = arith.truncf %176 : vector<72x16xf32> to vector<72x16xbf16>
    %178 = tpu.concatenate %133, %139, %145, %151, %153, %159, %165, %171, %177 in 1 : vector<72x16xbf16>, vector<72x16xbf16>, vector<72x16xbf16>, vector<72x16xbf16>, vector<72x16xbf16>, vector<72x16xbf16>, vector<72x16xbf16>, vector<72x16xbf16>, vector<72x16xbf16> -> vector<72x144xbf16>
    %cst_139 = arith.constant dense<0.000000e+00> : vector<72x16xf32>
    %179 = tpu.matmul %178, %127, %cst_139 {dimension_numbers = #tpu.dot_dimension_numbers<[1], [0], [0], [1], [0, 0, 1, 1], [], []>} : vector<72x144xbf16>, vector<144x16xbf16>, vector<72x16xf32> -> vector<72x16xf32>
    %c0_140 = arith.constant 0 : index
    %c0_141 = arith.constant 0 : index
    %c0_142 = arith.constant 0 : index
    %180 = vector.load %arg8[%c0_140, %c0_141, %c0_142] : memref<2x1x16xf32, #tpu.memory_space<vmem>>, vector<1x1x16xf32>
    %181 = vector.shape_cast %180 : vector<1x1x16xf32> to vector<1x16xf32>
    %182 = vector.broadcast %181 : vector<1x16xf32> to vector<72x16xf32>
    %183 = arith.mulf %179, %182 : vector<72x16xf32>
    %c0_143 = arith.constant 0 : index
    %c0_144 = arith.constant 0 : index
    %c0_145 = arith.constant 0 : index
    %184 = vector.load %arg9[%c0_143, %c0_144, %c0_145] : memref<2x1x16xf32, #tpu.memory_space<vmem>>, vector<1x1x16xf32>
    %185 = vector.shape_cast %184 : vector<1x1x16xf32> to vector<1x16xf32>
    %186 = vector.broadcast %185 : vector<1x16xf32> to vector<72x16xf32>
    %187 = arith.addf %183, %186 : vector<72x16xf32>
    %188 = arith.addf %187, %59 : vector<72x16xf32>
    %cst_146 = arith.constant 0.000000e+00 : f32
    %189 = vector.broadcast %cst_146 : f32 to vector<72x16xf32>
    %190 = arith.maximumf %188, %189 : vector<72x16xf32>
    %c8_147 = arith.constant 8 : index
    %c0_148 = arith.constant 0 : index
    %191 = vector.load %arg11[%c8_147, %c0_148] : memref<88x16xf32, #tpu.memory_space<vmem>>, vector<72x16xf32>
    tpu.vector_store %arg11[%c8_147, %c0_148], %190 {strides = array<i32>} : memref<88x16xf32, #tpu.memory_space<vmem>>, vector<72x16xf32>,
    %c1_149 = arith.constant 1 : index
    %c0_150 = arith.constant 0 : index
    %c0_151 = arith.constant 0 : index
    %192 = vector.load %arg4[%c1_149, %c0_150, %c0_151] : memref<2x144x16xbf16, #tpu.memory_space<vmem>>, vector<1x144x16xbf16>
    %193 = vector.shape_cast %192 : vector<1x144x16xbf16> to vector<144x16xbf16>
    %c3_152 = arith.constant 3 : index
    %c0_153 = arith.constant 0 : index
    %194 = vector.load %arg11[%c3_152, %c0_153] : memref<88x16xf32, #tpu.memory_space<vmem>>, vector<72x16xf32>
    %c0_154 = arith.constant 0 : index
    %c0_155 = arith.constant 0 : index
    %c0_156 = arith.constant 0 : index
    %195 = vector.load %arg1[%c0_154, %c0_155, %c0_156] : memref<9x72x1xf32, #tpu.memory_space<vmem>>, vector<1x72x1xf32>
    %196 = vector.shape_cast %195 : vector<1x72x1xf32> to vector<72x1xf32>
    %197 = vector.broadcast %196 : vector<72x1xf32> to vector<72x16xf32>
    %198 = arith.mulf %194, %197 : vector<72x16xf32>
    %199 = arith.truncf %198 : vector<72x16xf32> to vector<72x16xbf16>
    %c4_157 = arith.constant 4 : index
    %c0_158 = arith.constant 0 : index
    %200 = vector.load %arg11[%c4_157, %c0_158] : memref<88x16xf32, #tpu.memory_space<vmem>>, vector<72x16xf32>
    %c1_159 = arith.constant 1 : index
    %c0_160 = arith.constant 0 : index
    %c0_161 = arith.constant 0 : index
    %201 = vector.load %arg1[%c1_159, %c0_160, %c0_161] : memref<9x72x1xf32, #tpu.memory_space<vmem>>, vector<1x72x1xf32>
    %202 = vector.shape_cast %201 : vector<1x72x1xf32> to vector<72x1xf32>
    %203 = vector.broadcast %202 : vector<72x1xf32> to vector<72x16xf32>
    %204 = arith.mulf %200, %203 : vector<72x16xf32>
    %205 = arith.truncf %204 : vector<72x16xf32> to vector<72x16xbf16>
    %c5_162 = arith.constant 5 : index
    %c0_163 = arith.constant 0 : index
    %206 = vector.load %arg11[%c5_162, %c0_163] : memref<88x16xf32, #tpu.memory_space<vmem>>, vector<72x16xf32>
    %c2_164 = arith.constant 2 : index
    %c0_165 = arith.constant 0 : index
    %c0_166 = arith.constant 0 : index
    %207 = vector.load %arg1[%c2_164, %c0_165, %c0_166] : memref<9x72x1xf32, #tpu.memory_space<vmem>>, vector<1x72x1xf32>
    %208 = vector.shape_cast %207 : vector<1x72x1xf32> to vector<72x1xf32>
    %209 = vector.broadcast %208 : vector<72x1xf32> to vector<72x16xf32>
    %210 = arith.mulf %206, %209 : vector<72x16xf32>
    %211 = arith.truncf %210 : vector<72x16xf32> to vector<72x16xbf16>
    %c7_167 = arith.constant 7 : index
    %c0_168 = arith.constant 0 : index
    %212 = vector.load %arg11[%c7_167, %c0_168] : memref<88x16xf32, #tpu.memory_space<vmem>>, vector<72x16xf32>
    %c3_169 = arith.constant 3 : index
    %c0_170 = arith.constant 0 : index
    %c0_171 = arith.constant 0 : index
    %213 = vector.load %arg1[%c3_169, %c0_170, %c0_171] : memref<9x72x1xf32, #tpu.memory_space<vmem>>, vector<1x72x1xf32>
    %214 = vector.shape_cast %213 : vector<1x72x1xf32> to vector<72x1xf32>
    %215 = vector.broadcast %214 : vector<72x1xf32> to vector<72x16xf32>
    %216 = arith.mulf %212, %215 : vector<72x16xf32>
    %217 = arith.truncf %216 : vector<72x16xf32> to vector<72x16xbf16>
    %c8_172 = arith.constant 8 : index
    %c0_173 = arith.constant 0 : index
    %218 = vector.load %arg11[%c8_172, %c0_173] : memref<88x16xf32, #tpu.memory_space<vmem>>, vector<72x16xf32>
    %219 = arith.truncf %218 : vector<72x16xf32> to vector<72x16xbf16>
    %c9_174 = arith.constant 9 : index
    %c0_175 = arith.constant 0 : index
    %220 = vector.load %arg11[%c9_174, %c0_175] : memref<88x16xf32, #tpu.memory_space<vmem>>, vector<72x16xf32>
    %c5_176 = arith.constant 5 : index
    %c0_177 = arith.constant 0 : index
    %c0_178 = arith.constant 0 : index
    %221 = vector.load %arg1[%c5_176, %c0_177, %c0_178] : memref<9x72x1xf32, #tpu.memory_space<vmem>>, vector<1x72x1xf32>
    %222 = vector.shape_cast %221 : vector<1x72x1xf32> to vector<72x1xf32>
    %223 = vector.broadcast %222 : vector<72x1xf32> to vector<72x16xf32>
    %224 = arith.mulf %220, %223 : vector<72x16xf32>
    %225 = arith.truncf %224 : vector<72x16xf32> to vector<72x16xbf16>
    %c11_179 = arith.constant 11 : index
    %c0_180 = arith.constant 0 : index
    %226 = vector.load %arg11[%c11_179, %c0_180] : memref<88x16xf32, #tpu.memory_space<vmem>>, vector<72x16xf32>
    %c6_181 = arith.constant 6 : index
    %c0_182 = arith.constant 0 : index
    %c0_183 = arith.constant 0 : index
    %227 = vector.load %arg1[%c6_181, %c0_182, %c0_183] : memref<9x72x1xf32, #tpu.memory_space<vmem>>, vector<1x72x1xf32>
    %228 = vector.shape_cast %227 : vector<1x72x1xf32> to vector<72x1xf32>
    %229 = vector.broadcast %228 : vector<72x1xf32> to vector<72x16xf32>
    %230 = arith.mulf %226, %229 : vector<72x16xf32>
    %231 = arith.truncf %230 : vector<72x16xf32> to vector<72x16xbf16>
    %c12_184 = arith.constant 12 : index
    %c0_185 = arith.constant 0 : index
    %232 = vector.load %arg11[%c12_184, %c0_185] : memref<88x16xf32, #tpu.memory_space<vmem>>, vector<72x16xf32>
    %c7_186 = arith.constant 7 : index
    %c0_187 = arith.constant 0 : index
    %c0_188 = arith.constant 0 : index
    %233 = vector.load %arg1[%c7_186, %c0_187, %c0_188] : memref<9x72x1xf32, #tpu.memory_space<vmem>>, vector<1x72x1xf32>
    %234 = vector.shape_cast %233 : vector<1x72x1xf32> to vector<72x1xf32>
    %235 = vector.broadcast %234 : vector<72x1xf32> to vector<72x16xf32>
    %236 = arith.mulf %232, %235 : vector<72x16xf32>
    %237 = arith.truncf %236 : vector<72x16xf32> to vector<72x16xbf16>
    %c13_189 = arith.constant 13 : index
    %c0_190 = arith.constant 0 : index
    %238 = vector.load %arg11[%c13_189, %c0_190] : memref<88x16xf32, #tpu.memory_space<vmem>>, vector<72x16xf32>
    %c8_191 = arith.constant 8 : index
    %c0_192 = arith.constant 0 : index
    %c0_193 = arith.constant 0 : index
    %239 = vector.load %arg1[%c8_191, %c0_192, %c0_193] : memref<9x72x1xf32, #tpu.memory_space<vmem>>, vector<1x72x1xf32>
    %240 = vector.shape_cast %239 : vector<1x72x1xf32> to vector<72x1xf32>
    %241 = vector.broadcast %240 : vector<72x1xf32> to vector<72x16xf32>
    %242 = arith.mulf %238, %241 : vector<72x16xf32>
    %243 = arith.truncf %242 : vector<72x16xf32> to vector<72x16xbf16>
    %244 = tpu.concatenate %199, %205, %211, %217, %219, %225, %231, %237, %243 in 1 : vector<72x16xbf16>, vector<72x16xbf16>, vector<72x16xbf16>, vector<72x16xbf16>, vector<72x16xbf16>, vector<72x16xbf16>, vector<72x16xbf16>, vector<72x16xbf16>, vector<72x16xbf16> -> vector<72x144xbf16>
    %cst_194 = arith.constant dense<0.000000e+00> : vector<72x16xf32>
    %245 = tpu.matmul %244, %193, %cst_194 {dimension_numbers = #tpu.dot_dimension_numbers<[1], [0], [0], [1], [0, 0, 1, 1], [], []>} : vector<72x144xbf16>, vector<144x16xbf16>, vector<72x16xf32> -> vector<72x16xf32>
    %c1_195 = arith.constant 1 : index
    %c0_196 = arith.constant 0 : index
    %c0_197 = arith.constant 0 : index
    %246 = vector.load %arg5[%c1_195, %c0_196, %c0_197] : memref<2x1x16xf32, #tpu.memory_space<vmem>>, vector<1x1x16xf32>
    %247 = vector.shape_cast %246 : vector<1x1x16xf32> to vector<1x16xf32>
    %248 = vector.broadcast %247 : vector<1x16xf32> to vector<72x16xf32>
    %249 = arith.mulf %245, %248 : vector<72x16xf32>
    %c1_198 = arith.constant 1 : index
    %c0_199 = arith.constant 0 : index
    %c0_200 = arith.constant 0 : index
    %250 = vector.load %arg6[%c1_198, %c0_199, %c0_200] : memref<2x1x16xf32, #tpu.memory_space<vmem>>, vector<1x1x16xf32>
    %251 = vector.shape_cast %250 : vector<1x1x16xf32> to vector<1x16xf32>
    %252 = vector.broadcast %251 : vector<1x16xf32> to vector<72x16xf32>
    %253 = arith.addf %249, %252 : vector<72x16xf32>
    %cst_201 = arith.constant 0.000000e+00 : f32
    %254 = vector.broadcast %cst_201 : f32 to vector<72x16xf32>
    %255 = arith.maximumf %253, %254 : vector<72x16xf32>
    %c8_202 = arith.constant 8 : index
    %c0_203 = arith.constant 0 : index
    %256 = vector.load %arg11[%c8_202, %c0_203] : memref<88x16xf32, #tpu.memory_space<vmem>>, vector<72x16xf32>
    tpu.vector_store %arg11[%c8_202, %c0_203], %255 {strides = array<i32>} : memref<88x16xf32, #tpu.memory_space<vmem>>, vector<72x16xf32>,
    %c1_204 = arith.constant 1 : index
    %c0_205 = arith.constant 0 : index
    %c0_206 = arith.constant 0 : index
    %257 = vector.load %arg7[%c1_204, %c0_205, %c0_206] : memref<2x144x16xbf16, #tpu.memory_space<vmem>>, vector<1x144x16xbf16>
    %258 = vector.shape_cast %257 : vector<1x144x16xbf16> to vector<144x16xbf16>
    %c3_207 = arith.constant 3 : index
    %c0_208 = arith.constant 0 : index
    %259 = vector.load %arg11[%c3_207, %c0_208] : memref<88x16xf32, #tpu.memory_space<vmem>>, vector<72x16xf32>
    %c0_209 = arith.constant 0 : index
    %c0_210 = arith.constant 0 : index
    %c0_211 = arith.constant 0 : index
    %260 = vector.load %arg1[%c0_209, %c0_210, %c0_211] : memref<9x72x1xf32, #tpu.memory_space<vmem>>, vector<1x72x1xf32>
    %261 = vector.shape_cast %260 : vector<1x72x1xf32> to vector<72x1xf32>
    %262 = vector.broadcast %261 : vector<72x1xf32> to vector<72x16xf32>
    %263 = arith.mulf %259, %262 : vector<72x16xf32>
    %264 = arith.truncf %263 : vector<72x16xf32> to vector<72x16xbf16>
    %c4_212 = arith.constant 4 : index
    %c0_213 = arith.constant 0 : index
    %265 = vector.load %arg11[%c4_212, %c0_213] : memref<88x16xf32, #tpu.memory_space<vmem>>, vector<72x16xf32>
    %c1_214 = arith.constant 1 : index
    %c0_215 = arith.constant 0 : index
    %c0_216 = arith.constant 0 : index
    %266 = vector.load %arg1[%c1_214, %c0_215, %c0_216] : memref<9x72x1xf32, #tpu.memory_space<vmem>>, vector<1x72x1xf32>
    %267 = vector.shape_cast %266 : vector<1x72x1xf32> to vector<72x1xf32>
    %268 = vector.broadcast %267 : vector<72x1xf32> to vector<72x16xf32>
    %269 = arith.mulf %265, %268 : vector<72x16xf32>
    %270 = arith.truncf %269 : vector<72x16xf32> to vector<72x16xbf16>
    %c5_217 = arith.constant 5 : index
    %c0_218 = arith.constant 0 : index
    %271 = vector.load %arg11[%c5_217, %c0_218] : memref<88x16xf32, #tpu.memory_space<vmem>>, vector<72x16xf32>
    %c2_219 = arith.constant 2 : index
    %c0_220 = arith.constant 0 : index
    %c0_221 = arith.constant 0 : index
    %272 = vector.load %arg1[%c2_219, %c0_220, %c0_221] : memref<9x72x1xf32, #tpu.memory_space<vmem>>, vector<1x72x1xf32>
    %273 = vector.shape_cast %272 : vector<1x72x1xf32> to vector<72x1xf32>
    %274 = vector.broadcast %273 : vector<72x1xf32> to vector<72x16xf32>
    %275 = arith.mulf %271, %274 : vector<72x16xf32>
    %276 = arith.truncf %275 : vector<72x16xf32> to vector<72x16xbf16>
    %c7_222 = arith.constant 7 : index
    %c0_223 = arith.constant 0 : index
    %277 = vector.load %arg11[%c7_222, %c0_223] : memref<88x16xf32, #tpu.memory_space<vmem>>, vector<72x16xf32>
    %c3_224 = arith.constant 3 : index
    %c0_225 = arith.constant 0 : index
    %c0_226 = arith.constant 0 : index
    %278 = vector.load %arg1[%c3_224, %c0_225, %c0_226] : memref<9x72x1xf32, #tpu.memory_space<vmem>>, vector<1x72x1xf32>
    %279 = vector.shape_cast %278 : vector<1x72x1xf32> to vector<72x1xf32>
    %280 = vector.broadcast %279 : vector<72x1xf32> to vector<72x16xf32>
    %281 = arith.mulf %277, %280 : vector<72x16xf32>
    %282 = arith.truncf %281 : vector<72x16xf32> to vector<72x16xbf16>
    %c8_227 = arith.constant 8 : index
    %c0_228 = arith.constant 0 : index
    %283 = vector.load %arg11[%c8_227, %c0_228] : memref<88x16xf32, #tpu.memory_space<vmem>>, vector<72x16xf32>
    %284 = arith.truncf %283 : vector<72x16xf32> to vector<72x16xbf16>
    %c9_229 = arith.constant 9 : index
    %c0_230 = arith.constant 0 : index
    %285 = vector.load %arg11[%c9_229, %c0_230] : memref<88x16xf32, #tpu.memory_space<vmem>>, vector<72x16xf32>
    %c5_231 = arith.constant 5 : index
    %c0_232 = arith.constant 0 : index
    %c0_233 = arith.constant 0 : index
    %286 = vector.load %arg1[%c5_231, %c0_232, %c0_233] : memref<9x72x1xf32, #tpu.memory_space<vmem>>, vector<1x72x1xf32>
    %287 = vector.shape_cast %286 : vector<1x72x1xf32> to vector<72x1xf32>
    %288 = vector.broadcast %287 : vector<72x1xf32> to vector<72x16xf32>
    %289 = arith.mulf %285, %288 : vector<72x16xf32>
    %290 = arith.truncf %289 : vector<72x16xf32> to vector<72x16xbf16>
    %c11_234 = arith.constant 11 : index
    %c0_235 = arith.constant 0 : index
    %291 = vector.load %arg11[%c11_234, %c0_235] : memref<88x16xf32, #tpu.memory_space<vmem>>, vector<72x16xf32>
    %c6_236 = arith.constant 6 : index
    %c0_237 = arith.constant 0 : index
    %c0_238 = arith.constant 0 : index
    %292 = vector.load %arg1[%c6_236, %c0_237, %c0_238] : memref<9x72x1xf32, #tpu.memory_space<vmem>>, vector<1x72x1xf32>
    %293 = vector.shape_cast %292 : vector<1x72x1xf32> to vector<72x1xf32>
    %294 = vector.broadcast %293 : vector<72x1xf32> to vector<72x16xf32>
    %295 = arith.mulf %291, %294 : vector<72x16xf32>
    %296 = arith.truncf %295 : vector<72x16xf32> to vector<72x16xbf16>
    %c12_239 = arith.constant 12 : index
    %c0_240 = arith.constant 0 : index
    %297 = vector.load %arg11[%c12_239, %c0_240] : memref<88x16xf32, #tpu.memory_space<vmem>>, vector<72x16xf32>
    %c7_241 = arith.constant 7 : index
    %c0_242 = arith.constant 0 : index
    %c0_243 = arith.constant 0 : index
    %298 = vector.load %arg1[%c7_241, %c0_242, %c0_243] : memref<9x72x1xf32, #tpu.memory_space<vmem>>, vector<1x72x1xf32>
    %299 = vector.shape_cast %298 : vector<1x72x1xf32> to vector<72x1xf32>
    %300 = vector.broadcast %299 : vector<72x1xf32> to vector<72x16xf32>
    %301 = arith.mulf %297, %300 : vector<72x16xf32>
    %302 = arith.truncf %301 : vector<72x16xf32> to vector<72x16xbf16>
    %c13_244 = arith.constant 13 : index
    %c0_245 = arith.constant 0 : index
    %303 = vector.load %arg11[%c13_244, %c0_245] : memref<88x16xf32, #tpu.memory_space<vmem>>, vector<72x16xf32>
    %c8_246 = arith.constant 8 : index
    %c0_247 = arith.constant 0 : index
    %c0_248 = arith.constant 0 : index
    %304 = vector.load %arg1[%c8_246, %c0_247, %c0_248] : memref<9x72x1xf32, #tpu.memory_space<vmem>>, vector<1x72x1xf32>
    %305 = vector.shape_cast %304 : vector<1x72x1xf32> to vector<72x1xf32>
    %306 = vector.broadcast %305 : vector<72x1xf32> to vector<72x16xf32>
    %307 = arith.mulf %303, %306 : vector<72x16xf32>
    %308 = arith.truncf %307 : vector<72x16xf32> to vector<72x16xbf16>
    %309 = tpu.concatenate %264, %270, %276, %282, %284, %290, %296, %302, %308 in 1 : vector<72x16xbf16>, vector<72x16xbf16>, vector<72x16xbf16>, vector<72x16xbf16>, vector<72x16xbf16>, vector<72x16xbf16>, vector<72x16xbf16>, vector<72x16xbf16>, vector<72x16xbf16> -> vector<72x144xbf16>
    %cst_249 = arith.constant dense<0.000000e+00> : vector<72x16xf32>
    %310 = tpu.matmul %309, %258, %cst_249 {dimension_numbers = #tpu.dot_dimension_numbers<[1], [0], [0], [1], [0, 0, 1, 1], [], []>} : vector<72x144xbf16>, vector<144x16xbf16>, vector<72x16xf32> -> vector<72x16xf32>
    %c1_250 = arith.constant 1 : index
    %c0_251 = arith.constant 0 : index
    %c0_252 = arith.constant 0 : index
    %311 = vector.load %arg8[%c1_250, %c0_251, %c0_252] : memref<2x1x16xf32, #tpu.memory_space<vmem>>, vector<1x1x16xf32>
    %312 = vector.shape_cast %311 : vector<1x1x16xf32> to vector<1x16xf32>
    %313 = vector.broadcast %312 : vector<1x16xf32> to vector<72x16xf32>
    %314 = arith.mulf %310, %313 : vector<72x16xf32>
    %c1_253 = arith.constant 1 : index
    %c0_254 = arith.constant 0 : index
    %c0_255 = arith.constant 0 : index
    %315 = vector.load %arg9[%c1_253, %c0_254, %c0_255] : memref<2x1x16xf32, #tpu.memory_space<vmem>>, vector<1x1x16xf32>
    %316 = vector.shape_cast %315 : vector<1x1x16xf32> to vector<1x16xf32>
    %317 = vector.broadcast %316 : vector<1x16xf32> to vector<72x16xf32>
    %318 = arith.addf %314, %317 : vector<72x16xf32>
    %319 = arith.addf %318, %190 : vector<72x16xf32>
    %cst_256 = arith.constant 0.000000e+00 : f32
    %320 = vector.broadcast %cst_256 : f32 to vector<72x16xf32>
    %321 = arith.maximumf %319, %320 : vector<72x16xf32>
    %322 = arith.truncf %321 : vector<72x16xf32> to vector<72x16xbf16>
    %c0_257 = arith.constant 0 : index
    %c0_258 = arith.constant 0 : index
    %323 = vector.load %arg10[%c0_257, %c0_258] : memref<72x16xbf16, #tpu.memory_space<vmem>>, vector<72x16xbf16>
    tpu.vector_store %arg10[%c0_257, %c0_258], %322 {strides = array<i32>} : memref<72x16xbf16, #tpu.memory_space<vmem>>, vector<72x16xbf16>,
    return
  }
}

module attributes {stable_mosaic.version = 11 : i64} {
  func.func @_heads_kernel(%arg0: memref<2x576xbf16, #tpu.memory_space<vmem>>, %arg1: memref<576x512xbf16, #tpu.memory_space<vmem>>, %arg2: memref<1x512xf32, #tpu.memory_space<vmem>>, %arg3: memref<512x128xbf16, #tpu.memory_space<vmem>>, %arg4: memref<1x128xf32, #tpu.memory_space<vmem>>, %arg5: memref<2x128xf32, #tpu.memory_space<vmem>>) attributes {dimension_semantics = [], scalar_prefetch = 0 : i64, scratch_operands = 0 : i64, tpu.core_type = #tpu.core_type<tc>} {
    %c0 = arith.constant 0 : index
    %c0_0 = arith.constant 0 : index
    %0 = vector.load %arg0[%c0, %c0_0] : memref<2x576xbf16, #tpu.memory_space<vmem>>, vector<2x576xbf16>
    %c0_1 = arith.constant 0 : index
    %c0_2 = arith.constant 0 : index
    %1 = vector.load %arg1[%c0_1, %c0_2] : memref<576x512xbf16, #tpu.memory_space<vmem>>, vector<576x512xbf16>
    %cst = arith.constant dense<0.000000e+00> : vector<2x512xf32>
    %2 = tpu.matmul %0, %1, %cst {dimension_numbers = #tpu.dot_dimension_numbers<[1], [0], [0], [1], [0, 0, 1, 1], [], []>} : vector<2x576xbf16>, vector<576x512xbf16>, vector<2x512xf32> -> vector<2x512xf32>
    %c0_3 = arith.constant 0 : index
    %c0_4 = arith.constant 0 : index
    %3 = vector.load %arg2[%c0_3, %c0_4] : memref<1x512xf32, #tpu.memory_space<vmem>>, vector<1x512xf32>
    %4 = vector.broadcast %3 : vector<1x512xf32> to vector<2x512xf32>
    %5 = arith.addf %2, %4 : vector<2x512xf32>
    %cst_5 = arith.constant 0.000000e+00 : f32
    %6 = vector.broadcast %cst_5 : f32 to vector<2x512xf32>
    %7 = arith.maximumf %5, %6 : vector<2x512xf32>
    %8 = arith.truncf %7 : vector<2x512xf32> to vector<2x512xbf16>
    %c0_6 = arith.constant 0 : index
    %c0_7 = arith.constant 0 : index
    %9 = vector.load %arg3[%c0_6, %c0_7] : memref<512x128xbf16, #tpu.memory_space<vmem>>, vector<512x128xbf16>
    %cst_8 = arith.constant dense<0.000000e+00> : vector<2x128xf32>
    %10 = tpu.matmul %8, %9, %cst_8 {dimension_numbers = #tpu.dot_dimension_numbers<[1], [0], [0], [1], [0, 0, 1, 1], [], []>} : vector<2x512xbf16>, vector<512x128xbf16>, vector<2x128xf32> -> vector<2x128xf32>
    %c0_9 = arith.constant 0 : index
    %c0_10 = arith.constant 0 : index
    %11 = vector.load %arg4[%c0_9, %c0_10] : memref<1x128xf32, #tpu.memory_space<vmem>>, vector<1x128xf32>
    %12 = vector.broadcast %11 : vector<1x128xf32> to vector<2x128xf32>
    %13 = arith.addf %10, %12 : vector<2x128xf32>
    %c0_11 = arith.constant 0 : index
    %c0_12 = arith.constant 0 : index
    %14 = vector.load %arg5[%c0_11, %c0_12] : memref<2x128xf32, #tpu.memory_space<vmem>>, vector<2x128xf32>
    tpu.vector_store %arg5[%c0_11, %c0_12], %13 {strides = array<i32>} : memref<2x128xf32, #tpu.memory_space<vmem>>, vector<2x128xf32>,
    return
  }
}

</mosaic_0001>

<llo_original>
// kernel: forward_value_head.3
$region0: #{forward_value_head.3}
  #allocation0 [shape = 'u32[]', space=smem, size = 0x4, offset = 0x4, fixed_abs, tag = 'smem constant byte address 0x4 - core index']
  #allocation1 [shape = 'u32[72,128]{1,0:T(1,128)}', space=vmem, size = 0x9000, scoped, tag = 'internal scratch']
  %s0 = inlined_call_operand.vmem [shape: bf16[2,576], index: 0, kind: input, shape index: {}]
  %s1 = inlined_call_operand.hbm [shape: bf16[576,512], index: 1, kind: input, shape index: {}]
  %s2 = inlined_call_operand.vmem [shape: f32[1,512], index: 2, kind: input, shape index: {}]
  %s3 = inlined_call_operand.vmem [shape: bf16[512,128], index: 3, kind: input, shape index: {}]
  %s4 = inlined_call_operand.vmem [shape: f32[1,128], index: 4, kind: input, shape index: {}]
  %s5 = inlined_call_operand.vmem [shape: f32[2,128], index: 5, kind: output, shape index: {}]
  %s6 = sld [smem:[#allocation0]]
  $region34: #{forward_value_head.3} parent=0
    _
  %s8 = ssub.s32 1, %s6
  %s9 = scalar_select 0, %s8, %s6
  $region1: #{forward_value_head.3} parent=0
    #allocation2 [shape = 'u8[589824]{0}', space=vmem, size = 0x90000, scoped, tag = 'input window, operand 1, single buffered']
    #allocation3 [shape = 's32[1]{0}', space=sflag, size = 0x4, scoped, tag = 'scoped memory for forward_value_head.3']
    %10 = vsyncpa [#allocation3], 0
    // Predicated region
    $region2: #{forward_value_head.3} parent=1 // pred_check
      _
    $region3: #{forward_value_head.3} parent=1 // pred_check_branch
      %12 = sbr.rel (0) target = $region5
    $region4: #{forward_value_head.3} parent=1 // pred_region
      _
    $region5: #{forward_value_head.3} parent=1 // pred_fallthru
      _
    // Predicated region
    $region6: #{forward_value_head.3} parent=1 // pred_check
      _
    $region7: #{forward_value_head.3} parent=1 // pred_check_branch
      %14 = sbr.rel (0) target = $region9
    $region8: #{forward_value_head.3} parent=1 // pred_region
      %16 = vsyncadd [#allocation3], 0
      %s17 = sshll.u32 %s1, 4
      %s18 = int_to_ptr.hbm [resolvable:$true] %s17
      %s19 = sshll.u32 [#allocation2], 4
      %s20 = int_to_ptr.vmem [resolvable:$true] %s19
      %25 = dma.hbm_to_vmem [thread:$0]  %s18, 18432, %s20, [#allocation3], 256, 256, 16
    $region9: #{forward_value_head.3} parent=1 // pred_fallthru
      _
    // Predicated region
    $region10: #{forward_value_head.3} parent=1 // pred_check
      _
    $region11: #{forward_value_head.3} parent=1 // pred_check_branch
      %27 = sbr.rel (0) target = $region13
    $region12: #{forward_value_head.3} parent=1 // pred_region
      _
    $region13: #{forward_value_head.3} parent=1 // pred_fallthru
      _
    // Predicated region
    $region14: #{forward_value_head.3} parent=1 // pred_check
      _
    $region15: #{forward_value_head.3} parent=1 // pred_check_branch
      %29 = sbr.rel (0) target = $region17
    $region16: #{forward_value_head.3} parent=1 // pred_region
      _
    $region17: #{forward_value_head.3} parent=1 // pred_fallthru
      _
    // Predicated region
    $region18: #{forward_value_head.3} parent=1 // pred_check
      _
    $region19: #{forward_value_head.3} parent=1 // pred_check_branch
      %31 = sbr.rel (0) target = $region21
    $region20: #{forward_value_head.3} parent=1 // pred_region
      _
    $region21: #{forward_value_head.3} parent=1 // pred_fallthru
      _
    // Predicated region
    $region22: #{forward_value_head.3} parent=1 // pred_check
      _
    $region23: #{forward_value_head.3} parent=1 // pred_check_branch
      %33 = sbr.rel (0) target = $region25
    $region24: #{forward_value_head.3} parent=1 // pred_region
      %35 = dma.done [#allocation3], 18432
    $region25: #{forward_value_head.3} parent=1 // pred_fallthru
      _
    %v37 = vld [vmem:[%s0] sm:$0x1f]
    %v38 = vld [vmem:[#allocation2] sm:$0xff]
    %v39 = vld [vmem:[#allocation2 + $0x8] sm:$0xff]
    %v40 = vld [vmem:[#allocation2 + $0x10] sm:$0xff]
    %v41 = vld [vmem:[#allocation2 + $0x18] sm:$0xff]
    %v42 = vld [vmem:[#allocation2 + $0x20] sm:$0xff]
    %v43 = vld [vmem:[#allocation2 + $0x28] sm:$0xff]
    %v44 = vld [vmem:[#allocation2 + $0x30] sm:$0xff]
    %v45 = vld [vmem:[#allocation2 + $0x38] sm:$0xff]
    %v46 = vld [vmem:[#allocation2 + $0x40] sm:$0xff]
    %v47 = vld [vmem:[#allocation2 + $0x48] sm:$0xff]
    %v48 = vld [vmem:[#allocation2 + $0x50] sm:$0xff]
    %v49 = vld [vmem:[#allocation2 + $0x58] sm:$0xff]
    %v50 = vld [vmem:[#allocation2 + $0x60] sm:$0xff]
    %v51 = vld [vmem:[#allocation2 + $0x68] sm:$0xff]
    %v52 = vld [vmem:[#allocation2 + $0x70] sm:$0xff]
    %v53 = vld [vmem:[#allocation2 + $0x78] sm:$0xff]
    %v54 = vld [vmem:[#allocation2 + $0x80] sm:$0xff]
    %v55 = vld [vmem:[#allocation2 + $0x88] sm:$0xff]
    %v56 = vld [vmem:[#allocation2 + $0x90] sm:$0xff]
    %v57 = vld [vmem:[#allocation2 + $0x98] sm:$0xff]
    %v58 = vld [vmem:[#allocation2 + $0xa0] sm:$0xff]
    %v59 = vld [vmem:[#allocation2 + $0xa8] sm:$0xff]
    %v60 = vld [vmem:[#allocation2 + $0xb0] sm:$0xff]
    %v61 = vld [vmem:[#allocation2 + $0xb8] sm:$0xff]
    %v62 = vld [vmem:[#allocation2 + $0xc0] sm:$0xff]
    %v63 = vld [vmem:[#allocation2 + $0xc8] sm:$0xff]
    %v64 = vld [vmem:[#allocation2 + $0xd0] sm:$0xff]
    %v65 = vld [vmem:[#allocation2 + $0xd8] sm:$0xff]
    %v66 = vld [vmem:[#allocation2 + $0xe0] sm:$0xff]
    %v67 = vld [vmem:[#allocation2 + $0xe8] sm:$0xff]
    %v68 = vld [vmem:[#allocation2 + $0xf0] sm:$0xff]
    %v69 = vld [vmem:[#allocation2 + $0xf8] sm:$0xff]
    %v70 = vld [vmem:[#allocation2 + $0x100] sm:$0xff]
    %v71 = vld [vmem:[#allocation2 + $0x108] sm:$0xff]
    %v72 = vld [vmem:[#allocation2 + $0x110] sm:$0xff]
    %v73 = vld [vmem:[#allocation2 + $0x118] sm:$0xff]
    %v74 = vld [vmem:[#allocation2 + $0x120] sm:$0xff]
    %v75 = vld [vmem:[#allocation2 + $0x128] sm:$0xff]
    %v76 = vld [vmem:[#allocation2 + $0x130] sm:$0xff]
    %v77 = vld [vmem:[#allocation2 + $0x138] sm:$0xff]
    %v78 = vld [vmem:[#allocation2 + $0x140] sm:$0xff]
    %v79 = vld [vmem:[#allocation2 + $0x148] sm:$0xff]
    %v80 = vld [vmem:[#allocation2 + $0x150] sm:$0xff]
    %v81 = vld [vmem:[#allocation2 + $0x158] sm:$0xff]
    %v82 = vld [vmem:[#allocation2 + $0x160] sm:$0xff]
    %v83 = vld [vmem:[#allocation2 + $0x168] sm:$0xff]
    %v84 = vld [vmem:[#allocation2 + $0x170] sm:$0xff]
    %v85 = vld [vmem:[#allocation2 + $0x178] sm:$0xff]
    %v86 = vld [vmem:[#allocation2 + $0x180] sm:$0xff]
    %v87 = vld [vmem:[#allocation2 + $0x188] sm:$0xff]
    %v88 = vld [vmem:[#allocation2 + $0x190] sm:$0xff]
    %v89 = vld [vmem:[#allocation2 + $0x198] sm:$0xff]
    %v90 = vld [vmem:[#allocation2 + $0x1a0] sm:$0xff]
    %v91 = vld [vmem:[#allocation2 + $0x1a8] sm:$0xff]
    %v92 = vld [vmem:[#allocation2 + $0x1b0] sm:$0xff]
    %v93 = vld [vmem:[#allocation2 + $0x1b8] sm:$0xff]
    %v94 = vld [vmem:[#allocation2 + $0x1c0] sm:$0xff]
    %v95 = vld [vmem:[#allocation2 + $0x1c8] sm:$0xff]
    %v96 = vld [vmem:[#allocation2 + $0x1d0] sm:$0xff]
    %v97 = vld [vmem:[#allocation2 + $0x1d8] sm:$0xff]
    %v98 = vld [vmem:[#allocation2 + $0x1e0] sm:$0xff]
    %v99 = vld [vmem:[#allocation2 + $0x1e8] sm:$0xff]
    %v100 = vld [vmem:[#allocation2 + $0x1f0] sm:$0xff]
    %v101 = vld [vmem:[#allocation2 + $0x1f8] sm:$0xff]
    %v102 = vld [vmem:[#allocation2 + $0x200] sm:$0xff]
    %v103 = vld [vmem:[#allocation2 + $0x208] sm:$0xff]
    %v104 = vld [vmem:[#allocation2 + $0x210] sm:$0xff]
    %v105 = vld [vmem:[#allocation2 + $0x218] sm:$0xff]
    %v106 = vld [vmem:[#allocation2 + $0x220] sm:$0xff]
    %v107 = vld [vmem:[#allocation2 + $0x228] sm:$0xff]
    %v108 = vld [vmem:[#allocation2 + $0x230] sm:$0xff]
    %v109 = vld [vmem:[#allocation2 + $0x238] sm:$0xff]
    %v110 = vld [vmem:[#allocation2 + $0x240] sm:$0xff]
    %v111 = vld [vmem:[#allocation2 + $0x248] sm:$0xff]
    %v112 = vld [vmem:[#allocation2 + $0x250] sm:$0xff]
    %v113 = vld [vmem:[#allocation2 + $0x258] sm:$0xff]
    %v114 = vld [vmem:[#allocation2 + $0x260] sm:$0xff]
    %v115 = vld [vmem:[#allocation2 + $0x268] sm:$0xff]
    %v116 = vld [vmem:[#allocation2 + $0x270] sm:$0xff]
    %v117 = vld [vmem:[#allocation2 + $0x278] sm:$0xff]
    %v118 = vld [vmem:[#allocation2 + $0x280] sm:$0xff]
    %v119 = vld [vmem:[#allocation2 + $0x288] sm:$0xff]
    %v120 = vld [vmem:[#allocation2 + $0x290] sm:$0xff]
    %v121 = vld [vmem:[#allocation2 + $0x298] sm:$0xff]
    %v122 = vld [vmem:[#allocation2 + $0x2a0] sm:$0xff]
    %v123 = vld [vmem:[#allocation2 + $0x2a8] sm:$0xff]
    %v124 = vld [vmem:[#allocation2 + $0x2b0] sm:$0xff]
    %v125 = vld [vmem:[#allocation2 + $0x2b8] sm:$0xff]
    %v126 = vld [vmem:[#allocation2 + $0x2c0] sm:$0xff]
    %v127 = vld [vmem:[#allocation2 + $0x2c8] sm:$0xff]
    %v128 = vld [vmem:[#allocation2 + $0x2d0] sm:$0xff]
    %v129 = vld [vmem:[#allocation2 + $0x2d8] sm:$0xff]
    %v130 = vld [vmem:[#allocation2 + $0x2e0] sm:$0xff]
    %v131 = vld [vmem:[#allocation2 + $0x2e8] sm:$0xff]
    %v132 = vld [vmem:[#allocation2 + $0x2f0] sm:$0xff]
    %v133 = vld [vmem:[#allocation2 + $0x2f8] sm:$0xff]
    %v134 = vld [vmem:[#allocation2 + $0x300] sm:$0xff]
    %v135 = vld [vmem:[#allocation2 + $0x308] sm:$0xff]
    %v136 = vld [vmem:[#allocation2 + $0x310] sm:$0xff]
    %v137 = vld [vmem:[#allocation2 + $0x318] sm:$0xff]
    %v138 = vld [vmem:[#allocation2 + $0x320] sm:$0xff]
    %v139 = vld [vmem:[#allocation2 + $0x328] sm:$0xff]
    %v140 = vld [vmem:[#allocation2 + $0x330] sm:$0xff]
    %v141 = vld [vmem:[#allocation2 + $0x338] sm:$0xff]
    %v142 = vld [vmem:[#allocation2 + $0x340] sm:$0xff]
    %v143 = vld [vmem:[#allocation2 + $0x348] sm:$0xff]
    %v144 = vld [vmem:[#allocation2 + $0x350] sm:$0xff]
    %v145 = vld [vmem:[#allocation2 + $0x358] sm:$0xff]
    %v146 = vld [vmem:[#allocation2 + $0x360] sm:$0xff]
    %v147 = vld [vmem:[#allocation2 + $0x368] sm:$0xff]
    %v148 = vld [vmem:[#allocation2 + $0x370] sm:$0xff]
    %v149 = vld [vmem:[#allocation2 + $0x378] sm:$0xff]
    %v150 = vld [vmem:[#allocation2 + $0x380] sm:$0xff]
    %v151 = vld [vmem:[#allocation2 + $0x388] sm:$0xff]
    %v152 = vld [vmem:[#allocation2 + $0x390] sm:$0xff]
    %v153 = vld [vmem:[#allocation2 + $0x398] sm:$0xff]
    %v154 = vld [vmem:[#allocation2 + $0x3a0] sm:$0xff]
    %v155 = vld [vmem:[#allocation2 + $0x3a8] sm:$0xff]
    %v156 = vld [vmem:[#allocation2 + $0x3b0] sm:$0xff]
    %v157 = vld [vmem:[#allocation2 + $0x3b8] sm:$0xff]
    %v158 = vld [vmem:[#allocation2 + $0x3c0] sm:$0xff]
    %v159 = vld [vmem:[#allocation2 + $0x3c8] sm:$0xff]
    %v160 = vld [vmem:[#allocation2 + $0x3d0] sm:$0xff]
    %v161 = vld [vmem:[#allocation2 + $0x3d8] sm:$0xff]
    %v162 = vld [vmem:[#allocation2 + $0x3e0] sm:$0xff]
    %v163 = vld [vmem:[#allocation2 + $0x3e8] sm:$0xff]
    %v164 = vld [vmem:[#allocation2 + $0x3f0] sm:$0xff]
    %v165 = vld [vmem:[#allocation2 + $0x3f8] sm:$0xff]
    %v166 = vld [vmem:[#allocation2 + $0x400] sm:$0xff]
    %v167 = vld [vmem:[#allocation2 + $0x408] sm:$0xff]
    %v168 = vld [vmem:[#allocation2 + $0x410] sm:$0xff]
    %v169 = vld [vmem:[#allocation2 + $0x418] sm:$0xff]
    %v170 = vld [vmem:[#allocation2 + $0x420] sm:$0xff]
    %v171 = vld [vmem:[#allocation2 + $0x428] sm:$0xff]
    %v172 = vld [vmem:[#allocation2 + $0x430] sm:$0xff]
    %v173 = vld [vmem:[#allocation2 + $0x438] sm:$0xff]
    %v174 = vld [vmem:[#allocation2 + $0x440] sm:$0xff]
    %v175 = vld [vmem:[#allocation2 + $0x448] sm:$0xff]
    %v176 = vld [vmem:[#allocation2 + $0x450] sm:$0xff]
    %v177 = vld [vmem:[#allocation2 + $0x458] sm:$0xff]
    %v178 = vld [vmem:[#allocation2 + $0x460] sm:$0xff]
    %v179 = vld [vmem:[#allocation2 + $0x468] sm:$0xff]
    %v180 = vld [vmem:[#allocation2 + $0x470] sm:$0xff]
    %v181 = vld [vmem:[#allocation2 + $0x478] sm:$0xff]
    %v182 = vld [vmem:[%s2] sm:$0xf]
    %v184 = vperm.slane %v182, 0
    %v185 = vperm.slane %v182, 1
    %v186 = vperm.slane %v182, 2
    %v187 = vperm.slane %v182, 3
    %193 = vst [vmem:[#allocation1] ss:$9 sm:$0xff] %v37
    %v194 = vld [vmem:[#allocation1] sm:$0xff]
    %v195 = vld [vmem:[#allocation1 + $0x9] sm:$0xff]
    %v196 = vld [vmem:[#allocation1 + $0x12] sm:$0xff]
    %v197 = vld [vmem:[#allocation1 + $0x1b] sm:$0xff]
    %v198 = vld [vmem:[#allocation1 + $0x24] sm:$0xff]
    %v347 = vunpack.c.l.b16 %v38
    %v348 = vunpack.c.h.b16 %v38
    %v349 = vunpack.c.l.b16 %v39
    %v350 = vunpack.c.h.b16 %v39
    %v351 = vunpack.c.l.b16 %v40
    %v352 = vunpack.c.h.b16 %v40
    %v353 = vunpack.c.l.b16 %v41
    %v354 = vunpack.c.h.b16 %v41
    %v355 = vunpack.c.l.b16 %v42
    %v356 = vunpack.c.h.b16 %v42
    %v357 = vunpack.c.l.b16 %v43
    %v358 = vunpack.c.h.b16 %v43
    %v359 = vunpack.c.l.b16 %v44
    %v360 = vunpack.c.h.b16 %v44
    %v361 = vunpack.c.l.b16 %v45
    %v362 = vunpack.c.h.b16 %v45
    %v363 = vunpack.c.l.b16 %v46
    %v364 = vunpack.c.h.b16 %v46
    %v365 = vunpack.c.l.b16 %v47
    %v366 = vunpack.c.h.b16 %v47
    %v367 = vunpack.c.l.b16 %v48
    %v368 = vunpack.c.h.b16 %v48
    %v369 = vunpack.c.l.b16 %v49
    %v370 = vunpack.c.h.b16 %v49
    %v371 = vunpack.c.l.b16 %v50
    %v372 = vunpack.c.h.b16 %v50
    %v373 = vunpack.c.l.b16 %v51
    %v374 = vunpack.c.h.b16 %v51
    %v375 = vunpack.c.l.b16 %v52
    %v376 = vunpack.c.h.b16 %v52
    %v377 = vunpack.c.l.b16 %v53
    %v378 = vunpack.c.h.b16 %v53
    %v379 = vunpack.c.l.b16 %v54
    %v380 = vunpack.c.h.b16 %v54
    %v381 = vunpack.c.l.b16 %v55
    %v382 = vunpack.c.h.b16 %v55
    %v383 = vunpack.c.l.b16 %v56
    %v384 = vunpack.c.h.b16 %v56
    %v385 = vunpack.c.l.b16 %v57
    %v386 = vunpack.c.h.b16 %v57
    %v387 = vunpack.c.l.b16 %v58
    %v388 = vunpack.c.h.b16 %v58
    %v389 = vunpack.c.l.b16 %v59
    %v390 = vunpack.c.h.b16 %v59
    %v391 = vunpack.c.l.b16 %v60
    %v392 = vunpack.c.h.b16 %v60
    %v393 = vunpack.c.l.b16 %v61
    %v394 = vunpack.c.h.b16 %v61
    %v395 = vunpack.c.l.b16 %v62
    %v396 = vunpack.c.h.b16 %v62
    %v397 = vunpack.c.l.b16 %v63
    %v398 = vunpack.c.h.b16 %v63
    %v399 = vunpack.c.l.b16 %v64
    %v400 = vunpack.c.h.b16 %v64
    %v401 = vunpack.c.l.b16 %v65
    %v402 = vunpack.c.h.b16 %v65
    %v403 = vunpack.c.l.b16 %v66
    %v404 = vunpack.c.h.b16 %v66
    %v405 = vunpack.c.l.b16 %v67
    %v406 = vunpack.c.h.b16 %v67
    %v407 = vunpack.c.l.b16 %v68
    %v408 = vunpack.c.h.b16 %v68
    %v409 = vunpack.c.l.b16 %v69
    %v410 = vunpack.c.h.b16 %v69
    %v411 = vunpack.c.l.b16 %v70
    %v412 = vunpack.c.h.b16 %v70
    %v413 = vunpack.c.l.b16 %v71
    %v414 = vunpack.c.h.b16 %v71
    %v415 = vunpack.c.l.b16 %v72
    %v416 = vunpack.c.h.b16 %v72
    %v417 = vunpack.c.l.b16 %v73
    %v418 = vunpack.c.h.b16 %v73
    %v419 = vunpack.c.l.b16 %v74
    %v420 = vunpack.c.h.b16 %v74
    %v421 = vunpack.c.l.b16 %v75
    %v422 = vunpack.c.h.b16 %v75
    %v423 = vunpack.c.l.b16 %v76
    %v424 = vunpack.c.h.b16 %v76
    %v425 = vunpack.c.l.b16 %v77
    %v426 = vunpack.c.h.b16 %v77
    %v427 = vunpack.c.l.b16 %v78
    %v428 = vunpack.c.h.b16 %v78
    %v429 = vunpack.c.l.b16 %v79
    %v430 = vunpack.c.h.b16 %v79
    %v431 = vunpack.c.l.b16 %v80
    %v432 = vunpack.c.h.b16 %v80
    %v433 = vunpack.c.l.b16 %v81
    %v434 = vunpack.c.h.b16 %v81
    %v435 = vunpack.c.l.b16 %v82
    %v436 = vunpack.c.h.b16 %v82
    %v437 = vunpack.c.l.b16 %v83
    %v438 = vunpack.c.h.b16 %v83
    %v439 = vunpack.c.l.b16 %v84
    %v440 = vunpack.c.h.b16 %v84
    %v441 = vunpack.c.l.b16 %v85
    %v442 = vunpack.c.h.b16 %v85
    %v443 = vunpack.c.l.b16 %v86
    %v444 = vunpack.c.h.b16 %v86
    %v445 = vunpack.c.l.b16 %v87
    %v446 = vunpack.c.h.b16 %v87
    %v447 = vunpack.c.l.b16 %v88
    %v448 = vunpack.c.h.b16 %v88
    %v449 = vunpack.c.l.b16 %v89
    %v450 = vunpack.c.h.b16 %v89
    %v451 = vunpack.c.l.b16 %v90
    %v452 = vunpack.c.h.b16 %v90
    %v453 = vunpack.c.l.b16 %v91
    %v454 = vunpack.c.h.b16 %v91
    %v455 = vunpack.c.l.b16 %v92
    %v456 = vunpack.c.h.b16 %v92
    %v457 = vunpack.c.l.b16 %v93
    %v458 = vunpack.c.h.b16 %v93
    %v459 = vunpack.c.l.b16 %v94
    %v460 = vunpack.c.h.b16 %v94
    %v461 = vunpack.c.l.b16 %v95
    %v462 = vunpack.c.h.b16 %v95
    %v463 = vunpack.c.l.b16 %v96
    %v464 = vunpack.c.h.b16 %v96
    %v465 = vunpack.c.l.b16 %v97
    %v466 = vunpack.c.h.b16 %v97
    %v467 = vunpack.c.l.b16 %v98
    %v468 = vunpack.c.h.b16 %v98
    %v469 = vunpack.c.l.b16 %v99
    %v470 = vunpack.c.h.b16 %v99
    %v471 = vunpack.c.l.b16 %v100
    %v472 = vunpack.c.h.b16 %v100
    %v473 = vunpack.c.l.b16 %v101
    %v474 = vunpack.c.h.b16 %v101
    %v475 = vunpack.c.l.b16 %v102
    %v476 = vunpack.c.h.b16 %v102
    %v477 = vunpack.c.l.b16 %v103
    %v478 = vunpack.c.h.b16 %v103
    %v479 = vunpack.c.l.b16 %v104
    %v480 = vunpack.c.h.b16 %v104
    %v481 = vunpack.c.l.b16 %v105
    %v482 = vunpack.c.h.b16 %v105
    %v483 = vunpack.c.l.b16 %v106
    %v484 = vunpack.c.h.b16 %v106
    %v485 = vunpack.c.l.b16 %v107
    %v486 = vunpack.c.h.b16 %v107
    %v487 = vunpack.c.l.b16 %v108
    %v488 = vunpack.c.h.b16 %v108
    %v489 = vunpack.c.l.b16 %v109
    %v490 = vunpack.c.h.b16 %v109
    %v491 = vunpack.c.l.b16 %v110
    %v492 = vunpack.c.h.b16 %v110
    %v493 = vunpack.c.l.b16 %v111
    %v494 = vunpack.c.h.b16 %v111
    %v495 = vunpack.c.l.b16 %v112
    %v496 = vunpack.c.h.b16 %v112
    %v497 = vunpack.c.l.b16 %v113
    %v498 = vunpack.c.h.b16 %v113
    %v499 = vunpack.c.l.b16 %v114
    %v500 = vunpack.c.h.b16 %v114
    %v501 = vunpack.c.l.b16 %v115
    %v502 = vunpack.c.h.b16 %v115
    %v503 = vunpack.c.l.b16 %v116
    %v504 = vunpack.c.h.b16 %v116
    %v505 = vunpack.c.l.b16 %v117
    %v506 = vunpack.c.h.b16 %v117
    %v507 = vunpack.c.l.b16 %v118
    %v508 = vunpack.c.h.b16 %v118
    %v509 = vunpack.c.l.b16 %v119
    %v510 = vunpack.c.h.b16 %v119
    %v511 = vunpack.c.l.b16 %v120
    %v512 = vunpack.c.h.b16 %v120
    %v513 = vunpack.c.l.b16 %v121
    %v514 = vunpack.c.h.b16 %v121
    %v515 = vunpack.c.l.b16 %v122
    %v516 = vunpack.c.h.b16 %v122
    %v517 = vunpack.c.l.b16 %v123
    %v518 = vunpack.c.h.b16 %v123
    %v519 = vunpack.c.l.b16 %v124
    %v520 = vunpack.c.h.b16 %v124
    %v521 = vunpack.c.l.b16 %v125
    %v522 = vunpack.c.h.b16 %v125
    %v523 = vunpack.c.l.b16 %v126
    %v524 = vunpack.c.h.b16 %v126
    %v525 = vunpack.c.l.b16 %v127
    %v526 = vunpack.c.h.b16 %v127
    %v527 = vunpack.c.l.b16 %v128
    %v528 = vunpack.c.h.b16 %v128
    %v529 = vunpack.c.l.b16 %v129
    %v530 = vunpack.c.h.b16 %v129
    %v531 = vunpack.c.l.b16 %v130
    %v532 = vunpack.c.h.b16 %v130
    %v533 = vunpack.c.l.b16 %v131
    %v534 = vunpack.c.h.b16 %v131
    %v535 = vunpack.c.l.b16 %v132
    %v536 = vunpack.c.h.b16 %v132
    %v537 = vunpack.c.l.b16 %v133
    %v538 = vunpack.c.h.b16 %v133
    %v539 = vunpack.c.l.b16 %v134
    %v540 = vunpack.c.h.b16 %v134
    %v541 = vunpack.c.l.b16 %v135
    %v542 = vunpack.c.h.b16 %v135
    %v543 = vunpack.c.l.b16 %v136
    %v544 = vunpack.c.h.b16 %v136
    %v545 = vunpack.c.l.b16 %v137
    %v546 = vunpack.c.h.b16 %v137
    %v547 = vunpack.c.l.b16 %v138
    %v548 = vunpack.c.h.b16 %v138
    %v549 = vunpack.c.l.b16 %v139
    %v550 = vunpack.c.h.b16 %v139
    %v551 = vunpack.c.l.b16 %v140
    %v552 = vunpack.c.h.b16 %v140
    %v553 = vunpack.c.l.b16 %v141
    %v554 = vunpack.c.h.b16 %v141
    %v555 = vunpack.c.l.b16 %v142
    %v556 = vunpack.c.h.b16 %v142
    %v557 = vunpack.c.l.b16 %v143
    %v558 = vunpack.c.h.b16 %v143
    %v559 = vunpack.c.l.b16 %v144
    %v560 = vunpack.c.h.b16 %v144
    %v561 = vunpack.c.l.b16 %v145
    %v562 = vunpack.c.h.b16 %v145
    %v563 = vunpack.c.l.b16 %v146
    %v564 = vunpack.c.h.b16 %v146
    %v565 = vunpack.c.l.b16 %v147
    %v566 = vunpack.c.h.b16 %v147
    %v567 = vunpack.c.l.b16 %v148
    %v568 = vunpack.c.h.b16 %v148
    %v569 = vunpack.c.l.b16 %v149
    %v570 = vunpack.c.h.b16 %v149
    %v571 = vunpack.c.l.b16 %v150
    %v572 = vunpack.c.h.b16 %v150
    %v573 = vunpack.c.l.b16 %v151
    %v574 = vunpack.c.h.b16 %v151
    %v575 = vunpack.c.l.b16 %v152
    %v576 = vunpack.c.h.b16 %v152
    %v577 = vunpack.c.l.b16 %v153
    %v578 = vunpack.c.h.b16 %v153
    %v579 = vunpack.c.l.b16 %v154
    %v580 = vunpack.c.h.b16 %v154
    %v581 = vunpack.c.l.b16 %v155
    %v582 = vunpack.c.h.b16 %v155
    %v583 = vunpack.c.l.b16 %v156
    %v584 = vunpack.c.h.b16 %v156
    %v585 = vunpack.c.l.b16 %v157
    %v586 = vunpack.c.h.b16 %v157
    %v587 = vunpack.c.l.b16 %v158
    %v588 = vunpack.c.h.b16 %v158
    %v589 = vunpack.c.l.b16 %v159
    %v590 = vunpack.c.h.b16 %v159
    %v591 = vunpack.c.l.b16 %v160
    %v592 = vunpack.c.h.b16 %v160
    %v593 = vunpack.c.l.b16 %v161
    %v594 = vunpack.c.h.b16 %v161
    %v595 = vunpack.c.l.b16 %v162
    %v596 = vunpack.c.h.b16 %v162
    %v597 = vunpack.c.l.b16 %v163
    %v598 = vunpack.c.h.b16 %v163
    %v599 = vunpack.c.l.b16 %v164
    %v600 = vunpack.c.h.b16 %v164
    %v601 = vunpack.c.l.b16 %v165
    %v602 = vunpack.c.h.b16 %v165
    %v603 = vunpack.c.l.b16 %v166
    %v604 = vunpack.c.h.b16 %v166
    %v605 = vunpack.c.l.b16 %v167
    %v606 = vunpack.c.h.b16 %v167
    %v607 = vunpack.c.l.b16 %v168
    %v608 = vunpack.c.h.b16 %v168
    %v609 = vunpack.c.l.b16 %v169
    %v610 = vunpack.c.h.b16 %v169
    %v611 = vunpack.c.l.b16 %v170
    %v612 = vunpack.c.h.b16 %v170
    %v613 = vunpack.c.l.b16 %v171
    %v614 = vunpack.c.h.b16 %v171
    %v615 = vunpack.c.l.b16 %v172
    %v616 = vunpack.c.h.b16 %v172
    %v617 = vunpack.c.l.b16 %v173
    %v618 = vunpack.c.h.b16 %v173
    %v619 = vunpack.c.l.b16 %v174
    %v620 = vunpack.c.h.b16 %v174
    %v621 = vunpack.c.l.b16 %v175
    %v622 = vunpack.c.h.b16 %v175
    %v623 = vunpack.c.l.b16 %v176
    %v624 = vunpack.c.h.b16 %v176
    %v625 = vunpack.c.l.b16 %v177
    %v626 = vunpack.c.h.b16 %v177
    %v627 = vunpack.c.l.b16 %v178
    %v628 = vunpack.c.h.b16 %v178
    %v629 = vunpack.c.l.b16 %v179
    %v630 = vunpack.c.h.b16 %v179
    %v631 = vunpack.c.l.b16 %v180
    %v632 = vunpack.c.h.b16 %v180
    %v633 = vunpack.c.l.b16 %v181
    %v634 = vunpack.c.h.b16 %v181
    %v635 = vpack.c.b16 %v351, %v347
    %v636 = vpack.c.b16 %v352, %v348
    %v637 = vpack.c.b16 %v353, %v349
    %v638 = vpack.c.b16 %v354, %v350
    %v639 = vpack.c.b16 %v359, %v355
    %v640 = vpack.c.b16 %v360, %v356
    %v641 = vpack.c.b16 %v361, %v357
    %v642 = vpack.c.b16 %v362, %v358
    %v643 = vpack.c.b16 %v367, %v363
    %v644 = vpack.c.b16 %v368, %v364
    %v645 = vpack.c.b16 %v369, %v365
    %v646 = vpack.c.b16 %v370, %v366
    %v647 = vpack.c.b16 %v375, %v371
    %v648 = vpack.c.b16 %v376, %v372
    %v649 = vpack.c.b16 %v377, %v373
    %v650 = vpack.c.b16 %v378, %v374
    %v651 = vpack.c.b16 %v383, %v379
    %v652 = vpack.c.b16 %v384, %v380
    %v653 = vpack.c.b16 %v385, %v381
    %v654 = vpack.c.b16 %v386, %v382
    %v655 = vpack.c.b16 %v391, %v387
    %v656 = vpack.c.b16 %v392, %v388
    %v657 = vpack.c.b16 %v393, %v389
    %v658 = vpack.c.b16 %v394, %v390
    %v659 = vpack.c.b16 %v399, %v395
    %v660 = vpack.c.b16 %v400, %v396
    %v661 = vpack.c.b16 %v401, %v397
    %v662 = vpack.c.b16 %v402, %v398
    %v663 = vpack.c.b16 %v407, %v403
    %v664 = vpack.c.b16 %v408, %v404
    %v665 = vpack.c.b16 %v409, %v405
    %v666 = vpack.c.b16 %v410, %v406
    %v667 = vpack.c.b16 %v415, %v411
    %v668 = vpack.c.b16 %v416, %v412
    %v669 = vpack.c.b16 %v417, %v413
    %v670 = vpack.c.b16 %v418, %v414
    %v671 = vpack.c.b16 %v423, %v419
    %v672 = vpack.c.b16 %v424, %v420
    %v673 = vpack.c.b16 %v425, %v421
    %v674 = vpack.c.b16 %v426, %v422
    %v675 = vpack.c.b16 %v431, %v427
    %v676 = vpack.c.b16 %v432, %v428
    %v677 = vpack.c.b16 %v433, %v429
    %v678 = vpack.c.b16 %v434, %v430
    %v679 = vpack.c.b16 %v439, %v435
    %v680 = vpack.c.b16 %v440, %v436
    %v681 = vpack.c.b16 %v441, %v437
    %v682 = vpack.c.b16 %v442, %v438
    %v683 = vpack.c.b16 %v447, %v443
    %v684 = vpack.c.b16 %v448, %v444
    %v685 = vpack.c.b16 %v449, %v445
    %v686 = vpack.c.b16 %v450, %v446
    %v687 = vpack.c.b16 %v455, %v451
    %v688 = vpack.c.b16 %v456, %v452
    %v689 = vpack.c.b16 %v457, %v453
    %v690 = vpack.c.b16 %v458, %v454
    %v691 = vpack.c.b16 %v463, %v459
    %v692 = vpack.c.b16 %v464, %v460
    %v693 = vpack.c.b16 %v465, %v461
    %v694 = vpack.c.b16 %v466, %v462
    %v695 = vpack.c.b16 %v471, %v467
    %v696 = vpack.c.b16 %v472, %v468
    %v697 = vpack.c.b16 %v473, %v469
    %v698 = vpack.c.b16 %v474, %v470
    %v699 = vpack.c.b16 %v479, %v475
    %v700 = vpack.c.b16 %v480, %v476
    %v701 = vpack.c.b16 %v481, %v477
    %v702 = vpack.c.b16 %v482, %v478
    %v703 = vpack.c.b16 %v487, %v483
    %v704 = vpack.c.b16 %v488, %v484
    %v705 = vpack.c.b16 %v489, %v485
    %v706 = vpack.c.b16 %v490, %v486
    %v707 = vpack.c.b16 %v495, %v491
    %v708 = vpack.c.b16 %v496, %v492
    %v709 = vpack.c.b16 %v497, %v493
    %v710 = vpack.c.b16 %v498, %v494
    %v711 = vpack.c.b16 %v503, %v499
    %v712 = vpack.c.b16 %v504, %v500
    %v713 = vpack.c.b16 %v505, %v501
    %v714 = vpack.c.b16 %v506, %v502
    %v715 = vpack.c.b16 %v511, %v507
    %v716 = vpack.c.b16 %v512, %v508
    %v717 = vpack.c.b16 %v513, %v509
    %v718 = vpack.c.b16 %v514, %v510
    %v719 = vpack.c.b16 %v519, %v515
    %v720 = vpack.c.b16 %v520, %v516
    %v721 = vpack.c.b16 %v521, %v517
    %v722 = vpack.c.b16 %v522, %v518
    %v723 = vpack.c.b16 %v527, %v523
    %v724 = vpack.c.b16 %v528, %v524
    %v725 = vpack.c.b16 %v529, %v525
    %v726 = vpack.c.b16 %v530, %v526
    %v727 = vpack.c.b16 %v535, %v531
    %v728 = vpack.c.b16 %v536, %v532
    %v729 = vpack.c.b16 %v537, %v533
    %v730 = vpack.c.b16 %v538, %v534
    %v731 = vpack.c.b16 %v543, %v539
    %v732 = vpack.c.b16 %v544, %v540
    %v733 = vpack.c.b16 %v545, %v541
    %v734 = vpack.c.b16 %v546, %v542
    %v735 = vpack.c.b16 %v551, %v547
    %v736 = vpack.c.b16 %v552, %v548
    %v737 = vpack.c.b16 %v553, %v549
    %v738 = vpack.c.b16 %v554, %v550
    %v739 = vpack.c.b16 %v559, %v555
    %v740 = vpack.c.b16 %v560, %v556
    %v741 = vpack.c.b16 %v561, %v557
    %v742 = vpack.c.b16 %v562, %v558
    %v743 = vpack.c.b16 %v567, %v563
    %v744 = vpack.c.b16 %v568, %v564
    %v745 = vpack.c.b16 %v569, %v565
    %v746 = vpack.c.b16 %v570, %v566
    %v747 = vpack.c.b16 %v575, %v571
    %v748 = vpack.c.b16 %v576, %v572
    %v749 = vpack.c.b16 %v577, %v573
    %v750 = vpack.c.b16 %v578, %v574
    %v751 = vpack.c.b16 %v583, %v579
    %v752 = vpack.c.b16 %v584, %v580
    %v753 = vpack.c.b16 %v585, %v581
    %v754 = vpack.c.b16 %v586, %v582
    %v755 = vpack.c.b16 %v591, %v587
    %v756 = vpack.c.b16 %v592, %v588
    %v757 = vpack.c.b16 %v593, %v589
    %v758 = vpack.c.b16 %v594, %v590
    %v759 = vpack.c.b16 %v599, %v595
    %v760 = vpack.c.b16 %v600, %v596
    %v761 = vpack.c.b16 %v601, %v597
    %v762 = vpack.c.b16 %v602, %v598
    %v763 = vpack.c.b16 %v607, %v603
    %v764 = vpack.c.b16 %v608, %v604
    %v765 = vpack.c.b16 %v609, %v605
    %v766 = vpack.c.b16 %v610, %v606
    %v767 = vpack.c.b16 %v615, %v611
    %v768 = vpack.c.b16 %v616, %v612
    %v769 = vpack.c.b16 %v617, %v613
    %v770 = vpack.c.b16 %v618, %v614
    %v771 = vpack.c.b16 %v623, %v619
    %v772 = vpack.c.b16 %v624, %v620
    %v773 = vpack.c.b16 %v625, %v621
    %v774 = vpack.c.b16 %v626, %v622
    %v775 = vpack.c.b16 %v631, %v627
    %v776 = vpack.c.b16 %v632, %v628
    %v777 = vpack.c.b16 %v633, %v629
    %v778 = vpack.c.b16 %v634, %v630
    %vm923 = vcmask 523264
    %v924 = vsel %vm923, %v198, 0
    %926 = vmatpush.bf16.msra.mxu0 %v663
    %927 = vmatpush.bf16.msra.mxu0 %v659
    %928 = vmatpush.bf16.msra.mxu0 %v655
    %929 = vmatpush.bf16.msra.mxu0 %v651
    %930 = vmatpush.bf16.msra.mxu0 %v647
    %931 = vmatpush.bf16.msra.mxu0 %v643
    %932 = vmatpush.bf16.msra.mxu0 %v639
    %933 = vmatpush.bf16.msra.mxu0 %v635
    %934 = vmatmul.bf16.gmra.mxu0 %v194
    %v935 = vpop.f32.mrf.mxu0
    %v936 = vadd.f32 %v184, %v935
    %v937 = vpop.f32.mrf.mxu0
    %938 = vdwg.mxu0
    %939 = vmatpush.bf16.msra.mxu0 %v695
    %940 = vmatpush.bf16.msra.mxu0 %v691
    %941 = vmatpush.bf16.msra.mxu0 %v687
    %942 = vmatpush.bf16.msra.mxu0 %v683
    %943 = vmatpush.bf16.msra.mxu0 %v679
    %944 = vmatpush.bf16.msra.mxu0 %v675
    %945 = vmatpush.bf16.msra.mxu0 %v671
    %946 = vmatpush.bf16.msra.mxu0 %v667
    %947 = vmatmul.bf16.gmra.mxu0 %v195
    %v948 = vpop.f32.mrf.mxu0
    %v949 = vadd.f32 %v936, %v948
    %v950 = vpop.f32.mrf.mxu0
    %951 = vdwg.mxu0
    %952 = vmatpush.bf16.msra.mxu0 %v727
    %953 = vmatpush.bf16.msra.mxu0 %v723
    %954 = vmatpush.bf16.msra.mxu0 %v719
    %955 = vmatpush.bf16.msra.mxu0 %v715
    %956 = vmatpush.bf16.msra.mxu0 %v711
    %957 = vmatpush.bf16.msra.mxu0 %v707
    %958 = vmatpush.bf16.msra.mxu0 %v703
    %959 = vmatpush.bf16.msra.mxu0 %v699
    %960 = vmatmul.bf16.gmra.mxu0 %v196
    %v961 = vpop.f32.mrf.mxu0
    %v962 = vadd.f32 %v949, %v961
    %v963 = vpop.f32.mrf.mxu0
    %964 = vdwg.mxu0
    %965 = vmatpush.bf16.msra.mxu0 %v759
    %966 = vmatpush.bf16.msra.mxu0 %v755
    %967 = vmatpush.bf16.msra.mxu0 %v751
    %968 = vmatpush.bf16.msra.mxu0 %v747
    %969 = vmatpush.bf16.msra.mxu0 %v743
    %970 = vmatpush.bf16.msra.mxu0 %v739
    %971 = vmatpush.bf16.msra.mxu0 %v735
    %972 = vmatpush.bf16.msra.mxu0 %v731
    %973 = vmatmul.bf16.gmra.mxu0 %v197
    %v974 = vpop.f32.mrf.mxu0
    %v975 = vadd.f32 %v962, %v974
    %v976 = vpop.f32.mrf.mxu0
    %977 = vdwg.mxu0
    %978 = vmatpush.bf16.msra.mxu0 0
    %979 = vmatpush.bf16.msra.mxu0 0
    %980 = vmatpush.bf16.msra.mxu0 0
    %981 = vmatpush.bf16.msra.mxu0 0
    %982 = vmatpush.bf16.msra.mxu0 %v775
    %983 = vmatpush.bf16.msra.mxu0 %v771
    %984 = vmatpush.bf16.msra.mxu0 %v767
    %985 = vmatpush.bf16.msra.mxu0 %v763
    %986 = vmatmul.bf16.gmra.mxu0 %v924
    %v987 = vpop.f32.mrf.mxu0
    %v988 = vadd.f32 %v975, %v987
    %v989 = vpop.f32.mrf.mxu0
    %990 = vdwg.mxu0
    %991 = vmatpush.bf16.msra.mxu0 %v664
    %992 = vmatpush.bf16.msra.mxu0 %v660
    %993 = vmatpush.bf16.msra.mxu0 %v656
    %994 = vmatpush.bf16.msra.mxu0 %v652
    %995 = vmatpush.bf16.msra.mxu0 %v648
    %996 = vmatpush.bf16.msra.mxu0 %v644
    %997 = vmatpush.bf16.msra.mxu0 %v640
    %998 = vmatpush.bf16.msra.mxu0 %v636
    %999 = vmatmul.bf16.gmra.mxu0 %v194
    %v1000 = vpop.f32.mrf.mxu0
    %v1001 = vadd.f32 %v185, %v1000
    %v1002 = vpop.f32.mrf.mxu0
    %1003 = vdwg.mxu0
    %1004 = vmatpush.bf16.msra.mxu0 %v696
    %1005 = vmatpush.bf16.msra.mxu0 %v692
    %1006 = vmatpush.bf16.msra.mxu0 %v688
    %1007 = vmatpush.bf16.msra.mxu0 %v684
    %1008 = vmatpush.bf16.msra.mxu0 %v680
    %1009 = vmatpush.bf16.msra.mxu0 %v676
    %1010 = vmatpush.bf16.msra.mxu0 %v672
    %1011 = vmatpush.bf16.msra.mxu0 %v668
    %1012 = vmatmul.bf16.gmra.mxu0 %v195
    %v1013 = vpop.f32.mrf.mxu0
    %v1014 = vadd.f32 %v1001, %v1013
    %v1015 = vpop.f32.mrf.mxu0
    %1016 = vdwg.mxu0
    %1017 = vmatpush.bf16.msra.mxu0 %v728
    %1018 = vmatpush.bf16.msra.mxu0 %v724
    %1019 = vmatpush.bf16.msra.mxu0 %v720
    %1020 = vmatpush.bf16.msra.mxu0 %v716
    %1021 = vmatpush.bf16.msra.mxu0 %v712
    %1022 = vmatpush.bf16.msra.mxu0 %v708
    %1023 = vmatpush.bf16.msra.mxu0 %v704
    %1024 = vmatpush.bf16.msra.mxu0 %v700
    %1025 = vmatmul.bf16.gmra.mxu0 %v196
    %v1026 = vpop.f32.mrf.mxu0
    %v1027 = vadd.f32 %v1014, %v1026
    %v1028 = vpop.f32.mrf.mxu0
    %1029 = vdwg.mxu0
    %1030 = vmatpush.bf16.msra.mxu0 %v760
    %1031 = vmatpush.bf16.msra.mxu0 %v756
    %1032 = vmatpush.bf16.msra.mxu0 %v752
    %1033 = vmatpush.bf16.msra.mxu0 %v748
    %1034 = vmatpush.bf16.msra.mxu0 %v744
    %1035 = vmatpush.bf16.msra.mxu0 %v740
    %1036 = vmatpush.bf16.msra.mxu0 %v736
    %1037 = vmatpush.bf16.msra.mxu0 %v732
    %1038 = vmatmul.bf16.gmra.mxu0 %v197
    %v1039 = vpop.f32.mrf.mxu0
    %v1040 = vadd.f32 %v1027, %v1039
    %v1041 = vpop.f32.mrf.mxu0
    %1042 = vdwg.mxu0
    %1043 = vmatpush.bf16.msra.mxu0 0
    %1044 = vmatpush.bf16.msra.mxu0 0
    %1045 = vmatpush.bf16.msra.mxu0 0
    %1046 = vmatpush.bf16.msra.mxu0 0
    %1047 = vmatpush.bf16.msra.mxu0 %v776
    %1048 = vmatpush.bf16.msra.mxu0 %v772
    %1049 = vmatpush.bf16.msra.mxu0 %v768
    %1050 = vmatpush.bf16.msra.mxu0 %v764
    %1051 = vmatmul.bf16.gmra.mxu0 %v924
    %v1052 = vpop.f32.mrf.mxu0
    %v1053 = vadd.f32 %v1040, %v1052
    %v1054 = vpop.f32.mrf.mxu0
    %1055 = vdwg.mxu0
    %1056 = vmatpush.bf16.msra.mxu0 %v665
    %1057 = vmatpush.bf16.msra.mxu0 %v661
    %1058 = vmatpush.bf16.msra.mxu0 %v657
    %1059 = vmatpush.bf16.msra.mxu0 %v653
    %1060 = vmatpush.bf16.msra.mxu0 %v649
    %1061 = vmatpush.bf16.msra.mxu0 %v645
    %1062 = vmatpush.bf16.msra.mxu0 %v641
    %1063 = vmatpush.bf16.msra.mxu0 %v637
    %1064 = vmatmul.bf16.gmra.mxu0 %v194
    %v1065 = vpop.f32.mrf.mxu0
    %v1066 = vadd.f32 %v186, %v1065
    %v1067 = vpop.f32.mrf.mxu0
    %1068 = vdwg.mxu0
    %1069 = vmatpush.bf16.msra.mxu0 %v697
    %1070 = vmatpush.bf16.msra.mxu0 %v693
    %1071 = vmatpush.bf16.msra.mxu0 %v689
    %1072 = vmatpush.bf16.msra.mxu0 %v685
    %1073 = vmatpush.bf16.msra.mxu0 %v681
    %1074 = vmatpush.bf16.msra.mxu0 %v677
    %1075 = vmatpush.bf16.msra.mxu0 %v673
    %1076 = vmatpush.bf16.msra.mxu0 %v669
    %1077 = vmatmul.bf16.gmra.mxu0 %v195
    %v1078 = vpop.f32.mrf.mxu0
    %v1079 = vadd.f32 %v1066, %v1078
    %v1080 = vpop.f32.mrf.mxu0
    %1081 = vdwg.mxu0
    %1082 = vmatpush.bf16.msra.mxu0 %v729
    %1083 = vmatpush.bf16.msra.mxu0 %v725
    %1084 = vmatpush.bf16.msra.mxu0 %v721
    %1085 = vmatpush.bf16.msra.mxu0 %v717
    %1086 = vmatpush.bf16.msra.mxu0 %v713
    %1087 = vmatpush.bf16.msra.mxu0 %v709
    %1088 = vmatpush.bf16.msra.mxu0 %v705
    %1089 = vmatpush.bf16.msra.mxu0 %v701
    %1090 = vmatmul.bf16.gmra.mxu0 %v196
    %v1091 = vpop.f32.mrf.mxu0
    %v1092 = vadd.f32 %v1079, %v1091
    %v1093 = vpop.f32.mrf.mxu0
    %1094 = vdwg.mxu0
    %1095 = vmatpush.bf16.msra.mxu0 %v761
    %1096 = vmatpush.bf16.msra.mxu0 %v757
    %1097 = vmatpush.bf16.msra.mxu0 %v753
    %1098 = vmatpush.bf16.msra.mxu0 %v749
    %1099 = vmatpush.bf16.msra.mxu0 %v745
    %1100 = vmatpush.bf16.msra.mxu0 %v741
    %1101 = vmatpush.bf16.msra.mxu0 %v737
    %1102 = vmatpush.bf16.msra.mxu0 %v733
    %1103 = vmatmul.bf16.gmra.mxu0 %v197
    %v1104 = vpop.f32.mrf.mxu0
    %v1105 = vadd.f32 %v1092, %v1104
    %v1106 = vpop.f32.mrf.mxu0
    %1107 = vdwg.mxu0
    %1108 = vmatpush.bf16.msra.mxu0 0
    %1109 = vmatpush.bf16.msra.mxu0 0
    %1110 = vmatpush.bf16.msra.mxu0 0
    %1111 = vmatpush.bf16.msra.mxu0 0
    %1112 = vmatpush.bf16.msra.mxu0 %v777
    %1113 = vmatpush.bf16.msra.mxu0 %v773
    %1114 = vmatpush.bf16.msra.mxu0 %v769
    %1115 = vmatpush.bf16.msra.mxu0 %v765
    %1116 = vmatmul.bf16.gmra.mxu0 %v924
    %v1117 = vpop.f32.mrf.mxu0
    %v1118 = vadd.f32 %v1105, %v1117
    %v1119 = vpop.f32.mrf.mxu0
    %1120 = vdwg.mxu0
    %1121 = vmatpush.bf16.msra.mxu0 %v666
    %1122 = vmatpush.bf16.msra.mxu0 %v662
    %1123 = vmatpush.bf16.msra.mxu0 %v658
    %1124 = vmatpush.bf16.msra.mxu0 %v654
    %1125 = vmatpush.bf16.msra.mxu0 %v650
    %1126 = vmatpush.bf16.msra.mxu0 %v646
    %1127 = vmatpush.bf16.msra.mxu0 %v642
    %1128 = vmatpush.bf16.msra.mxu0 %v638
    %1129 = vmatmul.bf16.gmra.mxu0 %v194
    %v1130 = vpop.f32.mrf.mxu0
    %v1131 = vadd.f32 %v187, %v1130
    %v1132 = vpop.f32.mrf.mxu0
    %1133 = vdwg.mxu0
    %1134 = vmatpush.bf16.msra.mxu0 %v698
    %1135 = vmatpush.bf16.msra.mxu0 %v694
    %1136 = vmatpush.bf16.msra.mxu0 %v690
    %1137 = vmatpush.bf16.msra.mxu0 %v686
    %1138 = vmatpush.bf16.msra.mxu0 %v682
    %1139 = vmatpush.bf16.msra.mxu0 %v678
    %1140 = vmatpush.bf16.msra.mxu0 %v674
    %1141 = vmatpush.bf16.msra.mxu0 %v670
    %1142 = vmatmul.bf16.gmra.mxu0 %v195
    %v1143 = vpop.f32.mrf.mxu0
    %v1144 = vadd.f32 %v1131, %v1143
    %v1145 = vpop.f32.mrf.mxu0
    %1146 = vdwg.mxu0
    %1147 = vmatpush.bf16.msra.mxu0 %v730
    %1148 = vmatpush.bf16.msra.mxu0 %v726
    %1149 = vmatpush.bf16.msra.mxu0 %v722
    %1150 = vmatpush.bf16.msra.mxu0 %v718
    %1151 = vmatpush.bf16.msra.mxu0 %v714
    %1152 = vmatpush.bf16.msra.mxu0 %v710
    %1153 = vmatpush.bf16.msra.mxu0 %v706
    %1154 = vmatpush.bf16.msra.mxu0 %v702
    %1155 = vmatmul.bf16.gmra.mxu0 %v196
    %v1156 = vpop.f32.mrf.mxu0
    %v1157 = vadd.f32 %v1144, %v1156
    %v1158 = vpop.f32.mrf.mxu0
    %1159 = vdwg.mxu0
    %1160 = vmatpush.bf16.msra.mxu0 %v762
    %1161 = vmatpush.bf16.msra.mxu0 %v758
    %1162 = vmatpush.bf16.msra.mxu0 %v754
    %1163 = vmatpush.bf16.msra.mxu0 %v750
    %1164 = vmatpush.bf16.msra.mxu0 %v746
    %1165 = vmatpush.bf16.msra.mxu0 %v742
    %1166 = vmatpush.bf16.msra.mxu0 %v738
    %1167 = vmatpush.bf16.msra.mxu0 %v734
    %1168 = vmatmul.bf16.gmra.mxu0 %v197
    %v1169 = vpop.f32.mrf.mxu0
    %v1170 = vadd.f32 %v1157, %v1169
    %v1171 = vpop.f32.mrf.mxu0
    %1172 = vdwg.mxu0
    %1173 = vmatpush.bf16.msra.mxu0 0
    %1174 = vmatpush.bf16.msra.mxu0 0
    %1175 = vmatpush.bf16.msra.mxu0 0
    %1176 = vmatpush.bf16.msra.mxu0 0
    %1177 = vmatpush.bf16.msra.mxu0 %v778
    %1178 = vmatpush.bf16.msra.mxu0 %v774
    %1179 = vmatpush.bf16.msra.mxu0 %v770
    %1180 = vmatpush.bf16.msra.mxu0 %v766
    %1181 = vmatmul.bf16.gmra.mxu0 %v924
    %v1182 = vpop.f32.mrf.mxu0
    %v1183 = vadd.f32 %v1170, %v1182
    %v1184 = vpop.f32.mrf.mxu0
    %1185 = vdwg.mxu0
    %v1186 = vmax.f32 %v988, 0.0
    %v1187 = vmax.f32 %v1053, 0.0
    %v1188 = vmax.f32 %v1118, 0.0
    %v1189 = vmax.f32 %v1183, 0.0
    %v1190 = vpack.c.bf16 %v1186, %v1186
    %v1191 = vpack.c.bf16 %v1187, %v1187
    %v1192 = vpack.c.bf16 %v1188, %v1188
    %v1193 = vpack.c.bf16 %v1189, %v1189
    %v1194 = vld [vmem:[%s3] sm:$0xf]
    %v1195 = vld [vmem:[%s3 + $0x4] sm:$0xf]
    %v1196 = vld [vmem:[%s3 + $0x8] sm:$0xf]
    %v1197 = vld [vmem:[%s3 + $0xc] sm:$0xf]
    %v1198 = vld [vmem:[%s3 + $0x10] sm:$0xf]
    %v1199 = vld [vmem:[%s3 + $0x14] sm:$0xf]
    %v1200 = vld [vmem:[%s3 + $0x18] sm:$0xf]
    %v1201 = vld [vmem:[%s3 + $0x1c] sm:$0xf]
    %v1202 = vld [vmem:[%s3 + $0x20] sm:$0xf]
    %v1203 = vld [vmem:[%s3 + $0x24] sm:$0xf]
    %v1204 = vld [vmem:[%s3 + $0x28] sm:$0xf]
    %v1205 = vld [vmem:[%s3 + $0x2c] sm:$0xf]
    %v1206 = vld [vmem:[%s3 + $0x30] sm:$0xf]
    %v1207 = vld [vmem:[%s3 + $0x34] sm:$0xf]
    %v1208 = vld [vmem:[%s3 + $0x38] sm:$0xf]
    %v1209 = vld [vmem:[%s3 + $0x3c] sm:$0xf]
    %v1210 = vld [vmem:[%s3 + $0x40] sm:$0xf]
    %v1211 = vld [vmem:[%s3 + $0x44] sm:$0xf]
    %v1212 = vld [vmem:[%s3 + $0x48] sm:$0xf]
    %v1213 = vld [vmem:[%s3 + $0x4c] sm:$0xf]
    %v1214 = vld [vmem:[%s3 + $0x50] sm:$0xf]
    %v1215 = vld [vmem:[%s3 + $0x54] sm:$0xf]
    %v1216 = vld [vmem:[%s3 + $0x58] sm:$0xf]
    %v1217 = vld [vmem:[%s3 + $0x5c] sm:$0xf]
    %v1218 = vld [vmem:[%s3 + $0x60] sm:$0xf]
    %v1219 = vld [vmem:[%s3 + $0x64] sm:$0xf]
    %v1220 = vld [vmem:[%s3 + $0x68] sm:$0xf]
    %v1221 = vld [vmem:[%s3 + $0x6c] sm:$0xf]
    %v1222 = vld [vmem:[%s3 + $0x70] sm:$0xf]
    %v1223 = vld [vmem:[%s3 + $0x74] sm:$0xf]
    %v1224 = vld [vmem:[%s3 + $0x78] sm:$0xf]
    %v1225 = vld [vmem:[%s3 + $0x7c] sm:$0xf]
    %v1226 = vld [vmem:[%s3 + $0x80] sm:$0xf]
    %v1227 = vld [vmem:[%s3 + $0x84] sm:$0xf]
    %v1228 = vld [vmem:[%s3 + $0x88] sm:$0xf]
    %v1229 = vld [vmem:[%s3 + $0x8c] sm:$0xf]
    %v1230 = vld [vmem:[%s3 + $0x90] sm:$0xf]
    %v1231 = vld [vmem:[%s3 + $0x94] sm:$0xf]
    %v1232 = vld [vmem:[%s3 + $0x98] sm:$0xf]
    %v1233 = vld [vmem:[%s3 + $0x9c] sm:$0xf]
    %v1234 = vld [vmem:[%s3 + $0xa0] sm:$0xf]
    %v1235 = vld [vmem:[%s3 + $0xa4] sm:$0xf]
    %v1236 = vld [vmem:[%s3 + $0xa8] sm:$0xf]
    %v1237 = vld [vmem:[%s3 + $0xac] sm:$0xf]
    %v1238 = vld [vmem:[%s3 + $0xb0] sm:$0xf]
    %v1239 = vld [vmem:[%s3 + $0xb4] sm:$0xf]
    %v1240 = vld [vmem:[%s3 + $0xb8] sm:$0xf]
    %v1241 = vld [vmem:[%s3 + $0xbc] sm:$0xf]
    %v1242 = vld [vmem:[%s3 + $0xc0] sm:$0xf]
    %v1243 = vld [vmem:[%s3 + $0xc4] sm:$0xf]
    %v1244 = vld [vmem:[%s3 + $0xc8] sm:$0xf]
    %v1245 = vld [vmem:[%s3 + $0xcc] sm:$0xf]
    %v1246 = vld [vmem:[%s3 + $0xd0] sm:$0xf]
    %v1247 = vld [vmem:[%s3 + $0xd4] sm:$0xf]
    %v1248 = vld [vmem:[%s3 + $0xd8] sm:$0xf]
    %v1249 = vld [vmem:[%s3 + $0xdc] sm:$0xf]
    %v1250 = vld [vmem:[%s3 + $0xe0] sm:$0xf]
    %v1251 = vld [vmem:[%s3 + $0xe4] sm:$0xf]
    %v1252 = vld [vmem:[%s3 + $0xe8] sm:$0xf]
    %v1253 = vld [vmem:[%s3 + $0xec] sm:$0xf]
    %v1254 = vld [vmem:[%s3 + $0xf0] sm:$0xf]
    %v1255 = vld [vmem:[%s3 + $0xf4] sm:$0xf]
    %v1256 = vld [vmem:[%s3 + $0xf8] sm:$0xf]
    %v1257 = vld [vmem:[%s3 + $0xfc] sm:$0xf]
    %v1258 = vld [vmem:[%s4] sm:$0x1]
    %v1260 = vperm.slane %v1258, 0
    %v1326 = vunpack.c.l.b16 %v1194
    %v1327 = vunpack.c.l.b16 %v1195
    %v1328 = vunpack.c.l.b16 %v1196
    %v1329 = vunpack.c.l.b16 %v1197
    %v1330 = vunpack.c.l.b16 %v1198
    %v1331 = vunpack.c.l.b16 %v1199
    %v1332 = vunpack.c.l.b16 %v1200
    %v1333 = vunpack.c.l.b16 %v1201
    %v1334 = vunpack.c.l.b16 %v1202
    %v1335 = vunpack.c.l.b16 %v1203
    %v1336 = vunpack.c.l.b16 %v1204
    %v1337 = vunpack.c.l.b16 %v1205
    %v1338 = vunpack.c.l.b16 %v1206
    %v1339 = vunpack.c.l.b16 %v1207
    %v1340 = vunpack.c.l.b16 %v1208
    %v1341 = vunpack.c.l.b16 %v1209
    %v1342 = vunpack.c.l.b16 %v1210
    %v1343 = vunpack.c.l.b16 %v1211
    %v1344 = vunpack.c.l.b16 %v1212
    %v1345 = vunpack.c.l.b16 %v1213
    %v1346 = vunpack.c.l.b16 %v1214
    %v1347 = vunpack.c.l.b16 %v1215
    %v1348 = vunpack.c.l.b16 %v1216
    %v1349 = vunpack.c.l.b16 %v1217
    %v1350 = vunpack.c.l.b16 %v1218
    %v1351 = vunpack.c.l.b16 %v1219
    %v1352 = vunpack.c.l.b16 %v1220
    %v1353 = vunpack.c.l.b16 %v1221
    %v1354 = vunpack.c.l.b16 %v1222
    %v1355 = vunpack.c.l.b16 %v1223
    %v1356 = vunpack.c.l.b16 %v1224
    %v1357 = vunpack.c.l.b16 %v1225
    %v1358 = vunpack.c.l.b16 %v1226
    %v1359 = vunpack.c.l.b16 %v1227
    %v1360 = vunpack.c.l.b16 %v1228
    %v1361 = vunpack.c.l.b16 %v1229
    %v1362 = vunpack.c.l.b16 %v1230
    %v1363 = vunpack.c.l.b16 %v1231
    %v1364 = vunpack.c.l.b16 %v1232
    %v1365 = vunpack.c.l.b16 %v1233
    %v1366 = vunpack.c.l.b16 %v1234
    %v1367 = vunpack.c.l.b16 %v1235
    %v1368 = vunpack.c.l.b16 %v1236
    %v1369 = vunpack.c.l.b16 %v1237
    %v1370 = vunpack.c.l.b16 %v1238
    %v1371 = vunpack.c.l.b16 %v1239
    %v1372 = vunpack.c.l.b16 %v1240
    %v1373 = vunpack.c.l.b16 %v1241
    %v1374 = vunpack.c.l.b16 %v1242
    %v1375 = vunpack.c.l.b16 %v1243
    %v1376 = vunpack.c.l.b16 %v1244
    %v1377 = vunpack.c.l.b16 %v1245
    %v1378 = vunpack.c.l.b16 %v1246
    %v1379 = vunpack.c.l.b16 %v1247
    %v1380 = vunpack.c.l.b16 %v1248
    %v1381 = vunpack.c.l.b16 %v1249
    %v1382 = vunpack.c.l.b16 %v1250
    %v1383 = vunpack.c.l.b16 %v1251
    %v1384 = vunpack.c.l.b16 %v1252
    %v1385 = vunpack.c.l.b16 %v1253
    %v1386 = vunpack.c.l.b16 %v1254
    %v1387 = vunpack.c.l.b16 %v1255
    %v1388 = vunpack.c.l.b16 %v1256
    %v1389 = vunpack.c.l.b16 %v1257
    %v1390 = vpack.c.b16 %v1327, %v1326
    %v1391 = vpack.c.b16 %v1329, %v1328
    %v1392 = vpack.c.b16 %v1331, %v1330
    %v1393 = vpack.c.b16 %v1333, %v1332
    %v1394 = vpack.c.b16 %v1335, %v1334
    %v1395 = vpack.c.b16 %v1337, %v1336
    %v1396 = vpack.c.b16 %v1339, %v1338
    %v1397 = vpack.c.b16 %v1341, %v1340
    %v1398 = vpack.c.b16 %v1343, %v1342
    %v1399 = vpack.c.b16 %v1345, %v1344
    %v1400 = vpack.c.b16 %v1347, %v1346
    %v1401 = vpack.c.b16 %v1349, %v1348
    %v1402 = vpack.c.b16 %v1351, %v1350
    %v1403 = vpack.c.b16 %v1353, %v1352
    %v1404 = vpack.c.b16 %v1355, %v1354
    %v1405 = vpack.c.b16 %v1357, %v1356
    %v1406 = vpack.c.b16 %v1359, %v1358
    %v1407 = vpack.c.b16 %v1361, %v1360
    %v1408 = vpack.c.b16 %v1363, %v1362
    %v1409 = vpack.c.b16 %v1365, %v1364
    %v1410 = vpack.c.b16 %v1367, %v1366
    %v1411 = vpack.c.b16 %v1369, %v1368
    %v1412 = vpack.c.b16 %v1371, %v1370
    %v1413 = vpack.c.b16 %v1373, %v1372
    %v1414 = vpack.c.b16 %v1375, %v1374
    %v1415 = vpack.c.b16 %v1377, %v1376
    %v1416 = vpack.c.b16 %v1379, %v1378
    %v1417 = vpack.c.b16 %v1381, %v1380
    %v1418 = vpack.c.b16 %v1383, %v1382
    %v1419 = vpack.c.b16 %v1385, %v1384
    %v1420 = vpack.c.b16 %v1387, %v1386
    %v1421 = vpack.c.b16 %v1389, %v1388
    %1454 = vmatpush.bf16.msra.mxu0 %v1397
    %1455 = vmatpush.bf16.msra.mxu0 %v1396
    %1456 = vmatpush.bf16.msra.mxu0 %v1395
    %1457 = vmatpush.bf16.msra.mxu0 %v1394
    %1458 = vmatpush.bf16.msra.mxu0 %v1393
    %1459 = vmatpush.bf16.msra.mxu0 %v1392
    %1460 = vmatpush.bf16.msra.mxu0 %v1391
    %1461 = vmatpush.bf16.msra.mxu0 %v1390
    %1462 = vmatmul.bf16.gmra.mxu0 %v1190
    %v1463 = vpop.f32.mrf.mxu0
    %v1464 = vadd.f32 %v1260, %v1463
    %v1465 = vpop.f32.mrf.mxu0
    %1466 = vdwg.mxu0
    %1467 = vmatpush.bf16.msra.mxu0 %v1405
    %1468 = vmatpush.bf16.msra.mxu0 %v1404
    %1469 = vmatpush.bf16.msra.mxu0 %v1403
    %1470 = vmatpush.bf16.msra.mxu0 %v1402
    %1471 = vmatpush.bf16.msra.mxu0 %v1401
    %1472 = vmatpush.bf16.msra.mxu0 %v1400
    %1473 = vmatpush.bf16.msra.mxu0 %v1399
    %1474 = vmatpush.bf16.msra.mxu0 %v1398
    %1475 = vmatmul.bf16.gmra.mxu0 %v1191
    %v1476 = vpop.f32.mrf.mxu0
    %v1477 = vadd.f32 %v1464, %v1476
    %v1478 = vpop.f32.mrf.mxu0
    %1479 = vdwg.mxu0
    %1480 = vmatpush.bf16.msra.mxu0 %v1413
    %1481 = vmatpush.bf16.msra.mxu0 %v1412
    %1482 = vmatpush.bf16.msra.mxu0 %v1411
    %1483 = vmatpush.bf16.msra.mxu0 %v1410
    %1484 = vmatpush.bf16.msra.mxu0 %v1409
    %1485 = vmatpush.bf16.msra.mxu0 %v1408
    %1486 = vmatpush.bf16.msra.mxu0 %v1407
    %1487 = vmatpush.bf16.msra.mxu0 %v1406
    %1488 = vmatmul.bf16.gmra.mxu0 %v1192
    %v1489 = vpop.f32.mrf.mxu0
    %v1490 = vadd.f32 %v1477, %v1489
    %v1491 = vpop.f32.mrf.mxu0
    %1492 = vdwg.mxu0
    %1493 = vmatpush.bf16.msra.mxu0 %v1421
    %1494 = vmatpush.bf16.msra.mxu0 %v1420
    %1495 = vmatpush.bf16.msra.mxu0 %v1419
    %1496 = vmatpush.bf16.msra.mxu0 %v1418
    %1497 = vmatpush.bf16.msra.mxu0 %v1417
    %1498 = vmatpush.bf16.msra.mxu0 %v1416
    %1499 = vmatpush.bf16.msra.mxu0 %v1415
    %1500 = vmatpush.bf16.msra.mxu0 %v1414
    %1501 = vmatmul.bf16.gmra.mxu0 %v1193
    %v1502 = vpop.f32.mrf.mxu0
    %v1503 = vadd.f32 %v1490, %v1502
    %v1504 = vpop.f32.mrf.mxu0
    %1505 = vdwg.mxu0
    %1506 = vst [vmem:[%s5] sm:$0x3] %v1503
    // Predicated region
    $region26: #{forward_value_head.3} parent=1 // pred_check
      _
    $region27: #{forward_value_head.3} parent=1 // pred_check_branch
      %1508 = sbr.rel (0) target = $region29
    $region28: #{forward_value_head.3} parent=1 // pred_region
      _
    $region29: #{forward_value_head.3} parent=1 // pred_fallthru
      _
    // Predicated region
    $region30: #{forward_value_head.3} parent=1 // pred_check
      _
    $region31: #{forward_value_head.3} parent=1 // pred_check_branch
      %1510 = sbr.rel (0) target = $region33
    $region32: #{forward_value_head.3} parent=1 // pred_region
      _
    $region33: #{forward_value_head.3} parent=1 // pred_fallthru
      _
    %1511 = vsyncpa [#allocation3], 1

// kernel: forward_value_head.2
$region0: #{forward_value_head.2}
  #allocation0 [shape = 'u32[]', space=smem, size = 0x4, offset = 0x4, fixed_abs, tag = 'smem constant byte address 0x4 - core index']
  #allocation1 [shape = 'u32[72,128]{1,0:T(1,128)}', space=vmem, size = 0x9000, scoped, tag = 'internal scratch']
  #allocation2 [shape = 'f32[88,16]{1,0:T(8,128)}', space=vmem, size = 0xb000, scoped, tag = 'scratch operand']
  %s0 = inlined_call_operand.vmem [shape: f32[88,54], index: 0, kind: input, shape index: {}]
  %s1 = inlined_call_operand.vmem [shape: f32[9,72,1], index: 1, kind: input, shape index: {}]
  %s2 = inlined_call_operand.vmem [shape: bf16[486,16], index: 2, kind: input, shape index: {}]
  %s3 = inlined_call_operand.vmem [shape: f32[1,16], index: 3, kind: input, shape index: {}]
  %s4 = inlined_call_operand.vmem [shape: bf16[2,144,16], index: 4, kind: input, shape index: {}]
  %s5 = inlined_call_operand.vmem [shape: f32[2,1,16], index: 5, kind: input, shape index: {}]
  %s6 = inlined_call_operand.vmem [shape: f32[2,1,16], index: 6, kind: input, shape index: {}]
  %s7 = inlined_call_operand.vmem [shape: bf16[2,144,16], index: 7, kind: input, shape index: {}]
  %s8 = inlined_call_operand.vmem [shape: f32[2,1,16], index: 8, kind: input, shape index: {}]
  %s9 = inlined_call_operand.vmem [shape: f32[2,1,16], index: 9, kind: input, shape index: {}]
  %s10 = inlined_call_operand.vmem [shape: bf16[72,16], index: 10, kind: output, shape index: {}]
  %s11 = sld [smem:[#allocation0]]
  $region50: #{forward_value_head.2} parent=0
    _
  %s13 = ssub.s32 1, %s11
  %s14 = scalar_select 0, %s13, %s11
  // Predicated region
  $region2: #{forward_value_head.2} parent=0 // pred_check
    _
  $region3: #{forward_value_head.2} parent=0 // pred_check_branch
    %16 = sbr.rel (0) target = $region5
  $region4: #{forward_value_head.2} parent=0 // pred_region
    _
  $region5: #{forward_value_head.2} parent=0 // pred_fallthru
    _
  // Predicated region
  $region6: #{forward_value_head.2} parent=0 // pred_check
    _
  $region7: #{forward_value_head.2} parent=0 // pred_check_branch
    %18 = sbr.rel (0) target = $region9
  $region8: #{forward_value_head.2} parent=0 // pred_region
    _
  $region9: #{forward_value_head.2} parent=0 // pred_fallthru
    _
  // Predicated region
  $region10: #{forward_value_head.2} parent=0 // pred_check
    _
  $region11: #{forward_value_head.2} parent=0 // pred_check_branch
    %20 = sbr.rel (0) target = $region13
  $region12: #{forward_value_head.2} parent=0 // pred_region
    _
  $region13: #{forward_value_head.2} parent=0 // pred_fallthru
    _
  // Predicated region
  $region14: #{forward_value_head.2} parent=0 // pred_check
    _
  $region15: #{forward_value_head.2} parent=0 // pred_check_branch
    %22 = sbr.rel (0) target = $region17
  $region16: #{forward_value_head.2} parent=0 // pred_region
    _
  $region17: #{forward_value_head.2} parent=0 // pred_fallthru
    _
  // Predicated region
  $region18: #{forward_value_head.2} parent=0 // pred_check
    _
  $region19: #{forward_value_head.2} parent=0 // pred_check_branch
    %24 = sbr.rel (0) target = $region21
  $region20: #{forward_value_head.2} parent=0 // pred_region
    _
  $region21: #{forward_value_head.2} parent=0 // pred_fallthru
    _
  // Predicated region
  $region22: #{forward_value_head.2} parent=0 // pred_check
    _
  $region23: #{forward_value_head.2} parent=0 // pred_check_branch
    %26 = sbr.rel (0) target = $region25
  $region24: #{forward_value_head.2} parent=0 // pred_region
    _
  $region25: #{forward_value_head.2} parent=0 // pred_fallthru
    _
  // Predicated region
  $region26: #{forward_value_head.2} parent=0 // pred_check
    _
  $region27: #{forward_value_head.2} parent=0 // pred_check_branch
    %28 = sbr.rel (0) target = $region29
  $region28: #{forward_value_head.2} parent=0 // pred_region
    _
  $region29: #{forward_value_head.2} parent=0 // pred_fallthru
    _
  // Predicated region
  $region30: #{forward_value_head.2} parent=0 // pred_check
    _
  $region31: #{forward_value_head.2} parent=0 // pred_check_branch
    %30 = sbr.rel (0) target = $region33
  $region32: #{forward_value_head.2} parent=0 // pred_region
    _
  $region33: #{forward_value_head.2} parent=0 // pred_fallthru
    _
  // Predicated region
  $region34: #{forward_value_head.2} parent=0 // pred_check
    _
  $region35: #{forward_value_head.2} parent=0 // pred_check_branch
    %32 = sbr.rel (0) target = $region37
  $region36: #{forward_value_head.2} parent=0 // pred_region
    _
  $region37: #{forward_value_head.2} parent=0 // pred_fallthru
    _
  // Predicated region
  $region38: #{forward_value_head.2} parent=0 // pred_check
    _
  $region39: #{forward_value_head.2} parent=0 // pred_check_branch
    %34 = sbr.rel (0) target = $region41
  $region40: #{forward_value_head.2} parent=0 // pred_region
    _
  $region41: #{forward_value_head.2} parent=0 // pred_fallthru
    _
  %vm36 = vcmask 130048
  %37 = vst.msk [vmem:[#allocation2] sm:$0xff] %vm36, 0.0
  %38 = vst.msk [vmem:[#allocation2 + $0x8] sm:$0xff] %vm36, 0.0
  %39 = vst.msk [vmem:[#allocation2 + $0x10] sm:$0xff] %vm36, 0.0
  %40 = vst.msk [vmem:[#allocation2 + $0x18] sm:$0xff] %vm36, 0.0
  %41 = vst.msk [vmem:[#allocation2 + $0x20] sm:$0xff] %vm36, 0.0
  %42 = vst.msk [vmem:[#allocation2 + $0x28] sm:$0xff] %vm36, 0.0
  %43 = vst.msk [vmem:[#allocation2 + $0x30] sm:$0xff] %vm36, 0.0
  %44 = vst.msk [vmem:[#allocation2 + $0x38] sm:$0xff] %vm36, 0.0
  %45 = vst.msk [vmem:[#allocation2 + $0x40] sm:$0xff] %vm36, 0.0
  %46 = vst.msk [vmem:[#allocation2 + $0x48] sm:$0xff] %vm36, 0.0
  %47 = vst.msk [vmem:[#allocation2 + $0x50] sm:$0xff] %vm36, 0.0
  %v48 = vld [vmem:[%s2] sm:$0xf]
  %v49 = vld [vmem:[%s2 + $0x4] sm:$0xf]
  %v50 = vld [vmem:[%s2 + $0x8] sm:$0xf]
  %v51 = vld [vmem:[%s2 + $0xc] sm:$0xf]
  %v52 = vld [vmem:[%s2 + $0x10] sm:$0xf]
  %v53 = vld [vmem:[%s2 + $0x14] sm:$0xf]
  %v54 = vld [vmem:[%s2 + $0x18] sm:$0xf]
  %v55 = vld [vmem:[%s2 + $0x1c] sm:$0xf]
  %v56 = vld [vmem:[%s2 + $0x20] sm:$0xf]
  %v57 = vld [vmem:[%s2 + $0x24] sm:$0xf]
  %v58 = vld [vmem:[%s2 + $0x28] sm:$0xf]
  %v59 = vld [vmem:[%s2 + $0x2c] sm:$0xf]
  %v60 = vld [vmem:[%s2 + $0x30] sm:$0xf]
  %v61 = vld [vmem:[%s2 + $0x34] sm:$0xf]
  %v62 = vld [vmem:[%s2 + $0x38] sm:$0xf]
  %v63 = vld [vmem:[%s2 + $0x3c] sm:$0xf]
  %v64 = vld [vmem:[%s2 + $0x40] sm:$0xf]
  %v65 = vld [vmem:[%s2 + $0x44] sm:$0xf]
  %v66 = vld [vmem:[%s2 + $0x48] sm:$0xf]
  %v67 = vld [vmem:[%s2 + $0x4c] sm:$0xf]
  %v68 = vld [vmem:[%s2 + $0x50] sm:$0xf]
  %v69 = vld [vmem:[%s2 + $0x54] sm:$0xf]
  %v70 = vld [vmem:[%s2 + $0x58] sm:$0xf]
  %v71 = vld [vmem:[%s2 + $0x5c] sm:$0xf]
  %v72 = vld [vmem:[%s2 + $0x60] sm:$0xf]
  %v73 = vld [vmem:[%s2 + $0x64] sm:$0xf]
  %v74 = vld [vmem:[%s2 + $0x68] sm:$0xf]
  %v75 = vld [vmem:[%s2 + $0x6c] sm:$0xf]
  %v76 = vld [vmem:[%s2 + $0x70] sm:$0xf]
  %v77 = vld [vmem:[%s2 + $0x74] sm:$0xf]
  %v78 = vld [vmem:[%s2 + $0x78] sm:$0xf]
  %v79 = vld [vmem:[%s2 + $0x7c] sm:$0xf]
  %v80 = vld [vmem:[%s2 + $0x80] sm:$0xf]
  %v81 = vld [vmem:[%s2 + $0x84] sm:$0xf]
  %v82 = vld [vmem:[%s2 + $0x88] sm:$0xf]
  %v83 = vld [vmem:[%s2 + $0x8c] sm:$0xf]
  %v84 = vld [vmem:[%s2 + $0x90] sm:$0xf]
  %v85 = vld [vmem:[%s2 + $0x94] sm:$0xf]
  %v86 = vld [vmem:[%s2 + $0x98] sm:$0xf]
  %v87 = vld [vmem:[%s2 + $0x9c] sm:$0xf]
  %v88 = vld [vmem:[%s2 + $0xa0] sm:$0xf]
  %v89 = vld [vmem:[%s2 + $0xa4] sm:$0xf]
  %v90 = vld [vmem:[%s2 + $0xa8] sm:$0xf]
  %v91 = vld [vmem:[%s2 + $0xac] sm:$0xf]
  %v92 = vld [vmem:[%s2 + $0xb0] sm:$0xf]
  %v93 = vld [vmem:[%s2 + $0xb4] sm:$0xf]
  %v94 = vld [vmem:[%s2 + $0xb8] sm:$0xf]
  %v95 = vld [vmem:[%s2 + $0xbc] sm:$0xf]
  %v96 = vld [vmem:[%s2 + $0xc0] sm:$0xf]
  %v97 = vld [vmem:[%s2 + $0xc4] sm:$0xf]
  %v98 = vld [vmem:[%s2 + $0xc8] sm:$0xf]
  %v99 = vld [vmem:[%s2 + $0xcc] sm:$0xf]
  %v100 = vld [vmem:[%s2 + $0xd0] sm:$0xf]
  %v101 = vld [vmem:[%s2 + $0xd4] sm:$0xf]
  %v102 = vld [vmem:[%s2 + $0xd8] sm:$0xf]
  %v103 = vld [vmem:[%s2 + $0xdc] sm:$0xf]
  %v104 = vld [vmem:[%s2 + $0xe0] sm:$0xf]
  %v105 = vld [vmem:[%s2 + $0xe4] sm:$0xf]
  %v106 = vld [vmem:[%s2 + $0xe8] sm:$0xf]
  %v107 = vld [vmem:[%s2 + $0xec] sm:$0xf]
  %v108 = vld [vmem:[%s2 + $0xf0] sm:$0x7]
  %v109 = vld [vmem:[%s0 + $0x3] sm:$0xff]
  %v110 = vld [vmem:[%s0 + $0xb] sm:$0xff]
  %v111 = vld [vmem:[%s0 + $0x13] sm:$0xff]
  %v112 = vld [vmem:[%s0 + $0x1b] sm:$0xff]
  %v113 = vld [vmem:[%s0 + $0x23] sm:$0xff]
  %v114 = vld [vmem:[%s0 + $0x2b] sm:$0xff]
  %v115 = vld [vmem:[%s0 + $0x33] sm:$0xff]
  %v116 = vld [vmem:[%s0 + $0x3b] sm:$0xff]
  %v117 = vld [vmem:[%s0 + $0x43] sm:$0xff]
  %v118 = vld [vmem:[%s1] sm:$0xff]
  %v119 = vld [vmem:[%s1 + $0x8] sm:$0xff]
  %v120 = vld [vmem:[%s1 + $0x10] sm:$0xff]
  %v121 = vld [vmem:[%s1 + $0x18] sm:$0xff]
  %v122 = vld [vmem:[%s1 + $0x20] sm:$0xff]
  %v123 = vld [vmem:[%s1 + $0x28] sm:$0xff]
  %v124 = vld [vmem:[%s1 + $0x30] sm:$0xff]
  %v125 = vld [vmem:[%s1 + $0x38] sm:$0xff]
  %v126 = vld [vmem:[%s1 + $0x40] sm:$0xff]
  %128 = vset.pattern.permute.xlu0 0
  %129 = vperm.xlu0 %128, %v118
  %v130 = vpop.permute.xlu0 %129
  %133 = vset.pattern.permute.xlu0 0
  %134 = vperm.xlu0 %133, %v119
  %v135 = vpop.permute.xlu0 %134
  %138 = vset.pattern.permute.xlu0 0
  %139 = vperm.xlu0 %138, %v120
  %v140 = vpop.permute.xlu0 %139
  %143 = vset.pattern.permute.xlu0 0
  %144 = vperm.xlu0 %143, %v121
  %v145 = vpop.permute.xlu0 %144
  %148 = vset.pattern.permute.xlu0 0
  %149 = vperm.xlu0 %148, %v122
  %v150 = vpop.permute.xlu0 %149
  %153 = vset.pattern.permute.xlu0 0
  %154 = vperm.xlu0 %153, %v123
  %v155 = vpop.permute.xlu0 %154
  %158 = vset.pattern.permute.xlu0 0
  %159 = vperm.xlu0 %158, %v124
  %v160 = vpop.permute.xlu0 %159
  %163 = vset.pattern.permute.xlu0 0
  %164 = vperm.xlu0 %163, %v125
  %v165 = vpop.permute.xlu0 %164
  %168 = vset.pattern.permute.xlu0 0
  %169 = vperm.xlu0 %168, %v126
  %v170 = vpop.permute.xlu0 %169
  %v172 = vmul.f32 %v109, %v130
  %v173 = vmul.f32 %v110, %v135
  %v174 = vmul.f32 %v111, %v140
  %v175 = vmul.f32 %v112, %v145
  %v176 = vmul.f32 %v113, %v150
  %v177 = vmul.f32 %v114, %v155
  %v178 = vmul.f32 %v115, %v160
  %v179 = vmul.f32 %v116, %v165
  %v180 = vmul.f32 %v117, %v170
  %v181 = vpack.c.bf16 %v172, %v172
  %v182 = vpack.c.bf16 %v173, %v173
  %v183 = vpack.c.bf16 %v174, %v174
  %v184 = vpack.c.bf16 %v175, %v175
  %v185 = vpack.c.bf16 %v176, %v176
  %v186 = vpack.c.bf16 %v177, %v177
  %v187 = vpack.c.bf16 %v178, %v178
  %v188 = vpack.c.bf16 %v179, %v179
  %v189 = vpack.c.bf16 %v180, %v180
  %v190 = vld [vmem:[%s0 + $0x4] sm:$0xff]
  %v191 = vld [vmem:[%s0 + $0xc] sm:$0xff]
  %v192 = vld [vmem:[%s0 + $0x14] sm:$0xff]
  %v193 = vld [vmem:[%s0 + $0x1c] sm:$0xff]
  %v194 = vld [vmem:[%s0 + $0x24] sm:$0xff]
  %v195 = vld [vmem:[%s0 + $0x2c] sm:$0xff]
  %v196 = vld [vmem:[%s0 + $0x34] sm:$0xff]
  %v197 = vld [vmem:[%s0 + $0x3c] sm:$0xff]
  %v198 = vld [vmem:[%s0 + $0x44] sm:$0xff]
  %s199 = scalar_lea.vmem %s1, 72
  %v200 = vld [vmem:[%s199] sm:$0xff]
  %v201 = vld [vmem:[%s199 + $0x8] sm:$0xff]
  %v202 = vld [vmem:[%s199 + $0x10] sm:$0xff]
  %v203 = vld [vmem:[%s199 + $0x18] sm:$0xff]
  %v204 = vld [vmem:[%s199 + $0x20] sm:$0xff]
  %v205 = vld [vmem:[%s199 + $0x28] sm:$0xff]
  %v206 = vld [vmem:[%s199 + $0x30] sm:$0xff]
  %v207 = vld [vmem:[%s199 + $0x38] sm:$0xff]
  %v208 = vld [vmem:[%s199 + $0x40] sm:$0xff]
  %210 = vset.pattern.permute.xlu0 0
  %211 = vperm.xlu0 %210, %v200
  %v212 = vpop.permute.xlu0 %211
  %215 = vset.pattern.permute.xlu0 0
  %216 = vperm.xlu0 %215, %v201
  %v217 = vpop.permute.xlu0 %216
  %220 = vset.pattern.permute.xlu0 0
  %221 = vperm.xlu0 %220, %v202
  %v222 = vpop.permute.xlu0 %221
  %225 = vset.pattern.permute.xlu0 0
  %226 = vperm.xlu0 %225, %v203
  %v227 = vpop.permute.xlu0 %226
  %230 = vset.pattern.permute.xlu0 0
  %231 = vperm.xlu0 %230, %v204
  %v232 = vpop.permute.xlu0 %231
  %235 = vset.pattern.permute.xlu0 0
  %236 = vperm.xlu0 %235, %v205
  %v237 = vpop.permute.xlu0 %236
  %240 = vset.pattern.permute.xlu0 0
  %241 = vperm.xlu0 %240, %v206
  %v242 = vpop.permute.xlu0 %241
  %245 = vset.pattern.permute.xlu0 0
  %246 = vperm.xlu0 %245, %v207
  %v247 = vpop.permute.xlu0 %246
  %250 = vset.pattern.permute.xlu0 0
  %251 = vperm.xlu0 %250, %v208
  %v252 = vpop.permute.xlu0 %251
  %v254 = vmul.f32 %v190, %v212
  %v255 = vmul.f32 %v191, %v217
  %v256 = vmul.f32 %v192, %v222
  %v257 = vmul.f32 %v193, %v227
  %v258 = vmul.f32 %v194, %v232
  %v259 = vmul.f32 %v195, %v237
  %v260 = vmul.f32 %v196, %v242
  %v261 = vmul.f32 %v197, %v247
  %v262 = vmul.f32 %v198, %v252
  %v263 = vpack.c.bf16 %v254, %v254
  %v264 = vpack.c.bf16 %v255, %v255
  %v265 = vpack.c.bf16 %v256, %v256
  %v266 = vpack.c.bf16 %v257, %v257
  %v267 = vpack.c.bf16 %v258, %v258
  %v268 = vpack.c.bf16 %v259, %v259
  %v269 = vpack.c.bf16 %v260, %v260
  %v270 = vpack.c.bf16 %v261, %v261
  %v271 = vpack.c.bf16 %v262, %v262
  %v272 = vld [vmem:[%s0 + $0x5] sm:$0xff]
  %v273 = vld [vmem:[%s0 + $0xd] sm:$0xff]
  %v274 = vld [vmem:[%s0 + $0x15] sm:$0xff]
  %v275 = vld [vmem:[%s0 + $0x1d] sm:$0xff]
  %v276 = vld [vmem:[%s0 + $0x25] sm:$0xff]
  %v277 = vld [vmem:[%s0 + $0x2d] sm:$0xff]
  %v278 = vld [vmem:[%s0 + $0x35] sm:$0xff]
  %v279 = vld [vmem:[%s0 + $0x3d] sm:$0xff]
  %v280 = vld [vmem:[%s0 + $0x45] sm:$0xff]
  %s281 = scalar_lea.vmem %s1, 144
  %v282 = vld [vmem:[%s281] sm:$0xff]
  %v283 = vld [vmem:[%s281 + $0x8] sm:$0xff]
  %v284 = vld [vmem:[%s281 + $0x10] sm:$0xff]
  %v285 = vld [vmem:[%s281 + $0x18] sm:$0xff]
  %v286 = vld [vmem:[%s281 + $0x20] sm:$0xff]
  %v287 = vld [vmem:[%s281 + $0x28] sm:$0xff]
  %v288 = vld [vmem:[%s281 + $0x30] sm:$0xff]
  %v289 = vld [vmem:[%s281 + $0x38] sm:$0xff]
  %v290 = vld [vmem:[%s281 + $0x40] sm:$0xff]
  %292 = vset.pattern.permute.xlu0 0
  %293 = vperm.xlu0 %292, %v282
  %v294 = vpop.permute.xlu0 %293
  %297 = vset.pattern.permute.xlu0 0
  %298 = vperm.xlu0 %297, %v283
  %v299 = vpop.permute.xlu0 %298
  %302 = vset.pattern.permute.xlu0 0
  %303 = vperm.xlu0 %302, %v284
  %v304 = vpop.permute.xlu0 %303
  %307 = vset.pattern.permute.xlu0 0
  %308 = vperm.xlu0 %307, %v285
  %v309 = vpop.permute.xlu0 %308
  %312 = vset.pattern.permute.xlu0 0
  %313 = vperm.xlu0 %312, %v286
  %v314 = vpop.permute.xlu0 %313
  %317 = vset.pattern.permute.xlu0 0
  %318 = vperm.xlu0 %317, %v287
  %v319 = vpop.permute.xlu0 %318
  %322 = vset.pattern.permute.xlu0 0
  %323 = vperm.xlu0 %322, %v288
  %v324 = vpop.permute.xlu0 %323
  %327 = vset.pattern.permute.xlu0 0
  %328 = vperm.xlu0 %327, %v289
  %v329 = vpop.permute.xlu0 %328
  %332 = vset.pattern.permute.xlu0 0
  %333 = vperm.xlu0 %332, %v290
  %v334 = vpop.permute.xlu0 %333
  %v336 = vmul.f32 %v272, %v294
  %v337 = vmul.f32 %v273, %v299
  %v338 = vmul.f32 %v274, %v304
  %v339 = vmul.f32 %v275, %v309
  %v340 = vmul.f32 %v276, %v314
  %v341 = vmul.f32 %v277, %v319
  %v342 = vmul.f32 %v278, %v324
  %v343 = vmul.f32 %v279, %v329
  %v344 = vmul.f32 %v280, %v334
  %v345 = vpack.c.bf16 %v336, %v336
  %v346 = vpack.c.bf16 %v337, %v337
  %v347 = vpack.c.bf16 %v338, %v338
  %v348 = vpack.c.bf16 %v339, %v339
  %v349 = vpack.c.bf16 %v340, %v340
  %v350 = vpack.c.bf16 %v341, %v341
  %v351 = vpack.c.bf16 %v342, %v342
  %v352 = vpack.c.bf16 %v343, %v343
  %v353 = vpack.c.bf16 %v344, %v344
  %v354 = vld [vmem:[%s0 + $0x7] sm:$0xff]
  %v355 = vld [vmem:[%s0 + $0xf] sm:$0xff]
  %v356 = vld [vmem:[%s0 + $0x17] sm:$0xff]
  %v357 = vld [vmem:[%s0 + $0x1f] sm:$0xff]
  %v358 = vld [vmem:[%s0 + $0x27] sm:$0xff]
  %v359 = vld [vmem:[%s0 + $0x2f] sm:$0xff]
  %v360 = vld [vmem:[%s0 + $0x37] sm:$0xff]
  %v361 = vld [vmem:[%s0 + $0x3f] sm:$0xff]
  %v362 = vld [vmem:[%s0 + $0x47] sm:$0xff]
  %s363 = scalar_lea.vmem %s1, 216
  %v364 = vld [vmem:[%s363] sm:$0xff]
  %v365 = vld [vmem:[%s363 + $0x8] sm:$0xff]
  %v366 = vld [vmem:[%s363 + $0x10] sm:$0xff]
  %v367 = vld [vmem:[%s363 + $0x18] sm:$0xff]
  %v368 = vld [vmem:[%s363 + $0x20] sm:$0xff]
  %v369 = vld [vmem:[%s363 + $0x28] sm:$0xff]
  %v370 = vld [vmem:[%s363 + $0x30] sm:$0xff]
  %v371 = vld [vmem:[%s363 + $0x38] sm:$0xff]
  %v372 = vld [vmem:[%s363 + $0x40] sm:$0xff]
  %374 = vset.pattern.permute.xlu0 0
  %375 = vperm.xlu0 %374, %v364
  %v376 = vpop.permute.xlu0 %375
  %379 = vset.pattern.permute.xlu0 0
  %380 = vperm.xlu0 %379, %v365
  %v381 = vpop.permute.xlu0 %380
  %384 = vset.pattern.permute.xlu0 0
  %385 = vperm.xlu0 %384, %v366
  %v386 = vpop.permute.xlu0 %385
  %389 = vset.pattern.permute.xlu0 0
  %390 = vperm.xlu0 %389, %v367
  %v391 = vpop.permute.xlu0 %390
  %394 = vset.pattern.permute.xlu0 0
  %395 = vperm.xlu0 %394, %v368
  %v396 = vpop.permute.xlu0 %395
  %399 = vset.pattern.permute.xlu0 0
  %400 = vperm.xlu0 %399, %v369
  %v401 = vpop.permute.xlu0 %400
  %404 = vset.pattern.permute.xlu0 0
  %405 = vperm.xlu0 %404, %v370
  %v406 = vpop.permute.xlu0 %405
  %409 = vset.pattern.permute.xlu0 0
  %410 = vperm.xlu0 %409, %v371
  %v411 = vpop.permute.xlu0 %410
  %414 = vset.pattern.permute.xlu0 0
  %415 = vperm.xlu0 %414, %v372
  %v416 = vpop.permute.xlu0 %415
  %v418 = vmul.f32 %v354, %v376
  %v419 = vmul.f32 %v355, %v381
  %v420 = vmul.f32 %v356, %v386
  %v421 = vmul.f32 %v357, %v391
  %v422 = vmul.f32 %v358, %v396
  %v423 = vmul.f32 %v359, %v401
  %v424 = vmul.f32 %v360, %v406
  %v425 = vmul.f32 %v361, %v411
  %v426 = vmul.f32 %v362, %v416
  %v427 = vpack.c.bf16 %v418, %v418
  %v428 = vpack.c.bf16 %v419, %v419
  %v429 = vpack.c.bf16 %v420, %v420
  %v430 = vpack.c.bf16 %v421, %v421
  %v431 = vpack.c.bf16 %v422, %v422
  %v432 = vpack.c.bf16 %v423, %v423
  %v433 = vpack.c.bf16 %v424, %v424
  %v434 = vpack.c.bf16 %v425, %v425
  %v435 = vpack.c.bf16 %v426, %v426
  %v436 = vld [vmem:[%s0 + $0x8] sm:$0xff]
  %v437 = vld [vmem:[%s0 + $0x10] sm:$0xff]
  %v438 = vld [vmem:[%s0 + $0x18] sm:$0xff]
  %v439 = vld [vmem:[%s0 + $0x20] sm:$0xff]
  %v440 = vld [vmem:[%s0 + $0x28] sm:$0xff]
  %v441 = vld [vmem:[%s0 + $0x30] sm:$0xff]
  %v442 = vld [vmem:[%s0 + $0x38] sm:$0xff]
  %v443 = vld [vmem:[%s0 + $0x40] sm:$0xff]
  %v444 = vld [vmem:[%s0 + $0x48] sm:$0xff]
  %v445 = vpack.c.bf16 %v436, %v436
  %v446 = vpack.c.bf16 %v437, %v437
  %v447 = vpack.c.bf16 %v438, %v438
  %v448 = vpack.c.bf16 %v439, %v439
  %v449 = vpack.c.bf16 %v440, %v440
  %v450 = vpack.c.bf16 %v441, %v441
  %v451 = vpack.c.bf16 %v442, %v442
  %v452 = vpack.c.bf16 %v443, %v443
  %v453 = vpack.c.bf16 %v444, %v444
  %v454 = vld [vmem:[%s0 + $0x9] sm:$0xff]
  %v455 = vld [vmem:[%s0 + $0x11] sm:$0xff]
  %v456 = vld [vmem:[%s0 + $0x19] sm:$0xff]
  %v457 = vld [vmem:[%s0 + $0x21] sm:$0xff]
  %v458 = vld [vmem:[%s0 + $0x29] sm:$0xff]
  %v459 = vld [vmem:[%s0 + $0x31] sm:$0xff]
  %v460 = vld [vmem:[%s0 + $0x39] sm:$0xff]
  %v461 = vld [vmem:[%s0 + $0x41] sm:$0xff]
  %v462 = vld [vmem:[%s0 + $0x49] sm:$0xff]
  %s463 = scalar_lea.vmem %s1, 360
  %v464 = vld [vmem:[%s463] sm:$0xff]
  %v465 = vld [vmem:[%s463 + $0x8] sm:$0xff]
  %v466 = vld [vmem:[%s463 + $0x10] sm:$0xff]
  %v467 = vld [vmem:[%s463 + $0x18] sm:$0xff]
  %v468 = vld [vmem:[%s463 + $0x20] sm:$0xff]
  %v469 = vld [vmem:[%s463 + $0x28] sm:$0xff]
  %v470 = vld [vmem:[%s463 + $0x30] sm:$0xff]
  %v471 = vld [vmem:[%s463 + $0x38] sm:$0xff]
  %v472 = vld [vmem:[%s463 + $0x40] sm:$0xff]
  %474 = vset.pattern.permute.xlu0 0
  %475 = vperm.xlu0 %474, %v464
  %v476 = vpop.permute.xlu0 %475
  %479 = vset.pattern.permute.xlu0 0
  %480 = vperm.xlu0 %479, %v465
  %v481 = vpop.permute.xlu0 %480
  %484 = vset.pattern.permute.xlu0 0
  %485 = vperm.xlu0 %484, %v466
  %v486 = vpop.permute.xlu0 %485
  %489 = vset.pattern.permute.xlu0 0
  %490 = vperm.xlu0 %489, %v467
  %v491 = vpop.permute.xlu0 %490
  %494 = vset.pattern.permute.xlu0 0
  %495 = vperm.xlu0 %494, %v468
  %v496 = vpop.permute.xlu0 %495
  %499 = vset.pattern.permute.xlu0 0
  %500 = vperm.xlu0 %499, %v469
  %v501 = vpop.permute.xlu0 %500
  %504 = vset.pattern.permute.xlu0 0
  %505 = vperm.xlu0 %504, %v470
  %v506 = vpop.permute.xlu0 %505
  %509 = vset.pattern.permute.xlu0 0
  %510 = vperm.xlu0 %509, %v471
  %v511 = vpop.permute.xlu0 %510
  %514 = vset.pattern.permute.xlu0 0
  %515 = vperm.xlu0 %514, %v472
  %v516 = vpop.permute.xlu0 %515
  %v518 = vmul.f32 %v454, %v476
  %v519 = vmul.f32 %v455, %v481
  %v520 = vmul.f32 %v456, %v486
  %v521 = vmul.f32 %v457, %v491
  %v522 = vmul.f32 %v458, %v496
  %v523 = vmul.f32 %v459, %v501
  %v524 = vmul.f32 %v460, %v506
  %v525 = vmul.f32 %v461, %v511
  %v526 = vmul.f32 %v462, %v516
  %v527 = vpack.c.bf16 %v518, %v518
  %v528 = vpack.c.bf16 %v519, %v519
  %v529 = vpack.c.bf16 %v520, %v520
  %v530 = vpack.c.bf16 %v521, %v521
  %v531 = vpack.c.bf16 %v522, %v522
  %v532 = vpack.c.bf16 %v523, %v523
  %v533 = vpack.c.bf16 %v524, %v524
  %v534 = vpack.c.bf16 %v525, %v525
  %v535 = vpack.c.bf16 %v526, %v526
  %v536 = vld [vmem:[%s0 + $0xb] sm:$0xff]
  %v537 = vld [vmem:[%s0 + $0x13] sm:$0xff]
  %v538 = vld [vmem:[%s0 + $0x1b] sm:$0xff]
  %v539 = vld [vmem:[%s0 + $0x23] sm:$0xff]
  %v540 = vld [vmem:[%s0 + $0x2b] sm:$0xff]
  %v541 = vld [vmem:[%s0 + $0x33] sm:$0xff]
  %v542 = vld [vmem:[%s0 + $0x3b] sm:$0xff]
  %v543 = vld [vmem:[%s0 + $0x43] sm:$0xff]
  %v544 = vld [vmem:[%s0 + $0x4b] sm:$0xff]
  %s545 = scalar_lea.vmem %s1, 432
  %v546 = vld [vmem:[%s545] sm:$0xff]
  %v547 = vld [vmem:[%s545 + $0x8] sm:$0xff]
  %v548 = vld [vmem:[%s545 + $0x10] sm:$0xff]
  %v549 = vld [vmem:[%s545 + $0x18] sm:$0xff]
  %v550 = vld [vmem:[%s545 + $0x20] sm:$0xff]
  %v551 = vld [vmem:[%s545 + $0x28] sm:$0xff]
  %v552 = vld [vmem:[%s545 + $0x30] sm:$0xff]
  %v553 = vld [vmem:[%s545 + $0x38] sm:$0xff]
  %v554 = vld [vmem:[%s545 + $0x40] sm:$0xff]
  %556 = vset.pattern.permute.xlu0 0
  %557 = vperm.xlu0 %556, %v546
  %v558 = vpop.permute.xlu0 %557
  %561 = vset.pattern.permute.xlu0 0
  %562 = vperm.xlu0 %561, %v547
  %v563 = vpop.permute.xlu0 %562
  %566 = vset.pattern.permute.xlu0 0
  %567 = vperm.xlu0 %566, %v548
  %v568 = vpop.permute.xlu0 %567
  %571 = vset.pattern.permute.xlu0 0
  %572 = vperm.xlu0 %571, %v549
  %v573 = vpop.permute.xlu0 %572
  %576 = vset.pattern.permute.xlu0 0
  %577 = vperm.xlu0 %576, %v550
  %v578 = vpop.permute.xlu0 %577
  %581 = vset.pattern.permute.xlu0 0
  %582 = vperm.xlu0 %581, %v551
  %v583 = vpop.permute.xlu0 %582
  %586 = vset.pattern.permute.xlu0 0
  %587 = vperm.xlu0 %586, %v552
  %v588 = vpop.permute.xlu0 %587
  %591 = vset.pattern.permute.xlu0 0
  %592 = vperm.xlu0 %591, %v553
  %v593 = vpop.permute.xlu0 %592
  %596 = vset.pattern.permute.xlu0 0
  %597 = vperm.xlu0 %596, %v554
  %v598 = vpop.permute.xlu0 %597
  %v600 = vmul.f32 %v536, %v558
  %v601 = vmul.f32 %v537, %v563
  %v602 = vmul.f32 %v538, %v568
  %v603 = vmul.f32 %v539, %v573
  %v604 = vmul.f32 %v540, %v578
  %v605 = vmul.f32 %v541, %v583
  %v606 = vmul.f32 %v542, %v588
  %v607 = vmul.f32 %v543, %v593
  %v608 = vmul.f32 %v544, %v598
  %v609 = vpack.c.bf16 %v600, %v600
  %v610 = vpack.c.bf16 %v601, %v601
  %v611 = vpack.c.bf16 %v602, %v602
  %v612 = vpack.c.bf16 %v603, %v603
  %v613 = vpack.c.bf16 %v604, %v604
  %v614 = vpack.c.bf16 %v605, %v605
  %v615 = vpack.c.bf16 %v606, %v606
  %v616 = vpack.c.bf16 %v607, %v607
  %v617 = vpack.c.bf16 %v608, %v608
  %v618 = vld [vmem:[%s0 + $0xc] sm:$0xff]
  %v619 = vld [vmem:[%s0 + $0x14] sm:$0xff]
  %v620 = vld [vmem:[%s0 + $0x1c] sm:$0xff]
  %v621 = vld [vmem:[%s0 + $0x24] sm:$0xff]
  %v622 = vld [vmem:[%s0 + $0x2c] sm:$0xff]
  %v623 = vld [vmem:[%s0 + $0x34] sm:$0xff]
  %v624 = vld [vmem:[%s0 + $0x3c] sm:$0xff]
  %v625 = vld [vmem:[%s0 + $0x44] sm:$0xff]
  %v626 = vld [vmem:[%s0 + $0x4c] sm:$0xff]
  %s627 = scalar_lea.vmem %s1, 504
  %v628 = vld [vmem:[%s627] sm:$0xff]
  %v629 = vld [vmem:[%s627 + $0x8] sm:$0xff]
  %v630 = vld [vmem:[%s627 + $0x10] sm:$0xff]
  %v631 = vld [vmem:[%s627 + $0x18] sm:$0xff]
  %v632 = vld [vmem:[%s627 + $0x20] sm:$0xff]
  %v633 = vld [vmem:[%s627 + $0x28] sm:$0xff]
  %v634 = vld [vmem:[%s627 + $0x30] sm:$0xff]
  %v635 = vld [vmem:[%s627 + $0x38] sm:$0xff]
  %v636 = vld [vmem:[%s627 + $0x40] sm:$0xff]
  %638 = vset.pattern.permute.xlu0 0
  %639 = vperm.xlu0 %638, %v628
  %v640 = vpop.permute.xlu0 %639
  %643 = vset.pattern.permute.xlu0 0
  %644 = vperm.xlu0 %643, %v629
  %v645 = vpop.permute.xlu0 %644
  %648 = vset.pattern.permute.xlu0 0
  %649 = vperm.xlu0 %648, %v630
  %v650 = vpop.permute.xlu0 %649
  %653 = vset.pattern.permute.xlu0 0
  %654 = vperm.xlu0 %653, %v631
  %v655 = vpop.permute.xlu0 %654
  %658 = vset.pattern.permute.xlu0 0
  %659 = vperm.xlu0 %658, %v632
  %v660 = vpop.permute.xlu0 %659
  %663 = vset.pattern.permute.xlu0 0
  %664 = vperm.xlu0 %663, %v633
  %v665 = vpop.permute.xlu0 %664
  %668 = vset.pattern.permute.xlu0 0
  %669 = vperm.xlu0 %668, %v634
  %v670 = vpop.permute.xlu0 %669
  %673 = vset.pattern.permute.xlu0 0
  %674 = vperm.xlu0 %673, %v635
  %v675 = vpop.permute.xlu0 %674
  %678 = vset.pattern.permute.xlu0 0
  %679 = vperm.xlu0 %678, %v636
  %v680 = vpop.permute.xlu0 %679
  %v682 = vmul.f32 %v618, %v640
  %v683 = vmul.f32 %v619, %v645
  %v684 = vmul.f32 %v620, %v650
  %v685 = vmul.f32 %v621, %v655
  %v686 = vmul.f32 %v622, %v660
  %v687 = vmul.f32 %v623, %v665
  %v688 = vmul.f32 %v624, %v670
  %v689 = vmul.f32 %v625, %v675
  %v690 = vmul.f32 %v626, %v680
  %v691 = vpack.c.bf16 %v682, %v682
  %v692 = vpack.c.bf16 %v683, %v683
  %v693 = vpack.c.bf16 %v684, %v684
  %v694 = vpack.c.bf16 %v685, %v685
  %v695 = vpack.c.bf16 %v686, %v686
  %v696 = vpack.c.bf16 %v687, %v687
  %v697 = vpack.c.bf16 %v688, %v688
  %v698 = vpack.c.bf16 %v689, %v689
  %v699 = vpack.c.bf16 %v690, %v690
  %v700 = vld [vmem:[%s0 + $0xd] sm:$0xff]
  %v701 = vld [vmem:[%s0 + $0x15] sm:$0xff]
  %v702 = vld [vmem:[%s0 + $0x1d] sm:$0xff]
  %v703 = vld [vmem:[%s0 + $0x25] sm:$0xff]
  %v704 = vld [vmem:[%s0 + $0x2d] sm:$0xff]
  %v705 = vld [vmem:[%s0 + $0x35] sm:$0xff]
  %v706 = vld [vmem:[%s0 + $0x3d] sm:$0xff]
  %v707 = vld [vmem:[%s0 + $0x45] sm:$0xff]
  %v708 = vld [vmem:[%s0 + $0x4d] sm:$0xff]
  %s709 = scalar_lea.vmem %s1, 576
  %v710 = vld [vmem:[%s709] sm:$0xff]
  %v711 = vld [vmem:[%s709 + $0x8] sm:$0xff]
  %v712 = vld [vmem:[%s709 + $0x10] sm:$0xff]
  %v713 = vld [vmem:[%s709 + $0x18] sm:$0xff]
  %v714 = vld [vmem:[%s709 + $0x20] sm:$0xff]
  %v715 = vld [vmem:[%s709 + $0x28] sm:$0xff]
  %v716 = vld [vmem:[%s709 + $0x30] sm:$0xff]
  %v717 = vld [vmem:[%s709 + $0x38] sm:$0xff]
  %v718 = vld [vmem:[%s709 + $0x40] sm:$0xff]
  %720 = vset.pattern.permute.xlu0 0
  %721 = vperm.xlu0 %720, %v710
  %v722 = vpop.permute.xlu0 %721
  %725 = vset.pattern.permute.xlu0 0
  %726 = vperm.xlu0 %725, %v711
  %v727 = vpop.permute.xlu0 %726
  %730 = vset.pattern.permute.xlu0 0
  %731 = vperm.xlu0 %730, %v712
  %v732 = vpop.permute.xlu0 %731
  %735 = vset.pattern.permute.xlu0 0
  %736 = vperm.xlu0 %735, %v713
  %v737 = vpop.permute.xlu0 %736
  %740 = vset.pattern.permute.xlu0 0
  %741 = vperm.xlu0 %740, %v714
  %v742 = vpop.permute.xlu0 %741
  %745 = vset.pattern.permute.xlu0 0
  %746 = vperm.xlu0 %745, %v715
  %v747 = vpop.permute.xlu0 %746
  %750 = vset.pattern.permute.xlu0 0
  %751 = vperm.xlu0 %750, %v716
  %v752 = vpop.permute.xlu0 %751
  %755 = vset.pattern.permute.xlu0 0
  %756 = vperm.xlu0 %755, %v717
  %v757 = vpop.permute.xlu0 %756
  %760 = vset.pattern.permute.xlu0 0
  %761 = vperm.xlu0 %760, %v718
  %v762 = vpop.permute.xlu0 %761
  %v764 = vmul.f32 %v700, %v722
  %v765 = vmul.f32 %v701, %v727
  %v766 = vmul.f32 %v702, %v732
  %v767 = vmul.f32 %v703, %v737
  %v768 = vmul.f32 %v704, %v742
  %v769 = vmul.f32 %v705, %v747
  %v770 = vmul.f32 %v706, %v752
  %v771 = vmul.f32 %v707, %v757
  %v772 = vmul.f32 %v708, %v762
  %v773 = vpack.c.bf16 %v764, %v764
  %v774 = vpack.c.bf16 %v765, %v765
  %v775 = vpack.c.bf16 %v766, %v766
  %v776 = vpack.c.bf16 %v767, %v767
  %v777 = vpack.c.bf16 %v768, %v768
  %v778 = vpack.c.bf16 %v769, %v769
  %v779 = vpack.c.bf16 %v770, %v770
  %v780 = vpack.c.bf16 %v771, %v771
  %v781 = vpack.c.bf16 %v772, %v772
  %v791 = vunpack.c.l.b16 %v181
  %v792 = vunpack.c.l.b16 %v182
  %v793 = vunpack.c.l.b16 %v183
  %v794 = vunpack.c.l.b16 %v184
  %v795 = vunpack.c.l.b16 %v185
  %v796 = vunpack.c.l.b16 %v186
  %v797 = vunpack.c.l.b16 %v187
  %v798 = vunpack.c.l.b16 %v188
  %v799 = vunpack.c.l.b16 %v189
  %v800 = vpack.c.b16 %v792, %v791
  %v801 = vpack.c.b16 %v794, %v793
  %v802 = vpack.c.b16 %v796, %v795
  %v803 = vpack.c.b16 %v798, %v797
  %v804 = vpack.c.b16 %v799, %v799
  %v814 = vunpack.c.l.b16 %v263
  %v815 = vunpack.c.l.b16 %v264
  %v816 = vunpack.c.l.b16 %v265
  %v817 = vunpack.c.l.b16 %v266
  %v818 = vunpack.c.l.b16 %v267
  %v819 = vunpack.c.l.b16 %v268
  %v820 = vunpack.c.l.b16 %v269
  %v821 = vunpack.c.l.b16 %v270
  %v822 = vunpack.c.l.b16 %v271
  %v823 = vpack.c.b16 %v815, %v814
  %v824 = vpack.c.b16 %v817, %v816
  %v825 = vpack.c.b16 %v819, %v818
  %v826 = vpack.c.b16 %v821, %v820
  %v827 = vpack.c.b16 %v822, %v822
  %828 = vrot.lane.b32.xlu0 %v823, 54
  %v829 = vpop.permute.xlu0 %828
  %830 = vrot.lane.b32.xlu0 %v824, 54
  %v831 = vpop.permute.xlu0 %830
  %832 = vrot.lane.b32.xlu0 %v825, 54
  %v833 = vpop.permute.xlu0 %832
  %834 = vrot.lane.b32.xlu0 %v826, 54
  %v835 = vpop.permute.xlu0 %834
  %836 = vrot.lane.b32.xlu0 %v827, 54
  %v837 = vpop.permute.xlu0 %836
  %v847 = vunpack.c.l.b16 %v345
  %v848 = vunpack.c.l.b16 %v346
  %v849 = vunpack.c.l.b16 %v347
  %v850 = vunpack.c.l.b16 %v348
  %v851 = vunpack.c.l.b16 %v349
  %v852 = vunpack.c.l.b16 %v350
  %v853 = vunpack.c.l.b16 %v351
  %v854 = vunpack.c.l.b16 %v352
  %v855 = vunpack.c.l.b16 %v353
  %v856 = vpack.c.b16 %v848, %v847
  %v857 = vpack.c.b16 %v850, %v849
  %v858 = vpack.c.b16 %v852, %v851
  %v859 = vpack.c.b16 %v854, %v853
  %v860 = vpack.c.b16 %v855, %v855
  %861 = vrot.lane.b32.xlu0 %v856, 108
  %v862 = vpop.permute.xlu0 %861
  %863 = vrot.lane.b32.xlu0 %v857, 108
  %v864 = vpop.permute.xlu0 %863
  %865 = vrot.lane.b32.xlu0 %v858, 108
  %v866 = vpop.permute.xlu0 %865
  %867 = vrot.lane.b32.xlu0 %v859, 108
  %v868 = vpop.permute.xlu0 %867
  %869 = vrot.lane.b32.xlu0 %v860, 108
  %v870 = vpop.permute.xlu0 %869
  %v880 = vunpack.c.l.b16 %v427
  %v881 = vunpack.c.l.b16 %v428
  %v882 = vunpack.c.l.b16 %v429
  %v883 = vunpack.c.l.b16 %v430
  %v884 = vunpack.c.l.b16 %v431
  %v885 = vunpack.c.l.b16 %v432
  %v886 = vunpack.c.l.b16 %v433
  %v887 = vunpack.c.l.b16 %v434
  %v888 = vunpack.c.l.b16 %v435
  %v889 = vpack.c.b16 %v881, %v880
  %v890 = vpack.c.b16 %v883, %v882
  %v891 = vpack.c.b16 %v885, %v884
  %v892 = vpack.c.b16 %v887, %v886
  %v893 = vpack.c.b16 %v888, %v888
  %894 = vrot.lane.b32.xlu0 %v889, 34
  %v895 = vpop.permute.xlu0 %894
  %896 = vrot.lane.b32.xlu0 %v890, 34
  %v897 = vpop.permute.xlu0 %896
  %898 = vrot.lane.b32.xlu0 %v891, 34
  %v899 = vpop.permute.xlu0 %898
  %900 = vrot.lane.b32.xlu0 %v892, 34
  %v901 = vpop.permute.xlu0 %900
  %902 = vrot.lane.b32.xlu0 %v893, 34
  %v903 = vpop.permute.xlu0 %902
  %v913 = vunpack.c.l.b16 %v445
  %v914 = vunpack.c.l.b16 %v446
  %v915 = vunpack.c.l.b16 %v447
  %v916 = vunpack.c.l.b16 %v448
  %v917 = vunpack.c.l.b16 %v449
  %v918 = vunpack.c.l.b16 %v450
  %v919 = vunpack.c.l.b16 %v451
  %v920 = vunpack.c.l.b16 %v452
  %v921 = vunpack.c.l.b16 %v453
  %v922 = vpack.c.b16 %v914, %v913
  %v923 = vpack.c.b16 %v916, %v915
  %v924 = vpack.c.b16 %v918, %v917
  %v925 = vpack.c.b16 %v920, %v919
  %v926 = vpack.c.b16 %v921, %v921
  %927 = vrot.lane.b32.xlu0 %v922, 88
  %v928 = vpop.permute.xlu0 %927
  %929 = vrot.lane.b32.xlu0 %v923, 88
  %v930 = vpop.permute.xlu0 %929
  %931 = vrot.lane.b32.xlu0 %v924, 88
  %v932 = vpop.permute.xlu0 %931
  %933 = vrot.lane.b32.xlu0 %v925, 88
  %v934 = vpop.permute.xlu0 %933
  %935 = vrot.lane.b32.xlu0 %v926, 88
  %v936 = vpop.permute.xlu0 %935
  %v946 = vunpack.c.l.b16 %v527
  %v947 = vunpack.c.l.b16 %v528
  %v948 = vunpack.c.l.b16 %v529
  %v949 = vunpack.c.l.b16 %v530
  %v950 = vunpack.c.l.b16 %v531
  %v951 = vunpack.c.l.b16 %v532
  %v952 = vunpack.c.l.b16 %v533
  %v953 = vunpack.c.l.b16 %v534
  %v954 = vunpack.c.l.b16 %v535
  %v955 = vpack.c.b16 %v947, %v946
  %v956 = vpack.c.b16 %v949, %v948
  %v957 = vpack.c.b16 %v951, %v950
  %v958 = vpack.c.b16 %v953, %v952
  %v959 = vpack.c.b16 %v954, %v954
  %960 = vrot.lane.b32.xlu0 %v955, 14
  %v961 = vpop.permute.xlu0 %960
  %962 = vrot.lane.b32.xlu0 %v956, 14
  %v963 = vpop.permute.xlu0 %962
  %964 = vrot.lane.b32.xlu0 %v957, 14
  %v965 = vpop.permute.xlu0 %964
  %966 = vrot.lane.b32.xlu0 %v958, 14
  %v967 = vpop.permute.xlu0 %966
  %968 = vrot.lane.b32.xlu0 %v959, 14
  %v969 = vpop.permute.xlu0 %968
  %v979 = vunpack.c.l.b16 %v609
  %v980 = vunpack.c.l.b16 %v610
  %v981 = vunpack.c.l.b16 %v611
  %v982 = vunpack.c.l.b16 %v612
  %v983 = vunpack.c.l.b16 %v613
  %v984 = vunpack.c.l.b16 %v614
  %v985 = vunpack.c.l.b16 %v615
  %v986 = vunpack.c.l.b16 %v616
  %v987 = vunpack.c.l.b16 %v617
  %v988 = vpack.c.b16 %v980, %v979
  %v989 = vpack.c.b16 %v982, %v981
  %v990 = vpack.c.b16 %v984, %v983
  %v991 = vpack.c.b16 %v986, %v985
  %v992 = vpack.c.b16 %v987, %v987
  %993 = vrot.lane.b32.xlu0 %v988, 68
  %v994 = vpop.permute.xlu0 %993
  %995 = vrot.lane.b32.xlu0 %v989, 68
  %v996 = vpop.permute.xlu0 %995
  %997 = vrot.lane.b32.xlu0 %v990, 68
  %v998 = vpop.permute.xlu0 %997
  %999 = vrot.lane.b32.xlu0 %v991, 68
  %v1000 = vpop.permute.xlu0 %999
  %1001 = vrot.lane.b32.xlu0 %v992, 68
  %v1002 = vpop.permute.xlu0 %1001
  %v1012 = vunpack.c.l.b16 %v691
  %v1013 = vunpack.c.l.b16 %v692
  %v1014 = vunpack.c.l.b16 %v693
  %v1015 = vunpack.c.l.b16 %v694
  %v1016 = vunpack.c.l.b16 %v695
  %v1017 = vunpack.c.l.b16 %v696
  %v1018 = vunpack.c.l.b16 %v697
  %v1019 = vunpack.c.l.b16 %v698
  %v1020 = vunpack.c.l.b16 %v699
  %v1021 = vpack.c.b16 %v1013, %v1012
  %v1022 = vpack.c.b16 %v1015, %v1014
  %v1023 = vpack.c.b16 %v1017, %v1016
  %v1024 = vpack.c.b16 %v1019, %v1018
  %v1025 = vpack.c.b16 %v1020, %v1020
  %1026 = vrot.lane.b32.xlu0 %v1021, 122
  %v1027 = vpop.permute.xlu0 %1026
  %1028 = vrot.lane.b32.xlu0 %v1022, 122
  %v1029 = vpop.permute.xlu0 %1028
  %1030 = vrot.lane.b32.xlu0 %v1023, 122
  %v1031 = vpop.permute.xlu0 %1030
  %1032 = vrot.lane.b32.xlu0 %v1024, 122
  %v1033 = vpop.permute.xlu0 %1032
  %1034 = vrot.lane.b32.xlu0 %v1025, 122
  %v1035 = vpop.permute.xlu0 %1034
  %v1045 = vunpack.c.l.b16 %v773
  %v1046 = vunpack.c.l.b16 %v774
  %v1047 = vunpack.c.l.b16 %v775
  %v1048 = vunpack.c.l.b16 %v776
  %v1049 = vunpack.c.l.b16 %v777
  %v1050 = vunpack.c.l.b16 %v778
  %v1051 = vunpack.c.l.b16 %v779
  %v1052 = vunpack.c.l.b16 %v780
  %v1053 = vunpack.c.l.b16 %v781
  %v1054 = vpack.c.b16 %v1046, %v1045
  %v1055 = vpack.c.b16 %v1048, %v1047
  %v1056 = vpack.c.b16 %v1050, %v1049
  %v1057 = vpack.c.b16 %v1052, %v1051
  %v1058 = vpack.c.b16 %v1053, %v1053
  %1059 = vrot.lane.b32.xlu0 %v1054, 48
  %v1060 = vpop.permute.xlu0 %1059
  %1061 = vrot.lane.b32.xlu0 %v1055, 48
  %v1062 = vpop.permute.xlu0 %1061
  %1063 = vrot.lane.b32.xlu0 %v1056, 48
  %v1064 = vpop.permute.xlu0 %1063
  %1065 = vrot.lane.b32.xlu0 %v1057, 48
  %v1066 = vpop.permute.xlu0 %1065
  %1067 = vrot.lane.b32.xlu0 %v1058, 48
  %v1068 = vpop.permute.xlu0 %1067
  %vm1069 = vcmask 441344
  %v1072 = vsel %vm1069, %v800, %v829
  %v1075 = vsel %vm1069, %v801, %v831
  %v1078 = vsel %vm1069, %v802, %v833
  %v1081 = vsel %vm1069, %v803, %v835
  %v1084 = vsel %vm1069, %v804, %v837
  %vm1085 = vcmask 883712
  %v1087 = vsel %vm1085, %v1072, %v862
  %v1090 = vsel %vm1085, %v1075, %v864
  %v1093 = vsel %vm1085, %v1078, %v866
  %v1096 = vsel %vm1085, %v1081, %v868
  %v1099 = vsel %vm1085, %v1084, %v870
  %vm1101 = vcmask 277504
  %v1103 = vsel %vm1101, %v862, %v895
  %v1105 = vsel %vm1101, %v864, %v897
  %v1107 = vsel %vm1101, %v866, %v899
  %v1109 = vsel %vm1101, %v868, %v901
  %v1111 = vsel %vm1101, %v870, %v903
  %vm1112 = vcmask 719872
  %v1114 = vsel %vm1112, %v1103, %v928
  %v1117 = vsel %vm1112, %v1105, %v930
  %v1120 = vsel %vm1112, %v1107, %v932
  %v1123 = vsel %vm1112, %v1109, %v934
  %v1126 = vsel %vm1112, %v1111, %v936
  %vm1128 = vcmask 113664
  %v1130 = vsel %vm1128, %v928, %v961
  %v1132 = vsel %vm1128, %v930, %v963
  %v1134 = vsel %vm1128, %v932, %v965
  %v1136 = vsel %vm1128, %v934, %v967
  %v1138 = vsel %vm1128, %v936, %v969
  %vm1139 = vcmask 556032
  %v1141 = vsel %vm1139, %v1130, %v994
  %v1143 = vsel %vm1139, %v1132, %v996
  %v1145 = vsel %vm1139, %v1134, %v998
  %v1147 = vsel %vm1139, %v1136, %v1000
  %v1149 = vsel %vm1139, %v1138, %v1002
  %vm1150 = vcmask 998400
  %v1152 = vsel %vm1150, %v1141, %v1027
  %v1155 = vsel %vm1150, %v1143, %v1029
  %v1158 = vsel %vm1150, %v1145, %v1031
  %v1161 = vsel %vm1150, %v1147, %v1033
  %v1164 = vsel %vm1150, %v1149, %v1035
  %vm1166 = vcmask 392192
  %v1168 = vsel %vm1166, %v1027, %v1060
  %v1170 = vsel %vm1166, %v1029, %v1062
  %v1172 = vsel %vm1166, %v1031, %v1064
  %v1174 = vsel %vm1166, %v1033, %v1066
  %v1176 = vsel %vm1166, %v1035, %v1068
  %v1177 = vld [vmem:[%s3] sm:$0x1]
  %v1179 = vperm.slane %v1177, 0
  %v1242 = vunpack.c.l.b16 %v48
  %v1243 = vunpack.c.l.b16 %v49
  %v1244 = vunpack.c.l.b16 %v50
  %v1245 = vunpack.c.l.b16 %v51
  %v1246 = vunpack.c.l.b16 %v52
  %v1247 = vunpack.c.l.b16 %v53
  %v1248 = vunpack.c.l.b16 %v54
  %v1249 = vunpack.c.l.b16 %v55
  %v1250 = vunpack.c.l.b16 %v56
  %v1251 = vunpack.c.l.b16 %v57
  %v1252 = vunpack.c.l.b16 %v58
  %v1253 = vunpack.c.l.b16 %v59
  %v1254 = vunpack.c.l.b16 %v60
  %v1255 = vunpack.c.l.b16 %v61
  %v1256 = vunpack.c.l.b16 %v62
  %v1257 = vunpack.c.l.b16 %v63
  %v1258 = vunpack.c.l.b16 %v64
  %v1259 = vunpack.c.l.b16 %v65
  %v1260 = vunpack.c.l.b16 %v66
  %v1261 = vunpack.c.l.b16 %v67
  %v1262 = vunpack.c.l.b16 %v68
  %v1263 = vunpack.c.l.b16 %v69
  %v1264 = vunpack.c.l.b16 %v70
  %v1265 = vunpack.c.l.b16 %v71
  %v1266 = vunpack.c.l.b16 %v72
  %v1267 = vunpack.c.l.b16 %v73
  %v1268 = vunpack.c.l.b16 %v74
  %v1269 = vunpack.c.l.b16 %v75
  %v1270 = vunpack.c.l.b16 %v76
  %v1271 = vunpack.c.l.b16 %v77
  %v1272 = vunpack.c.l.b16 %v78
  %v1273 = vunpack.c.l.b16 %v79
  %v1274 = vunpack.c.l.b16 %v80
  %v1275 = vunpack.c.l.b16 %v81
  %v1276 = vunpack.c.l.b16 %v82
  %v1277 = vunpack.c.l.b16 %v83
  %v1278 = vunpack.c.l.b16 %v84
  %v1279 = vunpack.c.l.b16 %v85
  %v1280 = vunpack.c.l.b16 %v86
  %v1281 = vunpack.c.l.b16 %v87
  %v1282 = vunpack.c.l.b16 %v88
  %v1283 = vunpack.c.l.b16 %v89
  %v1284 = vunpack.c.l.b16 %v90
  %v1285 = vunpack.c.l.b16 %v91
  %v1286 = vunpack.c.l.b16 %v92
  %v1287 = vunpack.c.l.b16 %v93
  %v1288 = vunpack.c.l.b16 %v94
  %v1289 = vunpack.c.l.b16 %v95
  %v1290 = vunpack.c.l.b16 %v96
  %v1291 = vunpack.c.l.b16 %v97
  %v1292 = vunpack.c.l.b16 %v98
  %v1293 = vunpack.c.l.b16 %v99
  %v1294 = vunpack.c.l.b16 %v100
  %v1295 = vunpack.c.l.b16 %v101
  %v1296 = vunpack.c.l.b16 %v102
  %v1297 = vunpack.c.l.b16 %v103
  %v1298 = vunpack.c.l.b16 %v104
  %v1299 = vunpack.c.l.b16 %v105
  %v1300 = vunpack.c.l.b16 %v106
  %v1301 = vunpack.c.l.b16 %v107
  %v1302 = vunpack.c.l.b16 %v108
  %v1303 = vpack.c.b16 %v1243, %v1242
  %v1304 = vpack.c.b16 %v1245, %v1244
  %v1305 = vpack.c.b16 %v1247, %v1246
  %v1306 = vpack.c.b16 %v1249, %v1248
  %v1307 = vpack.c.b16 %v1251, %v1250
  %v1308 = vpack.c.b16 %v1253, %v1252
  %v1309 = vpack.c.b16 %v1255, %v1254
  %v1310 = vpack.c.b16 %v1257, %v1256
  %v1311 = vpack.c.b16 %v1259, %v1258
  %v1312 = vpack.c.b16 %v1261, %v1260
  %v1313 = vpack.c.b16 %v1263, %v1262
  %v1314 = vpack.c.b16 %v1265, %v1264
  %v1315 = vpack.c.b16 %v1267, %v1266
  %v1316 = vpack.c.b16 %v1269, %v1268
  %v1317 = vpack.c.b16 %v1271, %v1270
  %v1318 = vpack.c.b16 %v1273, %v1272
  %v1319 = vpack.c.b16 %v1275, %v1274
  %v1320 = vpack.c.b16 %v1277, %v1276
  %v1321 = vpack.c.b16 %v1279, %v1278
  %v1322 = vpack.c.b16 %v1281, %v1280
  %v1323 = vpack.c.b16 %v1283, %v1282
  %v1324 = vpack.c.b16 %v1285, %v1284
  %v1325 = vpack.c.b16 %v1287, %v1286
  %v1326 = vpack.c.b16 %v1289, %v1288
  %v1327 = vpack.c.b16 %v1291, %v1290
  %v1328 = vpack.c.b16 %v1293, %v1292
  %v1329 = vpack.c.b16 %v1295, %v1294
  %v1330 = vpack.c.b16 %v1297, %v1296
  %v1331 = vpack.c.b16 %v1299, %v1298
  %v1332 = vpack.c.b16 %v1301, %v1300
  %v1333 = vpack.c.b16 %v1302, %v1302
  %vm1364 = vcmask 834560
  %v1365 = vsel %vm1364, %v1168, 0
  %v1367 = vsel %vm1364, %v1170, 0
  %v1369 = vsel %vm1364, %v1172, 0
  %v1371 = vsel %vm1364, %v1174, 0
  %v1373 = vsel %vm1364, %v1176, 0
  %vm1375 = vcmask 1042432
  %v1377 = vsel %vm1375, %v1333, 0
  %1379 = vmatpush.bf16.msra.mxu0 %v1310
  %1380 = vmatpush.bf16.msra.mxu0 %v1309
  %1381 = vmatpush.bf16.msra.mxu0 %v1308
  %1382 = vmatpush.bf16.msra.mxu0 %v1307
  %1383 = vmatpush.bf16.msra.mxu0 %v1306
  %1384 = vmatpush.bf16.msra.mxu0 %v1305
  %1385 = vmatpush.bf16.msra.mxu0 %v1304
  %1386 = vmatpush.bf16.msra.mxu0 %v1303
  %1387 = vmatmul.bf16.gmra.mxu0 %v1087
  %v1388 = vpop.f32.mrf.mxu0
  %v1389 = vadd.f32 %v1179, %v1388
  %v1390 = vpop.f32.mrf.mxu0
  %v1391 = vadd.f32 %v1179, %v1390
  %1392 = vmatmul.bf16.gmra.mxu0 %v1090
  %v1393 = vpop.f32.mrf.mxu0
  %v1394 = vadd.f32 %v1179, %v1393
  %v1395 = vpop.f32.mrf.mxu0
  %v1396 = vadd.f32 %v1179, %v1395
  %1397 = vmatmul.bf16.gmra.mxu0 %v1093
  %v1398 = vpop.f32.mrf.mxu0
  %v1399 = vadd.f32 %v1179, %v1398
  %v1400 = vpop.f32.mrf.mxu0
  %v1401 = vadd.f32 %v1179, %v1400
  %1402 = vmatmul.bf16.gmra.mxu0 %v1096
  %v1403 = vpop.f32.mrf.mxu0
  %v1404 = vadd.f32 %v1179, %v1403
  %v1405 = vpop.f32.mrf.mxu0
  %v1406 = vadd.f32 %v1179, %v1405
  %1407 = vmatmul.bf16.gmra.mxu0 %v1099
  %v1408 = vpop.f32.mrf.mxu0
  %v1409 = vadd.f32 %v1179, %v1408
  %v1410 = vpop.f32.mrf.mxu0
  %1411 = vdwg.mxu0
  %1412 = vmatpush.bf16.msra.mxu0 %v1318
  %1413 = vmatpush.bf16.msra.mxu0 %v1317
  %1414 = vmatpush.bf16.msra.mxu0 %v1316
  %1415 = vmatpush.bf16.msra.mxu0 %v1315
  %1416 = vmatpush.bf16.msra.mxu0 %v1314
  %1417 = vmatpush.bf16.msra.mxu0 %v1313
  %1418 = vmatpush.bf16.msra.mxu0 %v1312
  %1419 = vmatpush.bf16.msra.mxu0 %v1311
  %1420 = vmatmul.bf16.gmra.mxu0 %v1114
  %v1421 = vpop.f32.mrf.mxu0
  %v1422 = vadd.f32 %v1389, %v1421
  %v1423 = vpop.f32.mrf.mxu0
  %v1424 = vadd.f32 %v1391, %v1423
  %1425 = vmatmul.bf16.gmra.mxu0 %v1117
  %v1426 = vpop.f32.mrf.mxu0
  %v1427 = vadd.f32 %v1394, %v1426
  %v1428 = vpop.f32.mrf.mxu0
  %v1429 = vadd.f32 %v1396, %v1428
  %1430 = vmatmul.bf16.gmra.mxu0 %v1120
  %v1431 = vpop.f32.mrf.mxu0
  %v1432 = vadd.f32 %v1399, %v1431
  %v1433 = vpop.f32.mrf.mxu0
  %v1434 = vadd.f32 %v1401, %v1433
  %1435 = vmatmul.bf16.gmra.mxu0 %v1123
  %v1436 = vpop.f32.mrf.mxu0
  %v1437 = vadd.f32 %v1404, %v1436
  %v1438 = vpop.f32.mrf.mxu0
  %v1439 = vadd.f32 %v1406, %v1438
  %1440 = vmatmul.bf16.gmra.mxu0 %v1126
  %v1441 = vpop.f32.mrf.mxu0
  %v1442 = vadd.f32 %v1409, %v1441
  %v1443 = vpop.f32.mrf.mxu0
  %1444 = vdwg.mxu0
  %1445 = vmatpush.bf16.msra.mxu0 %v1326
  %1446 = vmatpush.bf16.msra.mxu0 %v1325
  %1447 = vmatpush.bf16.msra.mxu0 %v1324
  %1448 = vmatpush.bf16.msra.mxu0 %v1323
  %1449 = vmatpush.bf16.msra.mxu0 %v1322
  %1450 = vmatpush.bf16.msra.mxu0 %v1321
  %1451 = vmatpush.bf16.msra.mxu0 %v1320
  %1452 = vmatpush.bf16.msra.mxu0 %v1319
  %1453 = vmatmul.bf16.gmra.mxu0 %v1152
  %v1454 = vpop.f32.mrf.mxu0
  %v1455 = vadd.f32 %v1422, %v1454
  %v1456 = vpop.f32.mrf.mxu0
  %v1457 = vadd.f32 %v1424, %v1456
  %1458 = vmatmul.bf16.gmra.mxu0 %v1155
  %v1459 = vpop.f32.mrf.mxu0
  %v1460 = vadd.f32 %v1427, %v1459
  %v1461 = vpop.f32.mrf.mxu0
  %v1462 = vadd.f32 %v1429, %v1461
  %1463 = vmatmul.bf16.gmra.mxu0 %v1158
  %v1464 = vpop.f32.mrf.mxu0
  %v1465 = vadd.f32 %v1432, %v1464
  %v1466 = vpop.f32.mrf.mxu0
  %v1467 = vadd.f32 %v1434, %v1466
  %1468 = vmatmul.bf16.gmra.mxu0 %v1161
  %v1469 = vpop.f32.mrf.mxu0
  %v1470 = vadd.f32 %v1437, %v1469
  %v1471 = vpop.f32.mrf.mxu0
  %v1472 = vadd.f32 %v1439, %v1471
  %1473 = vmatmul.bf16.gmra.mxu0 %v1164
  %v1474 = vpop.f32.mrf.mxu0
  %v1475 = vadd.f32 %v1442, %v1474
  %v1476 = vpop.f32.mrf.mxu0
  %1477 = vdwg.mxu0
  %1478 = vmatpush.bf16.msra.mxu0 0
  %1479 = vmatpush.bf16.msra.mxu0 %v1377
  %1480 = vmatpush.bf16.msra.mxu0 %v1332
  %1481 = vmatpush.bf16.msra.mxu0 %v1331
  %1482 = vmatpush.bf16.msra.mxu0 %v1330
  %1483 = vmatpush.bf16.msra.mxu0 %v1329
  %1484 = vmatpush.bf16.msra.mxu0 %v1328
  %1485 = vmatpush.bf16.msra.mxu0 %v1327
  %1486 = vmatmul.bf16.gmra.mxu0 %v1365
  %v1487 = vpop.f32.mrf.mxu0
  %v1488 = vadd.f32 %v1455, %v1487
  %v1489 = vpop.f32.mrf.mxu0
  %v1490 = vadd.f32 %v1457, %v1489
  %1491 = vmatmul.bf16.gmra.mxu0 %v1367
  %v1492 = vpop.f32.mrf.mxu0
  %v1493 = vadd.f32 %v1460, %v1492
  %v1494 = vpop.f32.mrf.mxu0
  %v1495 = vadd.f32 %v1462, %v1494
  %1496 = vmatmul.bf16.gmra.mxu0 %v1369
  %v1497 = vpop.f32.mrf.mxu0
  %v1498 = vadd.f32 %v1465, %v1497
  %v1499 = vpop.f32.mrf.mxu0
  %v1500 = vadd.f32 %v1467, %v1499
  %1501 = vmatmul.bf16.gmra.mxu0 %v1371
  %v1502 = vpop.f32.mrf.mxu0
  %v1503 = vadd.f32 %v1470, %v1502
  %v1504 = vpop.f32.mrf.mxu0
  %v1505 = vadd.f32 %v1472, %v1504
  %1506 = vmatmul.bf16.gmra.mxu0 %v1373
  %v1507 = vpop.f32.mrf.mxu0
  %v1508 = vadd.f32 %v1475, %v1507
  %v1509 = vpop.f32.mrf.mxu0
  %1510 = vdwg.mxu0
  %v1511 = vmax.f32 %v1488, 0.0
  %v1512 = vmax.f32 %v1490, 0.0
  %v1513 = vmax.f32 %v1493, 0.0
  %v1514 = vmax.f32 %v1495, 0.0
  %v1515 = vmax.f32 %v1498, 0.0
  %v1516 = vmax.f32 %v1500, 0.0
  %v1517 = vmax.f32 %v1503, 0.0
  %v1518 = vmax.f32 %v1505, 0.0
  %v1519 = vmax.f32 %v1508, 0.0
  %1520 = vst.msk [vmem:[#allocation2 + $0x8] sm:$0xff] %vm36, %v1511
  %1521 = vst.msk [vmem:[#allocation2 + $0x10] sm:$0xff] %vm36, %v1512
  %1522 = vst.msk [vmem:[#allocation2 + $0x18] sm:$0xff] %vm36, %v1513
  %1523 = vst.msk [vmem:[#allocation2 + $0x20] sm:$0xff] %vm36, %v1514
  %1524 = vst.msk [vmem:[#allocation2 + $0x28] sm:$0xff] %vm36, %v1515
  %1525 = vst.msk [vmem:[#allocation2 + $0x30] sm:$0xff] %vm36, %v1516
  %1526 = vst.msk [vmem:[#allocation2 + $0x38] sm:$0xff] %vm36, %v1517
  %1527 = vst.msk [vmem:[#allocation2 + $0x40] sm:$0xff] %vm36, %v1518
  %1528 = vst.msk [vmem:[#allocation2 + $0x48] sm:$0xff] %vm36, %v1519
  %v1529 = vld [vmem:[%s4] sm:$0xf]
  %v1530 = vld [vmem:[%s4 + $0x4] sm:$0xf]
  %v1531 = vld [vmem:[%s4 + $0x8] sm:$0xf]
  %v1532 = vld [vmem:[%s4 + $0xc] sm:$0xf]
  %v1533 = vld [vmem:[%s4 + $0x10] sm:$0xf]
  %v1534 = vld [vmem:[%s4 + $0x14] sm:$0xf]
  %v1535 = vld [vmem:[%s4 + $0x18] sm:$0xf]
  %v1536 = vld [vmem:[%s4 + $0x1c] sm:$0xf]
  %v1537 = vld [vmem:[%s4 + $0x20] sm:$0xf]
  %v1538 = vld [vmem:[%s4 + $0x24] sm:$0xf]
  %v1539 = vld [vmem:[%s4 + $0x28] sm:$0xf]
  %v1540 = vld [vmem:[%s4 + $0x2c] sm:$0xf]
  %v1541 = vld [vmem:[%s4 + $0x30] sm:$0xf]
  %v1542 = vld [vmem:[%s4 + $0x34] sm:$0xf]
  %v1543 = vld [vmem:[%s4 + $0x38] sm:$0xf]
  %v1544 = vld [vmem:[%s4 + $0x3c] sm:$0xf]
  %v1545 = vld [vmem:[%s4 + $0x40] sm:$0xf]
  %v1546 = vld [vmem:[%s4 + $0x44] sm:$0xf]
  %v1547 = vld [vmem:[#allocation2 + $0x3] sm:$0xff]
  %v1548 = vld [vmem:[#allocation2 + $0xb] sm:$0xff]
  %v1549 = vld [vmem:[#allocation2 + $0x13] sm:$0xff]
  %v1550 = vld [vmem:[#allocation2 + $0x1b] sm:$0xff]
  %v1551 = vld [vmem:[#allocation2 + $0x23] sm:$0xff]
  %v1552 = vld [vmem:[#allocation2 + $0x2b] sm:$0xff]
  %v1553 = vld [vmem:[#allocation2 + $0x33] sm:$0xff]
  %v1554 = vld [vmem:[#allocation2 + $0x3b] sm:$0xff]
  %v1555 = vld [vmem:[#allocation2 + $0x43] sm:$0xff]
  %v1556 = vld [vmem:[%s1] sm:$0xff]
  %v1557 = vld [vmem:[%s1 + $0x8] sm:$0xff]
  %v1558 = vld [vmem:[%s1 + $0x10] sm:$0xff]
  %v1559 = vld [vmem:[%s1 + $0x18] sm:$0xff]
  %v1560 = vld [vmem:[%s1 + $0x20] sm:$0xff]
  %v1561 = vld [vmem:[%s1 + $0x28] sm:$0xff]
  %v1562 = vld [vmem:[%s1 + $0x30] sm:$0xff]
  %v1563 = vld [vmem:[%s1 + $0x38] sm:$0xff]
  %v1564 = vld [vmem:[%s1 + $0x40] sm:$0xff]
  %1566 = vset.pattern.permute.xlu0 0
  %1567 = vperm.xlu0 %1566, %v1556
  %v1568 = vpop.permute.xlu0 %1567
  %1571 = vset.pattern.permute.xlu0 0
  %1572 = vperm.xlu0 %1571, %v1557
  %v1573 = vpop.permute.xlu0 %1572
  %1576 = vset.pattern.permute.xlu0 0
  %1577 = vperm.xlu0 %1576, %v1558
  %v1578 = vpop.permute.xlu0 %1577
  %1581 = vset.pattern.permute.xlu0 0
  %1582 = vperm.xlu0 %1581, %v1559
  %v1583 = vpop.permute.xlu0 %1582
  %1586 = vset.pattern.permute.xlu0 0
  %1587 = vperm.xlu0 %1586, %v1560
  %v1588 = vpop.permute.xlu0 %1587
  %1591 = vset.pattern.permute.xlu0 0
  %1592 = vperm.xlu0 %1591, %v1561
  %v1593 = vpop.permute.xlu0 %1592
  %1596 = vset.pattern.permute.xlu0 0
  %1597 = vperm.xlu0 %1596, %v1562
  %v1598 = vpop.permute.xlu0 %1597
  %1601 = vset.pattern.permute.xlu0 0
  %1602 = vperm.xlu0 %1601, %v1563
  %v1603 = vpop.permute.xlu0 %1602
  %1606 = vset.pattern.permute.xlu0 0
  %1607 = vperm.xlu0 %1606, %v1564
  %v1608 = vpop.permute.xlu0 %1607
  %v1610 = vmul.f32 %v1547, %v1568
  %v1611 = vmul.f32 %v1548, %v1573
  %v1612 = vmul.f32 %v1549, %v1578
  %v1613 = vmul.f32 %v1550, %v1583
  %v1614 = vmul.f32 %v1551, %v1588
  %v1615 = vmul.f32 %v1552, %v1593
  %v1616 = vmul.f32 %v1553, %v1598
  %v1617 = vmul.f32 %v1554, %v1603
  %v1618 = vmul.f32 %v1555, %v1608
  %v1619 = vpack.c.bf16 %v1610, %v1610
  %v1620 = vpack.c.bf16 %v1611, %v1611
  %v1621 = vpack.c.bf16 %v1612, %v1612
  %v1622 = vpack.c.bf16 %v1613, %v1613
  %v1623 = vpack.c.bf16 %v1614, %v1614
  %v1624 = vpack.c.bf16 %v1615, %v1615
  %v1625 = vpack.c.bf16 %v1616, %v1616
  %v1626 = vpack.c.bf16 %v1617, %v1617
  %v1627 = vpack.c.bf16 %v1618, %v1618
  %v1628 = vld [vmem:[#allocation2 + $0x4] sm:$0xff]
  %v1629 = vld [vmem:[#allocation2 + $0xc] sm:$0xff]
  %v1630 = vld [vmem:[#allocation2 + $0x14] sm:$0xff]
  %v1631 = vld [vmem:[#allocation2 + $0x1c] sm:$0xff]
  %v1632 = vld [vmem:[#allocation2 + $0x24] sm:$0xff]
  %v1633 = vld [vmem:[#allocation2 + $0x2c] sm:$0xff]
  %v1634 = vld [vmem:[#allocation2 + $0x34] sm:$0xff]
  %v1635 = vld [vmem:[#allocation2 + $0x3c] sm:$0xff]
  %v1636 = vld [vmem:[#allocation2 + $0x44] sm:$0xff]
  %v1637 = vld [vmem:[%s199] sm:$0xff]
  %v1638 = vld [vmem:[%s199 + $0x8] sm:$0xff]
  %v1639 = vld [vmem:[%s199 + $0x10] sm:$0xff]
  %v1640 = vld [vmem:[%s199 + $0x18] sm:$0xff]
  %v1641 = vld [vmem:[%s199 + $0x20] sm:$0xff]
  %v1642 = vld [vmem:[%s199 + $0x28] sm:$0xff]
  %v1643 = vld [vmem:[%s199 + $0x30] sm:$0xff]
  %v1644 = vld [vmem:[%s199 + $0x38] sm:$0xff]
  %v1645 = vld [vmem:[%s199 + $0x40] sm:$0xff]
  %1647 = vset.pattern.permute.xlu0 0
  %1648 = vperm.xlu0 %1647, %v1637
  %v1649 = vpop.permute.xlu0 %1648
  %1652 = vset.pattern.permute.xlu0 0
  %1653 = vperm.xlu0 %1652, %v1638
  %v1654 = vpop.permute.xlu0 %1653
  %1657 = vset.pattern.permute.xlu0 0
  %1658 = vperm.xlu0 %1657, %v1639
  %v1659 = vpop.permute.xlu0 %1658
  %1662 = vset.pattern.permute.xlu0 0
  %1663 = vperm.xlu0 %1662, %v1640
  %v1664 = vpop.permute.xlu0 %1663
  %1667 = vset.pattern.permute.xlu0 0
  %1668 = vperm.xlu0 %1667, %v1641
  %v1669 = vpop.permute.xlu0 %1668
  %1672 = vset.pattern.permute.xlu0 0
  %1673 = vperm.xlu0 %1672, %v1642
  %v1674 = vpop.permute.xlu0 %1673
  %1677 = vset.pattern.permute.xlu0 0
  %1678 = vperm.xlu0 %1677, %v1643
  %v1679 = vpop.permute.xlu0 %1678
  %1682 = vset.pattern.permute.xlu0 0
  %1683 = vperm.xlu0 %1682, %v1644
  %v1684 = vpop.permute.xlu0 %1683
  %1687 = vset.pattern.permute.xlu0 0
  %1688 = vperm.xlu0 %1687, %v1645
  %v1689 = vpop.permute.xlu0 %1688
  %v1691 = vmul.f32 %v1628, %v1649
  %v1692 = vmul.f32 %v1629, %v1654
  %v1693 = vmul.f32 %v1630, %v1659
  %v1694 = vmul.f32 %v1631, %v1664
  %v1695 = vmul.f32 %v1632, %v1669
  %v1696 = vmul.f32 %v1633, %v1674
  %v1697 = vmul.f32 %v1634, %v1679
  %v1698 = vmul.f32 %v1635, %v1684
  %v1699 = vmul.f32 %v1636, %v1689
  %v1700 = vpack.c.bf16 %v1691, %v1691
  %v1701 = vpack.c.bf16 %v1692, %v1692
  %v1702 = vpack.c.bf16 %v1693, %v1693
  %v1703 = vpack.c.bf16 %v1694, %v1694
  %v1704 = vpack.c.bf16 %v1695, %v1695
  %v1705 = vpack.c.bf16 %v1696, %v1696
  %v1706 = vpack.c.bf16 %v1697, %v1697
  %v1707 = vpack.c.bf16 %v1698, %v1698
  %v1708 = vpack.c.bf16 %v1699, %v1699
  %v1709 = vld [vmem:[#allocation2 + $0x5] sm:$0xff]
  %v1710 = vld [vmem:[#allocation2 + $0xd] sm:$0xff]
  %v1711 = vld [vmem:[#allocation2 + $0x15] sm:$0xff]
  %v1712 = vld [vmem:[#allocation2 + $0x1d] sm:$0xff]
  %v1713 = vld [vmem:[#allocation2 + $0x25] sm:$0xff]
  %v1714 = vld [vmem:[#allocation2 + $0x2d] sm:$0xff]
  %v1715 = vld [vmem:[#allocation2 + $0x35] sm:$0xff]
  %v1716 = vld [vmem:[#allocation2 + $0x3d] sm:$0xff]
  %v1717 = vld [vmem:[#allocation2 + $0x45] sm:$0xff]
  %v1718 = vld [vmem:[%s281] sm:$0xff]
  %v1719 = vld [vmem:[%s281 + $0x8] sm:$0xff]
  %v1720 = vld [vmem:[%s281 + $0x10] sm:$0xff]
  %v1721 = vld [vmem:[%s281 + $0x18] sm:$0xff]
  %v1722 = vld [vmem:[%s281 + $0x20] sm:$0xff]
  %v1723 = vld [vmem:[%s281 + $0x28] sm:$0xff]
  %v1724 = vld [vmem:[%s281 + $0x30] sm:$0xff]
  %v1725 = vld [vmem:[%s281 + $0x38] sm:$0xff]
  %v1726 = vld [vmem:[%s281 + $0x40] sm:$0xff]
  %1728 = vset.pattern.permute.xlu0 0
  %1729 = vperm.xlu0 %1728, %v1718
  %v1730 = vpop.permute.xlu0 %1729
  %1733 = vset.pattern.permute.xlu0 0
  %1734 = vperm.xlu0 %1733, %v1719
  %v1735 = vpop.permute.xlu0 %1734
  %1738 = vset.pattern.permute.xlu0 0
  %1739 = vperm.xlu0 %1738, %v1720
  %v1740 = vpop.permute.xlu0 %1739
  %1743 = vset.pattern.permute.xlu0 0
  %1744 = vperm.xlu0 %1743, %v1721
  %v1745 = vpop.permute.xlu0 %1744
  %1748 = vset.pattern.permute.xlu0 0
  %1749 = vperm.xlu0 %1748, %v1722
  %v1750 = vpop.permute.xlu0 %1749
  %1753 = vset.pattern.permute.xlu0 0
  %1754 = vperm.xlu0 %1753, %v1723
  %v1755 = vpop.permute.xlu0 %1754
  %1758 = vset.pattern.permute.xlu0 0
  %1759 = vperm.xlu0 %1758, %v1724
  %v1760 = vpop.permute.xlu0 %1759
  %1763 = vset.pattern.permute.xlu0 0
  %1764 = vperm.xlu0 %1763, %v1725
  %v1765 = vpop.permute.xlu0 %1764
  %1768 = vset.pattern.permute.xlu0 0
  %1769 = vperm.xlu0 %1768, %v1726
  %v1770 = vpop.permute.xlu0 %1769
  %v1772 = vmul.f32 %v1709, %v1730
  %v1773 = vmul.f32 %v1710, %v1735
  %v1774 = vmul.f32 %v1711, %v1740
  %v1775 = vmul.f32 %v1712, %v1745
  %v1776 = vmul.f32 %v1713, %v1750
  %v1777 = vmul.f32 %v1714, %v1755
  %v1778 = vmul.f32 %v1715, %v1760
  %v1779 = vmul.f32 %v1716, %v1765
  %v1780 = vmul.f32 %v1717, %v1770
  %v1781 = vpack.c.bf16 %v1772, %v1772
  %v1782 = vpack.c.bf16 %v1773, %v1773
  %v1783 = vpack.c.bf16 %v1774, %v1774
  %v1784 = vpack.c.bf16 %v1775, %v1775
  %v1785 = vpack.c.bf16 %v1776, %v1776
  %v1786 = vpack.c.bf16 %v1777, %v1777
  %v1787 = vpack.c.bf16 %v1778, %v1778
  %v1788 = vpack.c.bf16 %v1779, %v1779
  %v1789 = vpack.c.bf16 %v1780, %v1780
  %v1790 = vld [vmem:[#allocation2 + $0x7] sm:$0xff]
  %v1791 = vld [vmem:[#allocation2 + $0xf] sm:$0xff]
  %v1792 = vld [vmem:[#allocation2 + $0x17] sm:$0xff]
  %v1793 = vld [vmem:[#allocation2 + $0x1f] sm:$0xff]
  %v1794 = vld [vmem:[#allocation2 + $0x27] sm:$0xff]
  %v1795 = vld [vmem:[#allocation2 + $0x2f] sm:$0xff]
  %v1796 = vld [vmem:[#allocation2 + $0x37] sm:$0xff]
  %v1797 = vld [vmem:[#allocation2 + $0x3f] sm:$0xff]
  %v1798 = vld [vmem:[#allocation2 + $0x47] sm:$0xff]
  %v1799 = vld [vmem:[%s363] sm:$0xff]
  %v1800 = vld [vmem:[%s363 + $0x8] sm:$0xff]
  %v1801 = vld [vmem:[%s363 + $0x10] sm:$0xff]
  %v1802 = vld [vmem:[%s363 + $0x18] sm:$0xff]
  %v1803 = vld [vmem:[%s363 + $0x20] sm:$0xff]
  %v1804 = vld [vmem:[%s363 + $0x28] sm:$0xff]
  %v1805 = vld [vmem:[%s363 + $0x30] sm:$0xff]
  %v1806 = vld [vmem:[%s363 + $0x38] sm:$0xff]
  %v1807 = vld [vmem:[%s363 + $0x40] sm:$0xff]
  %1809 = vset.pattern.permute.xlu0 0
  %1810 = vperm.xlu0 %1809, %v1799
  %v1811 = vpop.permute.xlu0 %1810
  %1814 = vset.pattern.permute.xlu0 0
  %1815 = vperm.xlu0 %1814, %v1800
  %v1816 = vpop.permute.xlu0 %1815
  %1819 = vset.pattern.permute.xlu0 0
  %1820 = vperm.xlu0 %1819, %v1801
  %v1821 = vpop.permute.xlu0 %1820
  %1824 = vset.pattern.permute.xlu0 0
  %1825 = vperm.xlu0 %1824, %v1802
  %v1826 = vpop.permute.xlu0 %1825
  %1829 = vset.pattern.permute.xlu0 0
  %1830 = vperm.xlu0 %1829, %v1803
  %v1831 = vpop.permute.xlu0 %1830
  %1834 = vset.pattern.permute.xlu0 0
  %1835 = vperm.xlu0 %1834, %v1804
  %v1836 = vpop.permute.xlu0 %1835
  %1839 = vset.pattern.permute.xlu0 0
  %1840 = vperm.xlu0 %1839, %v1805
  %v1841 = vpop.permute.xlu0 %1840
  %1844 = vset.pattern.permute.xlu0 0
  %1845 = vperm.xlu0 %1844, %v1806
  %v1846 = vpop.permute.xlu0 %1845
  %1849 = vset.pattern.permute.xlu0 0
  %1850 = vperm.xlu0 %1849, %v1807
  %v1851 = vpop.permute.xlu0 %1850
  %v1853 = vmul.f32 %v1790, %v1811
  %v1854 = vmul.f32 %v1791, %v1816
  %v1855 = vmul.f32 %v1792, %v1821
  %v1856 = vmul.f32 %v1793, %v1826
  %v1857 = vmul.f32 %v1794, %v1831
  %v1858 = vmul.f32 %v1795, %v1836
  %v1859 = vmul.f32 %v1796, %v1841
  %v1860 = vmul.f32 %v1797, %v1846
  %v1861 = vmul.f32 %v1798, %v1851
  %v1862 = vpack.c.bf16 %v1853, %v1853
  %v1863 = vpack.c.bf16 %v1854, %v1854
  %v1864 = vpack.c.bf16 %v1855, %v1855
  %v1865 = vpack.c.bf16 %v1856, %v1856
  %v1866 = vpack.c.bf16 %v1857, %v1857
  %v1867 = vpack.c.bf16 %v1858, %v1858
  %v1868 = vpack.c.bf16 %v1859, %v1859
  %v1869 = vpack.c.bf16 %v1860, %v1860
  %v1870 = vpack.c.bf16 %v1861, %v1861
  %v1871 = vld [vmem:[#allocation2 + $0x8] sm:$0xff]
  %v1872 = vld [vmem:[#allocation2 + $0x10] sm:$0xff]
  %v1873 = vld [vmem:[#allocation2 + $0x18] sm:$0xff]
  %v1874 = vld [vmem:[#allocation2 + $0x20] sm:$0xff]
  %v1875 = vld [vmem:[#allocation2 + $0x28] sm:$0xff]
  %v1876 = vld [vmem:[#allocation2 + $0x30] sm:$0xff]
  %v1877 = vld [vmem:[#allocation2 + $0x38] sm:$0xff]
  %v1878 = vld [vmem:[#allocation2 + $0x40] sm:$0xff]
  %v1879 = vld [vmem:[#allocation2 + $0x48] sm:$0xff]
  %v1880 = vpack.c.bf16 %v1871, %v1871
  %v1881 = vpack.c.bf16 %v1872, %v1872
  %v1882 = vpack.c.bf16 %v1873, %v1873
  %v1883 = vpack.c.bf16 %v1874, %v1874
  %v1884 = vpack.c.bf16 %v1875, %v1875
  %v1885 = vpack.c.bf16 %v1876, %v1876
  %v1886 = vpack.c.bf16 %v1877, %v1877
  %v1887 = vpack.c.bf16 %v1878, %v1878
  %v1888 = vpack.c.bf16 %v1879, %v1879
  %v1889 = vld [vmem:[#allocation2 + $0x9] sm:$0xff]
  %v1890 = vld [vmem:[#allocation2 + $0x11] sm:$0xff]
  %v1891 = vld [vmem:[#allocation2 + $0x19] sm:$0xff]
  %v1892 = vld [vmem:[#allocation2 + $0x21] sm:$0xff]
  %v1893 = vld [vmem:[#allocation2 + $0x29] sm:$0xff]
  %v1894 = vld [vmem:[#allocation2 + $0x31] sm:$0xff]
  %v1895 = vld [vmem:[#allocation2 + $0x39] sm:$0xff]
  %v1896 = vld [vmem:[#allocation2 + $0x41] sm:$0xff]
  %v1897 = vld [vmem:[#allocation2 + $0x49] sm:$0xff]
  %v1898 = vld [vmem:[%s463] sm:$0xff]
  %v1899 = vld [vmem:[%s463 + $0x8] sm:$0xff]
  %v1900 = vld [vmem:[%s463 + $0x10] sm:$0xff]
  %v1901 = vld [vmem:[%s463 + $0x18] sm:$0xff]
  %v1902 = vld [vmem:[%s463 + $0x20] sm:$0xff]
  %v1903 = vld [vmem:[%s463 + $0x28] sm:$0xff]
  %v1904 = vld [vmem:[%s463 + $0x30] sm:$0xff]
  %v1905 = vld [vmem:[%s463 + $0x38] sm:$0xff]
  %v1906 = vld [vmem:[%s463 + $0x40] sm:$0xff]
  %1908 = vset.pattern.permute.xlu0 0
  %1909 = vperm.xlu0 %1908, %v1898
  %v1910 = vpop.permute.xlu0 %1909
  %1913 = vset.pattern.permute.xlu0 0
  %1914 = vperm.xlu0 %1913, %v1899
  %v1915 = vpop.permute.xlu0 %1914
  %1918 = vset.pattern.permute.xlu0 0
  %1919 = vperm.xlu0 %1918, %v1900
  %v1920 = vpop.permute.xlu0 %1919
  %1923 = vset.pattern.permute.xlu0 0
  %1924 = vperm.xlu0 %1923, %v1901
  %v1925 = vpop.permute.xlu0 %1924
  %1928 = vset.pattern.permute.xlu0 0
  %1929 = vperm.xlu0 %1928, %v1902
  %v1930 = vpop.permute.xlu0 %1929
  %1933 = vset.pattern.permute.xlu0 0
  %1934 = vperm.xlu0 %1933, %v1903
  %v1935 = vpop.permute.xlu0 %1934
  %1938 = vset.pattern.permute.xlu0 0
  %1939 = vperm.xlu0 %1938, %v1904
  %v1940 = vpop.permute.xlu0 %1939
  %1943 = vset.pattern.permute.xlu0 0
  %1944 = vperm.xlu0 %1943, %v1905
  %v1945 = vpop.permute.xlu0 %1944
  %1948 = vset.pattern.permute.xlu0 0
  %1949 = vperm.xlu0 %1948, %v1906
  %v1950 = vpop.permute.xlu0 %1949
  %v1952 = vmul.f32 %v1889, %v1910
  %v1953 = vmul.f32 %v1890, %v1915
  %v1954 = vmul.f32 %v1891, %v1920
  %v1955 = vmul.f32 %v1892, %v1925
  %v1956 = vmul.f32 %v1893, %v1930
  %v1957 = vmul.f32 %v1894, %v1935
  %v1958 = vmul.f32 %v1895, %v1940
  %v1959 = vmul.f32 %v1896, %v1945
  %v1960 = vmul.f32 %v1897, %v1950
  %v1961 = vpack.c.bf16 %v1952, %v1952
  %v1962 = vpack.c.bf16 %v1953, %v1953
  %v1963 = vpack.c.bf16 %v1954, %v1954
  %v1964 = vpack.c.bf16 %v1955, %v1955
  %v1965 = vpack.c.bf16 %v1956, %v1956
  %v1966 = vpack.c.bf16 %v1957, %v1957
  %v1967 = vpack.c.bf16 %v1958, %v1958
  %v1968 = vpack.c.bf16 %v1959, %v1959
  %v1969 = vpack.c.bf16 %v1960, %v1960
  %v1970 = vld [vmem:[#allocation2 + $0xb] sm:$0xff]
  %v1971 = vld [vmem:[#allocation2 + $0x13] sm:$0xff]
  %v1972 = vld [vmem:[#allocation2 + $0x1b] sm:$0xff]
  %v1973 = vld [vmem:[#allocation2 + $0x23] sm:$0xff]
  %v1974 = vld [vmem:[#allocation2 + $0x2b] sm:$0xff]
  %v1975 = vld [vmem:[#allocation2 + $0x33] sm:$0xff]
  %v1976 = vld [vmem:[#allocation2 + $0x3b] sm:$0xff]
  %v1977 = vld [vmem:[#allocation2 + $0x43] sm:$0xff]
  %v1978 = vld [vmem:[#allocation2 + $0x4b] sm:$0xff]
  %v1979 = vld [vmem:[%s545] sm:$0xff]
  %v1980 = vld [vmem:[%s545 + $0x8] sm:$0xff]
  %v1981 = vld [vmem:[%s545 + $0x10] sm:$0xff]
  %v1982 = vld [vmem:[%s545 + $0x18] sm:$0xff]
  %v1983 = vld [vmem:[%s545 + $0x20] sm:$0xff]
  %v1984 = vld [vmem:[%s545 + $0x28] sm:$0xff]
  %v1985 = vld [vmem:[%s545 + $0x30] sm:$0xff]
  %v1986 = vld [vmem:[%s545 + $0x38] sm:$0xff]
  %v1987 = vld [vmem:[%s545 + $0x40] sm:$0xff]
  %1989 = vset.pattern.permute.xlu0 0
  %1990 = vperm.xlu0 %1989, %v1979
  %v1991 = vpop.permute.xlu0 %1990
  %1994 = vset.pattern.permute.xlu0 0
  %1995 = vperm.xlu0 %1994, %v1980
  %v1996 = vpop.permute.xlu0 %1995
  %1999 = vset.pattern.permute.xlu0 0
  %2000 = vperm.xlu0 %1999, %v1981
  %v2001 = vpop.permute.xlu0 %2000
  %2004 = vset.pattern.permute.xlu0 0
  %2005 = vperm.xlu0 %2004, %v1982
  %v2006 = vpop.permute.xlu0 %2005
  %2009 = vset.pattern.permute.xlu0 0
  %2010 = vperm.xlu0 %2009, %v1983
  %v2011 = vpop.permute.xlu0 %2010
  %2014 = vset.pattern.permute.xlu0 0
  %2015 = vperm.xlu0 %2014, %v1984
  %v2016 = vpop.permute.xlu0 %2015
  %2019 = vset.pattern.permute.xlu0 0
  %2020 = vperm.xlu0 %2019, %v1985
  %v2021 = vpop.permute.xlu0 %2020
  %2024 = vset.pattern.permute.xlu0 0
  %2025 = vperm.xlu0 %2024, %v1986
  %v2026 = vpop.permute.xlu0 %2025
  %2029 = vset.pattern.permute.xlu0 0
  %2030 = vperm.xlu0 %2029, %v1987
  %v2031 = vpop.permute.xlu0 %2030
  %v2033 = vmul.f32 %v1970, %v1991
  %v2034 = vmul.f32 %v1971, %v1996
  %v2035 = vmul.f32 %v1972, %v2001
  %v2036 = vmul.f32 %v1973, %v2006
  %v2037 = vmul.f32 %v1974, %v2011
  %v2038 = vmul.f32 %v1975, %v2016
  %v2039 = vmul.f32 %v1976, %v2021
  %v2040 = vmul.f32 %v1977, %v2026
  %v2041 = vmul.f32 %v1978, %v2031
  %v2042 = vpack.c.bf16 %v2033, %v2033
  %v2043 = vpack.c.bf16 %v2034, %v2034
  %v2044 = vpack.c.bf16 %v2035, %v2035
  %v2045 = vpack.c.bf16 %v2036, %v2036
  %v2046 = vpack.c.bf16 %v2037, %v2037
  %v2047 = vpack.c.bf16 %v2038, %v2038
  %v2048 = vpack.c.bf16 %v2039, %v2039
  %v2049 = vpack.c.bf16 %v2040, %v2040
  %v2050 = vpack.c.bf16 %v2041, %v2041
  %v2051 = vld [vmem:[#allocation2 + $0xc] sm:$0xff]
  %v2052 = vld [vmem:[#allocation2 + $0x14] sm:$0xff]
  %v2053 = vld [vmem:[#allocation2 + $0x1c] sm:$0xff]
  %v2054 = vld [vmem:[#allocation2 + $0x24] sm:$0xff]
  %v2055 = vld [vmem:[#allocation2 + $0x2c] sm:$0xff]
  %v2056 = vld [vmem:[#allocation2 + $0x34] sm:$0xff]
  %v2057 = vld [vmem:[#allocation2 + $0x3c] sm:$0xff]
  %v2058 = vld [vmem:[#allocation2 + $0x44] sm:$0xff]
  %v2059 = vld [vmem:[#allocation2 + $0x4c] sm:$0xff]
  %v2060 = vld [vmem:[%s627] sm:$0xff]
  %v2061 = vld [vmem:[%s627 + $0x8] sm:$0xff]
  %v2062 = vld [vmem:[%s627 + $0x10] sm:$0xff]
  %v2063 = vld [vmem:[%s627 + $0x18] sm:$0xff]
  %v2064 = vld [vmem:[%s627 + $0x20] sm:$0xff]
  %v2065 = vld [vmem:[%s627 + $0x28] sm:$0xff]
  %v2066 = vld [vmem:[%s627 + $0x30] sm:$0xff]
  %v2067 = vld [vmem:[%s627 + $0x38] sm:$0xff]
  %v2068 = vld [vmem:[%s627 + $0x40] sm:$0xff]
  %2070 = vset.pattern.permute.xlu0 0
  %2071 = vperm.xlu0 %2070, %v2060
  %v2072 = vpop.permute.xlu0 %2071
  %2075 = vset.pattern.permute.xlu0 0
  %2076 = vperm.xlu0 %2075, %v2061
  %v2077 = vpop.permute.xlu0 %2076
  %2080 = vset.pattern.permute.xlu0 0
  %2081 = vperm.xlu0 %2080, %v2062
  %v2082 = vpop.permute.xlu0 %2081
  %2085 = vset.pattern.permute.xlu0 0
  %2086 = vperm.xlu0 %2085, %v2063
  %v2087 = vpop.permute.xlu0 %2086
  %2090 = vset.pattern.permute.xlu0 0
  %2091 = vperm.xlu0 %2090, %v2064
  %v2092 = vpop.permute.xlu0 %2091
  %2095 = vset.pattern.permute.xlu0 0
  %2096 = vperm.xlu0 %2095, %v2065
  %v2097 = vpop.permute.xlu0 %2096
  %2100 = vset.pattern.permute.xlu0 0
  %2101 = vperm.xlu0 %2100, %v2066
  %v2102 = vpop.permute.xlu0 %2101
  %2105 = vset.pattern.permute.xlu0 0
  %2106 = vperm.xlu0 %2105, %v2067
  %v2107 = vpop.permute.xlu0 %2106
  %2110 = vset.pattern.permute.xlu0 0
  %2111 = vperm.xlu0 %2110, %v2068
  %v2112 = vpop.permute.xlu0 %2111
  %v2114 = vmul.f32 %v2051, %v2072
  %v2115 = vmul.f32 %v2052, %v2077
  %v2116 = vmul.f32 %v2053, %v2082
  %v2117 = vmul.f32 %v2054, %v2087
  %v2118 = vmul.f32 %v2055, %v2092
  %v2119 = vmul.f32 %v2056, %v2097
  %v2120 = vmul.f32 %v2057, %v2102
  %v2121 = vmul.f32 %v2058, %v2107
  %v2122 = vmul.f32 %v2059, %v2112
  %v2123 = vpack.c.bf16 %v2114, %v2114
  %v2124 = vpack.c.bf16 %v2115, %v2115
  %v2125 = vpack.c.bf16 %v2116, %v2116
  %v2126 = vpack.c.bf16 %v2117, %v2117
  %v2127 = vpack.c.bf16 %v2118, %v2118
  %v2128 = vpack.c.bf16 %v2119, %v2119
  %v2129 = vpack.c.bf16 %v2120, %v2120
  %v2130 = vpack.c.bf16 %v2121, %v2121
  %v2131 = vpack.c.bf16 %v2122, %v2122
  %v2132 = vld [vmem:[#allocation2 + $0xd] sm:$0xff]
  %v2133 = vld [vmem:[#allocation2 + $0x15] sm:$0xff]
  %v2134 = vld [vmem:[#allocation2 + $0x1d] sm:$0xff]
  %v2135 = vld [vmem:[#allocation2 + $0x25] sm:$0xff]
  %v2136 = vld [vmem:[#allocation2 + $0x2d] sm:$0xff]
  %v2137 = vld [vmem:[#allocation2 + $0x35] sm:$0xff]
  %v2138 = vld [vmem:[#allocation2 + $0x3d] sm:$0xff]
  %v2139 = vld [vmem:[#allocation2 + $0x45] sm:$0xff]
  %v2140 = vld [vmem:[#allocation2 + $0x4d] sm:$0xff]
  %v2141 = vld [vmem:[%s709] sm:$0xff]
  %v2142 = vld [vmem:[%s709 + $0x8] sm:$0xff]
  %v2143 = vld [vmem:[%s709 + $0x10] sm:$0xff]
  %v2144 = vld [vmem:[%s709 + $0x18] sm:$0xff]
  %v2145 = vld [vmem:[%s709 + $0x20] sm:$0xff]
  %v2146 = vld [vmem:[%s709 + $0x28] sm:$0xff]
  %v2147 = vld [vmem:[%s709 + $0x30] sm:$0xff]
  %v2148 = vld [vmem:[%s709 + $0x38] sm:$0xff]
  %v2149 = vld [vmem:[%s709 + $0x40] sm:$0xff]
  %2151 = vset.pattern.permute.xlu0 0
  %2152 = vperm.xlu0 %2151, %v2141
  %v2153 = vpop.permute.xlu0 %2152
  %2156 = vset.pattern.permute.xlu0 0
  %2157 = vperm.xlu0 %2156, %v2142
  %v2158 = vpop.permute.xlu0 %2157
  %2161 = vset.pattern.permute.xlu0 0
  %2162 = vperm.xlu0 %2161, %v2143
  %v2163 = vpop.permute.xlu0 %2162
  %2166 = vset.pattern.permute.xlu0 0
  %2167 = vperm.xlu0 %2166, %v2144
  %v2168 = vpop.permute.xlu0 %2167
  %2171 = vset.pattern.permute.xlu0 0
  %2172 = vperm.xlu0 %2171, %v2145
  %v2173 = vpop.permute.xlu0 %2172
  %2176 = vset.pattern.permute.xlu0 0
  %2177 = vperm.xlu0 %2176, %v2146
  %v2178 = vpop.permute.xlu0 %2177
  %2181 = vset.pattern.permute.xlu0 0
  %2182 = vperm.xlu0 %2181, %v2147
  %v2183 = vpop.permute.xlu0 %2182
  %2186 = vset.pattern.permute.xlu0 0
  %2187 = vperm.xlu0 %2186, %v2148
  %v2188 = vpop.permute.xlu0 %2187
  %2191 = vset.pattern.permute.xlu0 0
  %2192 = vperm.xlu0 %2191, %v2149
  %v2193 = vpop.permute.xlu0 %2192
  %v2195 = vmul.f32 %v2132, %v2153
  %v2196 = vmul.f32 %v2133, %v2158
  %v2197 = vmul.f32 %v2134, %v2163
  %v2198 = vmul.f32 %v2135, %v2168
  %v2199 = vmul.f32 %v2136, %v2173
  %v2200 = vmul.f32 %v2137, %v2178
  %v2201 = vmul.f32 %v2138, %v2183
  %v2202 = vmul.f32 %v2139, %v2188
  %v2203 = vmul.f32 %v2140, %v2193
  %v2204 = vpack.c.bf16 %v2195, %v2195
  %v2205 = vpack.c.bf16 %v2196, %v2196
  %v2206 = vpack.c.bf16 %v2197, %v2197
  %v2207 = vpack.c.bf16 %v2198, %v2198
  %v2208 = vpack.c.bf16 %v2199, %v2199
  %v2209 = vpack.c.bf16 %v2200, %v2200
  %v2210 = vpack.c.bf16 %v2201, %v2201
  %v2211 = vpack.c.bf16 %v2202, %v2202
  %v2212 = vpack.c.bf16 %v2203, %v2203
  %v2222 = vunpack.c.l.b16 %v1619
  %v2223 = vunpack.c.l.b16 %v1620
  %v2224 = vunpack.c.l.b16 %v1621
  %v2225 = vunpack.c.l.b16 %v1622
  %v2226 = vunpack.c.l.b16 %v1623
  %v2227 = vunpack.c.l.b16 %v1624
  %v2228 = vunpack.c.l.b16 %v1625
  %v2229 = vunpack.c.l.b16 %v1626
  %v2230 = vunpack.c.l.b16 %v1627
  %v2231 = vpack.c.b16 %v2223, %v2222
  %v2232 = vpack.c.b16 %v2225, %v2224
  %v2233 = vpack.c.b16 %v2227, %v2226
  %v2234 = vpack.c.b16 %v2229, %v2228
  %v2235 = vpack.c.b16 %v2230, %v2230
  %v2245 = vunpack.c.l.b16 %v1700
  %v2246 = vunpack.c.l.b16 %v1701
  %v2247 = vunpack.c.l.b16 %v1702
  %v2248 = vunpack.c.l.b16 %v1703
  %v2249 = vunpack.c.l.b16 %v1704
  %v2250 = vunpack.c.l.b16 %v1705
  %v2251 = vunpack.c.l.b16 %v1706
  %v2252 = vunpack.c.l.b16 %v1707
  %v2253 = vunpack.c.l.b16 %v1708
  %v2254 = vpack.c.b16 %v2246, %v2245
  %v2255 = vpack.c.b16 %v2248, %v2247
  %v2256 = vpack.c.b16 %v2250, %v2249
  %v2257 = vpack.c.b16 %v2252, %v2251
  %v2258 = vpack.c.b16 %v2253, %v2253
  %2259 = vrot.lane.b32.xlu0 %v2254, 16
  %v2260 = vpop.permute.xlu0 %2259
  %2261 = vrot.lane.b32.xlu0 %v2255, 16
  %v2262 = vpop.permute.xlu0 %2261
  %2263 = vrot.lane.b32.xlu0 %v2256, 16
  %v2264 = vpop.permute.xlu0 %2263
  %2265 = vrot.lane.b32.xlu0 %v2257, 16
  %v2266 = vpop.permute.xlu0 %2265
  %2267 = vrot.lane.b32.xlu0 %v2258, 16
  %v2268 = vpop.permute.xlu0 %2267
  %v2278 = vunpack.c.l.b16 %v1781
  %v2279 = vunpack.c.l.b16 %v1782
  %v2280 = vunpack.c.l.b16 %v1783
  %v2281 = vunpack.c.l.b16 %v1784
  %v2282 = vunpack.c.l.b16 %v1785
  %v2283 = vunpack.c.l.b16 %v1786
  %v2284 = vunpack.c.l.b16 %v1787
  %v2285 = vunpack.c.l.b16 %v1788
  %v2286 = vunpack.c.l.b16 %v1789
  %v2287 = vpack.c.b16 %v2279, %v2278
  %v2288 = vpack.c.b16 %v2281, %v2280
  %v2289 = vpack.c.b16 %v2283, %v2282
  %v2290 = vpack.c.b16 %v2285, %v2284
  %v2291 = vpack.c.b16 %v2286, %v2286
  %2292 = vrot.lane.b32.xlu0 %v2287, 32
  %v2293 = vpop.permute.xlu0 %2292
  %2294 = vrot.lane.b32.xlu0 %v2288, 32
  %v2295 = vpop.permute.xlu0 %2294
  %2296 = vrot.lane.b32.xlu0 %v2289, 32
  %v2297 = vpop.permute.xlu0 %2296
  %2298 = vrot.lane.b32.xlu0 %v2290, 32
  %v2299 = vpop.permute.xlu0 %2298
  %2300 = vrot.lane.b32.xlu0 %v2291, 32
  %v2301 = vpop.permute.xlu0 %2300
  %v2311 = vunpack.c.l.b16 %v1862
  %v2312 = vunpack.c.l.b16 %v1863
  %v2313 = vunpack.c.l.b16 %v1864
  %v2314 = vunpack.c.l.b16 %v1865
  %v2315 = vunpack.c.l.b16 %v1866
  %v2316 = vunpack.c.l.b16 %v1867
  %v2317 = vunpack.c.l.b16 %v1868
  %v2318 = vunpack.c.l.b16 %v1869
  %v2319 = vunpack.c.l.b16 %v1870
  %v2320 = vpack.c.b16 %v2312, %v2311
  %v2321 = vpack.c.b16 %v2314, %v2313
  %v2322 = vpack.c.b16 %v2316, %v2315
  %v2323 = vpack.c.b16 %v2318, %v2317
  %v2324 = vpack.c.b16 %v2319, %v2319
  %2325 = vrot.lane.b32.xlu0 %v2320, 48
  %v2326 = vpop.permute.xlu0 %2325
  %2327 = vrot.lane.b32.xlu0 %v2321, 48
  %v2328 = vpop.permute.xlu0 %2327
  %2329 = vrot.lane.b32.xlu0 %v2322, 48
  %v2330 = vpop.permute.xlu0 %2329
  %2331 = vrot.lane.b32.xlu0 %v2323, 48
  %v2332 = vpop.permute.xlu0 %2331
  %2333 = vrot.lane.b32.xlu0 %v2324, 48
  %v2334 = vpop.permute.xlu0 %2333
  %v2344 = vunpack.c.l.b16 %v1880
  %v2345 = vunpack.c.l.b16 %v1881
  %v2346 = vunpack.c.l.b16 %v1882
  %v2347 = vunpack.c.l.b16 %v1883
  %v2348 = vunpack.c.l.b16 %v1884
  %v2349 = vunpack.c.l.b16 %v1885
  %v2350 = vunpack.c.l.b16 %v1886
  %v2351 = vunpack.c.l.b16 %v1887
  %v2352 = vunpack.c.l.b16 %v1888
  %v2353 = vpack.c.b16 %v2345, %v2344
  %v2354 = vpack.c.b16 %v2347, %v2346
  %v2355 = vpack.c.b16 %v2349, %v2348
  %v2356 = vpack.c.b16 %v2351, %v2350
  %v2357 = vpack.c.b16 %v2352, %v2352
  %2358 = vrot.lane.b32.xlu0 %v2353, 64
  %v2359 = vpop.permute.xlu0 %2358
  %2360 = vrot.lane.b32.xlu0 %v2354, 64
  %v2361 = vpop.permute.xlu0 %2360
  %2362 = vrot.lane.b32.xlu0 %v2355, 64
  %v2363 = vpop.permute.xlu0 %2362
  %2364 = vrot.lane.b32.xlu0 %v2356, 64
  %v2365 = vpop.permute.xlu0 %2364
  %2366 = vrot.lane.b32.xlu0 %v2357, 64
  %v2367 = vpop.permute.xlu0 %2366
  %v2377 = vunpack.c.l.b16 %v1961
  %v2378 = vunpack.c.l.b16 %v1962
  %v2379 = vunpack.c.l.b16 %v1963
  %v2380 = vunpack.c.l.b16 %v1964
  %v2381 = vunpack.c.l.b16 %v1965
  %v2382 = vunpack.c.l.b16 %v1966
  %v2383 = vunpack.c.l.b16 %v1967
  %v2384 = vunpack.c.l.b16 %v1968
  %v2385 = vunpack.c.l.b16 %v1969
  %v2386 = vpack.c.b16 %v2378, %v2377
  %v2387 = vpack.c.b16 %v2380, %v2379
  %v2388 = vpack.c.b16 %v2382, %v2381
  %v2389 = vpack.c.b16 %v2384, %v2383
  %v2390 = vpack.c.b16 %v2385, %v2385
  %2391 = vrot.lane.b32.xlu0 %v2386, 80
  %v2392 = vpop.permute.xlu0 %2391
  %2393 = vrot.lane.b32.xlu0 %v2387, 80
  %v2394 = vpop.permute.xlu0 %2393
  %2395 = vrot.lane.b32.xlu0 %v2388, 80
  %v2396 = vpop.permute.xlu0 %2395
  %2397 = vrot.lane.b32.xlu0 %v2389, 80
  %v2398 = vpop.permute.xlu0 %2397
  %2399 = vrot.lane.b32.xlu0 %v2390, 80
  %v2400 = vpop.permute.xlu0 %2399
  %v2410 = vunpack.c.l.b16 %v2042
  %v2411 = vunpack.c.l.b16 %v2043
  %v2412 = vunpack.c.l.b16 %v2044
  %v2413 = vunpack.c.l.b16 %v2045
  %v2414 = vunpack.c.l.b16 %v2046
  %v2415 = vunpack.c.l.b16 %v2047
  %v2416 = vunpack.c.l.b16 %v2048
  %v2417 = vunpack.c.l.b16 %v2049
  %v2418 = vunpack.c.l.b16 %v2050
  %v2419 = vpack.c.b16 %v2411, %v2410
  %v2420 = vpack.c.b16 %v2413, %v2412
  %v2421 = vpack.c.b16 %v2415, %v2414
  %v2422 = vpack.c.b16 %v2417, %v2416
  %v2423 = vpack.c.b16 %v2418, %v2418
  %2424 = vrot.lane.b32.xlu0 %v2419, 96
  %v2425 = vpop.permute.xlu0 %2424
  %2426 = vrot.lane.b32.xlu0 %v2420, 96
  %v2427 = vpop.permute.xlu0 %2426
  %2428 = vrot.lane.b32.xlu0 %v2421, 96
  %v2429 = vpop.permute.xlu0 %2428
  %2430 = vrot.lane.b32.xlu0 %v2422, 96
  %v2431 = vpop.permute.xlu0 %2430
  %2432 = vrot.lane.b32.xlu0 %v2423, 96
  %v2433 = vpop.permute.xlu0 %2432
  %v2443 = vunpack.c.l.b16 %v2123
  %v2444 = vunpack.c.l.b16 %v2124
  %v2445 = vunpack.c.l.b16 %v2125
  %v2446 = vunpack.c.l.b16 %v2126
  %v2447 = vunpack.c.l.b16 %v2127
  %v2448 = vunpack.c.l.b16 %v2128
  %v2449 = vunpack.c.l.b16 %v2129
  %v2450 = vunpack.c.l.b16 %v2130
  %v2451 = vunpack.c.l.b16 %v2131
  %v2452 = vpack.c.b16 %v2444, %v2443
  %v2453 = vpack.c.b16 %v2446, %v2445
  %v2454 = vpack.c.b16 %v2448, %v2447
  %v2455 = vpack.c.b16 %v2450, %v2449
  %v2456 = vpack.c.b16 %v2451, %v2451
  %2457 = vrot.lane.b32.xlu0 %v2452, 112
  %v2458 = vpop.permute.xlu0 %2457
  %2459 = vrot.lane.b32.xlu0 %v2453, 112
  %v2460 = vpop.permute.xlu0 %2459
  %2461 = vrot.lane.b32.xlu0 %v2454, 112
  %v2462 = vpop.permute.xlu0 %2461
  %2463 = vrot.lane.b32.xlu0 %v2455, 112
  %v2464 = vpop.permute.xlu0 %2463
  %2465 = vrot.lane.b32.xlu0 %v2456, 112
  %v2466 = vpop.permute.xlu0 %2465
  %v2476 = vunpack.c.l.b16 %v2204
  %v2477 = vunpack.c.l.b16 %v2205
  %v2478 = vunpack.c.l.b16 %v2206
  %v2479 = vunpack.c.l.b16 %v2207
  %v2480 = vunpack.c.l.b16 %v2208
  %v2481 = vunpack.c.l.b16 %v2209
  %v2482 = vunpack.c.l.b16 %v2210
  %v2483 = vunpack.c.l.b16 %v2211
  %v2484 = vunpack.c.l.b16 %v2212
  %v2485 = vpack.c.b16 %v2477, %v2476
  %v2486 = vpack.c.b16 %v2479, %v2478
  %v2487 = vpack.c.b16 %v2481, %v2480
  %v2488 = vpack.c.b16 %v2483, %v2482
  %v2489 = vpack.c.b16 %v2484, %v2484
  %v2492 = vsel %vm36, %v2231, %v2260
  %v2495 = vsel %vm36, %v2232, %v2262
  %v2498 = vsel %vm36, %v2233, %v2264
  %v2501 = vsel %vm36, %v2234, %v2266
  %v2504 = vsel %vm36, %v2235, %v2268
  %vm2505 = vcmask 261120
  %v2507 = vsel %vm2505, %v2492, %v2293
  %v2509 = vsel %vm2505, %v2495, %v2295
  %v2511 = vsel %vm2505, %v2498, %v2297
  %v2513 = vsel %vm2505, %v2501, %v2299
  %v2515 = vsel %vm2505, %v2504, %v2301
  %v2517 = vsel %vm1166, %v2507, %v2326
  %v2519 = vsel %vm1166, %v2509, %v2328
  %v2521 = vsel %vm1166, %v2511, %v2330
  %v2523 = vsel %vm1166, %v2513, %v2332
  %v2525 = vsel %vm1166, %v2515, %v2334
  %vm2526 = vcmask 523264
  %v2528 = vsel %vm2526, %v2517, %v2359
  %v2530 = vsel %vm2526, %v2519, %v2361
  %v2532 = vsel %vm2526, %v2521, %v2363
  %v2534 = vsel %vm2526, %v2523, %v2365
  %v2536 = vsel %vm2526, %v2525, %v2367
  %vm2537 = vcmask 654336
  %v2539 = vsel %vm2537, %v2528, %v2392
  %v2541 = vsel %vm2537, %v2530, %v2394
  %v2543 = vsel %vm2537, %v2532, %v2396
  %v2545 = vsel %vm2537, %v2534, %v2398
  %v2547 = vsel %vm2537, %v2536, %v2400
  %vm2548 = vcmask 785408
  %v2550 = vsel %vm2548, %v2539, %v2425
  %v2552 = vsel %vm2548, %v2541, %v2427
  %v2554 = vsel %vm2548, %v2543, %v2429
  %v2556 = vsel %vm2548, %v2545, %v2431
  %v2558 = vsel %vm2548, %v2547, %v2433
  %vm2559 = vcmask 916480
  %v2561 = vsel %vm2559, %v2550, %v2458
  %v2564 = vsel %vm2559, %v2552, %v2460
  %v2567 = vsel %vm2559, %v2554, %v2462
  %v2570 = vsel %vm2559, %v2556, %v2464
  %v2573 = vsel %vm2559, %v2558, %v2466
  %v2593 = vunpack.c.l.b16 %v1529
  %v2594 = vunpack.c.l.b16 %v1530
  %v2595 = vunpack.c.l.b16 %v1531
  %v2596 = vunpack.c.l.b16 %v1532
  %v2597 = vunpack.c.l.b16 %v1533
  %v2598 = vunpack.c.l.b16 %v1534
  %v2599 = vunpack.c.l.b16 %v1535
  %v2600 = vunpack.c.l.b16 %v1536
  %v2601 = vunpack.c.l.b16 %v1537
  %v2602 = vunpack.c.l.b16 %v1538
  %v2603 = vunpack.c.l.b16 %v1539
  %v2604 = vunpack.c.l.b16 %v1540
  %v2605 = vunpack.c.l.b16 %v1541
  %v2606 = vunpack.c.l.b16 %v1542
  %v2607 = vunpack.c.l.b16 %v1543
  %v2608 = vunpack.c.l.b16 %v1544
  %v2609 = vunpack.c.l.b16 %v1545
  %v2610 = vunpack.c.l.b16 %v1546
  %v2611 = vpack.c.b16 %v2594, %v2593
  %v2612 = vpack.c.b16 %v2596, %v2595
  %v2613 = vpack.c.b16 %v2598, %v2597
  %v2614 = vpack.c.b16 %v2600, %v2599
  %v2615 = vpack.c.b16 %v2602, %v2601
  %v2616 = vpack.c.b16 %v2604, %v2603
  %v2617 = vpack.c.b16 %v2606, %v2605
  %v2618 = vpack.c.b16 %v2608, %v2607
  %v2619 = vpack.c.b16 %v2610, %v2609
  %v2630 = vsel %vm36, %v2485, 0
  %v2633 = vsel %vm36, %v2486, 0
  %v2636 = vsel %vm36, %v2487, 0
  %v2639 = vsel %vm36, %v2488, 0
  %v2642 = vsel %vm36, %v2489, 0
  %2644 = vmatpush.bf16.msra.mxu0 %v2618
  %2645 = vmatpush.bf16.msra.mxu0 %v2617
  %2646 = vmatpush.bf16.msra.mxu0 %v2616
  %2647 = vmatpush.bf16.msra.mxu0 %v2615
  %2648 = vmatpush.bf16.msra.mxu0 %v2614
  %2649 = vmatpush.bf16.msra.mxu0 %v2613
  %2650 = vmatpush.bf16.msra.mxu0 %v2612
  %2651 = vmatpush.bf16.msra.mxu0 %v2611
  %2652 = vmatmul.bf16.gmra.mxu0 %v2561
  %v2653 = vpop.f32.mrf.mxu0
  %v2654 = vadd.f32 0.0, %v2653
  %v2655 = vpop.f32.mrf.mxu0
  %v2656 = vadd.f32 0.0, %v2655
  %2657 = vmatmul.bf16.gmra.mxu0 %v2564
  %v2658 = vpop.f32.mrf.mxu0
  %v2659 = vadd.f32 0.0, %v2658
  %v2660 = vpop.f32.mrf.mxu0
  %v2661 = vadd.f32 0.0, %v2660
  %2662 = vmatmul.bf16.gmra.mxu0 %v2567
  %v2663 = vpop.f32.mrf.mxu0
  %v2664 = vadd.f32 0.0, %v2663
  %v2665 = vpop.f32.mrf.mxu0
  %v2666 = vadd.f32 0.0, %v2665
  %2667 = vmatmul.bf16.gmra.mxu0 %v2570
  %v2668 = vpop.f32.mrf.mxu0
  %v2669 = vadd.f32 0.0, %v2668
  %v2670 = vpop.f32.mrf.mxu0
  %v2671 = vadd.f32 0.0, %v2670
  %2672 = vmatmul.bf16.gmra.mxu0 %v2573
  %v2673 = vpop.f32.mrf.mxu0
  %v2674 = vadd.f32 0.0, %v2673
  %v2675 = vpop.f32.mrf.mxu0
  %2676 = vdwg.mxu0
  %2677 = vmatpush.bf16.msra.mxu0 0
  %2678 = vmatpush.bf16.msra.mxu0 0
  %2679 = vmatpush.bf16.msra.mxu0 0
  %2680 = vmatpush.bf16.msra.mxu0 0
  %2681 = vmatpush.bf16.msra.mxu0 0
  %2682 = vmatpush.bf16.msra.mxu0 0
  %2683 = vmatpush.bf16.msra.mxu0 0
  %2684 = vmatpush.bf16.msra.mxu0 %v2619
  %2685 = vmatmul.bf16.gmra.mxu0 %v2630
  %v2686 = vpop.f32.mrf.mxu0
  %v2687 = vadd.f32 %v2654, %v2686
  %v2688 = vpop.f32.mrf.mxu0
  %v2689 = vadd.f32 %v2656, %v2688
  %2690 = vmatmul.bf16.gmra.mxu0 %v2633
  %v2691 = vpop.f32.mrf.mxu0
  %v2692 = vadd.f32 %v2659, %v2691
  %v2693 = vpop.f32.mrf.mxu0
  %v2694 = vadd.f32 %v2661, %v2693
  %2695 = vmatmul.bf16.gmra.mxu0 %v2636
  %v2696 = vpop.f32.mrf.mxu0
  %v2697 = vadd.f32 %v2664, %v2696
  %v2698 = vpop.f32.mrf.mxu0
  %v2699 = vadd.f32 %v2666, %v2698
  %2700 = vmatmul.bf16.gmra.mxu0 %v2639
  %v2701 = vpop.f32.mrf.mxu0
  %v2702 = vadd.f32 %v2669, %v2701
  %v2703 = vpop.f32.mrf.mxu0
  %v2704 = vadd.f32 %v2671, %v2703
  %2705 = vmatmul.bf16.gmra.mxu0 %v2642
  %v2706 = vpop.f32.mrf.mxu0
  %v2707 = vadd.f32 %v2674, %v2706
  %v2708 = vpop.f32.mrf.mxu0
  %2709 = vdwg.mxu0
  %v2710 = vld [vmem:[%s5] sm:$0x1]
  %v2712 = vperm.slane %v2710, 0
  %v2714 = vmul.f32 %v2687, %v2712
  %v2715 = vmul.f32 %v2689, %v2712
  %v2716 = vmul.f32 %v2692, %v2712
  %v2717 = vmul.f32 %v2694, %v2712
  %v2718 = vmul.f32 %v2697, %v2712
  %v2719 = vmul.f32 %v2699, %v2712
  %v2720 = vmul.f32 %v2702, %v2712
  %v2721 = vmul.f32 %v2704, %v2712
  %v2722 = vmul.f32 %v2707, %v2712
  %v2723 = vld [vmem:[%s6] sm:$0x1]
  %v2725 = vperm.slane %v2723, 0
  %v2727 = vadd.f32 %v2714, %v2725
  %v2728 = vadd.f32 %v2715, %v2725
  %v2729 = vadd.f32 %v2716, %v2725
  %v2730 = vadd.f32 %v2717, %v2725
  %v2731 = vadd.f32 %v2718, %v2725
  %v2732 = vadd.f32 %v2719, %v2725
  %v2733 = vadd.f32 %v2720, %v2725
  %v2734 = vadd.f32 %v2721, %v2725
  %v2735 = vadd.f32 %v2722, %v2725
  %v2736 = vmax.f32 %v2727, 0.0
  %v2737 = vmax.f32 %v2728, 0.0
  %v2738 = vmax.f32 %v2729, 0.0
  %v2739 = vmax.f32 %v2730, 0.0
  %v2740 = vmax.f32 %v2731, 0.0
  %v2741 = vmax.f32 %v2732, 0.0
  %v2742 = vmax.f32 %v2733, 0.0
  %v2743 = vmax.f32 %v2734, 0.0
  %v2744 = vmax.f32 %v2735, 0.0
  %2745 = vst.msk [vmem:[#allocation2 + $0x8] sm:$0xff] %vm36, %v2736
  %2746 = vst.msk [vmem:[#allocation2 + $0x10] sm:$0xff] %vm36, %v2737
  %2747 = vst.msk [vmem:[#allocation2 + $0x18] sm:$0xff] %vm36, %v2738
  %2748 = vst.msk [vmem:[#allocation2 + $0x20] sm:$0xff] %vm36, %v2739
  %2749 = vst.msk [vmem:[#allocation2 + $0x28] sm:$0xff] %vm36, %v2740
  %2750 = vst.msk [vmem:[#allocation2 + $0x30] sm:$0xff] %vm36, %v2741
  %2751 = vst.msk [vmem:[#allocation2 + $0x38] sm:$0xff] %vm36, %v2742
  %2752 = vst.msk [vmem:[#allocation2 + $0x40] sm:$0xff] %vm36, %v2743
  %2753 = vst.msk [vmem:[#allocation2 + $0x48] sm:$0xff] %vm36, %v2744
  %v2754 = vld [vmem:[%s7] sm:$0xf]
  %v2755 = vld [vmem:[%s7 + $0x4] sm:$0xf]
  %v2756 = vld [vmem:[%s7 + $0x8] sm:$0xf]
  %v2757 = vld [vmem:[%s7 + $0xc] sm:$0xf]
  %v2758 = vld [vmem:[%s7 + $0x10] sm:$0xf]
  %v2759 = vld [vmem:[%s7 + $0x14] sm:$0xf]
  %v2760 = vld [vmem:[%s7 + $0x18] sm:$0xf]
  %v2761 = vld [vmem:[%s7 + $0x1c] sm:$0xf]
  %v2762 = vld [vmem:[%s7 + $0x20] sm:$0xf]
  %v2763 = vld [vmem:[%s7 + $0x24] sm:$0xf]
  %v2764 = vld [vmem:[%s7 + $0x28] sm:$0xf]
  %v2765 = vld [vmem:[%s7 + $0x2c] sm:$0xf]
  %v2766 = vld [vmem:[%s7 + $0x30] sm:$0xf]
  %v2767 = vld [vmem:[%s7 + $0x34] sm:$0xf]
  %v2768 = vld [vmem:[%s7 + $0x38] sm:$0xf]
  %v2769 = vld [vmem:[%s7 + $0x3c] sm:$0xf]
  %v2770 = vld [vmem:[%s7 + $0x40] sm:$0xf]
  %v2771 = vld [vmem:[%s7 + $0x44] sm:$0xf]
  %v2772 = vld [vmem:[#allocation2 + $0x3] sm:$0xff]
  %v2773 = vld [vmem:[#allocation2 + $0xb] sm:$0xff]
  %v2774 = vld [vmem:[#allocation2 + $0x13] sm:$0xff]
  %v2775 = vld [vmem:[#allocation2 + $0x1b] sm:$0xff]
  %v2776 = vld [vmem:[#allocation2 + $0x23] sm:$0xff]
  %v2777 = vld [vmem:[#allocation2 + $0x2b] sm:$0xff]
  %v2778 = vld [vmem:[#allocation2 + $0x33] sm:$0xff]
  %v2779 = vld [vmem:[#allocation2 + $0x3b] sm:$0xff]
  %v2780 = vld [vmem:[#allocation2 + $0x43] sm:$0xff]
  %v2781 = vld [vmem:[%s1] sm:$0xff]
  %v2782 = vld [vmem:[%s1 + $0x8] sm:$0xff]
  %v2783 = vld [vmem:[%s1 + $0x10] sm:$0xff]
  %v2784 = vld [vmem:[%s1 + $0x18] sm:$0xff]
  %v2785 = vld [vmem:[%s1 + $0x20] sm:$0xff]
  %v2786 = vld [vmem:[%s1 + $0x28] sm:$0xff]
  %v2787 = vld [vmem:[%s1 + $0x30] sm:$0xff]
  %v2788 = vld [vmem:[%s1 + $0x38] sm:$0xff]
  %v2789 = vld [vmem:[%s1 + $0x40] sm:$0xff]
  %2791 = vset.pattern.permute.xlu0 0
  %2792 = vperm.xlu0 %2791, %v2781
  %v2793 = vpop.permute.xlu0 %2792
  %2796 = vset.pattern.permute.xlu0 0
  %2797 = vperm.xlu0 %2796, %v2782
  %v2798 = vpop.permute.xlu0 %2797
  %2801 = vset.pattern.permute.xlu0 0
  %2802 = vperm.xlu0 %2801, %v2783
  %v2803 = vpop.permute.xlu0 %2802
  %2806 = vset.pattern.permute.xlu0 0
  %2807 = vperm.xlu0 %2806, %v2784
  %v2808 = vpop.permute.xlu0 %2807
  %2811 = vset.pattern.permute.xlu0 0
  %2812 = vperm.xlu0 %2811, %v2785
  %v2813 = vpop.permute.xlu0 %2812
  %2816 = vset.pattern.permute.xlu0 0
  %2817 = vperm.xlu0 %2816, %v2786
  %v2818 = vpop.permute.xlu0 %2817
  %2821 = vset.pattern.permute.xlu0 0
  %2822 = vperm.xlu0 %2821, %v2787
  %v2823 = vpop.permute.xlu0 %2822
  %2826 = vset.pattern.permute.xlu0 0
  %2827 = vperm.xlu0 %2826, %v2788
  %v2828 = vpop.permute.xlu0 %2827
  %2831 = vset.pattern.permute.xlu0 0
  %2832 = vperm.xlu0 %2831, %v2789
  %v2833 = vpop.permute.xlu0 %2832
  %v2835 = vmul.f32 %v2772, %v2793
  %v2836 = vmul.f32 %v2773, %v2798
  %v2837 = vmul.f32 %v2774, %v2803
  %v2838 = vmul.f32 %v2775, %v2808
  %v2839 = vmul.f32 %v2776, %v2813
  %v2840 = vmul.f32 %v2777, %v2818
  %v2841 = vmul.f32 %v2778, %v2823
  %v2842 = vmul.f32 %v2779, %v2828
  %v2843 = vmul.f32 %v2780, %v2833
  %v2844 = vpack.c.bf16 %v2835, %v2835
  %v2845 = vpack.c.bf16 %v2836, %v2836
  %v2846 = vpack.c.bf16 %v2837, %v2837
  %v2847 = vpack.c.bf16 %v2838, %v2838
  %v2848 = vpack.c.bf16 %v2839, %v2839
  %v2849 = vpack.c.bf16 %v2840, %v2840
  %v2850 = vpack.c.bf16 %v2841, %v2841
  %v2851 = vpack.c.bf16 %v2842, %v2842
  %v2852 = vpack.c.bf16 %v2843, %v2843
  %v2853 = vld [vmem:[#allocation2 + $0x4] sm:$0xff]
  %v2854 = vld [vmem:[#allocation2 + $0xc] sm:$0xff]
  %v2855 = vld [vmem:[#allocation2 + $0x14] sm:$0xff]
  %v2856 = vld [vmem:[#allocation2 + $0x1c] sm:$0xff]
  %v2857 = vld [vmem:[#allocation2 + $0x24] sm:$0xff]
  %v2858 = vld [vmem:[#allocation2 + $0x2c] sm:$0xff]
  %v2859 = vld [vmem:[#allocation2 + $0x34] sm:$0xff]
  %v2860 = vld [vmem:[#allocation2 + $0x3c] sm:$0xff]
  %v2861 = vld [vmem:[#allocation2 + $0x44] sm:$0xff]
  %v2862 = vld [vmem:[%s199] sm:$0xff]
  %v2863 = vld [vmem:[%s199 + $0x8] sm:$0xff]
  %v2864 = vld [vmem:[%s199 + $0x10] sm:$0xff]
  %v2865 = vld [vmem:[%s199 + $0x18] sm:$0xff]
  %v2866 = vld [vmem:[%s199 + $0x20] sm:$0xff]
  %v2867 = vld [vmem:[%s199 + $0x28] sm:$0xff]
  %v2868 = vld [vmem:[%s199 + $0x30] sm:$0xff]
  %v2869 = vld [vmem:[%s199 + $0x38] sm:$0xff]
  %v2870 = vld [vmem:[%s199 + $0x40] sm:$0xff]
  %2872 = vset.pattern.permute.xlu0 0
  %2873 = vperm.xlu0 %2872, %v2862
  %v2874 = vpop.permute.xlu0 %2873
  %2877 = vset.pattern.permute.xlu0 0
  %2878 = vperm.xlu0 %2877, %v2863
  %v2879 = vpop.permute.xlu0 %2878
  %2882 = vset.pattern.permute.xlu0 0
  %2883 = vperm.xlu0 %2882, %v2864
  %v2884 = vpop.permute.xlu0 %2883
  %2887 = vset.pattern.permute.xlu0 0
  %2888 = vperm.xlu0 %2887, %v2865
  %v2889 = vpop.permute.xlu0 %2888
  %2892 = vset.pattern.permute.xlu0 0
  %2893 = vperm.xlu0 %2892, %v2866
  %v2894 = vpop.permute.xlu0 %2893
  %2897 = vset.pattern.permute.xlu0 0
  %2898 = vperm.xlu0 %2897, %v2867
  %v2899 = vpop.permute.xlu0 %2898
  %2902 = vset.pattern.permute.xlu0 0
  %2903 = vperm.xlu0 %2902, %v2868
  %v2904 = vpop.permute.xlu0 %2903
  %2907 = vset.pattern.permute.xlu0 0
  %2908 = vperm.xlu0 %2907, %v2869
  %v2909 = vpop.permute.xlu0 %2908
  %2912 = vset.pattern.permute.xlu0 0
  %2913 = vperm.xlu0 %2912, %v2870
  %v2914 = vpop.permute.xlu0 %2913
  %v2916 = vmul.f32 %v2853, %v2874
  %v2917 = vmul.f32 %v2854, %v2879
  %v2918 = vmul.f32 %v2855, %v2884
  %v2919 = vmul.f32 %v2856, %v2889
  %v2920 = vmul.f32 %v2857, %v2894
  %v2921 = vmul.f32 %v2858, %v2899
  %v2922 = vmul.f32 %v2859, %v2904
  %v2923 = vmul.f32 %v2860, %v2909
  %v2924 = vmul.f32 %v2861, %v2914
  %v2925 = vpack.c.bf16 %v2916, %v2916
  %v2926 = vpack.c.bf16 %v2917, %v2917
  %v2927 = vpack.c.bf16 %v2918, %v2918
  %v2928 = vpack.c.bf16 %v2919, %v2919
  %v2929 = vpack.c.bf16 %v2920, %v2920
  %v2930 = vpack.c.bf16 %v2921, %v2921
  %v2931 = vpack.c.bf16 %v2922, %v2922
  %v2932 = vpack.c.bf16 %v2923, %v2923
  %v2933 = vpack.c.bf16 %v2924, %v2924
  %v2934 = vld [vmem:[#allocation2 + $0x5] sm:$0xff]
  %v2935 = vld [vmem:[#allocation2 + $0xd] sm:$0xff]
  %v2936 = vld [vmem:[#allocation2 + $0x15] sm:$0xff]
  %v2937 = vld [vmem:[#allocation2 + $0x1d] sm:$0xff]
  %v2938 = vld [vmem:[#allocation2 + $0x25] sm:$0xff]
  %v2939 = vld [vmem:[#allocation2 + $0x2d] sm:$0xff]
  %v2940 = vld [vmem:[#allocation2 + $0x35] sm:$0xff]
  %v2941 = vld [vmem:[#allocation2 + $0x3d] sm:$0xff]
  %v2942 = vld [vmem:[#allocation2 + $0x45] sm:$0xff]
  %v2943 = vld [vmem:[%s281] sm:$0xff]
  %v2944 = vld [vmem:[%s281 + $0x8] sm:$0xff]
  %v2945 = vld [vmem:[%s281 + $0x10] sm:$0xff]
  %v2946 = vld [vmem:[%s281 + $0x18] sm:$0xff]
  %v2947 = vld [vmem:[%s281 + $0x20] sm:$0xff]
  %v2948 = vld [vmem:[%s281 + $0x28] sm:$0xff]
  %v2949 = vld [vmem:[%s281 + $0x30] sm:$0xff]
  %v2950 = vld [vmem:[%s281 + $0x38] sm:$0xff]
  %v2951 = vld [vmem:[%s281 + $0x40] sm:$0xff]
  %2953 = vset.pattern.permute.xlu0 0
  %2954 = vperm.xlu0 %2953, %v2943
  %v2955 = vpop.permute.xlu0 %2954
  %2958 = vset.pattern.permute.xlu0 0
  %2959 = vperm.xlu0 %2958, %v2944
  %v2960 = vpop.permute.xlu0 %2959
  %2963 = vset.pattern.permute.xlu0 0
  %2964 = vperm.xlu0 %2963, %v2945
  %v2965 = vpop.permute.xlu0 %2964
  %2968 = vset.pattern.permute.xlu0 0
  %2969 = vperm.xlu0 %2968, %v2946
  %v2970 = vpop.permute.xlu0 %2969
  %2973 = vset.pattern.permute.xlu0 0
  %2974 = vperm.xlu0 %2973, %v2947
  %v2975 = vpop.permute.xlu0 %2974
  %2978 = vset.pattern.permute.xlu0 0
  %2979 = vperm.xlu0 %2978, %v2948
  %v2980 = vpop.permute.xlu0 %2979
  %2983 = vset.pattern.permute.xlu0 0
  %2984 = vperm.xlu0 %2983, %v2949
  %v2985 = vpop.permute.xlu0 %2984
  %2988 = vset.pattern.permute.xlu0 0
  %2989 = vperm.xlu0 %2988, %v2950
  %v2990 = vpop.permute.xlu0 %2989
  %2993 = vset.pattern.permute.xlu0 0
  %2994 = vperm.xlu0 %2993, %v2951
  %v2995 = vpop.permute.xlu0 %2994
  %v2997 = vmul.f32 %v2934, %v2955
  %v2998 = vmul.f32 %v2935, %v2960
  %v2999 = vmul.f32 %v2936, %v2965
  %v3000 = vmul.f32 %v2937, %v2970
  %v3001 = vmul.f32 %v2938, %v2975
  %v3002 = vmul.f32 %v2939, %v2980
  %v3003 = vmul.f32 %v2940, %v2985
  %v3004 = vmul.f32 %v2941, %v2990
  %v3005 = vmul.f32 %v2942, %v2995
  %v3006 = vpack.c.bf16 %v2997, %v2997
  %v3007 = vpack.c.bf16 %v2998, %v2998
  %v3008 = vpack.c.bf16 %v2999, %v2999
  %v3009 = vpack.c.bf16 %v3000, %v3000
  %v3010 = vpack.c.bf16 %v3001, %v3001
  %v3011 = vpack.c.bf16 %v3002, %v3002
  %v3012 = vpack.c.bf16 %v3003, %v3003
  %v3013 = vpack.c.bf16 %v3004, %v3004
  %v3014 = vpack.c.bf16 %v3005, %v3005
  %v3015 = vld [vmem:[#allocation2 + $0x7] sm:$0xff]
  %v3016 = vld [vmem:[#allocation2 + $0xf] sm:$0xff]
  %v3017 = vld [vmem:[#allocation2 + $0x17] sm:$0xff]
  %v3018 = vld [vmem:[#allocation2 + $0x1f] sm:$0xff]
  %v3019 = vld [vmem:[#allocation2 + $0x27] sm:$0xff]
  %v3020 = vld [vmem:[#allocation2 + $0x2f] sm:$0xff]
  %v3021 = vld [vmem:[#allocation2 + $0x37] sm:$0xff]
  %v3022 = vld [vmem:[#allocation2 + $0x3f] sm:$0xff]
  %v3023 = vld [vmem:[#allocation2 + $0x47] sm:$0xff]
  %v3024 = vld [vmem:[%s363] sm:$0xff]
  %v3025 = vld [vmem:[%s363 + $0x8] sm:$0xff]
  %v3026 = vld [vmem:[%s363 + $0x10] sm:$0xff]
  %v3027 = vld [vmem:[%s363 + $0x18] sm:$0xff]
  %v3028 = vld [vmem:[%s363 + $0x20] sm:$0xff]
  %v3029 = vld [vmem:[%s363 + $0x28] sm:$0xff]
  %v3030 = vld [vmem:[%s363 + $0x30] sm:$0xff]
  %v3031 = vld [vmem:[%s363 + $0x38] sm:$0xff]
  %v3032 = vld [vmem:[%s363 + $0x40] sm:$0xff]
  %3034 = vset.pattern.permute.xlu0 0
  %3035 = vperm.xlu0 %3034, %v3024
  %v3036 = vpop.permute.xlu0 %3035
  %3039 = vset.pattern.permute.xlu0 0
  %3040 = vperm.xlu0 %3039, %v3025
  %v3041 = vpop.permute.xlu0 %3040
  %3044 = vset.pattern.permute.xlu0 0
  %3045 = vperm.xlu0 %3044, %v3026
  %v3046 = vpop.permute.xlu0 %3045
  %3049 = vset.pattern.permute.xlu0 0
  %3050 = vperm.xlu0 %3049, %v3027
  %v3051 = vpop.permute.xlu0 %3050
  %3054 = vset.pattern.permute.xlu0 0
  %3055 = vperm.xlu0 %3054, %v3028
  %v3056 = vpop.permute.xlu0 %3055
  %3059 = vset.pattern.permute.xlu0 0
  %3060 = vperm.xlu0 %3059, %v3029
  %v3061 = vpop.permute.xlu0 %3060
  %3064 = vset.pattern.permute.xlu0 0
  %3065 = vperm.xlu0 %3064, %v3030
  %v3066 = vpop.permute.xlu0 %3065
  %3069 = vset.pattern.permute.xlu0 0
  %3070 = vperm.xlu0 %3069, %v3031
  %v3071 = vpop.permute.xlu0 %3070
  %3074 = vset.pattern.permute.xlu0 0
  %3075 = vperm.xlu0 %3074, %v3032
  %v3076 = vpop.permute.xlu0 %3075
  %v3078 = vmul.f32 %v3015, %v3036
  %v3079 = vmul.f32 %v3016, %v3041
  %v3080 = vmul.f32 %v3017, %v3046
  %v3081 = vmul.f32 %v3018, %v3051
  %v3082 = vmul.f32 %v3019, %v3056
  %v3083 = vmul.f32 %v3020, %v3061
  %v3084 = vmul.f32 %v3021, %v3066
  %v3085 = vmul.f32 %v3022, %v3071
  %v3086 = vmul.f32 %v3023, %v3076
  %v3087 = vpack.c.bf16 %v3078, %v3078
  %v3088 = vpack.c.bf16 %v3079, %v3079
  %v3089 = vpack.c.bf16 %v3080, %v3080
  %v3090 = vpack.c.bf16 %v3081, %v3081
  %v3091 = vpack.c.bf16 %v3082, %v3082
  %v3092 = vpack.c.bf16 %v3083, %v3083
  %v3093 = vpack.c.bf16 %v3084, %v3084
  %v3094 = vpack.c.bf16 %v3085, %v3085
  %v3095 = vpack.c.bf16 %v3086, %v3086
  %v3096 = vld [vmem:[#allocation2 + $0x8] sm:$0xff]
  %v3097 = vld [vmem:[#allocation2 + $0x10] sm:$0xff]
  %v3098 = vld [vmem:[#allocation2 + $0x18] sm:$0xff]
  %v3099 = vld [vmem:[#allocation2 + $0x20] sm:$0xff]
  %v3100 = vld [vmem:[#allocation2 + $0x28] sm:$0xff]
  %v3101 = vld [vmem:[#allocation2 + $0x30] sm:$0xff]
  %v3102 = vld [vmem:[#allocation2 + $0x38] sm:$0xff]
  %v3103 = vld [vmem:[#allocation2 + $0x40] sm:$0xff]
  %v3104 = vld [vmem:[#allocation2 + $0x48] sm:$0xff]
  %v3105 = vpack.c.bf16 %v3096, %v3096
  %v3106 = vpack.c.bf16 %v3097, %v3097
  %v3107 = vpack.c.bf16 %v3098, %v3098
  %v3108 = vpack.c.bf16 %v3099, %v3099
  %v3109 = vpack.c.bf16 %v3100, %v3100
  %v3110 = vpack.c.bf16 %v3101, %v3101
  %v3111 = vpack.c.bf16 %v3102, %v3102
  %v3112 = vpack.c.bf16 %v3103, %v3103
  %v3113 = vpack.c.bf16 %v3104, %v3104
  %v3114 = vld [vmem:[#allocation2 + $0x9] sm:$0xff]
  %v3115 = vld [vmem:[#allocation2 + $0x11] sm:$0xff]
  %v3116 = vld [vmem:[#allocation2 + $0x19] sm:$0xff]
  %v3117 = vld [vmem:[#allocation2 + $0x21] sm:$0xff]
  %v3118 = vld [vmem:[#allocation2 + $0x29] sm:$0xff]
  %v3119 = vld [vmem:[#allocation2 + $0x31] sm:$0xff]
  %v3120 = vld [vmem:[#allocation2 + $0x39] sm:$0xff]
  %v3121 = vld [vmem:[#allocation2 + $0x41] sm:$0xff]
  %v3122 = vld [vmem:[#allocation2 + $0x49] sm:$0xff]
  %v3123 = vld [vmem:[%s463] sm:$0xff]
  %v3124 = vld [vmem:[%s463 + $0x8] sm:$0xff]
  %v3125 = vld [vmem:[%s463 + $0x10] sm:$0xff]
  %v3126 = vld [vmem:[%s463 + $0x18] sm:$0xff]
  %v3127 = vld [vmem:[%s463 + $0x20] sm:$0xff]
  %v3128 = vld [vmem:[%s463 + $0x28] sm:$0xff]
  %v3129 = vld [vmem:[%s463 + $0x30] sm:$0xff]
  %v3130 = vld [vmem:[%s463 + $0x38] sm:$0xff]
  %v3131 = vld [vmem:[%s463 + $0x40] sm:$0xff]
  %3133 = vset.pattern.permute.xlu0 0
  %3134 = vperm.xlu0 %3133, %v3123
  %v3135 = vpop.permute.xlu0 %3134
  %3138 = vset.pattern.permute.xlu0 0
  %3139 = vperm.xlu0 %3138, %v3124
  %v3140 = vpop.permute.xlu0 %3139
  %3143 = vset.pattern.permute.xlu0 0
  %3144 = vperm.xlu0 %3143, %v3125
  %v3145 = vpop.permute.xlu0 %3144
  %3148 = vset.pattern.permute.xlu0 0
  %3149 = vperm.xlu0 %3148, %v3126
  %v3150 = vpop.permute.xlu0 %3149
  %3153 = vset.pattern.permute.xlu0 0
  %3154 = vperm.xlu0 %3153, %v3127
  %v3155 = vpop.permute.xlu0 %3154
  %3158 = vset.pattern.permute.xlu0 0
  %3159 = vperm.xlu0 %3158, %v3128
  %v3160 = vpop.permute.xlu0 %3159
  %3163 = vset.pattern.permute.xlu0 0
  %3164 = vperm.xlu0 %3163, %v3129
  %v3165 = vpop.permute.xlu0 %3164
  %3168 = vset.pattern.permute.xlu0 0
  %3169 = vperm.xlu0 %3168, %v3130
  %v3170 = vpop.permute.xlu0 %3169
  %3173 = vset.pattern.permute.xlu0 0
  %3174 = vperm.xlu0 %3173, %v3131
  %v3175 = vpop.permute.xlu0 %3174
  %v3177 = vmul.f32 %v3114, %v3135
  %v3178 = vmul.f32 %v3115, %v3140
  %v3179 = vmul.f32 %v3116, %v3145
  %v3180 = vmul.f32 %v3117, %v3150
  %v3181 = vmul.f32 %v3118, %v3155
  %v3182 = vmul.f32 %v3119, %v3160
  %v3183 = vmul.f32 %v3120, %v3165
  %v3184 = vmul.f32 %v3121, %v3170
  %v3185 = vmul.f32 %v3122, %v3175
  %v3186 = vpack.c.bf16 %v3177, %v3177
  %v3187 = vpack.c.bf16 %v3178, %v3178
  %v3188 = vpack.c.bf16 %v3179, %v3179
  %v3189 = vpack.c.bf16 %v3180, %v3180
  %v3190 = vpack.c.bf16 %v3181, %v3181
  %v3191 = vpack.c.bf16 %v3182, %v3182
  %v3192 = vpack.c.bf16 %v3183, %v3183
  %v3193 = vpack.c.bf16 %v3184, %v3184
  %v3194 = vpack.c.bf16 %v3185, %v3185
  %v3195 = vld [vmem:[#allocation2 + $0xb] sm:$0xff]
  %v3196 = vld [vmem:[#allocation2 + $0x13] sm:$0xff]
  %v3197 = vld [vmem:[#allocation2 + $0x1b] sm:$0xff]
  %v3198 = vld [vmem:[#allocation2 + $0x23] sm:$0xff]
  %v3199 = vld [vmem:[#allocation2 + $0x2b] sm:$0xff]
  %v3200 = vld [vmem:[#allocation2 + $0x33] sm:$0xff]
  %v3201 = vld [vmem:[#allocation2 + $0x3b] sm:$0xff]
  %v3202 = vld [vmem:[#allocation2 + $0x43] sm:$0xff]
  %v3203 = vld [vmem:[#allocation2 + $0x4b] sm:$0xff]
  %v3204 = vld [vmem:[%s545] sm:$0xff]
  %v3205 = vld [vmem:[%s545 + $0x8] sm:$0xff]
  %v3206 = vld [vmem:[%s545 + $0x10] sm:$0xff]
  %v3207 = vld [vmem:[%s545 + $0x18] sm:$0xff]
  %v3208 = vld [vmem:[%s545 + $0x20] sm:$0xff]
  %v3209 = vld [vmem:[%s545 + $0x28] sm:$0xff]
  %v3210 = vld [vmem:[%s545 + $0x30] sm:$0xff]
  %v3211 = vld [vmem:[%s545 + $0x38] sm:$0xff]
  %v3212 = vld [vmem:[%s545 + $0x40] sm:$0xff]
  %3214 = vset.pattern.permute.xlu0 0
  %3215 = vperm.xlu0 %3214, %v3204
  %v3216 = vpop.permute.xlu0 %3215
  %3219 = vset.pattern.permute.xlu0 0
  %3220 = vperm.xlu0 %3219, %v3205
  %v3221 = vpop.permute.xlu0 %3220
  %3224 = vset.pattern.permute.xlu0 0
  %3225 = vperm.xlu0 %3224, %v3206
  %v3226 = vpop.permute.xlu0 %3225
  %3229 = vset.pattern.permute.xlu0 0
  %3230 = vperm.xlu0 %3229, %v3207
  %v3231 = vpop.permute.xlu0 %3230
  %3234 = vset.pattern.permute.xlu0 0
  %3235 = vperm.xlu0 %3234, %v3208
  %v3236 = vpop.permute.xlu0 %3235
  %3239 = vset.pattern.permute.xlu0 0
  %3240 = vperm.xlu0 %3239, %v3209
  %v3241 = vpop.permute.xlu0 %3240
  %3244 = vset.pattern.permute.xlu0 0
  %3245 = vperm.xlu0 %3244, %v3210
  %v3246 = vpop.permute.xlu0 %3245
  %3249 = vset.pattern.permute.xlu0 0
  %3250 = vperm.xlu0 %3249, %v3211
  %v3251 = vpop.permute.xlu0 %3250
  %3254 = vset.pattern.permute.xlu0 0
  %3255 = vperm.xlu0 %3254, %v3212
  %v3256 = vpop.permute.xlu0 %3255
  %v3258 = vmul.f32 %v3195, %v3216
  %v3259 = vmul.f32 %v3196, %v3221
  %v3260 = vmul.f32 %v3197, %v3226
  %v3261 = vmul.f32 %v3198, %v3231
  %v3262 = vmul.f32 %v3199, %v3236
  %v3263 = vmul.f32 %v3200, %v3241
  %v3264 = vmul.f32 %v3201, %v3246
  %v3265 = vmul.f32 %v3202, %v3251
  %v3266 = vmul.f32 %v3203, %v3256
  %v3267 = vpack.c.bf16 %v3258, %v3258
  %v3268 = vpack.c.bf16 %v3259, %v3259
  %v3269 = vpack.c.bf16 %v3260, %v3260
  %v3270 = vpack.c.bf16 %v3261, %v3261
  %v3271 = vpack.c.bf16 %v3262, %v3262
  %v3272 = vpack.c.bf16 %v3263, %v3263
  %v3273 = vpack.c.bf16 %v3264, %v3264
  %v3274 = vpack.c.bf16 %v3265, %v3265
  %v3275 = vpack.c.bf16 %v3266, %v3266
  %v3276 = vld [vmem:[#allocation2 + $0xc] sm:$0xff]
  %v3277 = vld [vmem:[#allocation2 + $0x14] sm:$0xff]
  %v3278 = vld [vmem:[#allocation2 + $0x1c] sm:$0xff]
  %v3279 = vld [vmem:[#allocation2 + $0x24] sm:$0xff]
  %v3280 = vld [vmem:[#allocation2 + $0x2c] sm:$0xff]
  %v3281 = vld [vmem:[#allocation2 + $0x34] sm:$0xff]
  %v3282 = vld [vmem:[#allocation2 + $0x3c] sm:$0xff]
  %v3283 = vld [vmem:[#allocation2 + $0x44] sm:$0xff]
  %v3284 = vld [vmem:[#allocation2 + $0x4c] sm:$0xff]
  %v3285 = vld [vmem:[%s627] sm:$0xff]
  %v3286 = vld [vmem:[%s627 + $0x8] sm:$0xff]
  %v3287 = vld [vmem:[%s627 + $0x10] sm:$0xff]
  %v3288 = vld [vmem:[%s627 + $0x18] sm:$0xff]
  %v3289 = vld [vmem:[%s627 + $0x20] sm:$0xff]
  %v3290 = vld [vmem:[%s627 + $0x28] sm:$0xff]
  %v3291 = vld [vmem:[%s627 + $0x30] sm:$0xff]
  %v3292 = vld [vmem:[%s627 + $0x38] sm:$0xff]
  %v3293 = vld [vmem:[%s627 + $0x40] sm:$0xff]
  %3295 = vset.pattern.permute.xlu0 0
  %3296 = vperm.xlu0 %3295, %v3285
  %v3297 = vpop.permute.xlu0 %3296
  %3300 = vset.pattern.permute.xlu0 0
  %3301 = vperm.xlu0 %3300, %v3286
  %v3302 = vpop.permute.xlu0 %3301
  %3305 = vset.pattern.permute.xlu0 0
  %3306 = vperm.xlu0 %3305, %v3287
  %v3307 = vpop.permute.xlu0 %3306
  %3310 = vset.pattern.permute.xlu0 0
  %3311 = vperm.xlu0 %3310, %v3288
  %v3312 = vpop.permute.xlu0 %3311
  %3315 = vset.pattern.permute.xlu0 0
  %3316 = vperm.xlu0 %3315, %v3289
  %v3317 = vpop.permute.xlu0 %3316
  %3320 = vset.pattern.permute.xlu0 0
  %3321 = vperm.xlu0 %3320, %v3290
  %v3322 = vpop.permute.xlu0 %3321
  %3325 = vset.pattern.permute.xlu0 0
  %3326 = vperm.xlu0 %3325, %v3291
  %v3327 = vpop.permute.xlu0 %3326
  %3330 = vset.pattern.permute.xlu0 0
  %3331 = vperm.xlu0 %3330, %v3292
  %v3332 = vpop.permute.xlu0 %3331
  %3335 = vset.pattern.permute.xlu0 0
  %3336 = vperm.xlu0 %3335, %v3293
  %v3337 = vpop.permute.xlu0 %3336
  %v3339 = vmul.f32 %v3276, %v3297
  %v3340 = vmul.f32 %v3277, %v3302
  %v3341 = vmul.f32 %v3278, %v3307
  %v3342 = vmul.f32 %v3279, %v3312
  %v3343 = vmul.f32 %v3280, %v3317
  %v3344 = vmul.f32 %v3281, %v3322
  %v3345 = vmul.f32 %v3282, %v3327
  %v3346 = vmul.f32 %v3283, %v3332
  %v3347 = vmul.f32 %v3284, %v3337
  %v3348 = vpack.c.bf16 %v3339, %v3339
  %v3349 = vpack.c.bf16 %v3340, %v3340
  %v3350 = vpack.c.bf16 %v3341, %v3341
  %v3351 = vpack.c.bf16 %v3342, %v3342
  %v3352 = vpack.c.bf16 %v3343, %v3343
  %v3353 = vpack.c.bf16 %v3344, %v3344
  %v3354 = vpack.c.bf16 %v3345, %v3345
  %v3355 = vpack.c.bf16 %v3346, %v3346
  %v3356 = vpack.c.bf16 %v3347, %v3347
  %v3357 = vld [vmem:[#allocation2 + $0xd] sm:$0xff]
  %v3358 = vld [vmem:[#allocation2 + $0x15] sm:$0xff]
  %v3359 = vld [vmem:[#allocation2 + $0x1d] sm:$0xff]
  %v3360 = vld [vmem:[#allocation2 + $0x25] sm:$0xff]
  %v3361 = vld [vmem:[#allocation2 + $0x2d] sm:$0xff]
  %v3362 = vld [vmem:[#allocation2 + $0x35] sm:$0xff]
  %v3363 = vld [vmem:[#allocation2 + $0x3d] sm:$0xff]
  %v3364 = vld [vmem:[#allocation2 + $0x45] sm:$0xff]
  %v3365 = vld [vmem:[#allocation2 + $0x4d] sm:$0xff]
  %v3366 = vld [vmem:[%s709] sm:$0xff]
  %v3367 = vld [vmem:[%s709 + $0x8] sm:$0xff]
  %v3368 = vld [vmem:[%s709 + $0x10] sm:$0xff]
  %v3369 = vld [vmem:[%s709 + $0x18] sm:$0xff]
  %v3370 = vld [vmem:[%s709 + $0x20] sm:$0xff]
  %v3371 = vld [vmem:[%s709 + $0x28] sm:$0xff]
  %v3372 = vld [vmem:[%s709 + $0x30] sm:$0xff]
  %v3373 = vld [vmem:[%s709 + $0x38] sm:$0xff]
  %v3374 = vld [vmem:[%s709 + $0x40] sm:$0xff]
  %3376 = vset.pattern.permute.xlu0 0
  %3377 = vperm.xlu0 %3376, %v3366
  %v3378 = vpop.permute.xlu0 %3377
  %3381 = vset.pattern.permute.xlu0 0
  %3382 = vperm.xlu0 %3381, %v3367
  %v3383 = vpop.permute.xlu0 %3382
  %3386 = vset.pattern.permute.xlu0 0
  %3387 = vperm.xlu0 %3386, %v3368
  %v3388 = vpop.permute.xlu0 %3387
  %3391 = vset.pattern.permute.xlu0 0
  %3392 = vperm.xlu0 %3391, %v3369
  %v3393 = vpop.permute.xlu0 %3392
  %3396 = vset.pattern.permute.xlu0 0
  %3397 = vperm.xlu0 %3396, %v3370
  %v3398 = vpop.permute.xlu0 %3397
  %3401 = vset.pattern.permute.xlu0 0
  %3402 = vperm.xlu0 %3401, %v3371
  %v3403 = vpop.permute.xlu0 %3402
  %3406 = vset.pattern.permute.xlu0 0
  %3407 = vperm.xlu0 %3406, %v3372
  %v3408 = vpop.permute.xlu0 %3407
  %3411 = vset.pattern.permute.xlu0 0
  %3412 = vperm.xlu0 %3411, %v3373
  %v3413 = vpop.permute.xlu0 %3412
  %3416 = vset.pattern.permute.xlu0 0
  %3417 = vperm.xlu0 %3416, %v3374
  %v3418 = vpop.permute.xlu0 %3417
  %v3420 = vmul.f32 %v3357, %v3378
  %v3421 = vmul.f32 %v3358, %v3383
  %v3422 = vmul.f32 %v3359, %v3388
  %v3423 = vmul.f32 %v3360, %v3393
  %v3424 = vmul.f32 %v3361, %v3398
  %v3425 = vmul.f32 %v3362, %v3403
  %v3426 = vmul.f32 %v3363, %v3408
  %v3427 = vmul.f32 %v3364, %v3413
  %v3428 = vmul.f32 %v3365, %v3418
  %v3429 = vpack.c.bf16 %v3420, %v3420
  %v3430 = vpack.c.bf16 %v3421, %v3421
  %v3431 = vpack.c.bf16 %v3422, %v3422
  %v3432 = vpack.c.bf16 %v3423, %v3423
  %v3433 = vpack.c.bf16 %v3424, %v3424
  %v3434 = vpack.c.bf16 %v3425, %v3425
  %v3435 = vpack.c.bf16 %v3426, %v3426
  %v3436 = vpack.c.bf16 %v3427, %v3427
  %v3437 = vpack.c.bf16 %v3428, %v3428
  %v3447 = vunpack.c.l.b16 %v2844
  %v3448 = vunpack.c.l.b16 %v2845
  %v3449 = vunpack.c.l.b16 %v2846
  %v3450 = vunpack.c.l.b16 %v2847
  %v3451 = vunpack.c.l.b16 %v2848
  %v3452 = vunpack.c.l.b16 %v2849
  %v3453 = vunpack.c.l.b16 %v2850
  %v3454 = vunpack.c.l.b16 %v2851
  %v3455 = vunpack.c.l.b16 %v2852
  %v3456 = vpack.c.b16 %v3448, %v3447
  %v3457 = vpack.c.b16 %v3450, %v3449
  %v3458 = vpack.c.b16 %v3452, %v3451
  %v3459 = vpack.c.b16 %v3454, %v3453
  %v3460 = vpack.c.b16 %v3455, %v3455
  %v3470 = vunpack.c.l.b16 %v2925
  %v3471 = vunpack.c.l.b16 %v2926
  %v3472 = vunpack.c.l.b16 %v2927
  %v3473 = vunpack.c.l.b16 %v2928
  %v3474 = vunpack.c.l.b16 %v2929
  %v3475 = vunpack.c.l.b16 %v2930
  %v3476 = vunpack.c.l.b16 %v2931
  %v3477 = vunpack.c.l.b16 %v2932
  %v3478 = vunpack.c.l.b16 %v2933
  %v3479 = vpack.c.b16 %v3471, %v3470
  %v3480 = vpack.c.b16 %v3473, %v3472
  %v3481 = vpack.c.b16 %v3475, %v3474
  %v3482 = vpack.c.b16 %v3477, %v3476
  %v3483 = vpack.c.b16 %v3478, %v3478
  %3484 = vrot.lane.b32.xlu0 %v3479, 16
  %v3485 = vpop.permute.xlu0 %3484
  %3486 = vrot.lane.b32.xlu0 %v3480, 16
  %v3487 = vpop.permute.xlu0 %3486
  %3488 = vrot.lane.b32.xlu0 %v3481, 16
  %v3489 = vpop.permute.xlu0 %3488
  %3490 = vrot.lane.b32.xlu0 %v3482, 16
  %v3491 = vpop.permute.xlu0 %3490
  %3492 = vrot.lane.b32.xlu0 %v3483, 16
  %v3493 = vpop.permute.xlu0 %3492
  %v3503 = vunpack.c.l.b16 %v3006
  %v3504 = vunpack.c.l.b16 %v3007
  %v3505 = vunpack.c.l.b16 %v3008
  %v3506 = vunpack.c.l.b16 %v3009
  %v3507 = vunpack.c.l.b16 %v3010
  %v3508 = vunpack.c.l.b16 %v3011
  %v3509 = vunpack.c.l.b16 %v3012
  %v3510 = vunpack.c.l.b16 %v3013
  %v3511 = vunpack.c.l.b16 %v3014
  %v3512 = vpack.c.b16 %v3504, %v3503
  %v3513 = vpack.c.b16 %v3506, %v3505
  %v3514 = vpack.c.b16 %v3508, %v3507
  %v3515 = vpack.c.b16 %v3510, %v3509
  %v3516 = vpack.c.b16 %v3511, %v3511
  %3517 = vrot.lane.b32.xlu0 %v3512, 32
  %v3518 = vpop.permute.xlu0 %3517
  %3519 = vrot.lane.b32.xlu0 %v3513, 32
  %v3520 = vpop.permute.xlu0 %3519
  %3521 = vrot.lane.b32.xlu0 %v3514, 32
  %v3522 = vpop.permute.xlu0 %3521
  %3523 = vrot.lane.b32.xlu0 %v3515, 32
  %v3524 = vpop.permute.xlu0 %3523
  %3525 = vrot.lane.b32.xlu0 %v3516, 32
  %v3526 = vpop.permute.xlu0 %3525
  %v3536 = vunpack.c.l.b16 %v3087
  %v3537 = vunpack.c.l.b16 %v3088
  %v3538 = vunpack.c.l.b16 %v3089
  %v3539 = vunpack.c.l.b16 %v3090
  %v3540 = vunpack.c.l.b16 %v3091
  %v3541 = vunpack.c.l.b16 %v3092
  %v3542 = vunpack.c.l.b16 %v3093
  %v3543 = vunpack.c.l.b16 %v3094
  %v3544 = vunpack.c.l.b16 %v3095
  %v3545 = vpack.c.b16 %v3537, %v3536
  %v3546 = vpack.c.b16 %v3539, %v3538
  %v3547 = vpack.c.b16 %v3541, %v3540
  %v3548 = vpack.c.b16 %v3543, %v3542
  %v3549 = vpack.c.b16 %v3544, %v3544
  %3550 = vrot.lane.b32.xlu0 %v3545, 48
  %v3551 = vpop.permute.xlu0 %3550
  %3552 = vrot.lane.b32.xlu0 %v3546, 48
  %v3553 = vpop.permute.xlu0 %3552
  %3554 = vrot.lane.b32.xlu0 %v3547, 48
  %v3555 = vpop.permute.xlu0 %3554
  %3556 = vrot.lane.b32.xlu0 %v3548, 48
  %v3557 = vpop.permute.xlu0 %3556
  %3558 = vrot.lane.b32.xlu0 %v3549, 48
  %v3559 = vpop.permute.xlu0 %3558
  %v3569 = vunpack.c.l.b16 %v3105
  %v3570 = vunpack.c.l.b16 %v3106
  %v3571 = vunpack.c.l.b16 %v3107
  %v3572 = vunpack.c.l.b16 %v3108
  %v3573 = vunpack.c.l.b16 %v3109
  %v3574 = vunpack.c.l.b16 %v3110
  %v3575 = vunpack.c.l.b16 %v3111
  %v3576 = vunpack.c.l.b16 %v3112
  %v3577 = vunpack.c.l.b16 %v3113
  %v3578 = vpack.c.b16 %v3570, %v3569
  %v3579 = vpack.c.b16 %v3572, %v3571
  %v3580 = vpack.c.b16 %v3574, %v3573
  %v3581 = vpack.c.b16 %v3576, %v3575
  %v3582 = vpack.c.b16 %v3577, %v3577
  %3583 = vrot.lane.b32.xlu0 %v3578, 64
  %v3584 = vpop.permute.xlu0 %3583
  %3585 = vrot.lane.b32.xlu0 %v3579, 64
  %v3586 = vpop.permute.xlu0 %3585
  %3587 = vrot.lane.b32.xlu0 %v3580, 64
  %v3588 = vpop.permute.xlu0 %3587
  %3589 = vrot.lane.b32.xlu0 %v3581, 64
  %v3590 = vpop.permute.xlu0 %3589
  %3591 = vrot.lane.b32.xlu0 %v3582, 64
  %v3592 = vpop.permute.xlu0 %3591
  %v3602 = vunpack.c.l.b16 %v3186
  %v3603 = vunpack.c.l.b16 %v3187
  %v3604 = vunpack.c.l.b16 %v3188
  %v3605 = vunpack.c.l.b16 %v3189
  %v3606 = vunpack.c.l.b16 %v3190
  %v3607 = vunpack.c.l.b16 %v3191
  %v3608 = vunpack.c.l.b16 %v3192
  %v3609 = vunpack.c.l.b16 %v3193
  %v3610 = vunpack.c.l.b16 %v3194
  %v3611 = vpack.c.b16 %v3603, %v3602
  %v3612 = vpack.c.b16 %v3605, %v3604
  %v3613 = vpack.c.b16 %v3607, %v3606
  %v3614 = vpack.c.b16 %v3609, %v3608
  %v3615 = vpack.c.b16 %v3610, %v3610
  %3616 = vrot.lane.b32.xlu0 %v3611, 80
  %v3617 = vpop.permute.xlu0 %3616
  %3618 = vrot.lane.b32.xlu0 %v3612, 80
  %v3619 = vpop.permute.xlu0 %3618
  %3620 = vrot.lane.b32.xlu0 %v3613, 80
  %v3621 = vpop.permute.xlu0 %3620
  %3622 = vrot.lane.b32.xlu0 %v3614, 80
  %v3623 = vpop.permute.xlu0 %3622
  %3624 = vrot.lane.b32.xlu0 %v3615, 80
  %v3625 = vpop.permute.xlu0 %3624
  %v3635 = vunpack.c.l.b16 %v3267
  %v3636 = vunpack.c.l.b16 %v3268
  %v3637 = vunpack.c.l.b16 %v3269
  %v3638 = vunpack.c.l.b16 %v3270
  %v3639 = vunpack.c.l.b16 %v3271
  %v3640 = vunpack.c.l.b16 %v3272
  %v3641 = vunpack.c.l.b16 %v3273
  %v3642 = vunpack.c.l.b16 %v3274
  %v3643 = vunpack.c.l.b16 %v3275
  %v3644 = vpack.c.b16 %v3636, %v3635
  %v3645 = vpack.c.b16 %v3638, %v3637
  %v3646 = vpack.c.b16 %v3640, %v3639
  %v3647 = vpack.c.b16 %v3642, %v3641
  %v3648 = vpack.c.b16 %v3643, %v3643
  %3649 = vrot.lane.b32.xlu0 %v3644, 96
  %v3650 = vpop.permute.xlu0 %3649
  %3651 = vrot.lane.b32.xlu0 %v3645, 96
  %v3652 = vpop.permute.xlu0 %3651
  %3653 = vrot.lane.b32.xlu0 %v3646, 96
  %v3654 = vpop.permute.xlu0 %3653
  %3655 = vrot.lane.b32.xlu0 %v3647, 96
  %v3656 = vpop.permute.xlu0 %3655
  %3657 = vrot.lane.b32.xlu0 %v3648, 96
  %v3658 = vpop.permute.xlu0 %3657
  %v3668 = vunpack.c.l.b16 %v3348
  %v3669 = vunpack.c.l.b16 %v3349
  %v3670 = vunpack.c.l.b16 %v3350
  %v3671 = vunpack.c.l.b16 %v3351
  %v3672 = vunpack.c.l.b16 %v3352
  %v3673 = vunpack.c.l.b16 %v3353
  %v3674 = vunpack.c.l.b16 %v3354
  %v3675 = vunpack.c.l.b16 %v3355
  %v3676 = vunpack.c.l.b16 %v3356
  %v3677 = vpack.c.b16 %v3669, %v3668
  %v3678 = vpack.c.b16 %v3671, %v3670
  %v3679 = vpack.c.b16 %v3673, %v3672
  %v3680 = vpack.c.b16 %v3675, %v3674
  %v3681 = vpack.c.b16 %v3676, %v3676
  %3682 = vrot.lane.b32.xlu0 %v3677, 112
  %v3683 = vpop.permute.xlu0 %3682
  %3684 = vrot.lane.b32.xlu0 %v3678, 112
  %v3685 = vpop.permute.xlu0 %3684
  %3686 = vrot.lane.b32.xlu0 %v3679, 112
  %v3687 = vpop.permute.xlu0 %3686
  %3688 = vrot.lane.b32.xlu0 %v3680, 112
  %v3689 = vpop.permute.xlu0 %3688
  %3690 = vrot.lane.b32.xlu0 %v3681, 112
  %v3691 = vpop.permute.xlu0 %3690
  %v3701 = vunpack.c.l.b16 %v3429
  %v3702 = vunpack.c.l.b16 %v3430
  %v3703 = vunpack.c.l.b16 %v3431
  %v3704 = vunpack.c.l.b16 %v3432
  %v3705 = vunpack.c.l.b16 %v3433
  %v3706 = vunpack.c.l.b16 %v3434
  %v3707 = vunpack.c.l.b16 %v3435
  %v3708 = vunpack.c.l.b16 %v3436
  %v3709 = vunpack.c.l.b16 %v3437
  %v3710 = vpack.c.b16 %v3702, %v3701
  %v3711 = vpack.c.b16 %v3704, %v3703
  %v3712 = vpack.c.b16 %v3706, %v3705
  %v3713 = vpack.c.b16 %v3708, %v3707
  %v3714 = vpack.c.b16 %v3709, %v3709
  %v3717 = vsel %vm36, %v3456, %v3485
  %v3720 = vsel %vm36, %v3457, %v3487
  %v3723 = vsel %vm36, %v3458, %v3489
  %v3726 = vsel %vm36, %v3459, %v3491
  %v3729 = vsel %vm36, %v3460, %v3493
  %v3731 = vsel %vm2505, %v3717, %v3518
  %v3733 = vsel %vm2505, %v3720, %v3520
  %v3735 = vsel %vm2505, %v3723, %v3522
  %v3737 = vsel %vm2505, %v3726, %v3524
  %v3739 = vsel %vm2505, %v3729, %v3526
  %v3741 = vsel %vm1166, %v3731, %v3551
  %v3743 = vsel %vm1166, %v3733, %v3553
  %v3745 = vsel %vm1166, %v3735, %v3555
  %v3747 = vsel %vm1166, %v3737, %v3557
  %v3749 = vsel %vm1166, %v3739, %v3559
  %v3751 = vsel %vm2526, %v3741, %v3584
  %v3753 = vsel %vm2526, %v3743, %v3586
  %v3755 = vsel %vm2526, %v3745, %v3588
  %v3757 = vsel %vm2526, %v3747, %v3590
  %v3759 = vsel %vm2526, %v3749, %v3592
  %v3761 = vsel %vm2537, %v3751, %v3617
  %v3763 = vsel %vm2537, %v3753, %v3619
  %v3765 = vsel %vm2537, %v3755, %v3621
  %v3767 = vsel %vm2537, %v3757, %v3623
  %v3769 = vsel %vm2537, %v3759, %v3625
  %v3771 = vsel %vm2548, %v3761, %v3650
  %v3773 = vsel %vm2548, %v3763, %v3652
  %v3775 = vsel %vm2548, %v3765, %v3654
  %v3777 = vsel %vm2548, %v3767, %v3656
  %v3779 = vsel %vm2548, %v3769, %v3658
  %v3781 = vsel %vm2559, %v3771, %v3683
  %v3784 = vsel %vm2559, %v3773, %v3685
  %v3787 = vsel %vm2559, %v3775, %v3687
  %v3790 = vsel %vm2559, %v3777, %v3689
  %v3793 = vsel %vm2559, %v3779, %v3691
  %v3813 = vunpack.c.l.b16 %v2754
  %v3814 = vunpack.c.l.b16 %v2755
  %v3815 = vunpack.c.l.b16 %v2756
  %v3816 = vunpack.c.l.b16 %v2757
  %v3817 = vunpack.c.l.b16 %v2758
  %v3818 = vunpack.c.l.b16 %v2759
  %v3819 = vunpack.c.l.b16 %v2760
  %v3820 = vunpack.c.l.b16 %v2761
  %v3821 = vunpack.c.l.b16 %v2762
  %v3822 = vunpack.c.l.b16 %v2763
  %v3823 = vunpack.c.l.b16 %v2764
  %v3824 = vunpack.c.l.b16 %v2765
  %v3825 = vunpack.c.l.b16 %v2766
  %v3826 = vunpack.c.l.b16 %v2767
  %v3827 = vunpack.c.l.b16 %v2768
  %v3828 = vunpack.c.l.b16 %v2769
  %v3829 = vunpack.c.l.b16 %v2770
  %v3830 = vunpack.c.l.b16 %v2771
  %v3831 = vpack.c.b16 %v3814, %v3813
  %v3832 = vpack.c.b16 %v3816, %v3815
  %v3833 = vpack.c.b16 %v3818, %v3817
  %v3834 = vpack.c.b16 %v3820, %v3819
  %v3835 = vpack.c.b16 %v3822, %v3821
  %v3836 = vpack.c.b16 %v3824, %v3823
  %v3837 = vpack.c.b16 %v3826, %v3825
  %v3838 = vpack.c.b16 %v3828, %v3827
  %v3839 = vpack.c.b16 %v3830, %v3829
  %v3850 = vsel %vm36, %v3710, 0
  %v3853 = vsel %vm36, %v3711, 0
  %v3856 = vsel %vm36, %v3712, 0
  %v3859 = vsel %vm36, %v3713, 0
  %v3862 = vsel %vm36, %v3714, 0
  %3864 = vmatpush.bf16.msra.mxu0 %v3838
  %3865 = vmatpush.bf16.msra.mxu0 %v3837
  %3866 = vmatpush.bf16.msra.mxu0 %v3836
  %3867 = vmatpush.bf16.msra.mxu0 %v3835
  %3868 = vmatpush.bf16.msra.mxu0 %v3834
  %3869 = vmatpush.bf16.msra.mxu0 %v3833
  %3870 = vmatpush.bf16.msra.mxu0 %v3832
  %3871 = vmatpush.bf16.msra.mxu0 %v3831
  %3872 = vmatmul.bf16.gmra.mxu0 %v3781
  %v3873 = vpop.f32.mrf.mxu0
  %v3874 = vadd.f32 0.0, %v3873
  %v3875 = vpop.f32.mrf.mxu0
  %v3876 = vadd.f32 0.0, %v3875
  %3877 = vmatmul.bf16.gmra.mxu0 %v3784
  %v3878 = vpop.f32.mrf.mxu0
  %v3879 = vadd.f32 0.0, %v3878
  %v3880 = vpop.f32.mrf.mxu0
  %v3881 = vadd.f32 0.0, %v3880
  %3882 = vmatmul.bf16.gmra.mxu0 %v3787
  %v3883 = vpop.f32.mrf.mxu0
  %v3884 = vadd.f32 0.0, %v3883
  %v3885 = vpop.f32.mrf.mxu0
  %v3886 = vadd.f32 0.0, %v3885
  %3887 = vmatmul.bf16.gmra.mxu0 %v3790
  %v3888 = vpop.f32.mrf.mxu0
  %v3889 = vadd.f32 0.0, %v3888
  %v3890 = vpop.f32.mrf.mxu0
  %v3891 = vadd.f32 0.0, %v3890
  %3892 = vmatmul.bf16.gmra.mxu0 %v3793
  %v3893 = vpop.f32.mrf.mxu0
  %v3894 = vadd.f32 0.0, %v3893
  %v3895 = vpop.f32.mrf.mxu0
  %3896 = vdwg.mxu0
  %3897 = vmatpush.bf16.msra.mxu0 0
  %3898 = vmatpush.bf16.msra.mxu0 0
  %3899 = vmatpush.bf16.msra.mxu0 0
  %3900 = vmatpush.bf16.msra.mxu0 0
  %3901 = vmatpush.bf16.msra.mxu0 0
  %3902 = vmatpush.bf16.msra.mxu0 0
  %3903 = vmatpush.bf16.msra.mxu0 0
  %3904 = vmatpush.bf16.msra.mxu0 %v3839
  %3905 = vmatmul.bf16.gmra.mxu0 %v3850
  %v3906 = vpop.f32.mrf.mxu0
  %v3907 = vadd.f32 %v3874, %v3906
  %v3908 = vpop.f32.mrf.mxu0
  %v3909 = vadd.f32 %v3876, %v3908
  %3910 = vmatmul.bf16.gmra.mxu0 %v3853
  %v3911 = vpop.f32.mrf.mxu0
  %v3912 = vadd.f32 %v3879, %v3911
  %v3913 = vpop.f32.mrf.mxu0
  %v3914 = vadd.f32 %v3881, %v3913
  %3915 = vmatmul.bf16.gmra.mxu0 %v3856
  %v3916 = vpop.f32.mrf.mxu0
  %v3917 = vadd.f32 %v3884, %v3916
  %v3918 = vpop.f32.mrf.mxu0
  %v3919 = vadd.f32 %v3886, %v3918
  %3920 = vmatmul.bf16.gmra.mxu0 %v3859
  %v3921 = vpop.f32.mrf.mxu0
  %v3922 = vadd.f32 %v3889, %v3921
  %v3923 = vpop.f32.mrf.mxu0
  %v3924 = vadd.f32 %v3891, %v3923
  %3925 = vmatmul.bf16.gmra.mxu0 %v3862
  %v3926 = vpop.f32.mrf.mxu0
  %v3927 = vadd.f32 %v3894, %v3926
  %v3928 = vpop.f32.mrf.mxu0
  %3929 = vdwg.mxu0
  %v3930 = vld [vmem:[%s8] sm:$0x1]
  %v3932 = vperm.slane %v3930, 0
  %v3934 = vmul.f32 %v3907, %v3932
  %v3935 = vmul.f32 %v3909, %v3932
  %v3936 = vmul.f32 %v3912, %v3932
  %v3937 = vmul.f32 %v3914, %v3932
  %v3938 = vmul.f32 %v3917, %v3932
  %v3939 = vmul.f32 %v3919, %v3932
  %v3940 = vmul.f32 %v3922, %v3932
  %v3941 = vmul.f32 %v3924, %v3932
  %v3942 = vmul.f32 %v3927, %v3932
  %v3943 = vld [vmem:[%s9] sm:$0x1]
  %v3945 = vperm.slane %v3943, 0
  %v3947 = vadd.f32 %v3934, %v3945
  %v3948 = vadd.f32 %v3935, %v3945
  %v3949 = vadd.f32 %v3936, %v3945
  %v3950 = vadd.f32 %v3937, %v3945
  %v3951 = vadd.f32 %v3938, %v3945
  %v3952 = vadd.f32 %v3939, %v3945
  %v3953 = vadd.f32 %v3940, %v3945
  %v3954 = vadd.f32 %v3941, %v3945
  %v3955 = vadd.f32 %v3942, %v3945
  %v3956 = vadd.f32 %v3947, %v1511
  %v3957 = vadd.f32 %v3948, %v1512
  %v3958 = vadd.f32 %v3949, %v1513
  %v3959 = vadd.f32 %v3950, %v1514
  %v3960 = vadd.f32 %v3951, %v1515
  %v3961 = vadd.f32 %v3952, %v1516
  %v3962 = vadd.f32 %v3953, %v1517
  %v3963 = vadd.f32 %v3954, %v1518
  %v3964 = vadd.f32 %v3955, %v1519
  %v3965 = vmax.f32 %v3956, 0.0
  %v3966 = vmax.f32 %v3957, 0.0
  %v3967 = vmax.f32 %v3958, 0.0
  %v3968 = vmax.f32 %v3959, 0.0
  %v3969 = vmax.f32 %v3960, 0.0
  %v3970 = vmax.f32 %v3961, 0.0
  %v3971 = vmax.f32 %v3962, 0.0
  %v3972 = vmax.f32 %v3963, 0.0
  %v3973 = vmax.f32 %v3964, 0.0
  %3974 = vst.msk [vmem:[#allocation2 + $0x8] sm:$0xff] %vm36, %v3965
  %3975 = vst.msk [vmem:[#allocation2 + $0x10] sm:$0xff] %vm36, %v3966
  %3976 = vst.msk [vmem:[#allocation2 + $0x18] sm:$0xff] %vm36, %v3967
  %3977 = vst.msk [vmem:[#allocation2 + $0x20] sm:$0xff] %vm36, %v3968
  %3978 = vst.msk [vmem:[#allocation2 + $0x28] sm:$0xff] %vm36, %v3969
  %3979 = vst.msk [vmem:[#allocation2 + $0x30] sm:$0xff] %vm36, %v3970
  %3980 = vst.msk [vmem:[#allocation2 + $0x38] sm:$0xff] %vm36, %v3971
  %3981 = vst.msk [vmem:[#allocation2 + $0x40] sm:$0xff] %vm36, %v3972
  %3982 = vst.msk [vmem:[#allocation2 + $0x48] sm:$0xff] %vm36, %v3973
  %s3983 = scalar_lea.vmem %s4, 72
  %v3984 = vld [vmem:[%s3983] sm:$0xf]
  %v3985 = vld [vmem:[%s3983 + $0x4] sm:$0xf]
  %v3986 = vld [vmem:[%s3983 + $0x8] sm:$0xf]
  %v3987 = vld [vmem:[%s3983 + $0xc] sm:$0xf]
  %v3988 = vld [vmem:[%s3983 + $0x10] sm:$0xf]
  %v3989 = vld [vmem:[%s3983 + $0x14] sm:$0xf]
  %v3990 = vld [vmem:[%s3983 + $0x18] sm:$0xf]
  %v3991 = vld [vmem:[%s3983 + $0x1c] sm:$0xf]
  %v3992 = vld [vmem:[%s3983 + $0x20] sm:$0xf]
  %v3993 = vld [vmem:[%s3983 + $0x24] sm:$0xf]
  %v3994 = vld [vmem:[%s3983 + $0x28] sm:$0xf]
  %v3995 = vld [vmem:[%s3983 + $0x2c] sm:$0xf]
  %v3996 = vld [vmem:[%s3983 + $0x30] sm:$0xf]
  %v3997 = vld [vmem:[%s3983 + $0x34] sm:$0xf]
  %v3998 = vld [vmem:[%s3983 + $0x38] sm:$0xf]
  %v3999 = vld [vmem:[%s3983 + $0x3c] sm:$0xf]
  %v4000 = vld [vmem:[%s3983 + $0x40] sm:$0xf]
  %v4001 = vld [vmem:[%s3983 + $0x44] sm:$0xf]
  %v4002 = vld [vmem:[#allocation2 + $0x3] sm:$0xff]
  %v4003 = vld [vmem:[#allocation2 + $0xb] sm:$0xff]
  %v4004 = vld [vmem:[#allocation2 + $0x13] sm:$0xff]
  %v4005 = vld [vmem:[#allocation2 + $0x1b] sm:$0xff]
  %v4006 = vld [vmem:[#allocation2 + $0x23] sm:$0xff]
  %v4007 = vld [vmem:[#allocation2 + $0x2b] sm:$0xff]
  %v4008 = vld [vmem:[#allocation2 + $0x33] sm:$0xff]
  %v4009 = vld [vmem:[#allocation2 + $0x3b] sm:$0xff]
  %v4010 = vld [vmem:[#allocation2 + $0x43] sm:$0xff]
  %v4011 = vld [vmem:[%s1] sm:$0xff]
  %v4012 = vld [vmem:[%s1 + $0x8] sm:$0xff]
  %v4013 = vld [vmem:[%s1 + $0x10] sm:$0xff]
  %v4014 = vld [vmem:[%s1 + $0x18] sm:$0xff]
  %v4015 = vld [vmem:[%s1 + $0x20] sm:$0xff]
  %v4016 = vld [vmem:[%s1 + $0x28] sm:$0xff]
  %v4017 = vld [vmem:[%s1 + $0x30] sm:$0xff]
  %v4018 = vld [vmem:[%s1 + $0x38] sm:$0xff]
  %v4019 = vld [vmem:[%s1 + $0x40] sm:$0xff]
  %4021 = vset.pattern.permute.xlu0 0
  %4022 = vperm.xlu0 %4021, %v4011
  %v4023 = vpop.permute.xlu0 %4022
  %4026 = vset.pattern.permute.xlu0 0
  %4027 = vperm.xlu0 %4026, %v4012
  %v4028 = vpop.permute.xlu0 %4027
  %4031 = vset.pattern.permute.xlu0 0
  %4032 = vperm.xlu0 %4031, %v4013
  %v4033 = vpop.permute.xlu0 %4032
  %4036 = vset.pattern.permute.xlu0 0
  %4037 = vperm.xlu0 %4036, %v4014
  %v4038 = vpop.permute.xlu0 %4037
  %4041 = vset.pattern.permute.xlu0 0
  %4042 = vperm.xlu0 %4041, %v4015
  %v4043 = vpop.permute.xlu0 %4042
  %4046 = vset.pattern.permute.xlu0 0
  %4047 = vperm.xlu0 %4046, %v4016
  %v4048 = vpop.permute.xlu0 %4047
  %4051 = vset.pattern.permute.xlu0 0
  %4052 = vperm.xlu0 %4051, %v4017
  %v4053 = vpop.permute.xlu0 %4052
  %4056 = vset.pattern.permute.xlu0 0
  %4057 = vperm.xlu0 %4056, %v4018
  %v4058 = vpop.permute.xlu0 %4057
  %4061 = vset.pattern.permute.xlu0 0
  %4062 = vperm.xlu0 %4061, %v4019
  %v4063 = vpop.permute.xlu0 %4062
  %v4065 = vmul.f32 %v4002, %v4023
  %v4066 = vmul.f32 %v4003, %v4028
  %v4067 = vmul.f32 %v4004, %v4033
  %v4068 = vmul.f32 %v4005, %v4038
  %v4069 = vmul.f32 %v4006, %v4043
  %v4070 = vmul.f32 %v4007, %v4048
  %v4071 = vmul.f32 %v4008, %v4053
  %v4072 = vmul.f32 %v4009, %v4058
  %v4073 = vmul.f32 %v4010, %v4063
  %v4074 = vpack.c.bf16 %v4065, %v4065
  %v4075 = vpack.c.bf16 %v4066, %v4066
  %v4076 = vpack.c.bf16 %v4067, %v4067
  %v4077 = vpack.c.bf16 %v4068, %v4068
  %v4078 = vpack.c.bf16 %v4069, %v4069
  %v4079 = vpack.c.bf16 %v4070, %v4070
  %v4080 = vpack.c.bf16 %v4071, %v4071
  %v4081 = vpack.c.bf16 %v4072, %v4072
  %v4082 = vpack.c.bf16 %v4073, %v4073
  %v4083 = vld [vmem:[#allocation2 + $0x4] sm:$0xff]
  %v4084 = vld [vmem:[#allocation2 + $0xc] sm:$0xff]
  %v4085 = vld [vmem:[#allocation2 + $0x14] sm:$0xff]
  %v4086 = vld [vmem:[#allocation2 + $0x1c] sm:$0xff]
  %v4087 = vld [vmem:[#allocation2 + $0x24] sm:$0xff]
  %v4088 = vld [vmem:[#allocation2 + $0x2c] sm:$0xff]
  %v4089 = vld [vmem:[#allocation2 + $0x34] sm:$0xff]
  %v4090 = vld [vmem:[#allocation2 + $0x3c] sm:$0xff]
  %v4091 = vld [vmem:[#allocation2 + $0x44] sm:$0xff]
  %v4092 = vld [vmem:[%s199] sm:$0xff]
  %v4093 = vld [vmem:[%s199 + $0x8] sm:$0xff]
  %v4094 = vld [vmem:[%s199 + $0x10] sm:$0xff]
  %v4095 = vld [vmem:[%s199 + $0x18] sm:$0xff]
  %v4096 = vld [vmem:[%s199 + $0x20] sm:$0xff]
  %v4097 = vld [vmem:[%s199 + $0x28] sm:$0xff]
  %v4098 = vld [vmem:[%s199 + $0x30] sm:$0xff]
  %v4099 = vld [vmem:[%s199 + $0x38] sm:$0xff]
  %v4100 = vld [vmem:[%s199 + $0x40] sm:$0xff]
  %4102 = vset.pattern.permute.xlu0 0
  %4103 = vperm.xlu0 %4102, %v4092
  %v4104 = vpop.permute.xlu0 %4103
  %4107 = vset.pattern.permute.xlu0 0
  %4108 = vperm.xlu0 %4107, %v4093
  %v4109 = vpop.permute.xlu0 %4108
  %4112 = vset.pattern.permute.xlu0 0
  %4113 = vperm.xlu0 %4112, %v4094
  %v4114 = vpop.permute.xlu0 %4113
  %4117 = vset.pattern.permute.xlu0 0
  %4118 = vperm.xlu0 %4117, %v4095
  %v4119 = vpop.permute.xlu0 %4118
  %4122 = vset.pattern.permute.xlu0 0
  %4123 = vperm.xlu0 %4122, %v4096
  %v4124 = vpop.permute.xlu0 %4123
  %4127 = vset.pattern.permute.xlu0 0
  %4128 = vperm.xlu0 %4127, %v4097
  %v4129 = vpop.permute.xlu0 %4128
  %4132 = vset.pattern.permute.xlu0 0
  %4133 = vperm.xlu0 %4132, %v4098
  %v4134 = vpop.permute.xlu0 %4133
  %4137 = vset.pattern.permute.xlu0 0
  %4138 = vperm.xlu0 %4137, %v4099
  %v4139 = vpop.permute.xlu0 %4138
  %4142 = vset.pattern.permute.xlu0 0
  %4143 = vperm.xlu0 %4142, %v4100
  %v4144 = vpop.permute.xlu0 %4143
  %v4146 = vmul.f32 %v4083, %v4104
  %v4147 = vmul.f32 %v4084, %v4109
  %v4148 = vmul.f32 %v4085, %v4114
  %v4149 = vmul.f32 %v4086, %v4119
  %v4150 = vmul.f32 %v4087, %v4124
  %v4151 = vmul.f32 %v4088, %v4129
  %v4152 = vmul.f32 %v4089, %v4134
  %v4153 = vmul.f32 %v4090, %v4139
  %v4154 = vmul.f32 %v4091, %v4144
  %v4155 = vpack.c.bf16 %v4146, %v4146
  %v4156 = vpack.c.bf16 %v4147, %v4147
  %v4157 = vpack.c.bf16 %v4148, %v4148
  %v4158 = vpack.c.bf16 %v4149, %v4149
  %v4159 = vpack.c.bf16 %v4150, %v4150
  %v4160 = vpack.c.bf16 %v4151, %v4151
  %v4161 = vpack.c.bf16 %v4152, %v4152
  %v4162 = vpack.c.bf16 %v4153, %v4153
  %v4163 = vpack.c.bf16 %v4154, %v4154
  %v4164 = vld [vmem:[#allocation2 + $0x5] sm:$0xff]
  %v4165 = vld [vmem:[#allocation2 + $0xd] sm:$0xff]
  %v4166 = vld [vmem:[#allocation2 + $0x15] sm:$0xff]
  %v4167 = vld [vmem:[#allocation2 + $0x1d] sm:$0xff]
  %v4168 = vld [vmem:[#allocation2 + $0x25] sm:$0xff]
  %v4169 = vld [vmem:[#allocation2 + $0x2d] sm:$0xff]
  %v4170 = vld [vmem:[#allocation2 + $0x35] sm:$0xff]
  %v4171 = vld [vmem:[#allocation2 + $0x3d] sm:$0xff]
  %v4172 = vld [vmem:[#allocation2 + $0x45] sm:$0xff]
  %v4173 = vld [vmem:[%s281] sm:$0xff]
  %v4174 = vld [vmem:[%s281 + $0x8] sm:$0xff]
  %v4175 = vld [vmem:[%s281 + $0x10] sm:$0xff]
  %v4176 = vld [vmem:[%s281 + $0x18] sm:$0xff]
  %v4177 = vld [vmem:[%s281 + $0x20] sm:$0xff]
  %v4178 = vld [vmem:[%s281 + $0x28] sm:$0xff]
  %v4179 = vld [vmem:[%s281 + $0x30] sm:$0xff]
  %v4180 = vld [vmem:[%s281 + $0x38] sm:$0xff]
  %v4181 = vld [vmem:[%s281 + $0x40] sm:$0xff]
  %4183 = vset.pattern.permute.xlu0 0
  %4184 = vperm.xlu0 %4183, %v4173
  %v4185 = vpop.permute.xlu0 %4184
  %4188 = vset.pattern.permute.xlu0 0
  %4189 = vperm.xlu0 %4188, %v4174
  %v4190 = vpop.permute.xlu0 %4189
  %4193 = vset.pattern.permute.xlu0 0
  %4194 = vperm.xlu0 %4193, %v4175
  %v4195 = vpop.permute.xlu0 %4194
  %4198 = vset.pattern.permute.xlu0 0
  %4199 = vperm.xlu0 %4198, %v4176
  %v4200 = vpop.permute.xlu0 %4199
  %4203 = vset.pattern.permute.xlu0 0
  %4204 = vperm.xlu0 %4203, %v4177
  %v4205 = vpop.permute.xlu0 %4204
  %4208 = vset.pattern.permute.xlu0 0
  %4209 = vperm.xlu0 %4208, %v4178
  %v4210 = vpop.permute.xlu0 %4209
  %4213 = vset.pattern.permute.xlu0 0
  %4214 = vperm.xlu0 %4213, %v4179
  %v4215 = vpop.permute.xlu0 %4214
  %4218 = vset.pattern.permute.xlu0 0
  %4219 = vperm.xlu0 %4218, %v4180
  %v4220 = vpop.permute.xlu0 %4219
  %4223 = vset.pattern.permute.xlu0 0
  %4224 = vperm.xlu0 %4223, %v4181
  %v4225 = vpop.permute.xlu0 %4224
  %v4227 = vmul.f32 %v4164, %v4185
  %v4228 = vmul.f32 %v4165, %v4190
  %v4229 = vmul.f32 %v4166, %v4195
  %v4230 = vmul.f32 %v4167, %v4200
  %v4231 = vmul.f32 %v4168, %v4205
  %v4232 = vmul.f32 %v4169, %v4210
  %v4233 = vmul.f32 %v4170, %v4215
  %v4234 = vmul.f32 %v4171, %v4220
  %v4235 = vmul.f32 %v4172, %v4225
  %v4236 = vpack.c.bf16 %v4227, %v4227
  %v4237 = vpack.c.bf16 %v4228, %v4228
  %v4238 = vpack.c.bf16 %v4229, %v4229
  %v4239 = vpack.c.bf16 %v4230, %v4230
  %v4240 = vpack.c.bf16 %v4231, %v4231
  %v4241 = vpack.c.bf16 %v4232, %v4232
  %v4242 = vpack.c.bf16 %v4233, %v4233
  %v4243 = vpack.c.bf16 %v4234, %v4234
  %v4244 = vpack.c.bf16 %v4235, %v4235
  %v4245 = vld [vmem:[#allocation2 + $0x7] sm:$0xff]
  %v4246 = vld [vmem:[#allocation2 + $0xf] sm:$0xff]
  %v4247 = vld [vmem:[#allocation2 + $0x17] sm:$0xff]
  %v4248 = vld [vmem:[#allocation2 + $0x1f] sm:$0xff]
  %v4249 = vld [vmem:[#allocation2 + $0x27] sm:$0xff]
  %v4250 = vld [vmem:[#allocation2 + $0x2f] sm:$0xff]
  %v4251 = vld [vmem:[#allocation2 + $0x37] sm:$0xff]
  %v4252 = vld [vmem:[#allocation2 + $0x3f] sm:$0xff]
  %v4253 = vld [vmem:[#allocation2 + $0x47] sm:$0xff]
  %v4254 = vld [vmem:[%s363] sm:$0xff]
  %v4255 = vld [vmem:[%s363 + $0x8] sm:$0xff]
  %v4256 = vld [vmem:[%s363 + $0x10] sm:$0xff]
  %v4257 = vld [vmem:[%s363 + $0x18] sm:$0xff]
  %v4258 = vld [vmem:[%s363 + $0x20] sm:$0xff]
  %v4259 = vld [vmem:[%s363 + $0x28] sm:$0xff]
  %v4260 = vld [vmem:[%s363 + $0x30] sm:$0xff]
  %v4261 = vld [vmem:[%s363 + $0x38] sm:$0xff]
  %v4262 = vld [vmem:[%s363 + $0x40] sm:$0xff]
  %4264 = vset.pattern.permute.xlu0 0
  %4265 = vperm.xlu0 %4264, %v4254
  %v4266 = vpop.permute.xlu0 %4265
  %4269 = vset.pattern.permute.xlu0 0
  %4270 = vperm.xlu0 %4269, %v4255
  %v4271 = vpop.permute.xlu0 %4270
  %4274 = vset.pattern.permute.xlu0 0
  %4275 = vperm.xlu0 %4274, %v4256
  %v4276 = vpop.permute.xlu0 %4275
  %4279 = vset.pattern.permute.xlu0 0
  %4280 = vperm.xlu0 %4279, %v4257
  %v4281 = vpop.permute.xlu0 %4280
  %4284 = vset.pattern.permute.xlu0 0
  %4285 = vperm.xlu0 %4284, %v4258
  %v4286 = vpop.permute.xlu0 %4285
  %4289 = vset.pattern.permute.xlu0 0
  %4290 = vperm.xlu0 %4289, %v4259
  %v4291 = vpop.permute.xlu0 %4290
  %4294 = vset.pattern.permute.xlu0 0
  %4295 = vperm.xlu0 %4294, %v4260
  %v4296 = vpop.permute.xlu0 %4295
  %4299 = vset.pattern.permute.xlu0 0
  %4300 = vperm.xlu0 %4299, %v4261
  %v4301 = vpop.permute.xlu0 %4300
  %4304 = vset.pattern.permute.xlu0 0
  %4305 = vperm.xlu0 %4304, %v4262
  %v4306 = vpop.permute.xlu0 %4305
  %v4308 = vmul.f32 %v4245, %v4266
  %v4309 = vmul.f32 %v4246, %v4271
  %v4310 = vmul.f32 %v4247, %v4276
  %v4311 = vmul.f32 %v4248, %v4281
  %v4312 = vmul.f32 %v4249, %v4286
  %v4313 = vmul.f32 %v4250, %v4291
  %v4314 = vmul.f32 %v4251, %v4296
  %v4315 = vmul.f32 %v4252, %v4301
  %v4316 = vmul.f32 %v4253, %v4306
  %v4317 = vpack.c.bf16 %v4308, %v4308
  %v4318 = vpack.c.bf16 %v4309, %v4309
  %v4319 = vpack.c.bf16 %v4310, %v4310
  %v4320 = vpack.c.bf16 %v4311, %v4311
  %v4321 = vpack.c.bf16 %v4312, %v4312
  %v4322 = vpack.c.bf16 %v4313, %v4313
  %v4323 = vpack.c.bf16 %v4314, %v4314
  %v4324 = vpack.c.bf16 %v4315, %v4315
  %v4325 = vpack.c.bf16 %v4316, %v4316
  %v4326 = vld [vmem:[#allocation2 + $0x8] sm:$0xff]
  %v4327 = vld [vmem:[#allocation2 + $0x10] sm:$0xff]
  %v4328 = vld [vmem:[#allocation2 + $0x18] sm:$0xff]
  %v4329 = vld [vmem:[#allocation2 + $0x20] sm:$0xff]
  %v4330 = vld [vmem:[#allocation2 + $0x28] sm:$0xff]
  %v4331 = vld [vmem:[#allocation2 + $0x30] sm:$0xff]
  %v4332 = vld [vmem:[#allocation2 + $0x38] sm:$0xff]
  %v4333 = vld [vmem:[#allocation2 + $0x40] sm:$0xff]
  %v4334 = vld [vmem:[#allocation2 + $0x48] sm:$0xff]
  %v4335 = vpack.c.bf16 %v4326, %v4326
  %v4336 = vpack.c.bf16 %v4327, %v4327
  %v4337 = vpack.c.bf16 %v4328, %v4328
  %v4338 = vpack.c.bf16 %v4329, %v4329
  %v4339 = vpack.c.bf16 %v4330, %v4330
  %v4340 = vpack.c.bf16 %v4331, %v4331
  %v4341 = vpack.c.bf16 %v4332, %v4332
  %v4342 = vpack.c.bf16 %v4333, %v4333
  %v4343 = vpack.c.bf16 %v4334, %v4334
  %v4344 = vld [vmem:[#allocation2 + $0x9] sm:$0xff]
  %v4345 = vld [vmem:[#allocation2 + $0x11] sm:$0xff]
  %v4346 = vld [vmem:[#allocation2 + $0x19] sm:$0xff]
  %v4347 = vld [vmem:[#allocation2 + $0x21] sm:$0xff]
  %v4348 = vld [vmem:[#allocation2 + $0x29] sm:$0xff]
  %v4349 = vld [vmem:[#allocation2 + $0x31] sm:$0xff]
  %v4350 = vld [vmem:[#allocation2 + $0x39] sm:$0xff]
  %v4351 = vld [vmem:[#allocation2 + $0x41] sm:$0xff]
  %v4352 = vld [vmem:[#allocation2 + $0x49] sm:$0xff]
  %v4353 = vld [vmem:[%s463] sm:$0xff]
  %v4354 = vld [vmem:[%s463 + $0x8] sm:$0xff]
  %v4355 = vld [vmem:[%s463 + $0x10] sm:$0xff]
  %v4356 = vld [vmem:[%s463 + $0x18] sm:$0xff]
  %v4357 = vld [vmem:[%s463 + $0x20] sm:$0xff]
  %v4358 = vld [vmem:[%s463 + $0x28] sm:$0xff]
  %v4359 = vld [vmem:[%s463 + $0x30] sm:$0xff]
  %v4360 = vld [vmem:[%s463 + $0x38] sm:$0xff]
  %v4361 = vld [vmem:[%s463 + $0x40] sm:$0xff]
  %4363 = vset.pattern.permute.xlu0 0
  %4364 = vperm.xlu0 %4363, %v4353
  %v4365 = vpop.permute.xlu0 %4364
  %4368 = vset.pattern.permute.xlu0 0
  %4369 = vperm.xlu0 %4368, %v4354
  %v4370 = vpop.permute.xlu0 %4369
  %4373 = vset.pattern.permute.xlu0 0
  %4374 = vperm.xlu0 %4373, %v4355
  %v4375 = vpop.permute.xlu0 %4374
  %4378 = vset.pattern.permute.xlu0 0
  %4379 = vperm.xlu0 %4378, %v4356
  %v4380 = vpop.permute.xlu0 %4379
  %4383 = vset.pattern.permute.xlu0 0
  %4384 = vperm.xlu0 %4383, %v4357
  %v4385 = vpop.permute.xlu0 %4384
  %4388 = vset.pattern.permute.xlu0 0
  %4389 = vperm.xlu0 %4388, %v4358
  %v4390 = vpop.permute.xlu0 %4389
  %4393 = vset.pattern.permute.xlu0 0
  %4394 = vperm.xlu0 %4393, %v4359
  %v4395 = vpop.permute.xlu0 %4394
  %4398 = vset.pattern.permute.xlu0 0
  %4399 = vperm.xlu0 %4398, %v4360
  %v4400 = vpop.permute.xlu0 %4399
  %4403 = vset.pattern.permute.xlu0 0
  %4404 = vperm.xlu0 %4403, %v4361
  %v4405 = vpop.permute.xlu0 %4404
  %v4407 = vmul.f32 %v4344, %v4365
  %v4408 = vmul.f32 %v4345, %v4370
  %v4409 = vmul.f32 %v4346, %v4375
  %v4410 = vmul.f32 %v4347, %v4380
  %v4411 = vmul.f32 %v4348, %v4385
  %v4412 = vmul.f32 %v4349, %v4390
  %v4413 = vmul.f32 %v4350, %v4395
  %v4414 = vmul.f32 %v4351, %v4400
  %v4415 = vmul.f32 %v4352, %v4405
  %v4416 = vpack.c.bf16 %v4407, %v4407
  %v4417 = vpack.c.bf16 %v4408, %v4408
  %v4418 = vpack.c.bf16 %v4409, %v4409
  %v4419 = vpack.c.bf16 %v4410, %v4410
  %v4420 = vpack.c.bf16 %v4411, %v4411
  %v4421 = vpack.c.bf16 %v4412, %v4412
  %v4422 = vpack.c.bf16 %v4413, %v4413
  %v4423 = vpack.c.bf16 %v4414, %v4414
  %v4424 = vpack.c.bf16 %v4415, %v4415
  %v4425 = vld [vmem:[#allocation2 + $0xb] sm:$0xff]
  %v4426 = vld [vmem:[#allocation2 + $0x13] sm:$0xff]
  %v4427 = vld [vmem:[#allocation2 + $0x1b] sm:$0xff]
  %v4428 = vld [vmem:[#allocation2 + $0x23] sm:$0xff]
  %v4429 = vld [vmem:[#allocation2 + $0x2b] sm:$0xff]
  %v4430 = vld [vmem:[#allocation2 + $0x33] sm:$0xff]
  %v4431 = vld [vmem:[#allocation2 + $0x3b] sm:$0xff]
  %v4432 = vld [vmem:[#allocation2 + $0x43] sm:$0xff]
  %v4433 = vld [vmem:[#allocation2 + $0x4b] sm:$0xff]
  %v4434 = vld [vmem:[%s545] sm:$0xff]
  %v4435 = vld [vmem:[%s545 + $0x8] sm:$0xff]
  %v4436 = vld [vmem:[%s545 + $0x10] sm:$0xff]
  %v4437 = vld [vmem:[%s545 + $0x18] sm:$0xff]
  %v4438 = vld [vmem:[%s545 + $0x20] sm:$0xff]
  %v4439 = vld [vmem:[%s545 + $0x28] sm:$0xff]
  %v4440 = vld [vmem:[%s545 + $0x30] sm:$0xff]
  %v4441 = vld [vmem:[%s545 + $0x38] sm:$0xff]
  %v4442 = vld [vmem:[%s545 + $0x40] sm:$0xff]
  %4444 = vset.pattern.permute.xlu0 0
  %4445 = vperm.xlu0 %4444, %v4434
  %v4446 = vpop.permute.xlu0 %4445
  %4449 = vset.pattern.permute.xlu0 0
  %4450 = vperm.xlu0 %4449, %v4435
  %v4451 = vpop.permute.xlu0 %4450
  %4454 = vset.pattern.permute.xlu0 0
  %4455 = vperm.xlu0 %4454, %v4436
  %v4456 = vpop.permute.xlu0 %4455
  %4459 = vset.pattern.permute.xlu0 0
  %4460 = vperm.xlu0 %4459, %v4437
  %v4461 = vpop.permute.xlu0 %4460
  %4464 = vset.pattern.permute.xlu0 0
  %4465 = vperm.xlu0 %4464, %v4438
  %v4466 = vpop.permute.xlu0 %4465
  %4469 = vset.pattern.permute.xlu0 0
  %4470 = vperm.xlu0 %4469, %v4439
  %v4471 = vpop.permute.xlu0 %4470
  %4474 = vset.pattern.permute.xlu0 0
  %4475 = vperm.xlu0 %4474, %v4440
  %v4476 = vpop.permute.xlu0 %4475
  %4479 = vset.pattern.permute.xlu0 0
  %4480 = vperm.xlu0 %4479, %v4441
  %v4481 = vpop.permute.xlu0 %4480
  %4484 = vset.pattern.permute.xlu0 0
  %4485 = vperm.xlu0 %4484, %v4442
  %v4486 = vpop.permute.xlu0 %4485
  %v4488 = vmul.f32 %v4425, %v4446
  %v4489 = vmul.f32 %v4426, %v4451
  %v4490 = vmul.f32 %v4427, %v4456
  %v4491 = vmul.f32 %v4428, %v4461
  %v4492 = vmul.f32 %v4429, %v4466
  %v4493 = vmul.f32 %v4430, %v4471
  %v4494 = vmul.f32 %v4431, %v4476
  %v4495 = vmul.f32 %v4432, %v4481
  %v4496 = vmul.f32 %v4433, %v4486
  %v4497 = vpack.c.bf16 %v4488, %v4488
  %v4498 = vpack.c.bf16 %v4489, %v4489
  %v4499 = vpack.c.bf16 %v4490, %v4490
  %v4500 = vpack.c.bf16 %v4491, %v4491
  %v4501 = vpack.c.bf16 %v4492, %v4492
  %v4502 = vpack.c.bf16 %v4493, %v4493
  %v4503 = vpack.c.bf16 %v4494, %v4494
  %v4504 = vpack.c.bf16 %v4495, %v4495
  %v4505 = vpack.c.bf16 %v4496, %v4496
  %v4506 = vld [vmem:[#allocation2 + $0xc] sm:$0xff]
  %v4507 = vld [vmem:[#allocation2 + $0x14] sm:$0xff]
  %v4508 = vld [vmem:[#allocation2 + $0x1c] sm:$0xff]
  %v4509 = vld [vmem:[#allocation2 + $0x24] sm:$0xff]
  %v4510 = vld [vmem:[#allocation2 + $0x2c] sm:$0xff]
  %v4511 = vld [vmem:[#allocation2 + $0x34] sm:$0xff]
  %v4512 = vld [vmem:[#allocation2 + $0x3c] sm:$0xff]
  %v4513 = vld [vmem:[#allocation2 + $0x44] sm:$0xff]
  %v4514 = vld [vmem:[#allocation2 + $0x4c] sm:$0xff]
  %v4515 = vld [vmem:[%s627] sm:$0xff]
  %v4516 = vld [vmem:[%s627 + $0x8] sm:$0xff]
  %v4517 = vld [vmem:[%s627 + $0x10] sm:$0xff]
  %v4518 = vld [vmem:[%s627 + $0x18] sm:$0xff]
  %v4519 = vld [vmem:[%s627 + $0x20] sm:$0xff]
  %v4520 = vld [vmem:[%s627 + $0x28] sm:$0xff]
  %v4521 = vld [vmem:[%s627 + $0x30] sm:$0xff]
  %v4522 = vld [vmem:[%s627 + $0x38] sm:$0xff]
  %v4523 = vld [vmem:[%s627 + $0x40] sm:$0xff]
  %4525 = vset.pattern.permute.xlu0 0
  %4526 = vperm.xlu0 %4525, %v4515
  %v4527 = vpop.permute.xlu0 %4526
  %4530 = vset.pattern.permute.xlu0 0
  %4531 = vperm.xlu0 %4530, %v4516
  %v4532 = vpop.permute.xlu0 %4531
  %4535 = vset.pattern.permute.xlu0 0
  %4536 = vperm.xlu0 %4535, %v4517
  %v4537 = vpop.permute.xlu0 %4536
  %4540 = vset.pattern.permute.xlu0 0
  %4541 = vperm.xlu0 %4540, %v4518
  %v4542 = vpop.permute.xlu0 %4541
  %4545 = vset.pattern.permute.xlu0 0
  %4546 = vperm.xlu0 %4545, %v4519
  %v4547 = vpop.permute.xlu0 %4546
  %4550 = vset.pattern.permute.xlu0 0
  %4551 = vperm.xlu0 %4550, %v4520
  %v4552 = vpop.permute.xlu0 %4551
  %4555 = vset.pattern.permute.xlu0 0
  %4556 = vperm.xlu0 %4555, %v4521
  %v4557 = vpop.permute.xlu0 %4556
  %4560 = vset.pattern.permute.xlu0 0
  %4561 = vperm.xlu0 %4560, %v4522
  %v4562 = vpop.permute.xlu0 %4561
  %4565 = vset.pattern.permute.xlu0 0
  %4566 = vperm.xlu0 %4565, %v4523
  %v4567 = vpop.permute.xlu0 %4566
  %v4569 = vmul.f32 %v4506, %v4527
  %v4570 = vmul.f32 %v4507, %v4532
  %v4571 = vmul.f32 %v4508, %v4537
  %v4572 = vmul.f32 %v4509, %v4542
  %v4573 = vmul.f32 %v4510, %v4547
  %v4574 = vmul.f32 %v4511, %v4552
  %v4575 = vmul.f32 %v4512, %v4557
  %v4576 = vmul.f32 %v4513, %v4562
  %v4577 = vmul.f32 %v4514, %v4567
  %v4578 = vpack.c.bf16 %v4569, %v4569
  %v4579 = vpack.c.bf16 %v4570, %v4570
  %v4580 = vpack.c.bf16 %v4571, %v4571
  %v4581 = vpack.c.bf16 %v4572, %v4572
  %v4582 = vpack.c.bf16 %v4573, %v4573
  %v4583 = vpack.c.bf16 %v4574, %v4574
  %v4584 = vpack.c.bf16 %v4575, %v4575
  %v4585 = vpack.c.bf16 %v4576, %v4576
  %v4586 = vpack.c.bf16 %v4577, %v4577
  %v4587 = vld [vmem:[#allocation2 + $0xd] sm:$0xff]
  %v4588 = vld [vmem:[#allocation2 + $0x15] sm:$0xff]
  %v4589 = vld [vmem:[#allocation2 + $0x1d] sm:$0xff]
  %v4590 = vld [vmem:[#allocation2 + $0x25] sm:$0xff]
  %v4591 = vld [vmem:[#allocation2 + $0x2d] sm:$0xff]
  %v4592 = vld [vmem:[#allocation2 + $0x35] sm:$0xff]
  %v4593 = vld [vmem:[#allocation2 + $0x3d] sm:$0xff]
  %v4594 = vld [vmem:[#allocation2 + $0x45] sm:$0xff]
  %v4595 = vld [vmem:[#allocation2 + $0x4d] sm:$0xff]
  %v4596 = vld [vmem:[%s709] sm:$0xff]
  %v4597 = vld [vmem:[%s709 + $0x8] sm:$0xff]
  %v4598 = vld [vmem:[%s709 + $0x10] sm:$0xff]
  %v4599 = vld [vmem:[%s709 + $0x18] sm:$0xff]
  %v4600 = vld [vmem:[%s709 + $0x20] sm:$0xff]
  %v4601 = vld [vmem:[%s709 + $0x28] sm:$0xff]
  %v4602 = vld [vmem:[%s709 + $0x30] sm:$0xff]
  %v4603 = vld [vmem:[%s709 + $0x38] sm:$0xff]
  %v4604 = vld [vmem:[%s709 + $0x40] sm:$0xff]
  %4606 = vset.pattern.permute.xlu0 0
  %4607 = vperm.xlu0 %4606, %v4596
  %v4608 = vpop.permute.xlu0 %4607
  %4611 = vset.pattern.permute.xlu0 0
  %4612 = vperm.xlu0 %4611, %v4597
  %v4613 = vpop.permute.xlu0 %4612
  %4616 = vset.pattern.permute.xlu0 0
  %4617 = vperm.xlu0 %4616, %v4598
  %v4618 = vpop.permute.xlu0 %4617
  %4621 = vset.pattern.permute.xlu0 0
  %4622 = vperm.xlu0 %4621, %v4599
  %v4623 = vpop.permute.xlu0 %4622
  %4626 = vset.pattern.permute.xlu0 0
  %4627 = vperm.xlu0 %4626, %v4600
  %v4628 = vpop.permute.xlu0 %4627
  %4631 = vset.pattern.permute.xlu0 0
  %4632 = vperm.xlu0 %4631, %v4601
  %v4633 = vpop.permute.xlu0 %4632
  %4636 = vset.pattern.permute.xlu0 0
  %4637 = vperm.xlu0 %4636, %v4602
  %v4638 = vpop.permute.xlu0 %4637
  %4641 = vset.pattern.permute.xlu0 0
  %4642 = vperm.xlu0 %4641, %v4603
  %v4643 = vpop.permute.xlu0 %4642
  %4646 = vset.pattern.permute.xlu0 0
  %4647 = vperm.xlu0 %4646, %v4604
  %v4648 = vpop.permute.xlu0 %4647
  %v4650 = vmul.f32 %v4587, %v4608
  %v4651 = vmul.f32 %v4588, %v4613
  %v4652 = vmul.f32 %v4589, %v4618
  %v4653 = vmul.f32 %v4590, %v4623
  %v4654 = vmul.f32 %v4591, %v4628
  %v4655 = vmul.f32 %v4592, %v4633
  %v4656 = vmul.f32 %v4593, %v4638
  %v4657 = vmul.f32 %v4594, %v4643
  %v4658 = vmul.f32 %v4595, %v4648
  %v4659 = vpack.c.bf16 %v4650, %v4650
  %v4660 = vpack.c.bf16 %v4651, %v4651
  %v4661 = vpack.c.bf16 %v4652, %v4652
  %v4662 = vpack.c.bf16 %v4653, %v4653
  %v4663 = vpack.c.bf16 %v4654, %v4654
  %v4664 = vpack.c.bf16 %v4655, %v4655
  %v4665 = vpack.c.bf16 %v4656, %v4656
  %v4666 = vpack.c.bf16 %v4657, %v4657
  %v4667 = vpack.c.bf16 %v4658, %v4658
  %v4677 = vunpack.c.l.b16 %v4074
  %v4678 = vunpack.c.l.b16 %v4075
  %v4679 = vunpack.c.l.b16 %v4076
  %v4680 = vunpack.c.l.b16 %v4077
  %v4681 = vunpack.c.l.b16 %v4078
  %v4682 = vunpack.c.l.b16 %v4079
  %v4683 = vunpack.c.l.b16 %v4080
  %v4684 = vunpack.c.l.b16 %v4081
  %v4685 = vunpack.c.l.b16 %v4082
  %v4686 = vpack.c.b16 %v4678, %v4677
  %v4687 = vpack.c.b16 %v4680, %v4679
  %v4688 = vpack.c.b16 %v4682, %v4681
  %v4689 = vpack.c.b16 %v4684, %v4683
  %v4690 = vpack.c.b16 %v4685, %v4685
  %v4700 = vunpack.c.l.b16 %v4155
  %v4701 = vunpack.c.l.b16 %v4156
  %v4702 = vunpack.c.l.b16 %v4157
  %v4703 = vunpack.c.l.b16 %v4158
  %v4704 = vunpack.c.l.b16 %v4159
  %v4705 = vunpack.c.l.b16 %v4160
  %v4706 = vunpack.c.l.b16 %v4161
  %v4707 = vunpack.c.l.b16 %v4162
  %v4708 = vunpack.c.l.b16 %v4163
  %v4709 = vpack.c.b16 %v4701, %v4700
  %v4710 = vpack.c.b16 %v4703, %v4702
  %v4711 = vpack.c.b16 %v4705, %v4704
  %v4712 = vpack.c.b16 %v4707, %v4706
  %v4713 = vpack.c.b16 %v4708, %v4708
  %4714 = vrot.lane.b32.xlu0 %v4709, 16
  %v4715 = vpop.permute.xlu0 %4714
  %4716 = vrot.lane.b32.xlu0 %v4710, 16
  %v4717 = vpop.permute.xlu0 %4716
  %4718 = vrot.lane.b32.xlu0 %v4711, 16
  %v4719 = vpop.permute.xlu0 %4718
  %4720 = vrot.lane.b32.xlu0 %v4712, 16
  %v4721 = vpop.permute.xlu0 %4720
  %4722 = vrot.lane.b32.xlu0 %v4713, 16
  %v4723 = vpop.permute.xlu0 %4722
  %v4733 = vunpack.c.l.b16 %v4236
  %v4734 = vunpack.c.l.b16 %v4237
  %v4735 = vunpack.c.l.b16 %v4238
  %v4736 = vunpack.c.l.b16 %v4239
  %v4737 = vunpack.c.l.b16 %v4240
  %v4738 = vunpack.c.l.b16 %v4241
  %v4739 = vunpack.c.l.b16 %v4242
  %v4740 = vunpack.c.l.b16 %v4243
  %v4741 = vunpack.c.l.b16 %v4244
  %v4742 = vpack.c.b16 %v4734, %v4733
  %v4743 = vpack.c.b16 %v4736, %v4735
  %v4744 = vpack.c.b16 %v4738, %v4737
  %v4745 = vpack.c.b16 %v4740, %v4739
  %v4746 = vpack.c.b16 %v4741, %v4741
  %4747 = vrot.lane.b32.xlu0 %v4742, 32
  %v4748 = vpop.permute.xlu0 %4747
  %4749 = vrot.lane.b32.xlu0 %v4743, 32
  %v4750 = vpop.permute.xlu0 %4749
  %4751 = vrot.lane.b32.xlu0 %v4744, 32
  %v4752 = vpop.permute.xlu0 %4751
  %4753 = vrot.lane.b32.xlu0 %v4745, 32
  %v4754 = vpop.permute.xlu0 %4753
  %4755 = vrot.lane.b32.xlu0 %v4746, 32
  %v4756 = vpop.permute.xlu0 %4755
  %v4766 = vunpack.c.l.b16 %v4317
  %v4767 = vunpack.c.l.b16 %v4318
  %v4768 = vunpack.c.l.b16 %v4319
  %v4769 = vunpack.c.l.b16 %v4320
  %v4770 = vunpack.c.l.b16 %v4321
  %v4771 = vunpack.c.l.b16 %v4322
  %v4772 = vunpack.c.l.b16 %v4323
  %v4773 = vunpack.c.l.b16 %v4324
  %v4774 = vunpack.c.l.b16 %v4325
  %v4775 = vpack.c.b16 %v4767, %v4766
  %v4776 = vpack.c.b16 %v4769, %v4768
  %v4777 = vpack.c.b16 %v4771, %v4770
  %v4778 = vpack.c.b16 %v4773, %v4772
  %v4779 = vpack.c.b16 %v4774, %v4774
  %4780 = vrot.lane.b32.xlu0 %v4775, 48
  %v4781 = vpop.permute.xlu0 %4780
  %4782 = vrot.lane.b32.xlu0 %v4776, 48
  %v4783 = vpop.permute.xlu0 %4782
  %4784 = vrot.lane.b32.xlu0 %v4777, 48
  %v4785 = vpop.permute.xlu0 %4784
  %4786 = vrot.lane.b32.xlu0 %v4778, 48
  %v4787 = vpop.permute.xlu0 %4786
  %4788 = vrot.lane.b32.xlu0 %v4779, 48
  %v4789 = vpop.permute.xlu0 %4788
  %v4799 = vunpack.c.l.b16 %v4335
  %v4800 = vunpack.c.l.b16 %v4336
  %v4801 = vunpack.c.l.b16 %v4337
  %v4802 = vunpack.c.l.b16 %v4338
  %v4803 = vunpack.c.l.b16 %v4339
  %v4804 = vunpack.c.l.b16 %v4340
  %v4805 = vunpack.c.l.b16 %v4341
  %v4806 = vunpack.c.l.b16 %v4342
  %v4807 = vunpack.c.l.b16 %v4343
  %v4808 = vpack.c.b16 %v4800, %v4799
  %v4809 = vpack.c.b16 %v4802, %v4801
  %v4810 = vpack.c.b16 %v4804, %v4803
  %v4811 = vpack.c.b16 %v4806, %v4805
  %v4812 = vpack.c.b16 %v4807, %v4807
  %4813 = vrot.lane.b32.xlu0 %v4808, 64
  %v4814 = vpop.permute.xlu0 %4813
  %4815 = vrot.lane.b32.xlu0 %v4809, 64
  %v4816 = vpop.permute.xlu0 %4815
  %4817 = vrot.lane.b32.xlu0 %v4810, 64
  %v4818 = vpop.permute.xlu0 %4817
  %4819 = vrot.lane.b32.xlu0 %v4811, 64
  %v4820 = vpop.permute.xlu0 %4819
  %4821 = vrot.lane.b32.xlu0 %v4812, 64
  %v4822 = vpop.permute.xlu0 %4821
  %v4832 = vunpack.c.l.b16 %v4416
  %v4833 = vunpack.c.l.b16 %v4417
  %v4834 = vunpack.c.l.b16 %v4418
  %v4835 = vunpack.c.l.b16 %v4419
  %v4836 = vunpack.c.l.b16 %v4420
  %v4837 = vunpack.c.l.b16 %v4421
  %v4838 = vunpack.c.l.b16 %v4422
  %v4839 = vunpack.c.l.b16 %v4423
  %v4840 = vunpack.c.l.b16 %v4424
  %v4841 = vpack.c.b16 %v4833, %v4832
  %v4842 = vpack.c.b16 %v4835, %v4834
  %v4843 = vpack.c.b16 %v4837, %v4836
  %v4844 = vpack.c.b16 %v4839, %v4838
  %v4845 = vpack.c.b16 %v4840, %v4840
  %4846 = vrot.lane.b32.xlu0 %v4841, 80
  %v4847 = vpop.permute.xlu0 %4846
  %4848 = vrot.lane.b32.xlu0 %v4842, 80
  %v4849 = vpop.permute.xlu0 %4848
  %4850 = vrot.lane.b32.xlu0 %v4843, 80
  %v4851 = vpop.permute.xlu0 %4850
  %4852 = vrot.lane.b32.xlu0 %v4844, 80
  %v4853 = vpop.permute.xlu0 %4852
  %4854 = vrot.lane.b32.xlu0 %v4845, 80
  %v4855 = vpop.permute.xlu0 %4854
  %v4865 = vunpack.c.l.b16 %v4497
  %v4866 = vunpack.c.l.b16 %v4498
  %v4867 = vunpack.c.l.b16 %v4499
  %v4868 = vunpack.c.l.b16 %v4500
  %v4869 = vunpack.c.l.b16 %v4501
  %v4870 = vunpack.c.l.b16 %v4502
  %v4871 = vunpack.c.l.b16 %v4503
  %v4872 = vunpack.c.l.b16 %v4504
  %v4873 = vunpack.c.l.b16 %v4505
  %v4874 = vpack.c.b16 %v4866, %v4865
  %v4875 = vpack.c.b16 %v4868, %v4867
  %v4876 = vpack.c.b16 %v4870, %v4869
  %v4877 = vpack.c.b16 %v4872, %v4871
  %v4878 = vpack.c.b16 %v4873, %v4873
  %4879 = vrot.lane.b32.xlu0 %v4874, 96
  %v4880 = vpop.permute.xlu0 %4879
  %4881 = vrot.lane.b32.xlu0 %v4875, 96
  %v4882 = vpop.permute.xlu0 %4881
  %4883 = vrot.lane.b32.xlu0 %v4876, 96
  %v4884 = vpop.permute.xlu0 %4883
  %4885 = vrot.lane.b32.xlu0 %v4877, 96
  %v4886 = vpop.permute.xlu0 %4885
  %4887 = vrot.lane.b32.xlu0 %v4878, 96
  %v4888 = vpop.permute.xlu0 %4887
  %v4898 = vunpack.c.l.b16 %v4578
  %v4899 = vunpack.c.l.b16 %v4579
  %v4900 = vunpack.c.l.b16 %v4580
  %v4901 = vunpack.c.l.b16 %v4581
  %v4902 = vunpack.c.l.b16 %v4582
  %v4903 = vunpack.c.l.b16 %v4583
  %v4904 = vunpack.c.l.b16 %v4584
  %v4905 = vunpack.c.l.b16 %v4585
  %v4906 = vunpack.c.l.b16 %v4586
  %v4907 = vpack.c.b16 %v4899, %v4898
  %v4908 = vpack.c.b16 %v4901, %v4900
  %v4909 = vpack.c.b16 %v4903, %v4902
  %v4910 = vpack.c.b16 %v4905, %v4904
  %v4911 = vpack.c.b16 %v4906, %v4906
  %4912 = vrot.lane.b32.xlu0 %v4907, 112
  %v4913 = vpop.permute.xlu0 %4912
  %4914 = vrot.lane.b32.xlu0 %v4908, 112
  %v4915 = vpop.permute.xlu0 %4914
  %4916 = vrot.lane.b32.xlu0 %v4909, 112
  %v4917 = vpop.permute.xlu0 %4916
  %4918 = vrot.lane.b32.xlu0 %v4910, 112
  %v4919 = vpop.permute.xlu0 %4918
  %4920 = vrot.lane.b32.xlu0 %v4911, 112
  %v4921 = vpop.permute.xlu0 %4920
  %v4931 = vunpack.c.l.b16 %v4659
  %v4932 = vunpack.c.l.b16 %v4660
  %v4933 = vunpack.c.l.b16 %v4661
  %v4934 = vunpack.c.l.b16 %v4662
  %v4935 = vunpack.c.l.b16 %v4663
  %v4936 = vunpack.c.l.b16 %v4664
  %v4937 = vunpack.c.l.b16 %v4665
  %v4938 = vunpack.c.l.b16 %v4666
  %v4939 = vunpack.c.l.b16 %v4667
  %v4940 = vpack.c.b16 %v4932, %v4931
  %v4941 = vpack.c.b16 %v4934, %v4933
  %v4942 = vpack.c.b16 %v4936, %v4935
  %v4943 = vpack.c.b16 %v4938, %v4937
  %v4944 = vpack.c.b16 %v4939, %v4939
  %v4947 = vsel %vm36, %v4686, %v4715
  %v4950 = vsel %vm36, %v4687, %v4717
  %v4953 = vsel %vm36, %v4688, %v4719
  %v4956 = vsel %vm36, %v4689, %v4721
  %v4959 = vsel %vm36, %v4690, %v4723
  %v4961 = vsel %vm2505, %v4947, %v4748
  %v4963 = vsel %vm2505, %v4950, %v4750
  %v4965 = vsel %vm2505, %v4953, %v4752
  %v4967 = vsel %vm2505, %v4956, %v4754
  %v4969 = vsel %vm2505, %v4959, %v4756
  %v4971 = vsel %vm1166, %v4961, %v4781
  %v4973 = vsel %vm1166, %v4963, %v4783
  %v4975 = vsel %vm1166, %v4965, %v4785
  %v4977 = vsel %vm1166, %v4967, %v4787
  %v4979 = vsel %vm1166, %v4969, %v4789
  %v4981 = vsel %vm2526, %v4971, %v4814
  %v4983 = vsel %vm2526, %v4973, %v4816
  %v4985 = vsel %vm2526, %v4975, %v4818
  %v4987 = vsel %vm2526, %v4977, %v4820
  %v4989 = vsel %vm2526, %v4979, %v4822
  %v4991 = vsel %vm2537, %v4981, %v4847
  %v4993 = vsel %vm2537, %v4983, %v4849
  %v4995 = vsel %vm2537, %v4985, %v4851
  %v4997 = vsel %vm2537, %v4987, %v4853
  %v4999 = vsel %vm2537, %v4989, %v4855
  %v5001 = vsel %vm2548, %v4991, %v4880
  %v5003 = vsel %vm2548, %v4993, %v4882
  %v5005 = vsel %vm2548, %v4995, %v4884
  %v5007 = vsel %vm2548, %v4997, %v4886
  %v5009 = vsel %vm2548, %v4999, %v4888
  %v5011 = vsel %vm2559, %v5001, %v4913
  %v5014 = vsel %vm2559, %v5003, %v4915
  %v5017 = vsel %vm2559, %v5005, %v4917
  %v5020 = vsel %vm2559, %v5007, %v4919
  %v5023 = vsel %vm2559, %v5009, %v4921
  %v5043 = vunpack.c.l.b16 %v3984
  %v5044 = vunpack.c.l.b16 %v3985
  %v5045 = vunpack.c.l.b16 %v3986
  %v5046 = vunpack.c.l.b16 %v3987
  %v5047 = vunpack.c.l.b16 %v3988
  %v5048 = vunpack.c.l.b16 %v3989
  %v5049 = vunpack.c.l.b16 %v3990
  %v5050 = vunpack.c.l.b16 %v3991
  %v5051 = vunpack.c.l.b16 %v3992
  %v5052 = vunpack.c.l.b16 %v3993
  %v5053 = vunpack.c.l.b16 %v3994
  %v5054 = vunpack.c.l.b16 %v3995
  %v5055 = vunpack.c.l.b16 %v3996
  %v5056 = vunpack.c.l.b16 %v3997
  %v5057 = vunpack.c.l.b16 %v3998
  %v5058 = vunpack.c.l.b16 %v3999
  %v5059 = vunpack.c.l.b16 %v4000
  %v5060 = vunpack.c.l.b16 %v4001
  %v5061 = vpack.c.b16 %v5044, %v5043
  %v5062 = vpack.c.b16 %v5046, %v5045
  %v5063 = vpack.c.b16 %v5048, %v5047
  %v5064 = vpack.c.b16 %v5050, %v5049
  %v5065 = vpack.c.b16 %v5052, %v5051
  %v5066 = vpack.c.b16 %v5054, %v5053
  %v5067 = vpack.c.b16 %v5056, %v5055
  %v5068 = vpack.c.b16 %v5058, %v5057
  %v5069 = vpack.c.b16 %v5060, %v5059
  %v5080 = vsel %vm36, %v4940, 0
  %v5083 = vsel %vm36, %v4941, 0
  %v5086 = vsel %vm36, %v4942, 0
  %v5089 = vsel %vm36, %v4943, 0
  %v5092 = vsel %vm36, %v4944, 0
  %5094 = vmatpush.bf16.msra.mxu0 %v5068
  %5095 = vmatpush.bf16.msra.mxu0 %v5067
  %5096 = vmatpush.bf16.msra.mxu0 %v5066
  %5097 = vmatpush.bf16.msra.mxu0 %v5065
  %5098 = vmatpush.bf16.msra.mxu0 %v5064
  %5099 = vmatpush.bf16.msra.mxu0 %v5063
  %5100 = vmatpush.bf16.msra.mxu0 %v5062
  %5101 = vmatpush.bf16.msra.mxu0 %v5061
  %5102 = vmatmul.bf16.gmra.mxu0 %v5011
  %v5103 = vpop.f32.mrf.mxu0
  %v5104 = vadd.f32 0.0, %v5103
  %v5105 = vpop.f32.mrf.mxu0
  %v5106 = vadd.f32 0.0, %v5105
  %5107 = vmatmul.bf16.gmra.mxu0 %v5014
  %v5108 = vpop.f32.mrf.mxu0
  %v5109 = vadd.f32 0.0, %v5108
  %v5110 = vpop.f32.mrf.mxu0
  %v5111 = vadd.f32 0.0, %v5110
  %5112 = vmatmul.bf16.gmra.mxu0 %v5017
  %v5113 = vpop.f32.mrf.mxu0
  %v5114 = vadd.f32 0.0, %v5113
  %v5115 = vpop.f32.mrf.mxu0
  %v5116 = vadd.f32 0.0, %v5115
  %5117 = vmatmul.bf16.gmra.mxu0 %v5020
  %v5118 = vpop.f32.mrf.mxu0
  %v5119 = vadd.f32 0.0, %v5118
  %v5120 = vpop.f32.mrf.mxu0
  %v5121 = vadd.f32 0.0, %v5120
  %5122 = vmatmul.bf16.gmra.mxu0 %v5023
  %v5123 = vpop.f32.mrf.mxu0
  %v5124 = vadd.f32 0.0, %v5123
  %v5125 = vpop.f32.mrf.mxu0
  %5126 = vdwg.mxu0
  %5127 = vmatpush.bf16.msra.mxu0 0
  %5128 = vmatpush.bf16.msra.mxu0 0
  %5129 = vmatpush.bf16.msra.mxu0 0
  %5130 = vmatpush.bf16.msra.mxu0 0
  %5131 = vmatpush.bf16.msra.mxu0 0
  %5132 = vmatpush.bf16.msra.mxu0 0
  %5133 = vmatpush.bf16.msra.mxu0 0
  %5134 = vmatpush.bf16.msra.mxu0 %v5069
  %5135 = vmatmul.bf16.gmra.mxu0 %v5080
  %v5136 = vpop.f32.mrf.mxu0
  %v5137 = vadd.f32 %v5104, %v5136
  %v5138 = vpop.f32.mrf.mxu0
  %v5139 = vadd.f32 %v5106, %v5138
  %5140 = vmatmul.bf16.gmra.mxu0 %v5083
  %v5141 = vpop.f32.mrf.mxu0
  %v5142 = vadd.f32 %v5109, %v5141
  %v5143 = vpop.f32.mrf.mxu0
  %v5144 = vadd.f32 %v5111, %v5143
  %5145 = vmatmul.bf16.gmra.mxu0 %v5086
  %v5146 = vpop.f32.mrf.mxu0
  %v5147 = vadd.f32 %v5114, %v5146
  %v5148 = vpop.f32.mrf.mxu0
  %v5149 = vadd.f32 %v5116, %v5148
  %5150 = vmatmul.bf16.gmra.mxu0 %v5089
  %v5151 = vpop.f32.mrf.mxu0
  %v5152 = vadd.f32 %v5119, %v5151
  %v5153 = vpop.f32.mrf.mxu0
  %v5154 = vadd.f32 %v5121, %v5153
  %5155 = vmatmul.bf16.gmra.mxu0 %v5092
  %v5156 = vpop.f32.mrf.mxu0
  %v5157 = vadd.f32 %v5124, %v5156
  %v5158 = vpop.f32.mrf.mxu0
  %5159 = vdwg.mxu0
  %s5160 = scalar_lea.vmem %s5, 1
  %v5161 = vld [vmem:[%s5160] sm:$0x1]
  %v5163 = vperm.slane %v5161, 0
  %v5165 = vmul.f32 %v5137, %v5163
  %v5166 = vmul.f32 %v5139, %v5163
  %v5167 = vmul.f32 %v5142, %v5163
  %v5168 = vmul.f32 %v5144, %v5163
  %v5169 = vmul.f32 %v5147, %v5163
  %v5170 = vmul.f32 %v5149, %v5163
  %v5171 = vmul.f32 %v5152, %v5163
  %v5172 = vmul.f32 %v5154, %v5163
  %v5173 = vmul.f32 %v5157, %v5163
  %s5174 = scalar_lea.vmem %s6, 1
  %v5175 = vld [vmem:[%s5174] sm:$0x1]
  %v5177 = vperm.slane %v5175, 0
  %v5179 = vadd.f32 %v5165, %v5177
  %v5180 = vadd.f32 %v5166, %v5177
  %v5181 = vadd.f32 %v5167, %v5177
  %v5182 = vadd.f32 %v5168, %v5177
  %v5183 = vadd.f32 %v5169, %v5177
  %v5184 = vadd.f32 %v5170, %v5177
  %v5185 = vadd.f32 %v5171, %v5177
  %v5186 = vadd.f32 %v5172, %v5177
  %v5187 = vadd.f32 %v5173, %v5177
  %v5188 = vmax.f32 %v5179, 0.0
  %v5189 = vmax.f32 %v5180, 0.0
  %v5190 = vmax.f32 %v5181, 0.0
  %v5191 = vmax.f32 %v5182, 0.0
  %v5192 = vmax.f32 %v5183, 0.0
  %v5193 = vmax.f32 %v5184, 0.0
  %v5194 = vmax.f32 %v5185, 0.0
  %v5195 = vmax.f32 %v5186, 0.0
  %v5196 = vmax.f32 %v5187, 0.0
  %5197 = vst.msk [vmem:[#allocation2 + $0x8] sm:$0xff] %vm36, %v5188
  %5198 = vst.msk [vmem:[#allocation2 + $0x10] sm:$0xff] %vm36, %v5189
  %5199 = vst.msk [vmem:[#allocation2 + $0x18] sm:$0xff] %vm36, %v5190
  %5200 = vst.msk [vmem:[#allocation2 + $0x20] sm:$0xff] %vm36, %v5191
  %5201 = vst.msk [vmem:[#allocation2 + $0x28] sm:$0xff] %vm36, %v5192
  %5202 = vst.msk [vmem:[#allocation2 + $0x30] sm:$0xff] %vm36, %v5193
  %5203 = vst.msk [vmem:[#allocation2 + $0x38] sm:$0xff] %vm36, %v5194
  %5204 = vst.msk [vmem:[#allocation2 + $0x40] sm:$0xff] %vm36, %v5195
  %5205 = vst.msk [vmem:[#allocation2 + $0x48] sm:$0xff] %vm36, %v5196
  %s5206 = scalar_lea.vmem %s7, 72
  %v5207 = vld [vmem:[%s5206] sm:$0xf]
  %v5208 = vld [vmem:[%s5206 + $0x4] sm:$0xf]
  %v5209 = vld [vmem:[%s5206 + $0x8] sm:$0xf]
  %v5210 = vld [vmem:[%s5206 + $0xc] sm:$0xf]
  %v5211 = vld [vmem:[%s5206 + $0x10] sm:$0xf]
  %v5212 = vld [vmem:[%s5206 + $0x14] sm:$0xf]
  %v5213 = vld [vmem:[%s5206 + $0x18] sm:$0xf]
  %v5214 = vld [vmem:[%s5206 + $0x1c] sm:$0xf]
  %v5215 = vld [vmem:[%s5206 + $0x20] sm:$0xf]
  %v5216 = vld [vmem:[%s5206 + $0x24] sm:$0xf]
  %v5217 = vld [vmem:[%s5206 + $0x28] sm:$0xf]
  %v5218 = vld [vmem:[%s5206 + $0x2c] sm:$0xf]
  %v5219 = vld [vmem:[%s5206 + $0x30] sm:$0xf]
  %v5220 = vld [vmem:[%s5206 + $0x34] sm:$0xf]
  %v5221 = vld [vmem:[%s5206 + $0x38] sm:$0xf]
  %v5222 = vld [vmem:[%s5206 + $0x3c] sm:$0xf]
  %v5223 = vld [vmem:[%s5206 + $0x40] sm:$0xf]
  %v5224 = vld [vmem:[%s5206 + $0x44] sm:$0xf]
  %v5225 = vld [vmem:[#allocation2 + $0x3] sm:$0xff]
  %v5226 = vld [vmem:[#allocation2 + $0xb] sm:$0xff]
  %v5227 = vld [vmem:[#allocation2 + $0x13] sm:$0xff]
  %v5228 = vld [vmem:[#allocation2 + $0x1b] sm:$0xff]
  %v5229 = vld [vmem:[#allocation2 + $0x23] sm:$0xff]
  %v5230 = vld [vmem:[#allocation2 + $0x2b] sm:$0xff]
  %v5231 = vld [vmem:[#allocation2 + $0x33] sm:$0xff]
  %v5232 = vld [vmem:[#allocation2 + $0x3b] sm:$0xff]
  %v5233 = vld [vmem:[#allocation2 + $0x43] sm:$0xff]
  %v5234 = vld [vmem:[%s1] sm:$0xff]
  %v5235 = vld [vmem:[%s1 + $0x8] sm:$0xff]
  %v5236 = vld [vmem:[%s1 + $0x10] sm:$0xff]
  %v5237 = vld [vmem:[%s1 + $0x18] sm:$0xff]
  %v5238 = vld [vmem:[%s1 + $0x20] sm:$0xff]
  %v5239 = vld [vmem:[%s1 + $0x28] sm:$0xff]
  %v5240 = vld [vmem:[%s1 + $0x30] sm:$0xff]
  %v5241 = vld [vmem:[%s1 + $0x38] sm:$0xff]
  %v5242 = vld [vmem:[%s1 + $0x40] sm:$0xff]
  %5244 = vset.pattern.permute.xlu0 0
  %5245 = vperm.xlu0 %5244, %v5234
  %v5246 = vpop.permute.xlu0 %5245
  %5249 = vset.pattern.permute.xlu0 0
  %5250 = vperm.xlu0 %5249, %v5235
  %v5251 = vpop.permute.xlu0 %5250
  %5254 = vset.pattern.permute.xlu0 0
  %5255 = vperm.xlu0 %5254, %v5236
  %v5256 = vpop.permute.xlu0 %5255
  %5259 = vset.pattern.permute.xlu0 0
  %5260 = vperm.xlu0 %5259, %v5237
  %v5261 = vpop.permute.xlu0 %5260
  %5264 = vset.pattern.permute.xlu0 0
  %5265 = vperm.xlu0 %5264, %v5238
  %v5266 = vpop.permute.xlu0 %5265
  %5269 = vset.pattern.permute.xlu0 0
  %5270 = vperm.xlu0 %5269, %v5239
  %v5271 = vpop.permute.xlu0 %5270
  %5274 = vset.pattern.permute.xlu0 0
  %5275 = vperm.xlu0 %5274, %v5240
  %v5276 = vpop.permute.xlu0 %5275
  %5279 = vset.pattern.permute.xlu0 0
  %5280 = vperm.xlu0 %5279, %v5241
  %v5281 = vpop.permute.xlu0 %5280
  %5284 = vset.pattern.permute.xlu0 0
  %5285 = vperm.xlu0 %5284, %v5242
  %v5286 = vpop.permute.xlu0 %5285
  %v5288 = vmul.f32 %v5225, %v5246
  %v5289 = vmul.f32 %v5226, %v5251
  %v5290 = vmul.f32 %v5227, %v5256
  %v5291 = vmul.f32 %v5228, %v5261
  %v5292 = vmul.f32 %v5229, %v5266
  %v5293 = vmul.f32 %v5230, %v5271
  %v5294 = vmul.f32 %v5231, %v5276
  %v5295 = vmul.f32 %v5232, %v5281
  %v5296 = vmul.f32 %v5233, %v5286
  %v5297 = vpack.c.bf16 %v5288, %v5288
  %v5298 = vpack.c.bf16 %v5289, %v5289
  %v5299 = vpack.c.bf16 %v5290, %v5290
  %v5300 = vpack.c.bf16 %v5291, %v5291
  %v5301 = vpack.c.bf16 %v5292, %v5292
  %v5302 = vpack.c.bf16 %v5293, %v5293
  %v5303 = vpack.c.bf16 %v5294, %v5294
  %v5304 = vpack.c.bf16 %v5295, %v5295
  %v5305 = vpack.c.bf16 %v5296, %v5296
  %v5306 = vld [vmem:[#allocation2 + $0x4] sm:$0xff]
  %v5307 = vld [vmem:[#allocation2 + $0xc] sm:$0xff]
  %v5308 = vld [vmem:[#allocation2 + $0x14] sm:$0xff]
  %v5309 = vld [vmem:[#allocation2 + $0x1c] sm:$0xff]
  %v5310 = vld [vmem:[#allocation2 + $0x24] sm:$0xff]
  %v5311 = vld [vmem:[#allocation2 + $0x2c] sm:$0xff]
  %v5312 = vld [vmem:[#allocation2 + $0x34] sm:$0xff]
  %v5313 = vld [vmem:[#allocation2 + $0x3c] sm:$0xff]
  %v5314 = vld [vmem:[#allocation2 + $0x44] sm:$0xff]
  %v5315 = vld [vmem:[%s199] sm:$0xff]
  %v5316 = vld [vmem:[%s199 + $0x8] sm:$0xff]
  %v5317 = vld [vmem:[%s199 + $0x10] sm:$0xff]
  %v5318 = vld [vmem:[%s199 + $0x18] sm:$0xff]
  %v5319 = vld [vmem:[%s199 + $0x20] sm:$0xff]
  %v5320 = vld [vmem:[%s199 + $0x28] sm:$0xff]
  %v5321 = vld [vmem:[%s199 + $0x30] sm:$0xff]
  %v5322 = vld [vmem:[%s199 + $0x38] sm:$0xff]
  %v5323 = vld [vmem:[%s199 + $0x40] sm:$0xff]
  %5325 = vset.pattern.permute.xlu0 0
  %5326 = vperm.xlu0 %5325, %v5315
  %v5327 = vpop.permute.xlu0 %5326
  %5330 = vset.pattern.permute.xlu0 0
  %5331 = vperm.xlu0 %5330, %v5316
  %v5332 = vpop.permute.xlu0 %5331
  %5335 = vset.pattern.permute.xlu0 0
  %5336 = vperm.xlu0 %5335, %v5317
  %v5337 = vpop.permute.xlu0 %5336
  %5340 = vset.pattern.permute.xlu0 0
  %5341 = vperm.xlu0 %5340, %v5318
  %v5342 = vpop.permute.xlu0 %5341
  %5345 = vset.pattern.permute.xlu0 0
  %5346 = vperm.xlu0 %5345, %v5319
  %v5347 = vpop.permute.xlu0 %5346
  %5350 = vset.pattern.permute.xlu0 0
  %5351 = vperm.xlu0 %5350, %v5320
  %v5352 = vpop.permute.xlu0 %5351
  %5355 = vset.pattern.permute.xlu0 0
  %5356 = vperm.xlu0 %5355, %v5321
  %v5357 = vpop.permute.xlu0 %5356
  %5360 = vset.pattern.permute.xlu0 0
  %5361 = vperm.xlu0 %5360, %v5322
  %v5362 = vpop.permute.xlu0 %5361
  %5365 = vset.pattern.permute.xlu0 0
  %5366 = vperm.xlu0 %5365, %v5323
  %v5367 = vpop.permute.xlu0 %5366
  %v5369 = vmul.f32 %v5306, %v5327
  %v5370 = vmul.f32 %v5307, %v5332
  %v5371 = vmul.f32 %v5308, %v5337
  %v5372 = vmul.f32 %v5309, %v5342
  %v5373 = vmul.f32 %v5310, %v5347
  %v5374 = vmul.f32 %v5311, %v5352
  %v5375 = vmul.f32 %v5312, %v5357
  %v5376 = vmul.f32 %v5313, %v5362
  %v5377 = vmul.f32 %v5314, %v5367
  %v5378 = vpack.c.bf16 %v5369, %v5369
  %v5379 = vpack.c.bf16 %v5370, %v5370
  %v5380 = vpack.c.bf16 %v5371, %v5371
  %v5381 = vpack.c.bf16 %v5372, %v5372
  %v5382 = vpack.c.bf16 %v5373, %v5373
  %v5383 = vpack.c.bf16 %v5374, %v5374
  %v5384 = vpack.c.bf16 %v5375, %v5375
  %v5385 = vpack.c.bf16 %v5376, %v5376
  %v5386 = vpack.c.bf16 %v5377, %v5377
  %v5387 = vld [vmem:[#allocation2 + $0x5] sm:$0xff]
  %v5388 = vld [vmem:[#allocation2 + $0xd] sm:$0xff]
  %v5389 = vld [vmem:[#allocation2 + $0x15] sm:$0xff]
  %v5390 = vld [vmem:[#allocation2 + $0x1d] sm:$0xff]
  %v5391 = vld [vmem:[#allocation2 + $0x25] sm:$0xff]
  %v5392 = vld [vmem:[#allocation2 + $0x2d] sm:$0xff]
  %v5393 = vld [vmem:[#allocation2 + $0x35] sm:$0xff]
  %v5394 = vld [vmem:[#allocation2 + $0x3d] sm:$0xff]
  %v5395 = vld [vmem:[#allocation2 + $0x45] sm:$0xff]
  %v5396 = vld [vmem:[%s281] sm:$0xff]
  %v5397 = vld [vmem:[%s281 + $0x8] sm:$0xff]
  %v5398 = vld [vmem:[%s281 + $0x10] sm:$0xff]
  %v5399 = vld [vmem:[%s281 + $0x18] sm:$0xff]
  %v5400 = vld [vmem:[%s281 + $0x20] sm:$0xff]
  %v5401 = vld [vmem:[%s281 + $0x28] sm:$0xff]
  %v5402 = vld [vmem:[%s281 + $0x30] sm:$0xff]
  %v5403 = vld [vmem:[%s281 + $0x38] sm:$0xff]
  %v5404 = vld [vmem:[%s281 + $0x40] sm:$0xff]
  %5406 = vset.pattern.permute.xlu0 0
  %5407 = vperm.xlu0 %5406, %v5396
  %v5408 = vpop.permute.xlu0 %5407
  %5411 = vset.pattern.permute.xlu0 0
  %5412 = vperm.xlu0 %5411, %v5397
  %v5413 = vpop.permute.xlu0 %5412
  %5416 = vset.pattern.permute.xlu0 0
  %5417 = vperm.xlu0 %5416, %v5398
  %v5418 = vpop.permute.xlu0 %5417
  %5421 = vset.pattern.permute.xlu0 0
  %5422 = vperm.xlu0 %5421, %v5399
  %v5423 = vpop.permute.xlu0 %5422
  %5426 = vset.pattern.permute.xlu0 0
  %5427 = vperm.xlu0 %5426, %v5400
  %v5428 = vpop.permute.xlu0 %5427
  %5431 = vset.pattern.permute.xlu0 0
  %5432 = vperm.xlu0 %5431, %v5401
  %v5433 = vpop.permute.xlu0 %5432
  %5436 = vset.pattern.permute.xlu0 0
  %5437 = vperm.xlu0 %5436, %v5402
  %v5438 = vpop.permute.xlu0 %5437
  %5441 = vset.pattern.permute.xlu0 0
  %5442 = vperm.xlu0 %5441, %v5403
  %v5443 = vpop.permute.xlu0 %5442
  %5446 = vset.pattern.permute.xlu0 0
  %5447 = vperm.xlu0 %5446, %v5404
  %v5448 = vpop.permute.xlu0 %5447
  %v5450 = vmul.f32 %v5387, %v5408
  %v5451 = vmul.f32 %v5388, %v5413
  %v5452 = vmul.f32 %v5389, %v5418
  %v5453 = vmul.f32 %v5390, %v5423
  %v5454 = vmul.f32 %v5391, %v5428
  %v5455 = vmul.f32 %v5392, %v5433
  %v5456 = vmul.f32 %v5393, %v5438
  %v5457 = vmul.f32 %v5394, %v5443
  %v5458 = vmul.f32 %v5395, %v5448
  %v5459 = vpack.c.bf16 %v5450, %v5450
  %v5460 = vpack.c.bf16 %v5451, %v5451
  %v5461 = vpack.c.bf16 %v5452, %v5452
  %v5462 = vpack.c.bf16 %v5453, %v5453
  %v5463 = vpack.c.bf16 %v5454, %v5454
  %v5464 = vpack.c.bf16 %v5455, %v5455
  %v5465 = vpack.c.bf16 %v5456, %v5456
  %v5466 = vpack.c.bf16 %v5457, %v5457
  %v5467 = vpack.c.bf16 %v5458, %v5458
  %v5468 = vld [vmem:[#allocation2 + $0x7] sm:$0xff]
  %v5469 = vld [vmem:[#allocation2 + $0xf] sm:$0xff]
  %v5470 = vld [vmem:[#allocation2 + $0x17] sm:$0xff]
  %v5471 = vld [vmem:[#allocation2 + $0x1f] sm:$0xff]
  %v5472 = vld [vmem:[#allocation2 + $0x27] sm:$0xff]
  %v5473 = vld [vmem:[#allocation2 + $0x2f] sm:$0xff]
  %v5474 = vld [vmem:[#allocation2 + $0x37] sm:$0xff]
  %v5475 = vld [vmem:[#allocation2 + $0x3f] sm:$0xff]
  %v5476 = vld [vmem:[#allocation2 + $0x47] sm:$0xff]
  %v5477 = vld [vmem:[%s363] sm:$0xff]
  %v5478 = vld [vmem:[%s363 + $0x8] sm:$0xff]
  %v5479 = vld [vmem:[%s363 + $0x10] sm:$0xff]
  %v5480 = vld [vmem:[%s363 + $0x18] sm:$0xff]
  %v5481 = vld [vmem:[%s363 + $0x20] sm:$0xff]
  %v5482 = vld [vmem:[%s363 + $0x28] sm:$0xff]
  %v5483 = vld [vmem:[%s363 + $0x30] sm:$0xff]
  %v5484 = vld [vmem:[%s363 + $0x38] sm:$0xff]
  %v5485 = vld [vmem:[%s363 + $0x40] sm:$0xff]
  %5487 = vset.pattern.permute.xlu0 0
  %5488 = vperm.xlu0 %5487, %v5477
  %v5489 = vpop.permute.xlu0 %5488
  %5492 = vset.pattern.permute.xlu0 0
  %5493 = vperm.xlu0 %5492, %v5478
  %v5494 = vpop.permute.xlu0 %5493
  %5497 = vset.pattern.permute.xlu0 0
  %5498 = vperm.xlu0 %5497, %v5479
  %v5499 = vpop.permute.xlu0 %5498
  %5502 = vset.pattern.permute.xlu0 0
  %5503 = vperm.xlu0 %5502, %v5480
  %v5504 = vpop.permute.xlu0 %5503
  %5507 = vset.pattern.permute.xlu0 0
  %5508 = vperm.xlu0 %5507, %v5481
  %v5509 = vpop.permute.xlu0 %5508
  %5512 = vset.pattern.permute.xlu0 0
  %5513 = vperm.xlu0 %5512, %v5482
  %v5514 = vpop.permute.xlu0 %5513
  %5517 = vset.pattern.permute.xlu0 0
  %5518 = vperm.xlu0 %5517, %v5483
  %v5519 = vpop.permute.xlu0 %5518
  %5522 = vset.pattern.permute.xlu0 0
  %5523 = vperm.xlu0 %5522, %v5484
  %v5524 = vpop.permute.xlu0 %5523
  %5527 = vset.pattern.permute.xlu0 0
  %5528 = vperm.xlu0 %5527, %v5485
  %v5529 = vpop.permute.xlu0 %5528
  %v5531 = vmul.f32 %v5468, %v5489
  %v5532 = vmul.f32 %v5469, %v5494
  %v5533 = vmul.f32 %v5470, %v5499
  %v5534 = vmul.f32 %v5471, %v5504
  %v5535 = vmul.f32 %v5472, %v5509
  %v5536 = vmul.f32 %v5473, %v5514
  %v5537 = vmul.f32 %v5474, %v5519
  %v5538 = vmul.f32 %v5475, %v5524
  %v5539 = vmul.f32 %v5476, %v5529
  %v5540 = vpack.c.bf16 %v5531, %v5531
  %v5541 = vpack.c.bf16 %v5532, %v5532
  %v5542 = vpack.c.bf16 %v5533, %v5533
  %v5543 = vpack.c.bf16 %v5534, %v5534
  %v5544 = vpack.c.bf16 %v5535, %v5535
  %v5545 = vpack.c.bf16 %v5536, %v5536
  %v5546 = vpack.c.bf16 %v5537, %v5537
  %v5547 = vpack.c.bf16 %v5538, %v5538
  %v5548 = vpack.c.bf16 %v5539, %v5539
  %v5549 = vld [vmem:[#allocation2 + $0x8] sm:$0xff]
  %v5550 = vld [vmem:[#allocation2 + $0x10] sm:$0xff]
  %v5551 = vld [vmem:[#allocation2 + $0x18] sm:$0xff]
  %v5552 = vld [vmem:[#allocation2 + $0x20] sm:$0xff]
  %v5553 = vld [vmem:[#allocation2 + $0x28] sm:$0xff]
  %v5554 = vld [vmem:[#allocation2 + $0x30] sm:$0xff]
  %v5555 = vld [vmem:[#allocation2 + $0x38] sm:$0xff]
  %v5556 = vld [vmem:[#allocation2 + $0x40] sm:$0xff]
  %v5557 = vld [vmem:[#allocation2 + $0x48] sm:$0xff]
  %v5558 = vpack.c.bf16 %v5549, %v5549
  %v5559 = vpack.c.bf16 %v5550, %v5550
  %v5560 = vpack.c.bf16 %v5551, %v5551
  %v5561 = vpack.c.bf16 %v5552, %v5552
  %v5562 = vpack.c.bf16 %v5553, %v5553
  %v5563 = vpack.c.bf16 %v5554, %v5554
  %v5564 = vpack.c.bf16 %v5555, %v5555
  %v5565 = vpack.c.bf16 %v5556, %v5556
  %v5566 = vpack.c.bf16 %v5557, %v5557
  %v5567 = vld [vmem:[#allocation2 + $0x9] sm:$0xff]
  %v5568 = vld [vmem:[#allocation2 + $0x11] sm:$0xff]
  %v5569 = vld [vmem:[#allocation2 + $0x19] sm:$0xff]
  %v5570 = vld [vmem:[#allocation2 + $0x21] sm:$0xff]
  %v5571 = vld [vmem:[#allocation2 + $0x29] sm:$0xff]
  %v5572 = vld [vmem:[#allocation2 + $0x31] sm:$0xff]
  %v5573 = vld [vmem:[#allocation2 + $0x39] sm:$0xff]
  %v5574 = vld [vmem:[#allocation2 + $0x41] sm:$0xff]
  %v5575 = vld [vmem:[#allocation2 + $0x49] sm:$0xff]
  %v5576 = vld [vmem:[%s463] sm:$0xff]
  %v5577 = vld [vmem:[%s463 + $0x8] sm:$0xff]
  %v5578 = vld [vmem:[%s463 + $0x10] sm:$0xff]
  %v5579 = vld [vmem:[%s463 + $0x18] sm:$0xff]
  %v5580 = vld [vmem:[%s463 + $0x20] sm:$0xff]
  %v5581 = vld [vmem:[%s463 + $0x28] sm:$0xff]
  %v5582 = vld [vmem:[%s463 + $0x30] sm:$0xff]
  %v5583 = vld [vmem:[%s463 + $0x38] sm:$0xff]
  %v5584 = vld [vmem:[%s463 + $0x40] sm:$0xff]
  %5586 = vset.pattern.permute.xlu0 0
  %5587 = vperm.xlu0 %5586, %v5576
  %v5588 = vpop.permute.xlu0 %5587
  %5591 = vset.pattern.permute.xlu0 0
  %5592 = vperm.xlu0 %5591, %v5577
  %v5593 = vpop.permute.xlu0 %5592
  %5596 = vset.pattern.permute.xlu0 0
  %5597 = vperm.xlu0 %5596, %v5578
  %v5598 = vpop.permute.xlu0 %5597
  %5601 = vset.pattern.permute.xlu0 0
  %5602 = vperm.xlu0 %5601, %v5579
  %v5603 = vpop.permute.xlu0 %5602
  %5606 = vset.pattern.permute.xlu0 0
  %5607 = vperm.xlu0 %5606, %v5580
  %v5608 = vpop.permute.xlu0 %5607
  %5611 = vset.pattern.permute.xlu0 0
  %5612 = vperm.xlu0 %5611, %v5581
  %v5613 = vpop.permute.xlu0 %5612
  %5616 = vset.pattern.permute.xlu0 0
  %5617 = vperm.xlu0 %5616, %v5582
  %v5618 = vpop.permute.xlu0 %5617
  %5621 = vset.pattern.permute.xlu0 0
  %5622 = vperm.xlu0 %5621, %v5583
  %v5623 = vpop.permute.xlu0 %5622
  %5626 = vset.pattern.permute.xlu0 0
  %5627 = vperm.xlu0 %5626, %v5584
  %v5628 = vpop.permute.xlu0 %5627
  %v5630 = vmul.f32 %v5567, %v5588
  %v5631 = vmul.f32 %v5568, %v5593
  %v5632 = vmul.f32 %v5569, %v5598
  %v5633 = vmul.f32 %v5570, %v5603
  %v5634 = vmul.f32 %v5571, %v5608
  %v5635 = vmul.f32 %v5572, %v5613
  %v5636 = vmul.f32 %v5573, %v5618
  %v5637 = vmul.f32 %v5574, %v5623
  %v5638 = vmul.f32 %v5575, %v5628
  %v5639 = vpack.c.bf16 %v5630, %v5630
  %v5640 = vpack.c.bf16 %v5631, %v5631
  %v5641 = vpack.c.bf16 %v5632, %v5632
  %v5642 = vpack.c.bf16 %v5633, %v5633
  %v5643 = vpack.c.bf16 %v5634, %v5634
  %v5644 = vpack.c.bf16 %v5635, %v5635
  %v5645 = vpack.c.bf16 %v5636, %v5636
  %v5646 = vpack.c.bf16 %v5637, %v5637
  %v5647 = vpack.c.bf16 %v5638, %v5638
  %v5648 = vld [vmem:[#allocation2 + $0xb] sm:$0xff]
  %v5649 = vld [vmem:[#allocation2 + $0x13] sm:$0xff]
  %v5650 = vld [vmem:[#allocation2 + $0x1b] sm:$0xff]
  %v5651 = vld [vmem:[#allocation2 + $0x23] sm:$0xff]
  %v5652 = vld [vmem:[#allocation2 + $0x2b] sm:$0xff]
  %v5653 = vld [vmem:[#allocation2 + $0x33] sm:$0xff]
  %v5654 = vld [vmem:[#allocation2 + $0x3b] sm:$0xff]
  %v5655 = vld [vmem:[#allocation2 + $0x43] sm:$0xff]
  %v5656 = vld [vmem:[#allocation2 + $0x4b] sm:$0xff]
  %v5657 = vld [vmem:[%s545] sm:$0xff]
  %v5658 = vld [vmem:[%s545 + $0x8] sm:$0xff]
  %v5659 = vld [vmem:[%s545 + $0x10] sm:$0xff]
  %v5660 = vld [vmem:[%s545 + $0x18] sm:$0xff]
  %v5661 = vld [vmem:[%s545 + $0x20] sm:$0xff]
  %v5662 = vld [vmem:[%s545 + $0x28] sm:$0xff]
  %v5663 = vld [vmem:[%s545 + $0x30] sm:$0xff]
  %v5664 = vld [vmem:[%s545 + $0x38] sm:$0xff]
  %v5665 = vld [vmem:[%s545 + $0x40] sm:$0xff]
  %5667 = vset.pattern.permute.xlu0 0
  %5668 = vperm.xlu0 %5667, %v5657
  %v5669 = vpop.permute.xlu0 %5668
  %5672 = vset.pattern.permute.xlu0 0
  %5673 = vperm.xlu0 %5672, %v5658
  %v5674 = vpop.permute.xlu0 %5673
  %5677 = vset.pattern.permute.xlu0 0
  %5678 = vperm.xlu0 %5677, %v5659
  %v5679 = vpop.permute.xlu0 %5678
  %5682 = vset.pattern.permute.xlu0 0
  %5683 = vperm.xlu0 %5682, %v5660
  %v5684 = vpop.permute.xlu0 %5683
  %5687 = vset.pattern.permute.xlu0 0
  %5688 = vperm.xlu0 %5687, %v5661
  %v5689 = vpop.permute.xlu0 %5688
  %5692 = vset.pattern.permute.xlu0 0
  %5693 = vperm.xlu0 %5692, %v5662
  %v5694 = vpop.permute.xlu0 %5693
  %5697 = vset.pattern.permute.xlu0 0
  %5698 = vperm.xlu0 %5697, %v5663
  %v5699 = vpop.permute.xlu0 %5698
  %5702 = vset.pattern.permute.xlu0 0
  %5703 = vperm.xlu0 %5702, %v5664
  %v5704 = vpop.permute.xlu0 %5703
  %5707 = vset.pattern.permute.xlu0 0
  %5708 = vperm.xlu0 %5707, %v5665
  %v5709 = vpop.permute.xlu0 %5708
  %v5711 = vmul.f32 %v5648, %v5669
  %v5712 = vmul.f32 %v5649, %v5674
  %v5713 = vmul.f32 %v5650, %v5679
  %v5714 = vmul.f32 %v5651, %v5684
  %v5715 = vmul.f32 %v5652, %v5689
  %v5716 = vmul.f32 %v5653, %v5694
  %v5717 = vmul.f32 %v5654, %v5699
  %v5718 = vmul.f32 %v5655, %v5704
  %v5719 = vmul.f32 %v5656, %v5709
  %v5720 = vpack.c.bf16 %v5711, %v5711
  %v5721 = vpack.c.bf16 %v5712, %v5712
  %v5722 = vpack.c.bf16 %v5713, %v5713
  %v5723 = vpack.c.bf16 %v5714, %v5714
  %v5724 = vpack.c.bf16 %v5715, %v5715
  %v5725 = vpack.c.bf16 %v5716, %v5716
  %v5726 = vpack.c.bf16 %v5717, %v5717
  %v5727 = vpack.c.bf16 %v5718, %v5718
  %v5728 = vpack.c.bf16 %v5719, %v5719
  %v5729 = vld [vmem:[#allocation2 + $0xc] sm:$0xff]
  %v5730 = vld [vmem:[#allocation2 + $0x14] sm:$0xff]
  %v5731 = vld [vmem:[#allocation2 + $0x1c] sm:$0xff]
  %v5732 = vld [vmem:[#allocation2 + $0x24] sm:$0xff]
  %v5733 = vld [vmem:[#allocation2 + $0x2c] sm:$0xff]
  %v5734 = vld [vmem:[#allocation2 + $0x34] sm:$0xff]
  %v5735 = vld [vmem:[#allocation2 + $0x3c] sm:$0xff]
  %v5736 = vld [vmem:[#allocation2 + $0x44] sm:$0xff]
  %v5737 = vld [vmem:[#allocation2 + $0x4c] sm:$0xff]
  %v5738 = vld [vmem:[%s627] sm:$0xff]
  %v5739 = vld [vmem:[%s627 + $0x8] sm:$0xff]
  %v5740 = vld [vmem:[%s627 + $0x10] sm:$0xff]
  %v5741 = vld [vmem:[%s627 + $0x18] sm:$0xff]
  %v5742 = vld [vmem:[%s627 + $0x20] sm:$0xff]
  %v5743 = vld [vmem:[%s627 + $0x28] sm:$0xff]
  %v5744 = vld [vmem:[%s627 + $0x30] sm:$0xff]
  %v5745 = vld [vmem:[%s627 + $0x38] sm:$0xff]
  %v5746 = vld [vmem:[%s627 + $0x40] sm:$0xff]
  %5748 = vset.pattern.permute.xlu0 0
  %5749 = vperm.xlu0 %5748, %v5738
  %v5750 = vpop.permute.xlu0 %5749
  %5753 = vset.pattern.permute.xlu0 0
  %5754 = vperm.xlu0 %5753, %v5739
  %v5755 = vpop.permute.xlu0 %5754
  %5758 = vset.pattern.permute.xlu0 0
  %5759 = vperm.xlu0 %5758, %v5740
  %v5760 = vpop.permute.xlu0 %5759
  %5763 = vset.pattern.permute.xlu0 0
  %5764 = vperm.xlu0 %5763, %v5741
  %v5765 = vpop.permute.xlu0 %5764
  %5768 = vset.pattern.permute.xlu0 0
  %5769 = vperm.xlu0 %5768, %v5742
  %v5770 = vpop.permute.xlu0 %5769
  %5773 = vset.pattern.permute.xlu0 0
  %5774 = vperm.xlu0 %5773, %v5743
  %v5775 = vpop.permute.xlu0 %5774
  %5778 = vset.pattern.permute.xlu0 0
  %5779 = vperm.xlu0 %5778, %v5744
  %v5780 = vpop.permute.xlu0 %5779
  %5783 = vset.pattern.permute.xlu0 0
  %5784 = vperm.xlu0 %5783, %v5745
  %v5785 = vpop.permute.xlu0 %5784
  %5788 = vset.pattern.permute.xlu0 0
  %5789 = vperm.xlu0 %5788, %v5746
  %v5790 = vpop.permute.xlu0 %5789
  %v5792 = vmul.f32 %v5729, %v5750
  %v5793 = vmul.f32 %v5730, %v5755
  %v5794 = vmul.f32 %v5731, %v5760
  %v5795 = vmul.f32 %v5732, %v5765
  %v5796 = vmul.f32 %v5733, %v5770
  %v5797 = vmul.f32 %v5734, %v5775
  %v5798 = vmul.f32 %v5735, %v5780
  %v5799 = vmul.f32 %v5736, %v5785
  %v5800 = vmul.f32 %v5737, %v5790
  %v5801 = vpack.c.bf16 %v5792, %v5792
  %v5802 = vpack.c.bf16 %v5793, %v5793
  %v5803 = vpack.c.bf16 %v5794, %v5794
  %v5804 = vpack.c.bf16 %v5795, %v5795
  %v5805 = vpack.c.bf16 %v5796, %v5796
  %v5806 = vpack.c.bf16 %v5797, %v5797
  %v5807 = vpack.c.bf16 %v5798, %v5798
  %v5808 = vpack.c.bf16 %v5799, %v5799
  %v5809 = vpack.c.bf16 %v5800, %v5800
  %v5810 = vld [vmem:[#allocation2 + $0xd] sm:$0xff]
  %v5811 = vld [vmem:[#allocation2 + $0x15] sm:$0xff]
  %v5812 = vld [vmem:[#allocation2 + $0x1d] sm:$0xff]
  %v5813 = vld [vmem:[#allocation2 + $0x25] sm:$0xff]
  %v5814 = vld [vmem:[#allocation2 + $0x2d] sm:$0xff]
  %v5815 = vld [vmem:[#allocation2 + $0x35] sm:$0xff]
  %v5816 = vld [vmem:[#allocation2 + $0x3d] sm:$0xff]
  %v5817 = vld [vmem:[#allocation2 + $0x45] sm:$0xff]
  %v5818 = vld [vmem:[#allocation2 + $0x4d] sm:$0xff]
  %v5819 = vld [vmem:[%s709] sm:$0xff]
  %v5820 = vld [vmem:[%s709 + $0x8] sm:$0xff]
  %v5821 = vld [vmem:[%s709 + $0x10] sm:$0xff]
  %v5822 = vld [vmem:[%s709 + $0x18] sm:$0xff]
  %v5823 = vld [vmem:[%s709 + $0x20] sm:$0xff]
  %v5824 = vld [vmem:[%s709 + $0x28] sm:$0xff]
  %v5825 = vld [vmem:[%s709 + $0x30] sm:$0xff]
  %v5826 = vld [vmem:[%s709 + $0x38] sm:$0xff]
  %v5827 = vld [vmem:[%s709 + $0x40] sm:$0xff]
  %5829 = vset.pattern.permute.xlu0 0
  %5830 = vperm.xlu0 %5829, %v5819
  %v5831 = vpop.permute.xlu0 %5830
  %5834 = vset.pattern.permute.xlu0 0
  %5835 = vperm.xlu0 %5834, %v5820
  %v5836 = vpop.permute.xlu0 %5835
  %5839 = vset.pattern.permute.xlu0 0
  %5840 = vperm.xlu0 %5839, %v5821
  %v5841 = vpop.permute.xlu0 %5840
  %5844 = vset.pattern.permute.xlu0 0
  %5845 = vperm.xlu0 %5844, %v5822
  %v5846 = vpop.permute.xlu0 %5845
  %5849 = vset.pattern.permute.xlu0 0
  %5850 = vperm.xlu0 %5849, %v5823
  %v5851 = vpop.permute.xlu0 %5850
  %5854 = vset.pattern.permute.xlu0 0
  %5855 = vperm.xlu0 %5854, %v5824
  %v5856 = vpop.permute.xlu0 %5855
  %5859 = vset.pattern.permute.xlu0 0
  %5860 = vperm.xlu0 %5859, %v5825
  %v5861 = vpop.permute.xlu0 %5860
  %5864 = vset.pattern.permute.xlu0 0
  %5865 = vperm.xlu0 %5864, %v5826
  %v5866 = vpop.permute.xlu0 %5865
  %5869 = vset.pattern.permute.xlu0 0
  %5870 = vperm.xlu0 %5869, %v5827
  %v5871 = vpop.permute.xlu0 %5870
  %v5873 = vmul.f32 %v5810, %v5831
  %v5874 = vmul.f32 %v5811, %v5836
  %v5875 = vmul.f32 %v5812, %v5841
  %v5876 = vmul.f32 %v5813, %v5846
  %v5877 = vmul.f32 %v5814, %v5851
  %v5878 = vmul.f32 %v5815, %v5856
  %v5879 = vmul.f32 %v5816, %v5861
  %v5880 = vmul.f32 %v5817, %v5866
  %v5881 = vmul.f32 %v5818, %v5871
  %v5882 = vpack.c.bf16 %v5873, %v5873
  %v5883 = vpack.c.bf16 %v5874, %v5874
  %v5884 = vpack.c.bf16 %v5875, %v5875
  %v5885 = vpack.c.bf16 %v5876, %v5876
  %v5886 = vpack.c.bf16 %v5877, %v5877
  %v5887 = vpack.c.bf16 %v5878, %v5878
  %v5888 = vpack.c.bf16 %v5879, %v5879
  %v5889 = vpack.c.bf16 %v5880, %v5880
  %v5890 = vpack.c.bf16 %v5881, %v5881
  %v5900 = vunpack.c.l.b16 %v5297
  %v5901 = vunpack.c.l.b16 %v5298
  %v5902 = vunpack.c.l.b16 %v5299
  %v5903 = vunpack.c.l.b16 %v5300
  %v5904 = vunpack.c.l.b16 %v5301
  %v5905 = vunpack.c.l.b16 %v5302
  %v5906 = vunpack.c.l.b16 %v5303
  %v5907 = vunpack.c.l.b16 %v5304
  %v5908 = vunpack.c.l.b16 %v5305
  %v5909 = vpack.c.b16 %v5901, %v5900
  %v5910 = vpack.c.b16 %v5903, %v5902
  %v5911 = vpack.c.b16 %v5905, %v5904
  %v5912 = vpack.c.b16 %v5907, %v5906
  %v5913 = vpack.c.b16 %v5908, %v5908
  %v5923 = vunpack.c.l.b16 %v5378
  %v5924 = vunpack.c.l.b16 %v5379
  %v5925 = vunpack.c.l.b16 %v5380
  %v5926 = vunpack.c.l.b16 %v5381
  %v5927 = vunpack.c.l.b16 %v5382
  %v5928 = vunpack.c.l.b16 %v5383
  %v5929 = vunpack.c.l.b16 %v5384
  %v5930 = vunpack.c.l.b16 %v5385
  %v5931 = vunpack.c.l.b16 %v5386
  %v5932 = vpack.c.b16 %v5924, %v5923
  %v5933 = vpack.c.b16 %v5926, %v5925
  %v5934 = vpack.c.b16 %v5928, %v5927
  %v5935 = vpack.c.b16 %v5930, %v5929
  %v5936 = vpack.c.b16 %v5931, %v5931
  %5937 = vrot.lane.b32.xlu0 %v5932, 16
  %v5938 = vpop.permute.xlu0 %5937
  %5939 = vrot.lane.b32.xlu0 %v5933, 16
  %v5940 = vpop.permute.xlu0 %5939
  %5941 = vrot.lane.b32.xlu0 %v5934, 16
  %v5942 = vpop.permute.xlu0 %5941
  %5943 = vrot.lane.b32.xlu0 %v5935, 16
  %v5944 = vpop.permute.xlu0 %5943
  %5945 = vrot.lane.b32.xlu0 %v5936, 16
  %v5946 = vpop.permute.xlu0 %5945
  %v5956 = vunpack.c.l.b16 %v5459
  %v5957 = vunpack.c.l.b16 %v5460
  %v5958 = vunpack.c.l.b16 %v5461
  %v5959 = vunpack.c.l.b16 %v5462
  %v5960 = vunpack.c.l.b16 %v5463
  %v5961 = vunpack.c.l.b16 %v5464
  %v5962 = vunpack.c.l.b16 %v5465
  %v5963 = vunpack.c.l.b16 %v5466
  %v5964 = vunpack.c.l.b16 %v5467
  %v5965 = vpack.c.b16 %v5957, %v5956
  %v5966 = vpack.c.b16 %v5959, %v5958
  %v5967 = vpack.c.b16 %v5961, %v5960
  %v5968 = vpack.c.b16 %v5963, %v5962
  %v5969 = vpack.c.b16 %v5964, %v5964
  %5970 = vrot.lane.b32.xlu0 %v5965, 32
  %v5971 = vpop.permute.xlu0 %5970
  %5972 = vrot.lane.b32.xlu0 %v5966, 32
  %v5973 = vpop.permute.xlu0 %5972
  %5974 = vrot.lane.b32.xlu0 %v5967, 32
  %v5975 = vpop.permute.xlu0 %5974
  %5976 = vrot.lane.b32.xlu0 %v5968, 32
  %v5977 = vpop.permute.xlu0 %5976
  %5978 = vrot.lane.b32.xlu0 %v5969, 32
  %v5979 = vpop.permute.xlu0 %5978
  %v5989 = vunpack.c.l.b16 %v5540
  %v5990 = vunpack.c.l.b16 %v5541
  %v5991 = vunpack.c.l.b16 %v5542
  %v5992 = vunpack.c.l.b16 %v5543
  %v5993 = vunpack.c.l.b16 %v5544
  %v5994 = vunpack.c.l.b16 %v5545
  %v5995 = vunpack.c.l.b16 %v5546
  %v5996 = vunpack.c.l.b16 %v5547
  %v5997 = vunpack.c.l.b16 %v5548
  %v5998 = vpack.c.b16 %v5990, %v5989
  %v5999 = vpack.c.b16 %v5992, %v5991
  %v6000 = vpack.c.b16 %v5994, %v5993
  %v6001 = vpack.c.b16 %v5996, %v5995
  %v6002 = vpack.c.b16 %v5997, %v5997
  %6003 = vrot.lane.b32.xlu0 %v5998, 48
  %v6004 = vpop.permute.xlu0 %6003
  %6005 = vrot.lane.b32.xlu0 %v5999, 48
  %v6006 = vpop.permute.xlu0 %6005
  %6007 = vrot.lane.b32.xlu0 %v6000, 48
  %v6008 = vpop.permute.xlu0 %6007
  %6009 = vrot.lane.b32.xlu0 %v6001, 48
  %v6010 = vpop.permute.xlu0 %6009
  %6011 = vrot.lane.b32.xlu0 %v6002, 48
  %v6012 = vpop.permute.xlu0 %6011
  %v6022 = vunpack.c.l.b16 %v5558
  %v6023 = vunpack.c.l.b16 %v5559
  %v6024 = vunpack.c.l.b16 %v5560
  %v6025 = vunpack.c.l.b16 %v5561
  %v6026 = vunpack.c.l.b16 %v5562
  %v6027 = vunpack.c.l.b16 %v5563
  %v6028 = vunpack.c.l.b16 %v5564
  %v6029 = vunpack.c.l.b16 %v5565
  %v6030 = vunpack.c.l.b16 %v5566
  %v6031 = vpack.c.b16 %v6023, %v6022
  %v6032 = vpack.c.b16 %v6025, %v6024
  %v6033 = vpack.c.b16 %v6027, %v6026
  %v6034 = vpack.c.b16 %v6029, %v6028
  %v6035 = vpack.c.b16 %v6030, %v6030
  %6036 = vrot.lane.b32.xlu0 %v6031, 64
  %v6037 = vpop.permute.xlu0 %6036
  %6038 = vrot.lane.b32.xlu0 %v6032, 64
  %v6039 = vpop.permute.xlu0 %6038
  %6040 = vrot.lane.b32.xlu0 %v6033, 64
  %v6041 = vpop.permute.xlu0 %6040
  %6042 = vrot.lane.b32.xlu0 %v6034, 64
  %v6043 = vpop.permute.xlu0 %6042
  %6044 = vrot.lane.b32.xlu0 %v6035, 64
  %v6045 = vpop.permute.xlu0 %6044
  %v6055 = vunpack.c.l.b16 %v5639
  %v6056 = vunpack.c.l.b16 %v5640
  %v6057 = vunpack.c.l.b16 %v5641
  %v6058 = vunpack.c.l.b16 %v5642
  %v6059 = vunpack.c.l.b16 %v5643
  %v6060 = vunpack.c.l.b16 %v5644
  %v6061 = vunpack.c.l.b16 %v5645
  %v6062 = vunpack.c.l.b16 %v5646
  %v6063 = vunpack.c.l.b16 %v5647
  %v6064 = vpack.c.b16 %v6056, %v6055
  %v6065 = vpack.c.b16 %v6058, %v6057
  %v6066 = vpack.c.b16 %v6060, %v6059
  %v6067 = vpack.c.b16 %v6062, %v6061
  %v6068 = vpack.c.b16 %v6063, %v6063
  %6069 = vrot.lane.b32.xlu0 %v6064, 80
  %v6070 = vpop.permute.xlu0 %6069
  %6071 = vrot.lane.b32.xlu0 %v6065, 80
  %v6072 = vpop.permute.xlu0 %6071
  %6073 = vrot.lane.b32.xlu0 %v6066, 80
  %v6074 = vpop.permute.xlu0 %6073
  %6075 = vrot.lane.b32.xlu0 %v6067, 80
  %v6076 = vpop.permute.xlu0 %6075
  %6077 = vrot.lane.b32.xlu0 %v6068, 80
  %v6078 = vpop.permute.xlu0 %6077
  %v6088 = vunpack.c.l.b16 %v5720
  %v6089 = vunpack.c.l.b16 %v5721
  %v6090 = vunpack.c.l.b16 %v5722
  %v6091 = vunpack.c.l.b16 %v5723
  %v6092 = vunpack.c.l.b16 %v5724
  %v6093 = vunpack.c.l.b16 %v5725
  %v6094 = vunpack.c.l.b16 %v5726
  %v6095 = vunpack.c.l.b16 %v5727
  %v6096 = vunpack.c.l.b16 %v5728
  %v6097 = vpack.c.b16 %v6089, %v6088
  %v6098 = vpack.c.b16 %v6091, %v6090
  %v6099 = vpack.c.b16 %v6093, %v6092
  %v6100 = vpack.c.b16 %v6095, %v6094
  %v6101 = vpack.c.b16 %v6096, %v6096
  %6102 = vrot.lane.b32.xlu0 %v6097, 96
  %v6103 = vpop.permute.xlu0 %6102
  %6104 = vrot.lane.b32.xlu0 %v6098, 96
  %v6105 = vpop.permute.xlu0 %6104
  %6106 = vrot.lane.b32.xlu0 %v6099, 96
  %v6107 = vpop.permute.xlu0 %6106
  %6108 = vrot.lane.b32.xlu0 %v6100, 96
  %v6109 = vpop.permute.xlu0 %6108
  %6110 = vrot.lane.b32.xlu0 %v6101, 96
  %v6111 = vpop.permute.xlu0 %6110
  %v6121 = vunpack.c.l.b16 %v5801
  %v6122 = vunpack.c.l.b16 %v5802
  %v6123 = vunpack.c.l.b16 %v5803
  %v6124 = vunpack.c.l.b16 %v5804
  %v6125 = vunpack.c.l.b16 %v5805
  %v6126 = vunpack.c.l.b16 %v5806
  %v6127 = vunpack.c.l.b16 %v5807
  %v6128 = vunpack.c.l.b16 %v5808
  %v6129 = vunpack.c.l.b16 %v5809
  %v6130 = vpack.c.b16 %v6122, %v6121
  %v6131 = vpack.c.b16 %v6124, %v6123
  %v6132 = vpack.c.b16 %v6126, %v6125
  %v6133 = vpack.c.b16 %v6128, %v6127
  %v6134 = vpack.c.b16 %v6129, %v6129
  %6135 = vrot.lane.b32.xlu0 %v6130, 112
  %v6136 = vpop.permute.xlu0 %6135
  %6137 = vrot.lane.b32.xlu0 %v6131, 112
  %v6138 = vpop.permute.xlu0 %6137
  %6139 = vrot.lane.b32.xlu0 %v6132, 112
  %v6140 = vpop.permute.xlu0 %6139
  %6141 = vrot.lane.b32.xlu0 %v6133, 112
  %v6142 = vpop.permute.xlu0 %6141
  %6143 = vrot.lane.b32.xlu0 %v6134, 112
  %v6144 = vpop.permute.xlu0 %6143
  %v6154 = vunpack.c.l.b16 %v5882
  %v6155 = vunpack.c.l.b16 %v5883
  %v6156 = vunpack.c.l.b16 %v5884
  %v6157 = vunpack.c.l.b16 %v5885
  %v6158 = vunpack.c.l.b16 %v5886
  %v6159 = vunpack.c.l.b16 %v5887
  %v6160 = vunpack.c.l.b16 %v5888
  %v6161 = vunpack.c.l.b16 %v5889
  %v6162 = vunpack.c.l.b16 %v5890
  %v6163 = vpack.c.b16 %v6155, %v6154
  %v6164 = vpack.c.b16 %v6157, %v6156
  %v6165 = vpack.c.b16 %v6159, %v6158
  %v6166 = vpack.c.b16 %v6161, %v6160
  %v6167 = vpack.c.b16 %v6162, %v6162
  %v6170 = vsel %vm36, %v5909, %v5938
  %v6173 = vsel %vm36, %v5910, %v5940
  %v6176 = vsel %vm36, %v5911, %v5942
  %v6179 = vsel %vm36, %v5912, %v5944
  %v6182 = vsel %vm36, %v5913, %v5946
  %v6184 = vsel %vm2505, %v6170, %v5971
  %v6186 = vsel %vm2505, %v6173, %v5973
  %v6188 = vsel %vm2505, %v6176, %v5975
  %v6190 = vsel %vm2505, %v6179, %v5977
  %v6192 = vsel %vm2505, %v6182, %v5979
  %v6194 = vsel %vm1166, %v6184, %v6004
  %v6196 = vsel %vm1166, %v6186, %v6006
  %v6198 = vsel %vm1166, %v6188, %v6008
  %v6200 = vsel %vm1166, %v6190, %v6010
  %v6202 = vsel %vm1166, %v6192, %v6012
  %v6204 = vsel %vm2526, %v6194, %v6037
  %v6206 = vsel %vm2526, %v6196, %v6039
  %v6208 = vsel %vm2526, %v6198, %v6041
  %v6210 = vsel %vm2526, %v6200, %v6043
  %v6212 = vsel %vm2526, %v6202, %v6045
  %v6214 = vsel %vm2537, %v6204, %v6070
  %v6216 = vsel %vm2537, %v6206, %v6072
  %v6218 = vsel %vm2537, %v6208, %v6074
  %v6220 = vsel %vm2537, %v6210, %v6076
  %v6222 = vsel %vm2537, %v6212, %v6078
  %v6224 = vsel %vm2548, %v6214, %v6103
  %v6226 = vsel %vm2548, %v6216, %v6105
  %v6228 = vsel %vm2548, %v6218, %v6107
  %v6230 = vsel %vm2548, %v6220, %v6109
  %v6232 = vsel %vm2548, %v6222, %v6111
  %v6234 = vsel %vm2559, %v6224, %v6136
  %v6237 = vsel %vm2559, %v6226, %v6138
  %v6240 = vsel %vm2559, %v6228, %v6140
  %v6243 = vsel %vm2559, %v6230, %v6142
  %v6246 = vsel %vm2559, %v6232, %v6144
  %v6266 = vunpack.c.l.b16 %v5207
  %v6267 = vunpack.c.l.b16 %v5208
  %v6268 = vunpack.c.l.b16 %v5209
  %v6269 = vunpack.c.l.b16 %v5210
  %v6270 = vunpack.c.l.b16 %v5211
  %v6271 = vunpack.c.l.b16 %v5212
  %v6272 = vunpack.c.l.b16 %v5213
  %v6273 = vunpack.c.l.b16 %v5214
  %v6274 = vunpack.c.l.b16 %v5215
  %v6275 = vunpack.c.l.b16 %v5216
  %v6276 = vunpack.c.l.b16 %v5217
  %v6277 = vunpack.c.l.b16 %v5218
  %v6278 = vunpack.c.l.b16 %v5219
  %v6279 = vunpack.c.l.b16 %v5220
  %v6280 = vunpack.c.l.b16 %v5221
  %v6281 = vunpack.c.l.b16 %v5222
  %v6282 = vunpack.c.l.b16 %v5223
  %v6283 = vunpack.c.l.b16 %v5224
  %v6284 = vpack.c.b16 %v6267, %v6266
  %v6285 = vpack.c.b16 %v6269, %v6268
  %v6286 = vpack.c.b16 %v6271, %v6270
  %v6287 = vpack.c.b16 %v6273, %v6272
  %v6288 = vpack.c.b16 %v6275, %v6274
  %v6289 = vpack.c.b16 %v6277, %v6276
  %v6290 = vpack.c.b16 %v6279, %v6278
  %v6291 = vpack.c.b16 %v6281, %v6280
  %v6292 = vpack.c.b16 %v6283, %v6282
  %v6303 = vsel %vm36, %v6163, 0
  %v6306 = vsel %vm36, %v6164, 0
  %v6309 = vsel %vm36, %v6165, 0
  %v6312 = vsel %vm36, %v6166, 0
  %v6315 = vsel %vm36, %v6167, 0
  %6317 = vmatpush.bf16.msra.mxu0 %v6291
  %6318 = vmatpush.bf16.msra.mxu0 %v6290
  %6319 = vmatpush.bf16.msra.mxu0 %v6289
  %6320 = vmatpush.bf16.msra.mxu0 %v6288
  %6321 = vmatpush.bf16.msra.mxu0 %v6287
  %6322 = vmatpush.bf16.msra.mxu0 %v6286
  %6323 = vmatpush.bf16.msra.mxu0 %v6285
  %6324 = vmatpush.bf16.msra.mxu0 %v6284
  %6325 = vmatmul.bf16.gmra.mxu0 %v6234
  %v6326 = vpop.f32.mrf.mxu0
  %v6327 = vadd.f32 0.0, %v6326
  %v6328 = vpop.f32.mrf.mxu0
  %v6329 = vadd.f32 0.0, %v6328
  %6330 = vmatmul.bf16.gmra.mxu0 %v6237
  %v6331 = vpop.f32.mrf.mxu0
  %v6332 = vadd.f32 0.0, %v6331
  %v6333 = vpop.f32.mrf.mxu0
  %v6334 = vadd.f32 0.0, %v6333
  %6335 = vmatmul.bf16.gmra.mxu0 %v6240
  %v6336 = vpop.f32.mrf.mxu0
  %v6337 = vadd.f32 0.0, %v6336
  %v6338 = vpop.f32.mrf.mxu0
  %v6339 = vadd.f32 0.0, %v6338
  %6340 = vmatmul.bf16.gmra.mxu0 %v6243
  %v6341 = vpop.f32.mrf.mxu0
  %v6342 = vadd.f32 0.0, %v6341
  %v6343 = vpop.f32.mrf.mxu0
  %v6344 = vadd.f32 0.0, %v6343
  %6345 = vmatmul.bf16.gmra.mxu0 %v6246
  %v6346 = vpop.f32.mrf.mxu0
  %v6347 = vadd.f32 0.0, %v6346
  %v6348 = vpop.f32.mrf.mxu0
  %6349 = vdwg.mxu0
  %6350 = vmatpush.bf16.msra.mxu0 0
  %6351 = vmatpush.bf16.msra.mxu0 0
  %6352 = vmatpush.bf16.msra.mxu0 0
  %6353 = vmatpush.bf16.msra.mxu0 0
  %6354 = vmatpush.bf16.msra.mxu0 0
  %6355 = vmatpush.bf16.msra.mxu0 0
  %6356 = vmatpush.bf16.msra.mxu0 0
  %6357 = vmatpush.bf16.msra.mxu0 %v6292
  %6358 = vmatmul.bf16.gmra.mxu0 %v6303
  %v6359 = vpop.f32.mrf.mxu0
  %v6360 = vadd.f32 %v6327, %v6359
  %v6361 = vpop.f32.mrf.mxu0
  %v6362 = vadd.f32 %v6329, %v6361
  %6363 = vmatmul.bf16.gmra.mxu0 %v6306
  %v6364 = vpop.f32.mrf.mxu0
  %v6365 = vadd.f32 %v6332, %v6364
  %v6366 = vpop.f32.mrf.mxu0
  %v6367 = vadd.f32 %v6334, %v6366
  %6368 = vmatmul.bf16.gmra.mxu0 %v6309
  %v6369 = vpop.f32.mrf.mxu0
  %v6370 = vadd.f32 %v6337, %v6369
  %v6371 = vpop.f32.mrf.mxu0
  %v6372 = vadd.f32 %v6339, %v6371
  %6373 = vmatmul.bf16.gmra.mxu0 %v6312
  %v6374 = vpop.f32.mrf.mxu0
  %v6375 = vadd.f32 %v6342, %v6374
  %v6376 = vpop.f32.mrf.mxu0
  %v6377 = vadd.f32 %v6344, %v6376
  %6378 = vmatmul.bf16.gmra.mxu0 %v6315
  %v6379 = vpop.f32.mrf.mxu0
  %v6380 = vadd.f32 %v6347, %v6379
  %v6381 = vpop.f32.mrf.mxu0
  %6382 = vdwg.mxu0
  %s6383 = scalar_lea.vmem %s8, 1
  %v6384 = vld [vmem:[%s6383] sm:$0x1]
  %v6386 = vperm.slane %v6384, 0
  %v6388 = vmul.f32 %v6360, %v6386
  %v6389 = vmul.f32 %v6362, %v6386
  %v6390 = vmul.f32 %v6365, %v6386
  %v6391 = vmul.f32 %v6367, %v6386
  %v6392 = vmul.f32 %v6370, %v6386
  %v6393 = vmul.f32 %v6372, %v6386
  %v6394 = vmul.f32 %v6375, %v6386
  %v6395 = vmul.f32 %v6377, %v6386
  %v6396 = vmul.f32 %v6380, %v6386
  %s6397 = scalar_lea.vmem %s9, 1
  %v6398 = vld [vmem:[%s6397] sm:$0x1]
  %v6400 = vperm.slane %v6398, 0
  %v6402 = vadd.f32 %v6388, %v6400
  %v6403 = vadd.f32 %v6389, %v6400
  %v6404 = vadd.f32 %v6390, %v6400
  %v6405 = vadd.f32 %v6391, %v6400
  %v6406 = vadd.f32 %v6392, %v6400
  %v6407 = vadd.f32 %v6393, %v6400
  %v6408 = vadd.f32 %v6394, %v6400
  %v6409 = vadd.f32 %v6395, %v6400
  %v6410 = vadd.f32 %v6396, %v6400
  %v6411 = vadd.f32 %v6402, %v3965
  %v6412 = vadd.f32 %v6403, %v3966
  %v6413 = vadd.f32 %v6404, %v3967
  %v6414 = vadd.f32 %v6405, %v3968
  %v6415 = vadd.f32 %v6406, %v3969
  %v6416 = vadd.f32 %v6407, %v3970
  %v6417 = vadd.f32 %v6408, %v3971
  %v6418 = vadd.f32 %v6409, %v3972
  %v6419 = vadd.f32 %v6410, %v3973
  %v6420 = vmax.f32 %v6411, 0.0
  %v6421 = vmax.f32 %v6412, 0.0
  %v6422 = vmax.f32 %v6413, 0.0
  %v6423 = vmax.f32 %v6414, 0.0
  %v6424 = vmax.f32 %v6415, 0.0
  %v6425 = vmax.f32 %v6416, 0.0
  %v6426 = vmax.f32 %v6417, 0.0
  %v6427 = vmax.f32 %v6418, 0.0
  %v6428 = vmax.f32 %v6419, 0.0
  %v6429 = vpack.c.bf16 %v6420, %v6420
  %v6430 = vpack.c.bf16 %v6421, %v6421
  %v6431 = vpack.c.bf16 %v6422, %v6422
  %v6432 = vpack.c.bf16 %v6423, %v6423
  %v6433 = vpack.c.bf16 %v6424, %v6424
  %v6434 = vpack.c.bf16 %v6425, %v6425
  %v6435 = vpack.c.bf16 %v6426, %v6426
  %v6436 = vpack.c.bf16 %v6427, %v6427
  %v6437 = vpack.c.bf16 %v6428, %v6428
  %vm6438 = vcmask 125952
  %6439 = vst.msk [vmem:[%s10] sm:$0xf] %vm6438, %v6429
  %6440 = vst.msk [vmem:[%s10 + $0x4] sm:$0xf] %vm6438, %v6430
  %6441 = vst.msk [vmem:[%s10 + $0x8] sm:$0xf] %vm6438, %v6431
  %6442 = vst.msk [vmem:[%s10 + $0xc] sm:$0xf] %vm6438, %v6432
  %6443 = vst.msk [vmem:[%s10 + $0x10] sm:$0xf] %vm6438, %v6433
  %6444 = vst.msk [vmem:[%s10 + $0x14] sm:$0xf] %vm6438, %v6434
  %6445 = vst.msk [vmem:[%s10 + $0x18] sm:$0xf] %vm6438, %v6435
  %6446 = vst.msk [vmem:[%s10 + $0x1c] sm:$0xf] %vm6438, %v6436
  %6447 = vst.msk [vmem:[%s10 + $0x20] sm:$0xf] %vm6438, %v6437
  // Predicated region
  $region42: #{forward_value_head.2} parent=0 // pred_check
    _
  $region43: #{forward_value_head.2} parent=0 // pred_check_branch
    %6449 = sbr.rel (0) target = $region45
  $region44: #{forward_value_head.2} parent=0 // pred_region
    _
  $region45: #{forward_value_head.2} parent=0 // pred_fallthru
    _
  // Predicated region
  $region46: #{forward_value_head.2} parent=0 // pred_check
    _
  $region47: #{forward_value_head.2} parent=0 // pred_check_branch
    %6451 = sbr.rel (0) target = $region49
  $region48: #{forward_value_head.2} parent=0 // pred_region
    _
  $region49: #{forward_value_head.2} parent=0 // pred_fallthru
    _

</llo_original>
